<compile_context>
chip_gen: v7x
topology: tpu7x:2x2x1
jax: 0.10.0
libtpu: 0.0.40
codegen_flags: <defaults>
</compile_context>

<pallas_src>
import jax
import jax.numpy as jnp
from jax import lax
from jax.experimental import pallas as pl
from jax.experimental.pallas import tpu as pltpu

EPS = 1e-5
# bf16 operands at the MXU (f32 accumulation) per the perf review; set to
# jnp.float32 to recover ~1e-5 agreement with the reference.
MATMUL_DTYPE = jnp.bfloat16


def _make_kernel(N, H, W, Cin, Cmid, Cout, pad):
    """Builds the fused kernel; all shape parameters are static."""
    HW = H * W
    M = N * HW
    KW = 9  # 3x3 taps

    def kernel(x_ref, g1_ref, b1_ref, w1_ref, g2_ref, b2_ref, w2_ref,
               row_ref, col_ref, o_ref, q_scr):
        inv_m = 1.0 / float(M)

        # ---------------- BN1 batch statistics (mean / biased var) ----------
        sum1 = jnp.zeros((Cin, 1), jnp.float32)
        for n in range(N):
            sum1 = sum1 + jnp.sum(x_ref[n], axis=1, keepdims=True)
        mean1 = sum1 * inv_m
        ss1 = jnp.zeros((Cin, 1), jnp.float32)
        for n in range(N):
            d = x_ref[n] - mean1
            ss1 = ss1 + jnp.sum(d * d, axis=1, keepdims=True)
        var1 = ss1 * inv_m
        s1 = g1_ref[...] * lax.rsqrt(var1 + EPS)
        t1 = b1_ref[...] - mean1 * s1

        # ---------------- stage 1: BN1 + ReLU + 1x1 conv ---------------------
        w1 = w1_ref[...]                                   # (Cmid, Cin) bf16
        ys = []
        for n in range(N):
            a1 = jnp.maximum(x_ref[n] * s1 + t1, 0.0)      # (Cin, HW) f32
            ys.append(jnp.dot(w1, a1.astype(w1.dtype),
                              preferred_element_type=jnp.float32))  # (Cmid, HW)

        # ---------------- BN2 batch statistics over the VMEM-resident y ------
        sum2 = jnp.zeros((Cmid, 1), jnp.float32)
        for y in ys:
            sum2 = sum2 + jnp.sum(y, axis=1, keepdims=True)
        mean2 = sum2 * inv_m
        ss2 = jnp.zeros((Cmid, 1), jnp.float32)
        for y in ys:
            d = y - mean2
            ss2 = ss2 + jnp.sum(d * d, axis=1, keepdims=True)
        var2 = ss2 * inv_m
        s2 = g2_ref[...] * lax.rsqrt(var2 + EPS)
        t2 = b2_ref[...] - mean2 * s2

        # ---------------- stage 2: BN2 + ReLU + 3x3 conv (pad=1) -------------
        # Zero the lane margins once so out-of-range tap reads are exact zeros.
        w2 = w2_ref[...]                                   # (9*Cout, Cmid) bf16
        q_scr[:, 0:pad] = jnp.zeros((KW * Cout, pad), jnp.float32)
        q_scr[:, pad + M:pad + M + pad] = jnp.zeros((KW * Cout, pad), jnp.float32)
        for n in range(N):
            a2 = jnp.maximum(ys[n] * s2 + t2, 0.0)         # (Cmid, HW) f32
            q_scr[:, pad + n * HW:pad + (n + 1) * HW] = jnp.dot(
                w2, a2.astype(w2.dtype), preferred_element_type=jnp.float32)

        row = row_ref[...]                                 # (1, M) int32: h
        col = col_ref[...]                                 # (1, M) int32: w
        acc = jnp.zeros((Cout, M), jnp.float32)
        for kh in range(3):
            for kw in range(3):
                dh, dw = kh - 1, kw - 1
                t = kh * 3 + kw
                off = dh * W + dw
                # sh[:, m] = q_tap[:, m + off]; lanes whose source pixel falls
                # outside its own image are zeroed by the border mask below.
                sh = q_scr[t * Cout:(t + 1) * Cout, pad + off:pad + off + M]
                if dh == 0 and dw == 0:
                    acc = acc + sh
                else:
                    valid = ((row + dh >= 0) & (row + dh < H) &
                             (col + dw >= 0) & (col + dw < W))
                    acc = acc + sh * jnp.where(valid, 1.0, 0.0)

        # ---------------- lane-dense output store: (Cout, H*W) per image -----
        for n in range(N):
            o_ref[n] = acc[:, n * HW:(n + 1) * HW].astype(o_ref.dtype)

    return kernel


def forward(x_nchw, params):
    """Public interface: NCHW in, NCHW out (reshapes only, no transposes)."""
    g1, b1, w1, g2, b2, w2 = params
    N, Cin, H, W = x_nchw.shape
    Cmid = w1.shape[0]        # 192
    Cout = w2.shape[0]        # 48
    HW = H * W
    M = N * HW
    pad = pl.cdiv(W + 1, 128) * 128      # lane-aligned margin covering |off|<=W+1

    x3 = x_nchw.reshape(N, Cin, HW)                                     # free
    w1m = w1.reshape(Cmid, Cin).astype(MATMUL_DTYPE)                    # (192,144)
    # tap-major weight stack: row t*Cout+o is w2[o, :, kh, kw], t = kh*3+kw
    w2m = jnp.transpose(w2, (2, 3, 0, 1)).reshape(9 * Cout, Cmid).astype(MATMUL_DTYPE)
    g1c = g1.reshape(Cin, 1).astype(jnp.float32)
    b1c = b1.reshape(Cin, 1).astype(jnp.float32)
    g2c = g2.reshape(Cmid, 1).astype(jnp.float32)
    b2c = b2.reshape(Cmid, 1).astype(jnp.float32)
    # (h, w) coordinates of every pixel on the flattened (N*H*W) lane axis
    rid = jnp.tile(jnp.repeat(jnp.arange(H, dtype=jnp.int32), W), N).reshape(1, M)
    cid = jnp.tile(jnp.arange(W, dtype=jnp.int32), N * H).reshape(1, M)

    kernel = _make_kernel(N, H, W, Cin, Cmid, Cout, pad)

    def full(shape):
        return pl.BlockSpec(shape, lambda i: (0,) * len(shape))

    out3 = pl.pallas_call(
        kernel,
        out_shape=jax.ShapeDtypeStruct((N, Cout, HW), jnp.float32),
        grid_spec=pltpu.PrefetchScalarGridSpec(
            num_scalar_prefetch=0,
            grid=(1,),
            in_specs=[
                full((N, Cin, HW)),
                full((Cin, 1)), full((Cin, 1)),
                full((Cmid, Cin)),
                full((Cmid, 1)), full((Cmid, 1)),
                full((9 * Cout, Cmid)),
                full((1, M)), full((1, M)),
            ],
            out_specs=full((N, Cout, HW)),
            scratch_shapes=[pltpu.VMEM((9 * Cout, M + 2 * pad), jnp.float32)],
        ),
        compiler_params=pltpu.CompilerParams(
            dimension_semantics=("arbitrary",)),
    )(x3, g1c, b1c, w1m, g2c, b2c, w2m, rid, cid)

    return out3.reshape(N, Cout, H, W)


# ---------------------------------------------------------------------------
# Pure-JAX f32 reference (same semantics as the PyTorch module, training mode)
# ---------------------------------------------------------------------------
def reference(x_nchw, params):
    g1, b1, w1, g2, b2, w2 = params

    def bn_train(x, g, b):
        m = x.mean(axis=(0, 2, 3), keepdims=True)
        v = ((x - m) ** 2).mean(axis=(0, 2, 3), keepdims=True)
        return (x - m) / jnp.sqrt(v + EPS) * g.reshape(1, -1, 1, 1) + \
            b.reshape(1, -1, 1, 1)

    y = jnp.maximum(bn_train(x_nchw, g1, b1), 0.0)
    y = lax.conv_general_dilated(y, w1, (1, 1), 'VALID',
                                 dimension_numbers=('NCHW', 'OIHW', 'NCHW'))
    y = jnp.maximum(bn_train(y, g2, b2), 0.0)
    y = lax.conv_general_dilated(y, w2, (1, 1), ((1, 1), (1, 1)),
                                 dimension_numbers=('NCHW', 'OIHW', 'NCHW'))
    return y


if __name__ == "__main__":
    key = jax.random.PRNGKey(0)
    k_x, k_g1, k_b1, k_w1, k_g2, k_b2, k_w2 = jax.random.split(key, 7)

    # Channel counts are fixed by the module (144 -> 192 -> 48); small
    # batch / spatial dims for the test.
    N, C, H, W = 2, 144, 16, 16
    x = jax.random.normal(k_x, (N, C, H, W), jnp.float32)

    gamma1 = 1.0 + 0.1 * jax.random.normal(k_g1, (144,), jnp.float32)
    beta1 = 0.1 * jax.random.normal(k_b1, (144,), jnp.float32)
    w1 = 0.1 * jax.random.normal(k_w1, (192, 144, 1, 1), jnp.float32)   # OIHW
    gamma2 = 1.0 + 0.1 * jax.random.normal(k_g2, (192,), jnp.float32)
    beta2 = 0.1 * jax.random.normal(k_b2, (192,), jnp.float32)
    w2 = 0.1 * jax.random.normal(k_w2, (48, 192, 3, 3), jnp.float32)    # OIHW
    params = (gamma1, beta1, w1, gamma2, beta2, w2)

    out = jax.block_until_ready(jax.jit(forward)(x, params))
    ref = jax.block_until_ready(reference(x, params))

    assert out.shape == (N, 48, H, W), out.shape
    # bf16 MXU operands (f32 accumulation) over the K=144 and K=9*192
    # contractions give a few 1e-2 worst-case absolute error on outputs of
    # magnitude O(3); all statistics / elementwise math are exact f32.
    # Set MATMUL_DTYPE = jnp.float32 for ~1e-5 agreement.
    err = float(jnp.max(jnp.abs(out - ref)))
    assert jnp.allclose(out, ref, atol=5e-2, rtol=5e-2), err
    print("KERNEL_OK")
</pallas_src>

<mosaic_0001>
module attributes {stable_mosaic.version = 11 : i64} {
  func.func @kernel(%arg0: i32, %arg1: memref<2x144x256xf32, #tpu.memory_space<vmem>>, %arg2: memref<144x1xf32, #tpu.memory_space<vmem>>, %arg3: memref<144x1xf32, #tpu.memory_space<vmem>>, %arg4: memref<192x144xbf16, #tpu.memory_space<vmem>>, %arg5: memref<192x1xf32, #tpu.memory_space<vmem>>, %arg6: memref<192x1xf32, #tpu.memory_space<vmem>>, %arg7: memref<432x192xbf16, #tpu.memory_space<vmem>>, %arg8: memref<1x512xi32, #tpu.memory_space<vmem>>, %arg9: memref<1x512xi32, #tpu.memory_space<vmem>>, %arg10: memref<2x48x256xf32, #tpu.memory_space<vmem>>, %arg11: memref<432x768xf32, #tpu.memory_space<vmem>>) attributes {dimension_semantics = [#tpu.dimension_semantics<arbitrary>], iteration_bounds = array<i64: 1>, scalar_prefetch = 0 : i64, scratch_operands = 1 : i64, tpu.core_type = #tpu.core_type<tc>, window_params = [{pipeline_mode = #tpu.pipeline_mode<synchronous>, transform_indices = @transform_0, window_bounds = array<i64: 2, 144, 256>}, {pipeline_mode = #tpu.pipeline_mode<synchronous>, transform_indices = @transform_1, window_bounds = array<i64: 144, 1>}, {pipeline_mode = #tpu.pipeline_mode<synchronous>, transform_indices = @transform_2, window_bounds = array<i64: 144, 1>}, {pipeline_mode = #tpu.pipeline_mode<synchronous>, transform_indices = @transform_3, window_bounds = array<i64: 192, 144>}, {pipeline_mode = #tpu.pipeline_mode<synchronous>, transform_indices = @transform_4, window_bounds = array<i64: 192, 1>}, {pipeline_mode = #tpu.pipeline_mode<synchronous>, transform_indices = @transform_5, window_bounds = array<i64: 192, 1>}, {pipeline_mode = #tpu.pipeline_mode<synchronous>, transform_indices = @transform_6, window_bounds = array<i64: 432, 192>}, {pipeline_mode = #tpu.pipeline_mode<synchronous>, transform_indices = @transform_7, window_bounds = array<i64: 1, 512>}, {pipeline_mode = #tpu.pipeline_mode<synchronous>, transform_indices = @transform_8, window_bounds = array<i64: 1, 512>}, {pipeline_mode = #tpu.pipeline_mode<synchronous>, transform_indices = @transform_9, window_bounds = array<i64: 2, 48, 256>}]} {
    %cst = arith.constant 0.000000e+00 : f32
    %0 = vector.broadcast %cst : f32 to vector<144x1xf32>
    %c0 = arith.constant 0 : index
    %c0_0 = arith.constant 0 : index
    %c0_1 = arith.constant 0 : index
    %1 = vector.load %arg1[%c0, %c0_0, %c0_1] : memref<2x144x256xf32, #tpu.memory_space<vmem>>, vector<1x144x256xf32>
    %2 = vector.shape_cast %1 : vector<1x144x256xf32> to vector<144x256xf32>
    %cst_2 = arith.constant dense<0.000000e+00> : vector<144xf32>
    %3 = vector.multi_reduction <add>, %2, %cst_2 [1] : vector<144x256xf32> to vector<144xf32>
    %4 = vector.shape_cast %3 : vector<144xf32> to vector<144x1xf32>
    %5 = arith.addf %0, %4 : vector<144x1xf32>
    %c1 = arith.constant 1 : index
    %c0_3 = arith.constant 0 : index
    %c0_4 = arith.constant 0 : index
    %6 = vector.load %arg1[%c1, %c0_3, %c0_4] : memref<2x144x256xf32, #tpu.memory_space<vmem>>, vector<1x144x256xf32>
    %7 = vector.shape_cast %6 : vector<1x144x256xf32> to vector<144x256xf32>
    %cst_5 = arith.constant dense<0.000000e+00> : vector<144xf32>
    %8 = vector.multi_reduction <add>, %7, %cst_5 [1] : vector<144x256xf32> to vector<144xf32>
    %9 = vector.shape_cast %8 : vector<144xf32> to vector<144x1xf32>
    %10 = arith.addf %5, %9 : vector<144x1xf32>
    %cst_6 = arith.constant 0.001953125 : f32
    %11 = vector.broadcast %cst_6 : f32 to vector<144x1xf32>
    %12 = arith.mulf %10, %11 : vector<144x1xf32>
    %cst_7 = arith.constant 0.000000e+00 : f32
    %13 = vector.broadcast %cst_7 : f32 to vector<144x1xf32>
    %c0_8 = arith.constant 0 : index
    %c0_9 = arith.constant 0 : index
    %c0_10 = arith.constant 0 : index
    %14 = vector.load %arg1[%c0_8, %c0_9, %c0_10] : memref<2x144x256xf32, #tpu.memory_space<vmem>>, vector<1x144x256xf32>
    %15 = vector.shape_cast %14 : vector<1x144x256xf32> to vector<144x256xf32>
    %16 = vector.broadcast %12 : vector<144x1xf32> to vector<144x256xf32>
    %17 = arith.subf %15, %16 : vector<144x256xf32>
    %18 = arith.mulf %17, %17 : vector<144x256xf32>
    %cst_11 = arith.constant dense<0.000000e+00> : vector<144xf32>
    %19 = vector.multi_reduction <add>, %18, %cst_11 [1] : vector<144x256xf32> to vector<144xf32>
    %20 = vector.shape_cast %19 : vector<144xf32> to vector<144x1xf32>
    %21 = arith.addf %13, %20 : vector<144x1xf32>
    %c1_12 = arith.constant 1 : index
    %c0_13 = arith.constant 0 : index
    %c0_14 = arith.constant 0 : index
    %22 = vector.load %arg1[%c1_12, %c0_13, %c0_14] : memref<2x144x256xf32, #tpu.memory_space<vmem>>, vector<1x144x256xf32>
    %23 = vector.shape_cast %22 : vector<1x144x256xf32> to vector<144x256xf32>
    %24 = vector.broadcast %12 : vector<144x1xf32> to vector<144x256xf32>
    %25 = arith.subf %23, %24 : vector<144x256xf32>
    %26 = arith.mulf %25, %25 : vector<144x256xf32>
    %cst_15 = arith.constant dense<0.000000e+00> : vector<144xf32>
    %27 = vector.multi_reduction <add>, %26, %cst_15 [1] : vector<144x256xf32> to vector<144xf32>
    %28 = vector.shape_cast %27 : vector<144xf32> to vector<144x1xf32>
    %29 = arith.addf %21, %28 : vector<144x1xf32>
    %cst_16 = arith.constant 0.001953125 : f32
    %30 = vector.broadcast %cst_16 : f32 to vector<144x1xf32>
    %31 = arith.mulf %29, %30 : vector<144x1xf32>
    %c0_17 = arith.constant 0 : index
    %c0_18 = arith.constant 0 : index
    %32 = vector.load %arg2[%c0_17, %c0_18] : memref<144x1xf32, #tpu.memory_space<vmem>>, vector<144x1xf32>
    %cst_19 = arith.constant 9.99999974E-6 : f32
    %33 = vector.broadcast %cst_19 : f32 to vector<144x1xf32>
    %34 = arith.addf %31, %33 : vector<144x1xf32>
    %35 = math.rsqrt %34 : vector<144x1xf32>
    %36 = arith.mulf %32, %35 : vector<144x1xf32>
    %c0_20 = arith.constant 0 : index
    %c0_21 = arith.constant 0 : index
    %37 = vector.load %arg3[%c0_20, %c0_21] : memref<144x1xf32, #tpu.memory_space<vmem>>, vector<144x1xf32>
    %38 = arith.mulf %12, %36 : vector<144x1xf32>
    %39 = arith.subf %37, %38 : vector<144x1xf32>
    %c0_22 = arith.constant 0 : index
    %c0_23 = arith.constant 0 : index
    %40 = vector.load %arg4[%c0_22, %c0_23] : memref<192x144xbf16, #tpu.memory_space<vmem>>, vector<192x144xbf16>
    %c0_24 = arith.constant 0 : index
    %c0_25 = arith.constant 0 : index
    %c0_26 = arith.constant 0 : index
    %41 = vector.load %arg1[%c0_24, %c0_25, %c0_26] : memref<2x144x256xf32, #tpu.memory_space<vmem>>, vector<1x144x256xf32>
    %42 = vector.shape_cast %41 : vector<1x144x256xf32> to vector<144x256xf32>
    %43 = vector.broadcast %36 : vector<144x1xf32> to vector<144x256xf32>
    %44 = arith.mulf %42, %43 : vector<144x256xf32>
    %45 = vector.broadcast %39 : vector<144x1xf32> to vector<144x256xf32>
    %46 = arith.addf %44, %45 : vector<144x256xf32>
    %cst_27 = arith.constant 0.000000e+00 : f32
    %47 = vector.broadcast %cst_27 : f32 to vector<144x256xf32>
    %48 = arith.maximumf %46, %47 : vector<144x256xf32>
    %49 = arith.truncf %48 : vector<144x256xf32> to vector<144x256xbf16>
    %cst_28 = arith.constant dense<0.000000e+00> : vector<192x256xf32>
    %50 = tpu.matmul %40, %49, %cst_28 {dimension_numbers = #tpu.dot_dimension_numbers<[1], [0], [0], [1], [0, 0, 1, 1], [], []>} : vector<192x144xbf16>, vector<144x256xbf16>, vector<192x256xf32> -> vector<192x256xf32>
    %c1_29 = arith.constant 1 : index
    %c0_30 = arith.constant 0 : index
    %c0_31 = arith.constant 0 : index
    %51 = vector.load %arg1[%c1_29, %c0_30, %c0_31] : memref<2x144x256xf32, #tpu.memory_space<vmem>>, vector<1x144x256xf32>
    %52 = vector.shape_cast %51 : vector<1x144x256xf32> to vector<144x256xf32>
    %53 = vector.broadcast %36 : vector<144x1xf32> to vector<144x256xf32>
    %54 = arith.mulf %52, %53 : vector<144x256xf32>
    %55 = vector.broadcast %39 : vector<144x1xf32> to vector<144x256xf32>
    %56 = arith.addf %54, %55 : vector<144x256xf32>
    %cst_32 = arith.constant 0.000000e+00 : f32
    %57 = vector.broadcast %cst_32 : f32 to vector<144x256xf32>
    %58 = arith.maximumf %56, %57 : vector<144x256xf32>
    %59 = arith.truncf %58 : vector<144x256xf32> to vector<144x256xbf16>
    %cst_33 = arith.constant dense<0.000000e+00> : vector<192x256xf32>
    %60 = tpu.matmul %40, %59, %cst_33 {dimension_numbers = #tpu.dot_dimension_numbers<[1], [0], [0], [1], [0, 0, 1, 1], [], []>} : vector<192x144xbf16>, vector<144x256xbf16>, vector<192x256xf32> -> vector<192x256xf32>
    %cst_34 = arith.constant 0.000000e+00 : f32
    %61 = vector.broadcast %cst_34 : f32 to vector<192x1xf32>
    %cst_35 = arith.constant dense<0.000000e+00> : vector<192xf32>
    %62 = vector.multi_reduction <add>, %50, %cst_35 [1] : vector<192x256xf32> to vector<192xf32>
    %63 = vector.shape_cast %62 : vector<192xf32> to vector<192x1xf32>
    %64 = arith.addf %61, %63 : vector<192x1xf32>
    %cst_36 = arith.constant dense<0.000000e+00> : vector<192xf32>
    %65 = vector.multi_reduction <add>, %60, %cst_36 [1] : vector<192x256xf32> to vector<192xf32>
    %66 = vector.shape_cast %65 : vector<192xf32> to vector<192x1xf32>
    %67 = arith.addf %64, %66 : vector<192x1xf32>
    %cst_37 = arith.constant 0.001953125 : f32
    %68 = vector.broadcast %cst_37 : f32 to vector<192x1xf32>
    %69 = arith.mulf %67, %68 : vector<192x1xf32>
    %cst_38 = arith.constant 0.000000e+00 : f32
    %70 = vector.broadcast %cst_38 : f32 to vector<192x1xf32>
    %71 = vector.broadcast %69 : vector<192x1xf32> to vector<192x256xf32>
    %72 = arith.subf %50, %71 : vector<192x256xf32>
    %73 = arith.mulf %72, %72 : vector<192x256xf32>
    %cst_39 = arith.constant dense<0.000000e+00> : vector<192xf32>
    %74 = vector.multi_reduction <add>, %73, %cst_39 [1] : vector<192x256xf32> to vector<192xf32>
    %75 = vector.shape_cast %74 : vector<192xf32> to vector<192x1xf32>
    %76 = arith.addf %70, %75 : vector<192x1xf32>
    %77 = vector.broadcast %69 : vector<192x1xf32> to vector<192x256xf32>
    %78 = arith.subf %60, %77 : vector<192x256xf32>
    %79 = arith.mulf %78, %78 : vector<192x256xf32>
    %cst_40 = arith.constant dense<0.000000e+00> : vector<192xf32>
    %80 = vector.multi_reduction <add>, %79, %cst_40 [1] : vector<192x256xf32> to vector<192xf32>
    %81 = vector.shape_cast %80 : vector<192xf32> to vector<192x1xf32>
    %82 = arith.addf %76, %81 : vector<192x1xf32>
    %cst_41 = arith.constant 0.001953125 : f32
    %83 = vector.broadcast %cst_41 : f32 to vector<192x1xf32>
    %84 = arith.mulf %82, %83 : vector<192x1xf32>
    %c0_42 = arith.constant 0 : index
    %c0_43 = arith.constant 0 : index
    %85 = vector.load %arg5[%c0_42, %c0_43] : memref<192x1xf32, #tpu.memory_space<vmem>>, vector<192x1xf32>
    %cst_44 = arith.constant 9.99999974E-6 : f32
    %86 = vector.broadcast %cst_44 : f32 to vector<192x1xf32>
    %87 = arith.addf %84, %86 : vector<192x1xf32>
    %88 = math.rsqrt %87 : vector<192x1xf32>
    %89 = arith.mulf %85, %88 : vector<192x1xf32>
    %c0_45 = arith.constant 0 : index
    %c0_46 = arith.constant 0 : index
    %90 = vector.load %arg6[%c0_45, %c0_46] : memref<192x1xf32, #tpu.memory_space<vmem>>, vector<192x1xf32>
    %91 = arith.mulf %69, %89 : vector<192x1xf32>
    %92 = arith.subf %90, %91 : vector<192x1xf32>
    %c0_47 = arith.constant 0 : index
    %c0_48 = arith.constant 0 : index
    %93 = vector.load %arg7[%c0_47, %c0_48] : memref<432x192xbf16, #tpu.memory_space<vmem>>, vector<432x192xbf16>
    %cst_49 = arith.constant 0.000000e+00 : f32
    %94 = vector.broadcast %cst_49 : f32 to vector<432x128xf32>
    %c0_50 = arith.constant 0 : index
    %c0_51 = arith.constant 0 : index
    %95 = vector.load %arg11[%c0_50, %c0_51] : memref<432x768xf32, #tpu.memory_space<vmem>>, vector<432x128xf32>
    tpu.vector_store %arg11[%c0_50, %c0_51], %94 {strides = array<i32>} : memref<432x768xf32, #tpu.memory_space<vmem>>, vector<432x128xf32>,
    %cst_52 = arith.constant 0.000000e+00 : f32
    %96 = vector.broadcast %cst_52 : f32 to vector<432x128xf32>
    %c0_53 = arith.constant 0 : index
    %c640 = arith.constant 640 : index
    %97 = vector.load %arg11[%c0_53, %c640] : memref<432x768xf32, #tpu.memory_space<vmem>>, vector<432x128xf32>
    tpu.vector_store %arg11[%c0_53, %c640], %96 {strides = array<i32>} : memref<432x768xf32, #tpu.memory_space<vmem>>, vector<432x128xf32>,
    %98 = vector.broadcast %89 : vector<192x1xf32> to vector<192x256xf32>
    %99 = arith.mulf %50, %98 : vector<192x256xf32>
    %100 = vector.broadcast %92 : vector<192x1xf32> to vector<192x256xf32>
    %101 = arith.addf %99, %100 : vector<192x256xf32>
    %cst_54 = arith.constant 0.000000e+00 : f32
    %102 = vector.broadcast %cst_54 : f32 to vector<192x256xf32>
    %103 = arith.maximumf %101, %102 : vector<192x256xf32>
    %104 = arith.truncf %103 : vector<192x256xf32> to vector<192x256xbf16>
    %cst_55 = arith.constant dense<0.000000e+00> : vector<432x256xf32>
    %105 = tpu.matmul %93, %104, %cst_55 {dimension_numbers = #tpu.dot_dimension_numbers<[1], [0], [0], [1], [0, 0, 1, 1], [], []>} : vector<432x192xbf16>, vector<192x256xbf16>, vector<432x256xf32> -> vector<432x256xf32>
    %c0_56 = arith.constant 0 : index
    %c128 = arith.constant 128 : index
    %106 = vector.load %arg11[%c0_56, %c128] : memref<432x768xf32, #tpu.memory_space<vmem>>, vector<432x256xf32>
    tpu.vector_store %arg11[%c0_56, %c128], %105 {strides = array<i32>} : memref<432x768xf32, #tpu.memory_space<vmem>>, vector<432x256xf32>,
    %107 = vector.broadcast %89 : vector<192x1xf32> to vector<192x256xf32>
    %108 = arith.mulf %60, %107 : vector<192x256xf32>
    %109 = vector.broadcast %92 : vector<192x1xf32> to vector<192x256xf32>
    %110 = arith.addf %108, %109 : vector<192x256xf32>
    %cst_57 = arith.constant 0.000000e+00 : f32
    %111 = vector.broadcast %cst_57 : f32 to vector<192x256xf32>
    %112 = arith.maximumf %110, %111 : vector<192x256xf32>
    %113 = arith.truncf %112 : vector<192x256xf32> to vector<192x256xbf16>
    %cst_58 = arith.constant dense<0.000000e+00> : vector<432x256xf32>
    %114 = tpu.matmul %93, %113, %cst_58 {dimension_numbers = #tpu.dot_dimension_numbers<[1], [0], [0], [1], [0, 0, 1, 1], [], []>} : vector<432x192xbf16>, vector<192x256xbf16>, vector<432x256xf32> -> vector<432x256xf32>
    %c0_59 = arith.constant 0 : index
    %c384 = arith.constant 384 : index
    %115 = vector.load %arg11[%c0_59, %c384] : memref<432x768xf32, #tpu.memory_space<vmem>>, vector<432x256xf32>
    tpu.vector_store %arg11[%c0_59, %c384], %114 {strides = array<i32>} : memref<432x768xf32, #tpu.memory_space<vmem>>, vector<432x256xf32>,
    %c0_60 = arith.constant 0 : index
    %c0_61 = arith.constant 0 : index
    %116 = vector.load %arg8[%c0_60, %c0_61] : memref<1x512xi32, #tpu.memory_space<vmem>>, vector<1x512xi32>
    %c0_62 = arith.constant 0 : index
    %c0_63 = arith.constant 0 : index
    %117 = vector.load %arg9[%c0_62, %c0_63] : memref<1x512xi32, #tpu.memory_space<vmem>>, vector<1x512xi32>
    %cst_64 = arith.constant 0.000000e+00 : f32
    %118 = vector.broadcast %cst_64 : f32 to vector<48x512xf32>
    %c0_65 = arith.constant 0 : index
    %c111 = arith.constant 111 : index
    %119 = vector.load %arg11[%c0_65, %c111] : memref<432x768xf32, #tpu.memory_space<vmem>>, vector<48x512xf32>
    %c-1_i32 = arith.constant -1 : i32
    %120 = vector.broadcast %c-1_i32 : i32 to vector<1x512xi32>
    %121 = arith.addi %116, %120 : vector<1x512xi32>
    %c0_i32 = arith.constant 0 : i32
    %122 = vector.broadcast %c0_i32 : i32 to vector<1x512xi32>
    %123 = arith.cmpi sge, %121, %122 : vector<1x512xi32>
    %c-1_i32_66 = arith.constant -1 : i32
    %124 = vector.broadcast %c-1_i32_66 : i32 to vector<1x512xi32>
    %125 = arith.addi %116, %124 : vector<1x512xi32>
    %c16_i32 = arith.constant 16 : i32
    %126 = vector.broadcast %c16_i32 : i32 to vector<1x512xi32>
    %127 = arith.cmpi slt, %125, %126 : vector<1x512xi32>
    %128 = arith.andi %123, %127 : vector<1x512xi1>
    %c-1_i32_67 = arith.constant -1 : i32
    %129 = vector.broadcast %c-1_i32_67 : i32 to vector<1x512xi32>
    %130 = arith.addi %117, %129 : vector<1x512xi32>
    %c0_i32_68 = arith.constant 0 : i32
    %131 = vector.broadcast %c0_i32_68 : i32 to vector<1x512xi32>
    %132 = arith.cmpi sge, %130, %131 : vector<1x512xi32>
    %133 = arith.andi %128, %132 : vector<1x512xi1>
    %c-1_i32_69 = arith.constant -1 : i32
    %134 = vector.broadcast %c-1_i32_69 : i32 to vector<1x512xi32>
    %135 = arith.addi %117, %134 : vector<1x512xi32>
    %c16_i32_70 = arith.constant 16 : i32
    %136 = vector.broadcast %c16_i32_70 : i32 to vector<1x512xi32>
    %137 = arith.cmpi slt, %135, %136 : vector<1x512xi32>
    %138 = arith.andi %133, %137 : vector<1x512xi1>
    %cst_71 = arith.constant 1.000000e+00 : f32
    %cst_72 = arith.constant 0.000000e+00 : f32
    %139 = vector.broadcast %cst_71 : f32 to vector<1x512xf32>
    %140 = vector.broadcast %cst_72 : f32 to vector<1x512xf32>
    %141 = arith.select %138, %139, %140 : vector<1x512xi1>, vector<1x512xf32>
    %142 = vector.broadcast %141 : vector<1x512xf32> to vector<48x512xf32>
    %143 = arith.mulf %119, %142 : vector<48x512xf32>
    %144 = arith.addf %118, %143 : vector<48x512xf32>
    %c48 = arith.constant 48 : index
    %c112 = arith.constant 112 : index
    %145 = vector.load %arg11[%c48, %c112] : memref<432x768xf32, #tpu.memory_space<vmem>>, vector<48x512xf32>
    %c-1_i32_73 = arith.constant -1 : i32
    %146 = vector.broadcast %c-1_i32_73 : i32 to vector<1x512xi32>
    %147 = arith.addi %116, %146 : vector<1x512xi32>
    %c0_i32_74 = arith.constant 0 : i32
    %148 = vector.broadcast %c0_i32_74 : i32 to vector<1x512xi32>
    %149 = arith.cmpi sge, %147, %148 : vector<1x512xi32>
    %c-1_i32_75 = arith.constant -1 : i32
    %150 = vector.broadcast %c-1_i32_75 : i32 to vector<1x512xi32>
    %151 = arith.addi %116, %150 : vector<1x512xi32>
    %c16_i32_76 = arith.constant 16 : i32
    %152 = vector.broadcast %c16_i32_76 : i32 to vector<1x512xi32>
    %153 = arith.cmpi slt, %151, %152 : vector<1x512xi32>
    %154 = arith.andi %149, %153 : vector<1x512xi1>
    %c0_i32_77 = arith.constant 0 : i32
    %155 = vector.broadcast %c0_i32_77 : i32 to vector<1x512xi32>
    %156 = arith.addi %117, %155 : vector<1x512xi32>
    %c0_i32_78 = arith.constant 0 : i32
    %157 = vector.broadcast %c0_i32_78 : i32 to vector<1x512xi32>
    %158 = arith.cmpi sge, %156, %157 : vector<1x512xi32>
    %159 = arith.andi %154, %158 : vector<1x512xi1>
    %c0_i32_79 = arith.constant 0 : i32
    %160 = vector.broadcast %c0_i32_79 : i32 to vector<1x512xi32>
    %161 = arith.addi %117, %160 : vector<1x512xi32>
    %c16_i32_80 = arith.constant 16 : i32
    %162 = vector.broadcast %c16_i32_80 : i32 to vector<1x512xi32>
    %163 = arith.cmpi slt, %161, %162 : vector<1x512xi32>
    %164 = arith.andi %159, %163 : vector<1x512xi1>
    %cst_81 = arith.constant 1.000000e+00 : f32
    %cst_82 = arith.constant 0.000000e+00 : f32
    %165 = vector.broadcast %cst_81 : f32 to vector<1x512xf32>
    %166 = vector.broadcast %cst_82 : f32 to vector<1x512xf32>
    %167 = arith.select %164, %165, %166 : vector<1x512xi1>, vector<1x512xf32>
    %168 = vector.broadcast %167 : vector<1x512xf32> to vector<48x512xf32>
    %169 = arith.mulf %145, %168 : vector<48x512xf32>
    %170 = arith.addf %144, %169 : vector<48x512xf32>
    %c96 = arith.constant 96 : index
    %c113 = arith.constant 113 : index
    %171 = vector.load %arg11[%c96, %c113] : memref<432x768xf32, #tpu.memory_space<vmem>>, vector<48x512xf32>
    %c-1_i32_83 = arith.constant -1 : i32
    %172 = vector.broadcast %c-1_i32_83 : i32 to vector<1x512xi32>
    %173 = arith.addi %116, %172 : vector<1x512xi32>
    %c0_i32_84 = arith.constant 0 : i32
    %174 = vector.broadcast %c0_i32_84 : i32 to vector<1x512xi32>
    %175 = arith.cmpi sge, %173, %174 : vector<1x512xi32>
    %c-1_i32_85 = arith.constant -1 : i32
    %176 = vector.broadcast %c-1_i32_85 : i32 to vector<1x512xi32>
    %177 = arith.addi %116, %176 : vector<1x512xi32>
    %c16_i32_86 = arith.constant 16 : i32
    %178 = vector.broadcast %c16_i32_86 : i32 to vector<1x512xi32>
    %179 = arith.cmpi slt, %177, %178 : vector<1x512xi32>
    %180 = arith.andi %175, %179 : vector<1x512xi1>
    %c1_i32 = arith.constant 1 : i32
    %181 = vector.broadcast %c1_i32 : i32 to vector<1x512xi32>
    %182 = arith.addi %117, %181 : vector<1x512xi32>
    %c0_i32_87 = arith.constant 0 : i32
    %183 = vector.broadcast %c0_i32_87 : i32 to vector<1x512xi32>
    %184 = arith.cmpi sge, %182, %183 : vector<1x512xi32>
    %185 = arith.andi %180, %184 : vector<1x512xi1>
    %c1_i32_88 = arith.constant 1 : i32
    %186 = vector.broadcast %c1_i32_88 : i32 to vector<1x512xi32>
    %187 = arith.addi %117, %186 : vector<1x512xi32>
    %c16_i32_89 = arith.constant 16 : i32
    %188 = vector.broadcast %c16_i32_89 : i32 to vector<1x512xi32>
    %189 = arith.cmpi slt, %187, %188 : vector<1x512xi32>
    %190 = arith.andi %185, %189 : vector<1x512xi1>
    %cst_90 = arith.constant 1.000000e+00 : f32
    %cst_91 = arith.constant 0.000000e+00 : f32
    %191 = vector.broadcast %cst_90 : f32 to vector<1x512xf32>
    %192 = vector.broadcast %cst_91 : f32 to vector<1x512xf32>
    %193 = arith.select %190, %191, %192 : vector<1x512xi1>, vector<1x512xf32>
    %194 = vector.broadcast %193 : vector<1x512xf32> to vector<48x512xf32>
    %195 = arith.mulf %171, %194 : vector<48x512xf32>
    %196 = arith.addf %170, %195 : vector<48x512xf32>
    %c144 = arith.constant 144 : index
    %c127 = arith.constant 127 : index
    %197 = vector.load %arg11[%c144, %c127] : memref<432x768xf32, #tpu.memory_space<vmem>>, vector<48x512xf32>
    %c0_i32_92 = arith.constant 0 : i32
    %198 = vector.broadcast %c0_i32_92 : i32 to vector<1x512xi32>
    %199 = arith.addi %116, %198 : vector<1x512xi32>
    %c0_i32_93 = arith.constant 0 : i32
    %200 = vector.broadcast %c0_i32_93 : i32 to vector<1x512xi32>
    %201 = arith.cmpi sge, %199, %200 : vector<1x512xi32>
    %c0_i32_94 = arith.constant 0 : i32
    %202 = vector.broadcast %c0_i32_94 : i32 to vector<1x512xi32>
    %203 = arith.addi %116, %202 : vector<1x512xi32>
    %c16_i32_95 = arith.constant 16 : i32
    %204 = vector.broadcast %c16_i32_95 : i32 to vector<1x512xi32>
    %205 = arith.cmpi slt, %203, %204 : vector<1x512xi32>
    %206 = arith.andi %201, %205 : vector<1x512xi1>
    %c-1_i32_96 = arith.constant -1 : i32
    %207 = vector.broadcast %c-1_i32_96 : i32 to vector<1x512xi32>
    %208 = arith.addi %117, %207 : vector<1x512xi32>
    %c0_i32_97 = arith.constant 0 : i32
    %209 = vector.broadcast %c0_i32_97 : i32 to vector<1x512xi32>
    %210 = arith.cmpi sge, %208, %209 : vector<1x512xi32>
    %211 = arith.andi %206, %210 : vector<1x512xi1>
    %c-1_i32_98 = arith.constant -1 : i32
    %212 = vector.broadcast %c-1_i32_98 : i32 to vector<1x512xi32>
    %213 = arith.addi %117, %212 : vector<1x512xi32>
    %c16_i32_99 = arith.constant 16 : i32
    %214 = vector.broadcast %c16_i32_99 : i32 to vector<1x512xi32>
    %215 = arith.cmpi slt, %213, %214 : vector<1x512xi32>
    %216 = arith.andi %211, %215 : vector<1x512xi1>
    %cst_100 = arith.constant 1.000000e+00 : f32
    %cst_101 = arith.constant 0.000000e+00 : f32
    %217 = vector.broadcast %cst_100 : f32 to vector<1x512xf32>
    %218 = vector.broadcast %cst_101 : f32 to vector<1x512xf32>
    %219 = arith.select %216, %217, %218 : vector<1x512xi1>, vector<1x512xf32>
    %220 = vector.broadcast %219 : vector<1x512xf32> to vector<48x512xf32>
    %221 = arith.mulf %197, %220 : vector<48x512xf32>
    %222 = arith.addf %196, %221 : vector<48x512xf32>
    %c192 = arith.constant 192 : index
    %c128_102 = arith.constant 128 : index
    %223 = vector.load %arg11[%c192, %c128_102] : memref<432x768xf32, #tpu.memory_space<vmem>>, vector<48x512xf32>
    %224 = arith.addf %222, %223 : vector<48x512xf32>
    %c240 = arith.constant 240 : index
    %c129 = arith.constant 129 : index
    %225 = vector.load %arg11[%c240, %c129] : memref<432x768xf32, #tpu.memory_space<vmem>>, vector<48x512xf32>
    %c0_i32_103 = arith.constant 0 : i32
    %226 = vector.broadcast %c0_i32_103 : i32 to vector<1x512xi32>
    %227 = arith.addi %116, %226 : vector<1x512xi32>
    %c0_i32_104 = arith.constant 0 : i32
    %228 = vector.broadcast %c0_i32_104 : i32 to vector<1x512xi32>
    %229 = arith.cmpi sge, %227, %228 : vector<1x512xi32>
    %c0_i32_105 = arith.constant 0 : i32
    %230 = vector.broadcast %c0_i32_105 : i32 to vector<1x512xi32>
    %231 = arith.addi %116, %230 : vector<1x512xi32>
    %c16_i32_106 = arith.constant 16 : i32
    %232 = vector.broadcast %c16_i32_106 : i32 to vector<1x512xi32>
    %233 = arith.cmpi slt, %231, %232 : vector<1x512xi32>
    %234 = arith.andi %229, %233 : vector<1x512xi1>
    %c1_i32_107 = arith.constant 1 : i32
    %235 = vector.broadcast %c1_i32_107 : i32 to vector<1x512xi32>
    %236 = arith.addi %117, %235 : vector<1x512xi32>
    %c0_i32_108 = arith.constant 0 : i32
    %237 = vector.broadcast %c0_i32_108 : i32 to vector<1x512xi32>
    %238 = arith.cmpi sge, %236, %237 : vector<1x512xi32>
    %239 = arith.andi %234, %238 : vector<1x512xi1>
    %c1_i32_109 = arith.constant 1 : i32
    %240 = vector.broadcast %c1_i32_109 : i32 to vector<1x512xi32>
    %241 = arith.addi %117, %240 : vector<1x512xi32>
    %c16_i32_110 = arith.constant 16 : i32
    %242 = vector.broadcast %c16_i32_110 : i32 to vector<1x512xi32>
    %243 = arith.cmpi slt, %241, %242 : vector<1x512xi32>
    %244 = arith.andi %239, %243 : vector<1x512xi1>
    %cst_111 = arith.constant 1.000000e+00 : f32
    %cst_112 = arith.constant 0.000000e+00 : f32
    %245 = vector.broadcast %cst_111 : f32 to vector<1x512xf32>
    %246 = vector.broadcast %cst_112 : f32 to vector<1x512xf32>
    %247 = arith.select %244, %245, %246 : vector<1x512xi1>, vector<1x512xf32>
    %248 = vector.broadcast %247 : vector<1x512xf32> to vector<48x512xf32>
    %249 = arith.mulf %225, %248 : vector<48x512xf32>
    %250 = arith.addf %224, %249 : vector<48x512xf32>
    %c288 = arith.constant 288 : index
    %c143 = arith.constant 143 : index
    %251 = vector.load %arg11[%c288, %c143] : memref<432x768xf32, #tpu.memory_space<vmem>>, vector<48x512xf32>
    %c1_i32_113 = arith.constant 1 : i32
    %252 = vector.broadcast %c1_i32_113 : i32 to vector<1x512xi32>
    %253 = arith.addi %116, %252 : vector<1x512xi32>
    %c0_i32_114 = arith.constant 0 : i32
    %254 = vector.broadcast %c0_i32_114 : i32 to vector<1x512xi32>
    %255 = arith.cmpi sge, %253, %254 : vector<1x512xi32>
    %c1_i32_115 = arith.constant 1 : i32
    %256 = vector.broadcast %c1_i32_115 : i32 to vector<1x512xi32>
    %257 = arith.addi %116, %256 : vector<1x512xi32>
    %c16_i32_116 = arith.constant 16 : i32
    %258 = vector.broadcast %c16_i32_116 : i32 to vector<1x512xi32>
    %259 = arith.cmpi slt, %257, %258 : vector<1x512xi32>
    %260 = arith.andi %255, %259 : vector<1x512xi1>
    %c-1_i32_117 = arith.constant -1 : i32
    %261 = vector.broadcast %c-1_i32_117 : i32 to vector<1x512xi32>
    %262 = arith.addi %117, %261 : vector<1x512xi32>
    %c0_i32_118 = arith.constant 0 : i32
    %263 = vector.broadcast %c0_i32_118 : i32 to vector<1x512xi32>
    %264 = arith.cmpi sge, %262, %263 : vector<1x512xi32>
    %265 = arith.andi %260, %264 : vector<1x512xi1>
    %c-1_i32_119 = arith.constant -1 : i32
    %266 = vector.broadcast %c-1_i32_119 : i32 to vector<1x512xi32>
    %267 = arith.addi %117, %266 : vector<1x512xi32>
    %c16_i32_120 = arith.constant 16 : i32
    %268 = vector.broadcast %c16_i32_120 : i32 to vector<1x512xi32>
    %269 = arith.cmpi slt, %267, %268 : vector<1x512xi32>
    %270 = arith.andi %265, %269 : vector<1x512xi1>
    %cst_121 = arith.constant 1.000000e+00 : f32
    %cst_122 = arith.constant 0.000000e+00 : f32
    %271 = vector.broadcast %cst_121 : f32 to vector<1x512xf32>
    %272 = vector.broadcast %cst_122 : f32 to vector<1x512xf32>
    %273 = arith.select %270, %271, %272 : vector<1x512xi1>, vector<1x512xf32>
    %274 = vector.broadcast %273 : vector<1x512xf32> to vector<48x512xf32>
    %275 = arith.mulf %251, %274 : vector<48x512xf32>
    %276 = arith.addf %250, %275 : vector<48x512xf32>
    %c336 = arith.constant 336 : index
    %c144_123 = arith.constant 144 : index
    %277 = vector.load %arg11[%c336, %c144_123] : memref<432x768xf32, #tpu.memory_space<vmem>>, vector<48x512xf32>
    %c1_i32_124 = arith.constant 1 : i32
    %278 = vector.broadcast %c1_i32_124 : i32 to vector<1x512xi32>
    %279 = arith.addi %116, %278 : vector<1x512xi32>
    %c0_i32_125 = arith.constant 0 : i32
    %280 = vector.broadcast %c0_i32_125 : i32 to vector<1x512xi32>
    %281 = arith.cmpi sge, %279, %280 : vector<1x512xi32>
    %c1_i32_126 = arith.constant 1 : i32
    %282 = vector.broadcast %c1_i32_126 : i32 to vector<1x512xi32>
    %283 = arith.addi %116, %282 : vector<1x512xi32>
    %c16_i32_127 = arith.constant 16 : i32
    %284 = vector.broadcast %c16_i32_127 : i32 to vector<1x512xi32>
    %285 = arith.cmpi slt, %283, %284 : vector<1x512xi32>
    %286 = arith.andi %281, %285 : vector<1x512xi1>
    %c0_i32_128 = arith.constant 0 : i32
    %287 = vector.broadcast %c0_i32_128 : i32 to vector<1x512xi32>
    %288 = arith.addi %117, %287 : vector<1x512xi32>
    %c0_i32_129 = arith.constant 0 : i32
    %289 = vector.broadcast %c0_i32_129 : i32 to vector<1x512xi32>
    %290 = arith.cmpi sge, %288, %289 : vector<1x512xi32>
    %291 = arith.andi %286, %290 : vector<1x512xi1>
    %c0_i32_130 = arith.constant 0 : i32
    %292 = vector.broadcast %c0_i32_130 : i32 to vector<1x512xi32>
    %293 = arith.addi %117, %292 : vector<1x512xi32>
    %c16_i32_131 = arith.constant 16 : i32
    %294 = vector.broadcast %c16_i32_131 : i32 to vector<1x512xi32>
    %295 = arith.cmpi slt, %293, %294 : vector<1x512xi32>
    %296 = arith.andi %291, %295 : vector<1x512xi1>
    %cst_132 = arith.constant 1.000000e+00 : f32
    %cst_133 = arith.constant 0.000000e+00 : f32
    %297 = vector.broadcast %cst_132 : f32 to vector<1x512xf32>
    %298 = vector.broadcast %cst_133 : f32 to vector<1x512xf32>
    %299 = arith.select %296, %297, %298 : vector<1x512xi1>, vector<1x512xf32>
    %300 = vector.broadcast %299 : vector<1x512xf32> to vector<48x512xf32>
    %301 = arith.mulf %277, %300 : vector<48x512xf32>
    %302 = arith.addf %276, %301 : vector<48x512xf32>
    %c384_134 = arith.constant 384 : index
    %c145 = arith.constant 145 : index
    %303 = vector.load %arg11[%c384_134, %c145] : memref<432x768xf32, #tpu.memory_space<vmem>>, vector<48x512xf32>
    %c1_i32_135 = arith.constant 1 : i32
    %304 = vector.broadcast %c1_i32_135 : i32 to vector<1x512xi32>
    %305 = arith.addi %116, %304 : vector<1x512xi32>
    %c0_i32_136 = arith.constant 0 : i32
    %306 = vector.broadcast %c0_i32_136 : i32 to vector<1x512xi32>
    %307 = arith.cmpi sge, %305, %306 : vector<1x512xi32>
    %c1_i32_137 = arith.constant 1 : i32
    %308 = vector.broadcast %c1_i32_137 : i32 to vector<1x512xi32>
    %309 = arith.addi %116, %308 : vector<1x512xi32>
    %c16_i32_138 = arith.constant 16 : i32
    %310 = vector.broadcast %c16_i32_138 : i32 to vector<1x512xi32>
    %311 = arith.cmpi slt, %309, %310 : vector<1x512xi32>
    %312 = arith.andi %307, %311 : vector<1x512xi1>
    %c1_i32_139 = arith.constant 1 : i32
    %313 = vector.broadcast %c1_i32_139 : i32 to vector<1x512xi32>
    %314 = arith.addi %117, %313 : vector<1x512xi32>
    %c0_i32_140 = arith.constant 0 : i32
    %315 = vector.broadcast %c0_i32_140 : i32 to vector<1x512xi32>
    %316 = arith.cmpi sge, %314, %315 : vector<1x512xi32>
    %317 = arith.andi %312, %316 : vector<1x512xi1>
    %c1_i32_141 = arith.constant 1 : i32
    %318 = vector.broadcast %c1_i32_141 : i32 to vector<1x512xi32>
    %319 = arith.addi %117, %318 : vector<1x512xi32>
    %c16_i32_142 = arith.constant 16 : i32
    %320 = vector.broadcast %c16_i32_142 : i32 to vector<1x512xi32>
    %321 = arith.cmpi slt, %319, %320 : vector<1x512xi32>
    %322 = arith.andi %317, %321 : vector<1x512xi1>
    %cst_143 = arith.constant 1.000000e+00 : f32
    %cst_144 = arith.constant 0.000000e+00 : f32
    %323 = vector.broadcast %cst_143 : f32 to vector<1x512xf32>
    %324 = vector.broadcast %cst_144 : f32 to vector<1x512xf32>
    %325 = arith.select %322, %323, %324 : vector<1x512xi1>, vector<1x512xf32>
    %326 = vector.broadcast %325 : vector<1x512xf32> to vector<48x512xf32>
    %327 = arith.mulf %303, %326 : vector<48x512xf32>
    %328 = arith.addf %302, %327 : vector<48x512xf32>
    %329 = vector.extract_strided_slice %328 {offsets = [0, 0], sizes = [48, 256], strides = [1, 1]} : vector<48x512xf32> to vector<48x256xf32>
    %c0_145 = arith.constant 0 : index
    %c0_146 = arith.constant 0 : index
    %c0_147 = arith.constant 0 : index
    %330 = vector.load %arg10[%c0_145, %c0_146, %c0_147] : memref<2x48x256xf32, #tpu.memory_space<vmem>>, vector<1x48x256xf32>
    %331 = vector.shape_cast %330 : vector<1x48x256xf32> to vector<48x256xf32>
    %332 = vector.shape_cast %329 : vector<48x256xf32> to vector<1x48x256xf32>
    tpu.vector_store %arg10[%c0_145, %c0_146, %c0_147], %332 {strides = array<i32>} : memref<2x48x256xf32, #tpu.memory_space<vmem>>, vector<1x48x256xf32>,
    %333 = vector.extract_strided_slice %328 {offsets = [0, 256], sizes = [48, 256], strides = [1, 1]} : vector<48x512xf32> to vector<48x256xf32>
    %c1_148 = arith.constant 1 : index
    %c0_149 = arith.constant 0 : index
    %c0_150 = arith.constant 0 : index
    %334 = vector.load %arg10[%c1_148, %c0_149, %c0_150] : memref<2x48x256xf32, #tpu.memory_space<vmem>>, vector<1x48x256xf32>
    %335 = vector.shape_cast %334 : vector<1x48x256xf32> to vector<48x256xf32>
    %336 = vector.shape_cast %333 : vector<48x256xf32> to vector<1x48x256xf32>
    tpu.vector_store %arg10[%c1_148, %c0_149, %c0_150], %336 {strides = array<i32>} : memref<2x48x256xf32, #tpu.memory_space<vmem>>, vector<1x48x256xf32>,
    return
  }
  func.func @transform_0(%arg0: i32) -> (i32, i32, i32) {
    %c0_i32 = arith.constant 0 : i32
    %c0_i32_0 = arith.constant 0 : i32
    %c0_i32_1 = arith.constant 0 : i32
    %c0_i32_2 = arith.constant 0 : i32
    return %c0_i32, %c0_i32_0, %c0_i32_1 : i32, i32, i32
  }
  func.func @transform_1(%arg0: i32) -> (i32, i32) {
    %c0_i32 = arith.constant 0 : i32
    %c0_i32_0 = arith.constant 0 : i32
    %c0_i32_1 = arith.constant 0 : i32
    return %c0_i32, %c0_i32_0 : i32, i32
  }
  func.func @transform_2(%arg0: i32) -> (i32, i32) {
    %c0_i32 = arith.constant 0 : i32
    %c0_i32_0 = arith.constant 0 : i32
    %c0_i32_1 = arith.constant 0 : i32
    return %c0_i32, %c0_i32_0 : i32, i32
  }
  func.func @transform_3(%arg0: i32) -> (i32, i32) {
    %c0_i32 = arith.constant 0 : i32
    %c0_i32_0 = arith.constant 0 : i32
    %c0_i32_1 = arith.constant 0 : i32
    return %c0_i32, %c0_i32_0 : i32, i32
  }
  func.func @transform_4(%arg0: i32) -> (i32, i32) {
    %c0_i32 = arith.constant 0 : i32
    %c0_i32_0 = arith.constant 0 : i32
    %c0_i32_1 = arith.constant 0 : i32
    return %c0_i32, %c0_i32_0 : i32, i32
  }
  func.func @transform_5(%arg0: i32) -> (i32, i32) {
    %c0_i32 = arith.constant 0 : i32
    %c0_i32_0 = arith.constant 0 : i32
    %c0_i32_1 = arith.constant 0 : i32
    return %c0_i32, %c0_i32_0 : i32, i32
  }
  func.func @transform_6(%arg0: i32) -> (i32, i32) {
    %c0_i32 = arith.constant 0 : i32
    %c0_i32_0 = arith.constant 0 : i32
    %c0_i32_1 = arith.constant 0 : i32
    return %c0_i32, %c0_i32_0 : i32, i32
  }
  func.func @transform_7(%arg0: i32) -> (i32, i32) {
    %c0_i32 = arith.constant 0 : i32
    %c0_i32_0 = arith.constant 0 : i32
    %c0_i32_1 = arith.constant 0 : i32
    return %c0_i32, %c0_i32_0 : i32, i32
  }
  func.func @transform_8(%arg0: i32) -> (i32, i32) {
    %c0_i32 = arith.constant 0 : i32
    %c0_i32_0 = arith.constant 0 : i32
    %c0_i32_1 = arith.constant 0 : i32
    return %c0_i32, %c0_i32_0 : i32, i32
  }
  func.func @transform_9(%arg0: i32) -> (i32, i32, i32) {
    %c0_i32 = arith.constant 0 : i32
    %c0_i32_0 = arith.constant 0 : i32
    %c0_i32_1 = arith.constant 0 : i32
    %c0_i32_2 = arith.constant 0 : i32
    return %c0_i32, %c0_i32_0, %c0_i32_1 : i32, i32, i32
  }
}

</mosaic_0001>

<llo_original>
// kernel: tile.10
$region0: #{tile.10}
  %s0 = inlined_call_operand.vmem [shape: s32[16,16], index: 0, kind: input, shape index: {}]
  %s1 = inlined_call_operand.vmem [shape: s32[256], index: 1, kind: output, shape index: {}]
  $region1: #{tile.10} parent=0
    #allocation0 [shape = 'u8[4096]{0}', space=vmem, size = 0x1000, scoped, tag = 'scoped mem for output reshape']
    %s2 = smov 3
    %v3 = vld [vmem:[%s0] ss:$8 sm:%s2]
    %vm4 = vcmask 130048
    %5 = vst.msk [vmem:[#allocation0] sm:$0x3] %vm4, %v3
    %s6 = scalar_lea.vmem %s0, 7
    %s7 = smov 3
    %v8 = vld [vmem:[%s6] ss:$8 sm:%s7]
    %9 = vrot.lane.b32.xlu0 %v8, 112
    %v10 = vpop.permute.xlu0 %9
    %vm11 = vcmask 1048448
    %12 = vst.msk [vmem:[#allocation0] sm:$0x3] %vm11, %v10
    %s13 = scalar_lea.vmem %s0, 6
    %s14 = smov 3
    %v15 = vld [vmem:[%s13] ss:$8 sm:%s14]
    %16 = vrot.lane.b32.xlu0 %v15, 96
    %v17 = vpop.permute.xlu0 %16
    %vm18 = vcmask 917248
    %19 = vst.msk [vmem:[#allocation0] sm:$0x3] %vm18, %v17
    %s20 = scalar_lea.vmem %s0, 5
    %s21 = smov 3
    %v22 = vld [vmem:[%s20] ss:$8 sm:%s21]
    %23 = vrot.lane.b32.xlu0 %v22, 80
    %v24 = vpop.permute.xlu0 %23
    %vm25 = vcmask 786048
    %26 = vst.msk [vmem:[#allocation0] sm:$0x3] %vm25, %v24
    %s27 = scalar_lea.vmem %s0, 4
    %s28 = smov 3
    %v29 = vld [vmem:[%s27] ss:$8 sm:%s28]
    %30 = vrot.lane.b32.xlu0 %v29, 64
    %v31 = vpop.permute.xlu0 %30
    %vm32 = vcmask 654848
    %33 = vst.msk [vmem:[#allocation0] sm:$0x3] %vm32, %v31
    %s34 = scalar_lea.vmem %s0, 3
    %s35 = smov 3
    %v36 = vld [vmem:[%s34] ss:$8 sm:%s35]
    %37 = vrot.lane.b32.xlu0 %v36, 48
    %v38 = vpop.permute.xlu0 %37
    %vm39 = vcmask 523648
    %40 = vst.msk [vmem:[#allocation0] sm:$0x3] %vm39, %v38
    %s41 = scalar_lea.vmem %s0, 2
    %s42 = smov 3
    %v43 = vld [vmem:[%s41] ss:$8 sm:%s42]
    %44 = vrot.lane.b32.xlu0 %v43, 32
    %v45 = vpop.permute.xlu0 %44
    %vm46 = vcmask 392448
    %47 = vst.msk [vmem:[#allocation0] sm:$0x3] %vm46, %v45
    %s48 = scalar_lea.vmem %s0, 1
    %s49 = smov 3
    %v50 = vld [vmem:[%s48] ss:$8 sm:%s49]
    %51 = vrot.lane.b32.xlu0 %v50, 16
    %v52 = vpop.permute.xlu0 %51
    %vm53 = vcmask 261248
    %54 = vst.msk [vmem:[#allocation0] sm:$0x3] %vm53, %v52
    %s56 = sshllo.u32 0, 2
    %v58 = vld [vmem:[#allocation0] sm:%s56]
    %s59 = sshllo.u32 0, 2
    %60 = vst [vmem:[%s1] sm:%s59] %v58

// kernel: tile.17
$region0: #{tile.17}
  %s0 = inlined_call_operand.vmem [shape: s32[32,16], index: 0, kind: input, shape index: {}]
  %s1 = inlined_call_operand.vmem [shape: s32[1,512], index: 1, kind: output, shape index: {}]
  $region1: #{tile.17} parent=0
    #allocation0 [shape = 'u8[16384]{0}', space=vmem, size = 0x4000, scoped, tag = 'scoped mem for output reshape']
    %v2 = vld [vmem:[%s0] ss:$8 sm:$0xf]
    %vm3 = vcmask 130048
    %4 = vst.msk [vmem:[#allocation0] ss:$8 sm:$0xf] %vm3, %v2
    %s5 = scalar_lea.vmem %s0, 7
    %v6 = vld [vmem:[%s5] ss:$8 sm:$0xf]
    %7 = vrot.lane.b32.xlu0 %v6, 112
    %v8 = vpop.permute.xlu0 %7
    %vm9 = vcmask 1048448
    %10 = vst.msk [vmem:[#allocation0] ss:$8 sm:$0xf] %vm9, %v8
    %s11 = scalar_lea.vmem %s0, 6
    %v12 = vld [vmem:[%s11] ss:$8 sm:$0xf]
    %13 = vrot.lane.b32.xlu0 %v12, 96
    %v14 = vpop.permute.xlu0 %13
    %vm15 = vcmask 917248
    %16 = vst.msk [vmem:[#allocation0] ss:$8 sm:$0xf] %vm15, %v14
    %s17 = scalar_lea.vmem %s0, 5
    %v18 = vld [vmem:[%s17] ss:$8 sm:$0xf]
    %19 = vrot.lane.b32.xlu0 %v18, 80
    %v20 = vpop.permute.xlu0 %19
    %vm21 = vcmask 786048
    %22 = vst.msk [vmem:[#allocation0] ss:$8 sm:$0xf] %vm21, %v20
    %s23 = scalar_lea.vmem %s0, 4
    %v24 = vld [vmem:[%s23] ss:$8 sm:$0xf]
    %25 = vrot.lane.b32.xlu0 %v24, 64
    %v26 = vpop.permute.xlu0 %25
    %vm27 = vcmask 654848
    %28 = vst.msk [vmem:[#allocation0] ss:$8 sm:$0xf] %vm27, %v26
    %s29 = scalar_lea.vmem %s0, 3
    %v30 = vld [vmem:[%s29] ss:$8 sm:$0xf]
    %31 = vrot.lane.b32.xlu0 %v30, 48
    %v32 = vpop.permute.xlu0 %31
    %vm33 = vcmask 523648
    %34 = vst.msk [vmem:[#allocation0] ss:$8 sm:$0xf] %vm33, %v32
    %s35 = scalar_lea.vmem %s0, 2
    %v36 = vld [vmem:[%s35] ss:$8 sm:$0xf]
    %37 = vrot.lane.b32.xlu0 %v36, 32
    %v38 = vpop.permute.xlu0 %37
    %vm39 = vcmask 392448
    %40 = vst.msk [vmem:[#allocation0] ss:$8 sm:$0xf] %vm39, %v38
    %s41 = scalar_lea.vmem %s0, 1
    %v42 = vld [vmem:[%s41] ss:$8 sm:$0xf]
    %43 = vrot.lane.b32.xlu0 %v42, 16
    %v44 = vpop.permute.xlu0 %43
    %vm45 = vcmask 261248
    %46 = vst.msk [vmem:[#allocation0] ss:$8 sm:$0xf] %vm45, %v44
    %s48 = sshllo.u32 0, 1
    %v50 = vld [vmem:[#allocation0] sm:%s48]
    %s51 = sshllo.u32 0, 1
    %52 = vst [vmem:[%s1] sm:%s51] %v50
    %s53 = scalar_lea.vmem [#allocation0], 8
    %v54 = vld [vmem:[%s53] sm:%s48]
    %s55 = sshllo.u32 0, 1
    %s56 = scalar_lea.vmem %s1, 1
    %57 = vst [vmem:[%s56] sm:%s55] %v54
    %s58 = scalar_lea.vmem [#allocation0], 16
    %v59 = vld [vmem:[%s58] sm:%s48]
    %s60 = sshllo.u32 0, 1
    %s61 = smul.addr 1, 2
    %s62 = scalar_lea.vmem %s1, %s61
    %63 = vst [vmem:[%s62] sm:%s60] %v59
    %s64 = scalar_lea.vmem [#allocation0], 24
    %v65 = vld [vmem:[%s64] sm:%s48]
    %s66 = sshllo.u32 0, 1
    %s67 = smul.addr 1, 3
    %s68 = scalar_lea.vmem %s1, %s67
    %69 = vst [vmem:[%s68] sm:%s66] %v65

// kernel: forward.1
$region0: #{forward.1}
  #allocation0 [shape = 'u32[]', space=smem, size = 0x4, offset = 0x4, fixed_abs, tag = 'smem constant byte address 0x4 - core index']
  #allocation1 [shape = 'u32[144,128]{1,0:T(1,128)}', space=vmem, size = 0x12000, scoped, tag = 'internal scratch']
  #allocation2 [shape = 'f32[432,768]{1,0:T(8,128)}', space=vmem, size = 0x144000, scoped, tag = 'scratch operand']
  %s0 = inlined_call_operand.vmem [shape: f32[2,144,256], index: 0, kind: input, shape index: {}]
  %s1 = inlined_call_operand.vmem [shape: f32[144,1], index: 1, kind: input, shape index: {}]
  %s2 = inlined_call_operand.vmem [shape: f32[144,1], index: 2, kind: input, shape index: {}]
  %s3 = inlined_call_operand.vmem [shape: bf16[192,144], index: 3, kind: input, shape index: {}]
  %s4 = inlined_call_operand.vmem [shape: f32[192,1], index: 4, kind: input, shape index: {}]
  %s5 = inlined_call_operand.vmem [shape: f32[192,1], index: 5, kind: input, shape index: {}]
  %s6 = inlined_call_operand.vmem [shape: bf16[432,192], index: 6, kind: input, shape index: {}]
  %s7 = inlined_call_operand.vmem [shape: s32[1,512], index: 7, kind: input, shape index: {}]
  %s8 = inlined_call_operand.vmem [shape: s32[1,512], index: 8, kind: input, shape index: {}]
  %s9 = inlined_call_operand.vmem [shape: f32[2,48,256], index: 9, kind: output, shape index: {}]
  %s10 = sld [smem:[#allocation0]]
  $region46: #{forward.1} parent=0
    _
  %s12 = ssub.s32 1, %s10
  %s13 = scalar_select 0, %s12, %s10
  // Predicated region
  $region2: #{forward.1} parent=0 // pred_check
    _
  $region3: #{forward.1} parent=0 // pred_check_branch
    %15 = sbr.rel (0) target = $region5
  $region4: #{forward.1} parent=0 // pred_region
    _
  $region5: #{forward.1} parent=0 // pred_fallthru
    _
  // Predicated region
  $region6: #{forward.1} parent=0 // pred_check
    _
  $region7: #{forward.1} parent=0 // pred_check_branch
    %17 = sbr.rel (0) target = $region9
  $region8: #{forward.1} parent=0 // pred_region
    _
  $region9: #{forward.1} parent=0 // pred_fallthru
    _
  // Predicated region
  $region10: #{forward.1} parent=0 // pred_check
    _
  $region11: #{forward.1} parent=0 // pred_check_branch
    %19 = sbr.rel (0) target = $region13
  $region12: #{forward.1} parent=0 // pred_region
    _
  $region13: #{forward.1} parent=0 // pred_fallthru
    _
  // Predicated region
  $region14: #{forward.1} parent=0 // pred_check
    _
  $region15: #{forward.1} parent=0 // pred_check_branch
    %21 = sbr.rel (0) target = $region17
  $region16: #{forward.1} parent=0 // pred_region
    _
  $region17: #{forward.1} parent=0 // pred_fallthru
    _
  // Predicated region
  $region18: #{forward.1} parent=0 // pred_check
    _
  $region19: #{forward.1} parent=0 // pred_check_branch
    %23 = sbr.rel (0) target = $region21
  $region20: #{forward.1} parent=0 // pred_region
    _
  $region21: #{forward.1} parent=0 // pred_fallthru
    _
  // Predicated region
  $region22: #{forward.1} parent=0 // pred_check
    _
  $region23: #{forward.1} parent=0 // pred_check_branch
    %25 = sbr.rel (0) target = $region25
  $region24: #{forward.1} parent=0 // pred_region
    _
  $region25: #{forward.1} parent=0 // pred_fallthru
    _
  // Predicated region
  $region26: #{forward.1} parent=0 // pred_check
    _
  $region27: #{forward.1} parent=0 // pred_check_branch
    %27 = sbr.rel (0) target = $region29
  $region28: #{forward.1} parent=0 // pred_region
    _
  $region29: #{forward.1} parent=0 // pred_fallthru
    _
  // Predicated region
  $region30: #{forward.1} parent=0 // pred_check
    _
  $region31: #{forward.1} parent=0 // pred_check_branch
    %29 = sbr.rel (0) target = $region33
  $region32: #{forward.1} parent=0 // pred_region
    _
  $region33: #{forward.1} parent=0 // pred_fallthru
    _
  // Predicated region
  $region34: #{forward.1} parent=0 // pred_check
    _
  $region35: #{forward.1} parent=0 // pred_check_branch
    %31 = sbr.rel (0) target = $region37
  $region36: #{forward.1} parent=0 // pred_region
    _
  $region37: #{forward.1} parent=0 // pred_fallthru
    _
  %v33 = vld [vmem:[%s0] sm:$0xff]
  %v34 = vld [vmem:[%s0 + $0x8] sm:$0xff]
  %v35 = vld [vmem:[%s0 + $0x10] sm:$0xff]
  %v36 = vld [vmem:[%s0 + $0x18] sm:$0xff]
  %v37 = vld [vmem:[%s0 + $0x20] sm:$0xff]
  %v38 = vld [vmem:[%s0 + $0x28] sm:$0xff]
  %v39 = vld [vmem:[%s0 + $0x30] sm:$0xff]
  %v40 = vld [vmem:[%s0 + $0x38] sm:$0xff]
  %v41 = vld [vmem:[%s0 + $0x40] sm:$0xff]
  %v42 = vld [vmem:[%s0 + $0x48] sm:$0xff]
  %v43 = vld [vmem:[%s0 + $0x50] sm:$0xff]
  %v44 = vld [vmem:[%s0 + $0x58] sm:$0xff]
  %v45 = vld [vmem:[%s0 + $0x60] sm:$0xff]
  %v46 = vld [vmem:[%s0 + $0x68] sm:$0xff]
  %v47 = vld [vmem:[%s0 + $0x70] sm:$0xff]
  %v48 = vld [vmem:[%s0 + $0x78] sm:$0xff]
  %v49 = vld [vmem:[%s0 + $0x80] sm:$0xff]
  %v50 = vld [vmem:[%s0 + $0x88] sm:$0xff]
  %v51 = vld [vmem:[%s0 + $0x90] sm:$0xff]
  %v52 = vld [vmem:[%s0 + $0x98] sm:$0xff]
  %v53 = vld [vmem:[%s0 + $0xa0] sm:$0xff]
  %v54 = vld [vmem:[%s0 + $0xa8] sm:$0xff]
  %v55 = vld [vmem:[%s0 + $0xb0] sm:$0xff]
  %v56 = vld [vmem:[%s0 + $0xb8] sm:$0xff]
  %v57 = vld [vmem:[%s0 + $0xc0] sm:$0xff]
  %v58 = vld [vmem:[%s0 + $0xc8] sm:$0xff]
  %v59 = vld [vmem:[%s0 + $0xd0] sm:$0xff]
  %v60 = vld [vmem:[%s0 + $0xd8] sm:$0xff]
  %v61 = vld [vmem:[%s0 + $0xe0] sm:$0xff]
  %v62 = vld [vmem:[%s0 + $0xe8] sm:$0xff]
  %v63 = vld [vmem:[%s0 + $0xf0] sm:$0xff]
  %v64 = vld [vmem:[%s0 + $0xf8] sm:$0xff]
  %v65 = vld [vmem:[%s0 + $0x100] sm:$0xff]
  %v66 = vld [vmem:[%s0 + $0x108] sm:$0xff]
  %v67 = vld [vmem:[%s0 + $0x110] sm:$0xff]
  %v68 = vld [vmem:[%s0 + $0x118] sm:$0xff]
  %v69 = vadd.f32 %v33, %v34
  %70 = vadd.xlane.f32.xlu0 %v69
  %v71 = vpop.xlane.xlu0 %70
  %v72 = vadd.f32 %v35, %v36
  %73 = vadd.xlane.f32.xlu0 %v72
  %v74 = vpop.xlane.xlu0 %73
  %v75 = vadd.f32 %v37, %v38
  %76 = vadd.xlane.f32.xlu0 %v75
  %v77 = vpop.xlane.xlu0 %76
  %v78 = vadd.f32 %v39, %v40
  %79 = vadd.xlane.f32.xlu0 %v78
  %v80 = vpop.xlane.xlu0 %79
  %v81 = vadd.f32 %v41, %v42
  %82 = vadd.xlane.f32.xlu0 %v81
  %v83 = vpop.xlane.xlu0 %82
  %v84 = vadd.f32 %v43, %v44
  %85 = vadd.xlane.f32.xlu0 %v84
  %v86 = vpop.xlane.xlu0 %85
  %v87 = vadd.f32 %v45, %v46
  %88 = vadd.xlane.f32.xlu0 %v87
  %v89 = vpop.xlane.xlu0 %88
  %v90 = vadd.f32 %v47, %v48
  %91 = vadd.xlane.f32.xlu0 %v90
  %v92 = vpop.xlane.xlu0 %91
  %v93 = vadd.f32 %v49, %v50
  %94 = vadd.xlane.f32.xlu0 %v93
  %v95 = vpop.xlane.xlu0 %94
  %v96 = vadd.f32 %v51, %v52
  %97 = vadd.xlane.f32.xlu0 %v96
  %v98 = vpop.xlane.xlu0 %97
  %v99 = vadd.f32 %v53, %v54
  %100 = vadd.xlane.f32.xlu0 %v99
  %v101 = vpop.xlane.xlu0 %100
  %v102 = vadd.f32 %v55, %v56
  %103 = vadd.xlane.f32.xlu0 %v102
  %v104 = vpop.xlane.xlu0 %103
  %v105 = vadd.f32 %v57, %v58
  %106 = vadd.xlane.f32.xlu0 %v105
  %v107 = vpop.xlane.xlu0 %106
  %v108 = vadd.f32 %v59, %v60
  %109 = vadd.xlane.f32.xlu0 %v108
  %v110 = vpop.xlane.xlu0 %109
  %v111 = vadd.f32 %v61, %v62
  %112 = vadd.xlane.f32.xlu0 %v111
  %v113 = vpop.xlane.xlu0 %112
  %v114 = vadd.f32 %v63, %v64
  %115 = vadd.xlane.f32.xlu0 %v114
  %v116 = vpop.xlane.xlu0 %115
  %v117 = vadd.f32 %v65, %v66
  %118 = vadd.xlane.f32.xlu0 %v117
  %v119 = vpop.xlane.xlu0 %118
  %v120 = vadd.f32 %v67, %v68
  %121 = vadd.xlane.f32.xlu0 %v120
  %v122 = vpop.xlane.xlu0 %121
  %v123 = vadd.f32 %v71, 0.0
  %v124 = vadd.f32 %v74, 0.0
  %v125 = vadd.f32 %v77, 0.0
  %v126 = vadd.f32 %v80, 0.0
  %v127 = vadd.f32 %v83, 0.0
  %v128 = vadd.f32 %v86, 0.0
  %v129 = vadd.f32 %v89, 0.0
  %v130 = vadd.f32 %v92, 0.0
  %v131 = vadd.f32 %v95, 0.0
  %v132 = vadd.f32 %v98, 0.0
  %v133 = vadd.f32 %v101, 0.0
  %v134 = vadd.f32 %v104, 0.0
  %v135 = vadd.f32 %v107, 0.0
  %v136 = vadd.f32 %v110, 0.0
  %v137 = vadd.f32 %v113, 0.0
  %v138 = vadd.f32 %v116, 0.0
  %v139 = vadd.f32 %v119, 0.0
  %v140 = vadd.f32 %v122, 0.0
  %s141 = scalar_lea.vmem %s0, 288
  %v142 = vld [vmem:[%s141] sm:$0xff]
  %v143 = vld [vmem:[%s141 + $0x8] sm:$0xff]
  %v144 = vld [vmem:[%s141 + $0x10] sm:$0xff]
  %v145 = vld [vmem:[%s141 + $0x18] sm:$0xff]
  %v146 = vld [vmem:[%s141 + $0x20] sm:$0xff]
  %v147 = vld [vmem:[%s141 + $0x28] sm:$0xff]
  %v148 = vld [vmem:[%s141 + $0x30] sm:$0xff]
  %v149 = vld [vmem:[%s141 + $0x38] sm:$0xff]
  %v150 = vld [vmem:[%s141 + $0x40] sm:$0xff]
  %v151 = vld [vmem:[%s141 + $0x48] sm:$0xff]
  %v152 = vld [vmem:[%s141 + $0x50] sm:$0xff]
  %v153 = vld [vmem:[%s141 + $0x58] sm:$0xff]
  %v154 = vld [vmem:[%s141 + $0x60] sm:$0xff]
  %v155 = vld [vmem:[%s141 + $0x68] sm:$0xff]
  %v156 = vld [vmem:[%s141 + $0x70] sm:$0xff]
  %v157 = vld [vmem:[%s141 + $0x78] sm:$0xff]
  %v158 = vld [vmem:[%s141 + $0x80] sm:$0xff]
  %v159 = vld [vmem:[%s141 + $0x88] sm:$0xff]
  %v160 = vld [vmem:[%s141 + $0x90] sm:$0xff]
  %v161 = vld [vmem:[%s141 + $0x98] sm:$0xff]
  %v162 = vld [vmem:[%s141 + $0xa0] sm:$0xff]
  %v163 = vld [vmem:[%s141 + $0xa8] sm:$0xff]
  %v164 = vld [vmem:[%s141 + $0xb0] sm:$0xff]
  %v165 = vld [vmem:[%s141 + $0xb8] sm:$0xff]
  %v166 = vld [vmem:[%s141 + $0xc0] sm:$0xff]
  %v167 = vld [vmem:[%s141 + $0xc8] sm:$0xff]
  %v168 = vld [vmem:[%s141 + $0xd0] sm:$0xff]
  %v169 = vld [vmem:[%s141 + $0xd8] sm:$0xff]
  %v170 = vld [vmem:[%s141 + $0xe0] sm:$0xff]
  %v171 = vld [vmem:[%s141 + $0xe8] sm:$0xff]
  %v172 = vld [vmem:[%s141 + $0xf0] sm:$0xff]
  %v173 = vld [vmem:[%s141 + $0xf8] sm:$0xff]
  %v174 = vld [vmem:[%s141 + $0x100] sm:$0xff]
  %v175 = vld [vmem:[%s141 + $0x108] sm:$0xff]
  %v176 = vld [vmem:[%s141 + $0x110] sm:$0xff]
  %v177 = vld [vmem:[%s141 + $0x118] sm:$0xff]
  %v178 = vadd.f32 %v142, %v143
  %179 = vadd.xlane.f32.xlu0 %v178
  %v180 = vpop.xlane.xlu0 %179
  %v181 = vadd.f32 %v144, %v145
  %182 = vadd.xlane.f32.xlu0 %v181
  %v183 = vpop.xlane.xlu0 %182
  %v184 = vadd.f32 %v146, %v147
  %185 = vadd.xlane.f32.xlu0 %v184
  %v186 = vpop.xlane.xlu0 %185
  %v187 = vadd.f32 %v148, %v149
  %188 = vadd.xlane.f32.xlu0 %v187
  %v189 = vpop.xlane.xlu0 %188
  %v190 = vadd.f32 %v150, %v151
  %191 = vadd.xlane.f32.xlu0 %v190
  %v192 = vpop.xlane.xlu0 %191
  %v193 = vadd.f32 %v152, %v153
  %194 = vadd.xlane.f32.xlu0 %v193
  %v195 = vpop.xlane.xlu0 %194
  %v196 = vadd.f32 %v154, %v155
  %197 = vadd.xlane.f32.xlu0 %v196
  %v198 = vpop.xlane.xlu0 %197
  %v199 = vadd.f32 %v156, %v157
  %200 = vadd.xlane.f32.xlu0 %v199
  %v201 = vpop.xlane.xlu0 %200
  %v202 = vadd.f32 %v158, %v159
  %203 = vadd.xlane.f32.xlu0 %v202
  %v204 = vpop.xlane.xlu0 %203
  %v205 = vadd.f32 %v160, %v161
  %206 = vadd.xlane.f32.xlu0 %v205
  %v207 = vpop.xlane.xlu0 %206
  %v208 = vadd.f32 %v162, %v163
  %209 = vadd.xlane.f32.xlu0 %v208
  %v210 = vpop.xlane.xlu0 %209
  %v211 = vadd.f32 %v164, %v165
  %212 = vadd.xlane.f32.xlu0 %v211
  %v213 = vpop.xlane.xlu0 %212
  %v214 = vadd.f32 %v166, %v167
  %215 = vadd.xlane.f32.xlu0 %v214
  %v216 = vpop.xlane.xlu0 %215
  %v217 = vadd.f32 %v168, %v169
  %218 = vadd.xlane.f32.xlu0 %v217
  %v219 = vpop.xlane.xlu0 %218
  %v220 = vadd.f32 %v170, %v171
  %221 = vadd.xlane.f32.xlu0 %v220
  %v222 = vpop.xlane.xlu0 %221
  %v223 = vadd.f32 %v172, %v173
  %224 = vadd.xlane.f32.xlu0 %v223
  %v225 = vpop.xlane.xlu0 %224
  %v226 = vadd.f32 %v174, %v175
  %227 = vadd.xlane.f32.xlu0 %v226
  %v228 = vpop.xlane.xlu0 %227
  %v229 = vadd.f32 %v176, %v177
  %230 = vadd.xlane.f32.xlu0 %v229
  %v231 = vpop.xlane.xlu0 %230
  %v232 = vadd.f32 %v123, %v180
  %v233 = vadd.f32 %v124, %v183
  %v234 = vadd.f32 %v125, %v186
  %v235 = vadd.f32 %v126, %v189
  %v236 = vadd.f32 %v127, %v192
  %v237 = vadd.f32 %v128, %v195
  %v238 = vadd.f32 %v129, %v198
  %v239 = vadd.f32 %v130, %v201
  %v240 = vadd.f32 %v131, %v204
  %v241 = vadd.f32 %v132, %v207
  %v242 = vadd.f32 %v133, %v210
  %v243 = vadd.f32 %v134, %v213
  %v244 = vadd.f32 %v135, %v216
  %v245 = vadd.f32 %v136, %v219
  %v246 = vadd.f32 %v137, %v222
  %v247 = vadd.f32 %v138, %v225
  %v248 = vadd.f32 %v139, %v228
  %v249 = vadd.f32 %v140, %v231
  %v250 = vmul.f32 %v232, 0.001953125
  %v251 = vmul.f32 %v233, 0.001953125
  %v252 = vmul.f32 %v234, 0.001953125
  %v253 = vmul.f32 %v235, 0.001953125
  %v254 = vmul.f32 %v236, 0.001953125
  %v255 = vmul.f32 %v237, 0.001953125
  %v256 = vmul.f32 %v238, 0.001953125
  %v257 = vmul.f32 %v239, 0.001953125
  %v258 = vmul.f32 %v240, 0.001953125
  %v259 = vmul.f32 %v241, 0.001953125
  %v260 = vmul.f32 %v242, 0.001953125
  %v261 = vmul.f32 %v243, 0.001953125
  %v262 = vmul.f32 %v244, 0.001953125
  %v263 = vmul.f32 %v245, 0.001953125
  %v264 = vmul.f32 %v246, 0.001953125
  %v265 = vmul.f32 %v247, 0.001953125
  %v266 = vmul.f32 %v248, 0.001953125
  %v267 = vmul.f32 %v249, 0.001953125
  %v268 = vsub.f32 %v33, %v250
  %v269 = vsub.f32 %v34, %v250
  %v270 = vsub.f32 %v35, %v251
  %v271 = vsub.f32 %v36, %v251
  %v272 = vsub.f32 %v37, %v252
  %v273 = vsub.f32 %v38, %v252
  %v274 = vsub.f32 %v39, %v253
  %v275 = vsub.f32 %v40, %v253
  %v276 = vsub.f32 %v41, %v254
  %v277 = vsub.f32 %v42, %v254
  %v278 = vsub.f32 %v43, %v255
  %v279 = vsub.f32 %v44, %v255
  %v280 = vsub.f32 %v45, %v256
  %v281 = vsub.f32 %v46, %v256
  %v282 = vsub.f32 %v47, %v257
  %v283 = vsub.f32 %v48, %v257
  %v284 = vsub.f32 %v49, %v258
  %v285 = vsub.f32 %v50, %v258
  %v286 = vsub.f32 %v51, %v259
  %v287 = vsub.f32 %v52, %v259
  %v288 = vsub.f32 %v53, %v260
  %v289 = vsub.f32 %v54, %v260
  %v290 = vsub.f32 %v55, %v261
  %v291 = vsub.f32 %v56, %v261
  %v292 = vsub.f32 %v57, %v262
  %v293 = vsub.f32 %v58, %v262
  %v294 = vsub.f32 %v59, %v263
  %v295 = vsub.f32 %v60, %v263
  %v296 = vsub.f32 %v61, %v264
  %v297 = vsub.f32 %v62, %v264
  %v298 = vsub.f32 %v63, %v265
  %v299 = vsub.f32 %v64, %v265
  %v300 = vsub.f32 %v65, %v266
  %v301 = vsub.f32 %v66, %v266
  %v302 = vsub.f32 %v67, %v267
  %v303 = vsub.f32 %v68, %v267
  %v304 = vmul.f32 %v268, %v268
  %v305 = vmul.f32 %v269, %v269
  %v306 = vmul.f32 %v270, %v270
  %v307 = vmul.f32 %v271, %v271
  %v308 = vmul.f32 %v272, %v272
  %v309 = vmul.f32 %v273, %v273
  %v310 = vmul.f32 %v274, %v274
  %v311 = vmul.f32 %v275, %v275
  %v312 = vmul.f32 %v276, %v276
  %v313 = vmul.f32 %v277, %v277
  %v314 = vmul.f32 %v278, %v278
  %v315 = vmul.f32 %v279, %v279
  %v316 = vmul.f32 %v280, %v280
  %v317 = vmul.f32 %v281, %v281
  %v318 = vmul.f32 %v282, %v282
  %v319 = vmul.f32 %v283, %v283
  %v320 = vmul.f32 %v284, %v284
  %v321 = vmul.f32 %v285, %v285
  %v322 = vmul.f32 %v286, %v286
  %v323 = vmul.f32 %v287, %v287
  %v324 = vmul.f32 %v288, %v288
  %v325 = vmul.f32 %v289, %v289
  %v326 = vmul.f32 %v290, %v290
  %v327 = vmul.f32 %v291, %v291
  %v328 = vmul.f32 %v292, %v292
  %v329 = vmul.f32 %v293, %v293
  %v330 = vmul.f32 %v294, %v294
  %v331 = vmul.f32 %v295, %v295
  %v332 = vmul.f32 %v296, %v296
  %v333 = vmul.f32 %v297, %v297
  %v334 = vmul.f32 %v298, %v298
  %v335 = vmul.f32 %v299, %v299
  %v336 = vmul.f32 %v300, %v300
  %v337 = vmul.f32 %v301, %v301
  %v338 = vmul.f32 %v302, %v302
  %v339 = vmul.f32 %v303, %v303
  %v340 = vadd.f32 %v304, %v305
  %341 = vadd.xlane.f32.xlu0 %v340
  %v342 = vpop.xlane.xlu0 %341
  %v343 = vadd.f32 %v306, %v307
  %344 = vadd.xlane.f32.xlu0 %v343
  %v345 = vpop.xlane.xlu0 %344
  %v346 = vadd.f32 %v308, %v309
  %347 = vadd.xlane.f32.xlu0 %v346
  %v348 = vpop.xlane.xlu0 %347
  %v349 = vadd.f32 %v310, %v311
  %350 = vadd.xlane.f32.xlu0 %v349
  %v351 = vpop.xlane.xlu0 %350
  %v352 = vadd.f32 %v312, %v313
  %353 = vadd.xlane.f32.xlu0 %v352
  %v354 = vpop.xlane.xlu0 %353
  %v355 = vadd.f32 %v314, %v315
  %356 = vadd.xlane.f32.xlu0 %v355
  %v357 = vpop.xlane.xlu0 %356
  %v358 = vadd.f32 %v316, %v317
  %359 = vadd.xlane.f32.xlu0 %v358
  %v360 = vpop.xlane.xlu0 %359
  %v361 = vadd.f32 %v318, %v319
  %362 = vadd.xlane.f32.xlu0 %v361
  %v363 = vpop.xlane.xlu0 %362
  %v364 = vadd.f32 %v320, %v321
  %365 = vadd.xlane.f32.xlu0 %v364
  %v366 = vpop.xlane.xlu0 %365
  %v367 = vadd.f32 %v322, %v323
  %368 = vadd.xlane.f32.xlu0 %v367
  %v369 = vpop.xlane.xlu0 %368
  %v370 = vadd.f32 %v324, %v325
  %371 = vadd.xlane.f32.xlu0 %v370
  %v372 = vpop.xlane.xlu0 %371
  %v373 = vadd.f32 %v326, %v327
  %374 = vadd.xlane.f32.xlu0 %v373
  %v375 = vpop.xlane.xlu0 %374
  %v376 = vadd.f32 %v328, %v329
  %377 = vadd.xlane.f32.xlu0 %v376
  %v378 = vpop.xlane.xlu0 %377
  %v379 = vadd.f32 %v330, %v331
  %380 = vadd.xlane.f32.xlu0 %v379
  %v381 = vpop.xlane.xlu0 %380
  %v382 = vadd.f32 %v332, %v333
  %383 = vadd.xlane.f32.xlu0 %v382
  %v384 = vpop.xlane.xlu0 %383
  %v385 = vadd.f32 %v334, %v335
  %386 = vadd.xlane.f32.xlu0 %v385
  %v387 = vpop.xlane.xlu0 %386
  %v388 = vadd.f32 %v336, %v337
  %389 = vadd.xlane.f32.xlu0 %v388
  %v390 = vpop.xlane.xlu0 %389
  %v391 = vadd.f32 %v338, %v339
  %392 = vadd.xlane.f32.xlu0 %v391
  %v393 = vpop.xlane.xlu0 %392
  %v394 = vadd.f32 %v342, 0.0
  %v395 = vadd.f32 %v345, 0.0
  %v396 = vadd.f32 %v348, 0.0
  %v397 = vadd.f32 %v351, 0.0
  %v398 = vadd.f32 %v354, 0.0
  %v399 = vadd.f32 %v357, 0.0
  %v400 = vadd.f32 %v360, 0.0
  %v401 = vadd.f32 %v363, 0.0
  %v402 = vadd.f32 %v366, 0.0
  %v403 = vadd.f32 %v369, 0.0
  %v404 = vadd.f32 %v372, 0.0
  %v405 = vadd.f32 %v375, 0.0
  %v406 = vadd.f32 %v378, 0.0
  %v407 = vadd.f32 %v381, 0.0
  %v408 = vadd.f32 %v384, 0.0
  %v409 = vadd.f32 %v387, 0.0
  %v410 = vadd.f32 %v390, 0.0
  %v411 = vadd.f32 %v393, 0.0
  %v412 = vsub.f32 %v142, %v250
  %v413 = vsub.f32 %v143, %v250
  %v414 = vsub.f32 %v144, %v251
  %v415 = vsub.f32 %v145, %v251
  %v416 = vsub.f32 %v146, %v252
  %v417 = vsub.f32 %v147, %v252
  %v418 = vsub.f32 %v148, %v253
  %v419 = vsub.f32 %v149, %v253
  %v420 = vsub.f32 %v150, %v254
  %v421 = vsub.f32 %v151, %v254
  %v422 = vsub.f32 %v152, %v255
  %v423 = vsub.f32 %v153, %v255
  %v424 = vsub.f32 %v154, %v256
  %v425 = vsub.f32 %v155, %v256
  %v426 = vsub.f32 %v156, %v257
  %v427 = vsub.f32 %v157, %v257
  %v428 = vsub.f32 %v158, %v258
  %v429 = vsub.f32 %v159, %v258
  %v430 = vsub.f32 %v160, %v259
  %v431 = vsub.f32 %v161, %v259
  %v432 = vsub.f32 %v162, %v260
  %v433 = vsub.f32 %v163, %v260
  %v434 = vsub.f32 %v164, %v261
  %v435 = vsub.f32 %v165, %v261
  %v436 = vsub.f32 %v166, %v262
  %v437 = vsub.f32 %v167, %v262
  %v438 = vsub.f32 %v168, %v263
  %v439 = vsub.f32 %v169, %v263
  %v440 = vsub.f32 %v170, %v264
  %v441 = vsub.f32 %v171, %v264
  %v442 = vsub.f32 %v172, %v265
  %v443 = vsub.f32 %v173, %v265
  %v444 = vsub.f32 %v174, %v266
  %v445 = vsub.f32 %v175, %v266
  %v446 = vsub.f32 %v176, %v267
  %v447 = vsub.f32 %v177, %v267
  %v448 = vmul.f32 %v412, %v412
  %v449 = vmul.f32 %v413, %v413
  %v450 = vmul.f32 %v414, %v414
  %v451 = vmul.f32 %v415, %v415
  %v452 = vmul.f32 %v416, %v416
  %v453 = vmul.f32 %v417, %v417
  %v454 = vmul.f32 %v418, %v418
  %v455 = vmul.f32 %v419, %v419
  %v456 = vmul.f32 %v420, %v420
  %v457 = vmul.f32 %v421, %v421
  %v458 = vmul.f32 %v422, %v422
  %v459 = vmul.f32 %v423, %v423
  %v460 = vmul.f32 %v424, %v424
  %v461 = vmul.f32 %v425, %v425
  %v462 = vmul.f32 %v426, %v426
  %v463 = vmul.f32 %v427, %v427
  %v464 = vmul.f32 %v428, %v428
  %v465 = vmul.f32 %v429, %v429
  %v466 = vmul.f32 %v430, %v430
  %v467 = vmul.f32 %v431, %v431
  %v468 = vmul.f32 %v432, %v432
  %v469 = vmul.f32 %v433, %v433
  %v470 = vmul.f32 %v434, %v434
  %v471 = vmul.f32 %v435, %v435
  %v472 = vmul.f32 %v436, %v436
  %v473 = vmul.f32 %v437, %v437
  %v474 = vmul.f32 %v438, %v438
  %v475 = vmul.f32 %v439, %v439
  %v476 = vmul.f32 %v440, %v440
  %v477 = vmul.f32 %v441, %v441
  %v478 = vmul.f32 %v442, %v442
  %v479 = vmul.f32 %v443, %v443
  %v480 = vmul.f32 %v444, %v444
  %v481 = vmul.f32 %v445, %v445
  %v482 = vmul.f32 %v446, %v446
  %v483 = vmul.f32 %v447, %v447
  %v484 = vadd.f32 %v448, %v449
  %485 = vadd.xlane.f32.xlu0 %v484
  %v486 = vpop.xlane.xlu0 %485
  %v487 = vadd.f32 %v450, %v451
  %488 = vadd.xlane.f32.xlu0 %v487
  %v489 = vpop.xlane.xlu0 %488
  %v490 = vadd.f32 %v452, %v453
  %491 = vadd.xlane.f32.xlu0 %v490
  %v492 = vpop.xlane.xlu0 %491
  %v493 = vadd.f32 %v454, %v455
  %494 = vadd.xlane.f32.xlu0 %v493
  %v495 = vpop.xlane.xlu0 %494
  %v496 = vadd.f32 %v456, %v457
  %497 = vadd.xlane.f32.xlu0 %v496
  %v498 = vpop.xlane.xlu0 %497
  %v499 = vadd.f32 %v458, %v459
  %500 = vadd.xlane.f32.xlu0 %v499
  %v501 = vpop.xlane.xlu0 %500
  %v502 = vadd.f32 %v460, %v461
  %503 = vadd.xlane.f32.xlu0 %v502
  %v504 = vpop.xlane.xlu0 %503
  %v505 = vadd.f32 %v462, %v463
  %506 = vadd.xlane.f32.xlu0 %v505
  %v507 = vpop.xlane.xlu0 %506
  %v508 = vadd.f32 %v464, %v465
  %509 = vadd.xlane.f32.xlu0 %v508
  %v510 = vpop.xlane.xlu0 %509
  %v511 = vadd.f32 %v466, %v467
  %512 = vadd.xlane.f32.xlu0 %v511
  %v513 = vpop.xlane.xlu0 %512
  %v514 = vadd.f32 %v468, %v469
  %515 = vadd.xlane.f32.xlu0 %v514
  %v516 = vpop.xlane.xlu0 %515
  %v517 = vadd.f32 %v470, %v471
  %518 = vadd.xlane.f32.xlu0 %v517
  %v519 = vpop.xlane.xlu0 %518
  %v520 = vadd.f32 %v472, %v473
  %521 = vadd.xlane.f32.xlu0 %v520
  %v522 = vpop.xlane.xlu0 %521
  %v523 = vadd.f32 %v474, %v475
  %524 = vadd.xlane.f32.xlu0 %v523
  %v525 = vpop.xlane.xlu0 %524
  %v526 = vadd.f32 %v476, %v477
  %527 = vadd.xlane.f32.xlu0 %v526
  %v528 = vpop.xlane.xlu0 %527
  %v529 = vadd.f32 %v478, %v479
  %530 = vadd.xlane.f32.xlu0 %v529
  %v531 = vpop.xlane.xlu0 %530
  %v532 = vadd.f32 %v480, %v481
  %533 = vadd.xlane.f32.xlu0 %v532
  %v534 = vpop.xlane.xlu0 %533
  %v535 = vadd.f32 %v482, %v483
  %536 = vadd.xlane.f32.xlu0 %v535
  %v537 = vpop.xlane.xlu0 %536
  %v538 = vadd.f32 %v394, %v486
  %v539 = vadd.f32 %v395, %v489
  %v540 = vadd.f32 %v396, %v492
  %v541 = vadd.f32 %v397, %v495
  %v542 = vadd.f32 %v398, %v498
  %v543 = vadd.f32 %v399, %v501
  %v544 = vadd.f32 %v400, %v504
  %v545 = vadd.f32 %v401, %v507
  %v546 = vadd.f32 %v402, %v510
  %v547 = vadd.f32 %v403, %v513
  %v548 = vadd.f32 %v404, %v516
  %v549 = vadd.f32 %v405, %v519
  %v550 = vadd.f32 %v406, %v522
  %v551 = vadd.f32 %v407, %v525
  %v552 = vadd.f32 %v408, %v528
  %v553 = vadd.f32 %v409, %v531
  %v554 = vadd.f32 %v410, %v534
  %v555 = vadd.f32 %v411, %v537
  %v556 = vmul.f32 %v538, 0.001953125
  %v557 = vmul.f32 %v539, 0.001953125
  %v558 = vmul.f32 %v540, 0.001953125
  %v559 = vmul.f32 %v541, 0.001953125
  %v560 = vmul.f32 %v542, 0.001953125
  %v561 = vmul.f32 %v543, 0.001953125
  %v562 = vmul.f32 %v544, 0.001953125
  %v563 = vmul.f32 %v545, 0.001953125
  %v564 = vmul.f32 %v546, 0.001953125
  %v565 = vmul.f32 %v547, 0.001953125
  %v566 = vmul.f32 %v548, 0.001953125
  %v567 = vmul.f32 %v549, 0.001953125
  %v568 = vmul.f32 %v550, 0.001953125
  %v569 = vmul.f32 %v551, 0.001953125
  %v570 = vmul.f32 %v552, 0.001953125
  %v571 = vmul.f32 %v553, 0.001953125
  %v572 = vmul.f32 %v554, 0.001953125
  %v573 = vmul.f32 %v555, 0.001953125
  %v574 = vld [vmem:[%s1] sm:$0xff]
  %v575 = vld [vmem:[%s1 + $0x8] sm:$0xff]
  %v576 = vld [vmem:[%s1 + $0x10] sm:$0xff]
  %v577 = vld [vmem:[%s1 + $0x18] sm:$0xff]
  %v578 = vld [vmem:[%s1 + $0x20] sm:$0xff]
  %v579 = vld [vmem:[%s1 + $0x28] sm:$0xff]
  %v580 = vld [vmem:[%s1 + $0x30] sm:$0xff]
  %v581 = vld [vmem:[%s1 + $0x38] sm:$0xff]
  %v582 = vld [vmem:[%s1 + $0x40] sm:$0xff]
  %v583 = vld [vmem:[%s1 + $0x48] sm:$0xff]
  %v584 = vld [vmem:[%s1 + $0x50] sm:$0xff]
  %v585 = vld [vmem:[%s1 + $0x58] sm:$0xff]
  %v586 = vld [vmem:[%s1 + $0x60] sm:$0xff]
  %v587 = vld [vmem:[%s1 + $0x68] sm:$0xff]
  %v588 = vld [vmem:[%s1 + $0x70] sm:$0xff]
  %v589 = vld [vmem:[%s1 + $0x78] sm:$0xff]
  %v590 = vld [vmem:[%s1 + $0x80] sm:$0xff]
  %v591 = vld [vmem:[%s1 + $0x88] sm:$0xff]
  %v592 = vadd.f32 %v556, 1e-05
  %v593 = vadd.f32 %v557, 1e-05
  %v594 = vadd.f32 %v558, 1e-05
  %v595 = vadd.f32 %v559, 1e-05
  %v596 = vadd.f32 %v560, 1e-05
  %v597 = vadd.f32 %v561, 1e-05
  %v598 = vadd.f32 %v562, 1e-05
  %v599 = vadd.f32 %v563, 1e-05
  %v600 = vadd.f32 %v564, 1e-05
  %v601 = vadd.f32 %v565, 1e-05
  %v602 = vadd.f32 %v566, 1e-05
  %v603 = vadd.f32 %v567, 1e-05
  %v604 = vadd.f32 %v568, 1e-05
  %v605 = vadd.f32 %v569, 1e-05
  %v606 = vadd.f32 %v570, 1e-05
  %v607 = vadd.f32 %v571, 1e-05
  %v608 = vadd.f32 %v572, 1e-05
  %v609 = vadd.f32 %v573, 1e-05
  %v610 = vrsqrt.pop %v592
  %v611 = vrsqrt.pop %v593
  %v612 = vrsqrt.pop %v594
  %v613 = vrsqrt.pop %v595
  %v614 = vrsqrt.pop %v596
  %v615 = vrsqrt.pop %v597
  %v616 = vrsqrt.pop %v598
  %v617 = vrsqrt.pop %v599
  %v618 = vrsqrt.pop %v600
  %v619 = vrsqrt.pop %v601
  %v620 = vrsqrt.pop %v602
  %v621 = vrsqrt.pop %v603
  %v622 = vrsqrt.pop %v604
  %v623 = vrsqrt.pop %v605
  %v624 = vrsqrt.pop %v606
  %v625 = vrsqrt.pop %v607
  %v626 = vrsqrt.pop %v608
  %v627 = vrsqrt.pop %v609
  %v628 = vmul.f32 %v574, %v610
  %v629 = vmul.f32 %v575, %v611
  %v630 = vmul.f32 %v576, %v612
  %v631 = vmul.f32 %v577, %v613
  %v632 = vmul.f32 %v578, %v614
  %v633 = vmul.f32 %v579, %v615
  %v634 = vmul.f32 %v580, %v616
  %v635 = vmul.f32 %v581, %v617
  %v636 = vmul.f32 %v582, %v618
  %v637 = vmul.f32 %v583, %v619
  %v638 = vmul.f32 %v584, %v620
  %v639 = vmul.f32 %v585, %v621
  %v640 = vmul.f32 %v586, %v622
  %v641 = vmul.f32 %v587, %v623
  %v642 = vmul.f32 %v588, %v624
  %v643 = vmul.f32 %v589, %v625
  %v644 = vmul.f32 %v590, %v626
  %v645 = vmul.f32 %v591, %v627
  %v646 = vld [vmem:[%s2] sm:$0xff]
  %v647 = vld [vmem:[%s2 + $0x8] sm:$0xff]
  %v648 = vld [vmem:[%s2 + $0x10] sm:$0xff]
  %v649 = vld [vmem:[%s2 + $0x18] sm:$0xff]
  %v650 = vld [vmem:[%s2 + $0x20] sm:$0xff]
  %v651 = vld [vmem:[%s2 + $0x28] sm:$0xff]
  %v652 = vld [vmem:[%s2 + $0x30] sm:$0xff]
  %v653 = vld [vmem:[%s2 + $0x38] sm:$0xff]
  %v654 = vld [vmem:[%s2 + $0x40] sm:$0xff]
  %v655 = vld [vmem:[%s2 + $0x48] sm:$0xff]
  %v656 = vld [vmem:[%s2 + $0x50] sm:$0xff]
  %v657 = vld [vmem:[%s2 + $0x58] sm:$0xff]
  %v658 = vld [vmem:[%s2 + $0x60] sm:$0xff]
  %v659 = vld [vmem:[%s2 + $0x68] sm:$0xff]
  %v660 = vld [vmem:[%s2 + $0x70] sm:$0xff]
  %v661 = vld [vmem:[%s2 + $0x78] sm:$0xff]
  %v662 = vld [vmem:[%s2 + $0x80] sm:$0xff]
  %v663 = vld [vmem:[%s2 + $0x88] sm:$0xff]
  %v664 = vmul.f32 %v250, %v628
  %v665 = vmul.f32 %v251, %v629
  %v666 = vmul.f32 %v252, %v630
  %v667 = vmul.f32 %v253, %v631
  %v668 = vmul.f32 %v254, %v632
  %v669 = vmul.f32 %v255, %v633
  %v670 = vmul.f32 %v256, %v634
  %v671 = vmul.f32 %v257, %v635
  %v672 = vmul.f32 %v258, %v636
  %v673 = vmul.f32 %v259, %v637
  %v674 = vmul.f32 %v260, %v638
  %v675 = vmul.f32 %v261, %v639
  %v676 = vmul.f32 %v262, %v640
  %v677 = vmul.f32 %v263, %v641
  %v678 = vmul.f32 %v264, %v642
  %v679 = vmul.f32 %v265, %v643
  %v680 = vmul.f32 %v266, %v644
  %v681 = vmul.f32 %v267, %v645
  %v682 = vsub.f32 %v646, %v664
  %v683 = vsub.f32 %v647, %v665
  %v684 = vsub.f32 %v648, %v666
  %v685 = vsub.f32 %v649, %v667
  %v686 = vsub.f32 %v650, %v668
  %v687 = vsub.f32 %v651, %v669
  %v688 = vsub.f32 %v652, %v670
  %v689 = vsub.f32 %v653, %v671
  %v690 = vsub.f32 %v654, %v672
  %v691 = vsub.f32 %v655, %v673
  %v692 = vsub.f32 %v656, %v674
  %v693 = vsub.f32 %v657, %v675
  %v694 = vsub.f32 %v658, %v676
  %v695 = vsub.f32 %v659, %v677
  %v696 = vsub.f32 %v660, %v678
  %v697 = vsub.f32 %v661, %v679
  %v698 = vsub.f32 %v662, %v680
  %v699 = vsub.f32 %v663, %v681
  %v700 = vld [vmem:[%s3] sm:$0xff]
  %v701 = vld [vmem:[%s3 + $0x8] sm:$0xff]
  %v702 = vld [vmem:[%s3 + $0x10] sm:$0xff]
  %v703 = vld [vmem:[%s3 + $0x18] sm:$0xff]
  %v704 = vld [vmem:[%s3 + $0x20] sm:$0xff]
  %v705 = vld [vmem:[%s3 + $0x28] sm:$0xff]
  %v706 = vld [vmem:[%s3 + $0x30] sm:$0xff]
  %v707 = vld [vmem:[%s3 + $0x38] sm:$0xff]
  %v708 = vld [vmem:[%s3 + $0x40] sm:$0xff]
  %v709 = vld [vmem:[%s3 + $0x48] sm:$0xff]
  %v710 = vld [vmem:[%s3 + $0x50] sm:$0xff]
  %v711 = vld [vmem:[%s3 + $0x58] sm:$0xff]
  %v712 = vld [vmem:[%s3 + $0x60] sm:$0xff]
  %v713 = vld [vmem:[%s3 + $0x68] sm:$0xff]
  %v714 = vld [vmem:[%s3 + $0x70] sm:$0xff]
  %v715 = vld [vmem:[%s3 + $0x78] sm:$0xff]
  %v716 = vld [vmem:[%s3 + $0x80] sm:$0xff]
  %v717 = vld [vmem:[%s3 + $0x88] sm:$0xff]
  %v718 = vld [vmem:[%s3 + $0x90] sm:$0xff]
  %v719 = vld [vmem:[%s3 + $0x98] sm:$0xff]
  %v720 = vld [vmem:[%s3 + $0xa0] sm:$0xff]
  %v721 = vld [vmem:[%s3 + $0xa8] sm:$0xff]
  %v722 = vld [vmem:[%s3 + $0xb0] sm:$0xff]
  %v723 = vld [vmem:[%s3 + $0xb8] sm:$0xff]
  %725 = vset.pattern.permute.xlu0 0
  %726 = vperm.xlu0 %725, %v628
  %v727 = vpop.permute.xlu0 %726
  %730 = vset.pattern.permute.xlu0 0
  %731 = vperm.xlu0 %730, %v629
  %v732 = vpop.permute.xlu0 %731
  %735 = vset.pattern.permute.xlu0 0
  %736 = vperm.xlu0 %735, %v630
  %v737 = vpop.permute.xlu0 %736
  %740 = vset.pattern.permute.xlu0 0
  %741 = vperm.xlu0 %740, %v631
  %v742 = vpop.permute.xlu0 %741
  %745 = vset.pattern.permute.xlu0 0
  %746 = vperm.xlu0 %745, %v632
  %v747 = vpop.permute.xlu0 %746
  %750 = vset.pattern.permute.xlu0 0
  %751 = vperm.xlu0 %750, %v633
  %v752 = vpop.permute.xlu0 %751
  %755 = vset.pattern.permute.xlu0 0
  %756 = vperm.xlu0 %755, %v634
  %v757 = vpop.permute.xlu0 %756
  %760 = vset.pattern.permute.xlu0 0
  %761 = vperm.xlu0 %760, %v635
  %v762 = vpop.permute.xlu0 %761
  %765 = vset.pattern.permute.xlu0 0
  %766 = vperm.xlu0 %765, %v636
  %v767 = vpop.permute.xlu0 %766
  %770 = vset.pattern.permute.xlu0 0
  %771 = vperm.xlu0 %770, %v637
  %v772 = vpop.permute.xlu0 %771
  %775 = vset.pattern.permute.xlu0 0
  %776 = vperm.xlu0 %775, %v638
  %v777 = vpop.permute.xlu0 %776
  %780 = vset.pattern.permute.xlu0 0
  %781 = vperm.xlu0 %780, %v639
  %v782 = vpop.permute.xlu0 %781
  %785 = vset.pattern.permute.xlu0 0
  %786 = vperm.xlu0 %785, %v640
  %v787 = vpop.permute.xlu0 %786
  %790 = vset.pattern.permute.xlu0 0
  %791 = vperm.xlu0 %790, %v641
  %v792 = vpop.permute.xlu0 %791
  %795 = vset.pattern.permute.xlu0 0
  %796 = vperm.xlu0 %795, %v642
  %v797 = vpop.permute.xlu0 %796
  %800 = vset.pattern.permute.xlu0 0
  %801 = vperm.xlu0 %800, %v643
  %v802 = vpop.permute.xlu0 %801
  %805 = vset.pattern.permute.xlu0 0
  %806 = vperm.xlu0 %805, %v644
  %v807 = vpop.permute.xlu0 %806
  %810 = vset.pattern.permute.xlu0 0
  %811 = vperm.xlu0 %810, %v645
  %v812 = vpop.permute.xlu0 %811
  %v814 = vmul.f32 %v33, %v727
  %v815 = vmul.f32 %v34, %v727
  %v816 = vmul.f32 %v35, %v732
  %v817 = vmul.f32 %v36, %v732
  %v818 = vmul.f32 %v37, %v737
  %v819 = vmul.f32 %v38, %v737
  %v820 = vmul.f32 %v39, %v742
  %v821 = vmul.f32 %v40, %v742
  %v822 = vmul.f32 %v41, %v747
  %v823 = vmul.f32 %v42, %v747
  %v824 = vmul.f32 %v43, %v752
  %v825 = vmul.f32 %v44, %v752
  %v826 = vmul.f32 %v45, %v757
  %v827 = vmul.f32 %v46, %v757
  %v828 = vmul.f32 %v47, %v762
  %v829 = vmul.f32 %v48, %v762
  %v830 = vmul.f32 %v49, %v767
  %v831 = vmul.f32 %v50, %v767
  %v832 = vmul.f32 %v51, %v772
  %v833 = vmul.f32 %v52, %v772
  %v834 = vmul.f32 %v53, %v777
  %v835 = vmul.f32 %v54, %v777
  %v836 = vmul.f32 %v55, %v782
  %v837 = vmul.f32 %v56, %v782
  %v838 = vmul.f32 %v57, %v787
  %v839 = vmul.f32 %v58, %v787
  %v840 = vmul.f32 %v59, %v792
  %v841 = vmul.f32 %v60, %v792
  %v842 = vmul.f32 %v61, %v797
  %v843 = vmul.f32 %v62, %v797
  %v844 = vmul.f32 %v63, %v802
  %v845 = vmul.f32 %v64, %v802
  %v846 = vmul.f32 %v65, %v807
  %v847 = vmul.f32 %v66, %v807
  %v848 = vmul.f32 %v67, %v812
  %v849 = vmul.f32 %v68, %v812
  %851 = vset.pattern.permute.xlu0 0
  %852 = vperm.xlu0 %851, %v682
  %v853 = vpop.permute.xlu0 %852
  %856 = vset.pattern.permute.xlu0 0
  %857 = vperm.xlu0 %856, %v683
  %v858 = vpop.permute.xlu0 %857
  %861 = vset.pattern.permute.xlu0 0
  %862 = vperm.xlu0 %861, %v684
  %v863 = vpop.permute.xlu0 %862
  %866 = vset.pattern.permute.xlu0 0
  %867 = vperm.xlu0 %866, %v685
  %v868 = vpop.permute.xlu0 %867
  %871 = vset.pattern.permute.xlu0 0
  %872 = vperm.xlu0 %871, %v686
  %v873 = vpop.permute.xlu0 %872
  %876 = vset.pattern.permute.xlu0 0
  %877 = vperm.xlu0 %876, %v687
  %v878 = vpop.permute.xlu0 %877
  %881 = vset.pattern.permute.xlu0 0
  %882 = vperm.xlu0 %881, %v688
  %v883 = vpop.permute.xlu0 %882
  %886 = vset.pattern.permute.xlu0 0
  %887 = vperm.xlu0 %886, %v689
  %v888 = vpop.permute.xlu0 %887
  %891 = vset.pattern.permute.xlu0 0
  %892 = vperm.xlu0 %891, %v690
  %v893 = vpop.permute.xlu0 %892
  %896 = vset.pattern.permute.xlu0 0
  %897 = vperm.xlu0 %896, %v691
  %v898 = vpop.permute.xlu0 %897
  %901 = vset.pattern.permute.xlu0 0
  %902 = vperm.xlu0 %901, %v692
  %v903 = vpop.permute.xlu0 %902
  %906 = vset.pattern.permute.xlu0 0
  %907 = vperm.xlu0 %906, %v693
  %v908 = vpop.permute.xlu0 %907
  %911 = vset.pattern.permute.xlu0 0
  %912 = vperm.xlu0 %911, %v694
  %v913 = vpop.permute.xlu0 %912
  %916 = vset.pattern.permute.xlu0 0
  %917 = vperm.xlu0 %916, %v695
  %v918 = vpop.permute.xlu0 %917
  %921 = vset.pattern.permute.xlu0 0
  %922 = vperm.xlu0 %921, %v696
  %v923 = vpop.permute.xlu0 %922
  %926 = vset.pattern.permute.xlu0 0
  %927 = vperm.xlu0 %926, %v697
  %v928 = vpop.permute.xlu0 %927
  %931 = vset.pattern.permute.xlu0 0
  %932 = vperm.xlu0 %931, %v698
  %v933 = vpop.permute.xlu0 %932
  %936 = vset.pattern.permute.xlu0 0
  %937 = vperm.xlu0 %936, %v699
  %v938 = vpop.permute.xlu0 %937
  %v940 = vadd.f32 %v814, %v853
  %v941 = vadd.f32 %v815, %v853
  %v942 = vadd.f32 %v816, %v858
  %v943 = vadd.f32 %v817, %v858
  %v944 = vadd.f32 %v818, %v863
  %v945 = vadd.f32 %v819, %v863
  %v946 = vadd.f32 %v820, %v868
  %v947 = vadd.f32 %v821, %v868
  %v948 = vadd.f32 %v822, %v873
  %v949 = vadd.f32 %v823, %v873
  %v950 = vadd.f32 %v824, %v878
  %v951 = vadd.f32 %v825, %v878
  %v952 = vadd.f32 %v826, %v883
  %v953 = vadd.f32 %v827, %v883
  %v954 = vadd.f32 %v828, %v888
  %v955 = vadd.f32 %v829, %v888
  %v956 = vadd.f32 %v830, %v893
  %v957 = vadd.f32 %v831, %v893
  %v958 = vadd.f32 %v832, %v898
  %v959 = vadd.f32 %v833, %v898
  %v960 = vadd.f32 %v834, %v903
  %v961 = vadd.f32 %v835, %v903
  %v962 = vadd.f32 %v836, %v908
  %v963 = vadd.f32 %v837, %v908
  %v964 = vadd.f32 %v838, %v913
  %v965 = vadd.f32 %v839, %v913
  %v966 = vadd.f32 %v840, %v918
  %v967 = vadd.f32 %v841, %v918
  %v968 = vadd.f32 %v842, %v923
  %v969 = vadd.f32 %v843, %v923
  %v970 = vadd.f32 %v844, %v928
  %v971 = vadd.f32 %v845, %v928
  %v972 = vadd.f32 %v846, %v933
  %v973 = vadd.f32 %v847, %v933
  %v974 = vadd.f32 %v848, %v938
  %v975 = vadd.f32 %v849, %v938
  %v976 = vmax.f32 %v940, 0.0
  %v977 = vmax.f32 %v941, 0.0
  %v978 = vmax.f32 %v942, 0.0
  %v979 = vmax.f32 %v943, 0.0
  %v980 = vmax.f32 %v944, 0.0
  %v981 = vmax.f32 %v945, 0.0
  %v982 = vmax.f32 %v946, 0.0
  %v983 = vmax.f32 %v947, 0.0
  %v984 = vmax.f32 %v948, 0.0
  %v985 = vmax.f32 %v949, 0.0
  %v986 = vmax.f32 %v950, 0.0
  %v987 = vmax.f32 %v951, 0.0
  %v988 = vmax.f32 %v952, 0.0
  %v989 = vmax.f32 %v953, 0.0
  %v990 = vmax.f32 %v954, 0.0
  %v991 = vmax.f32 %v955, 0.0
  %v992 = vmax.f32 %v956, 0.0
  %v993 = vmax.f32 %v957, 0.0
  %v994 = vmax.f32 %v958, 0.0
  %v995 = vmax.f32 %v959, 0.0
  %v996 = vmax.f32 %v960, 0.0
  %v997 = vmax.f32 %v961, 0.0
  %v998 = vmax.f32 %v962, 0.0
  %v999 = vmax.f32 %v963, 0.0
  %v1000 = vmax.f32 %v964, 0.0
  %v1001 = vmax.f32 %v965, 0.0
  %v1002 = vmax.f32 %v966, 0.0
  %v1003 = vmax.f32 %v967, 0.0
  %v1004 = vmax.f32 %v968, 0.0
  %v1005 = vmax.f32 %v969, 0.0
  %v1006 = vmax.f32 %v970, 0.0
  %v1007 = vmax.f32 %v971, 0.0
  %v1008 = vmax.f32 %v972, 0.0
  %v1009 = vmax.f32 %v973, 0.0
  %v1010 = vmax.f32 %v974, 0.0
  %v1011 = vmax.f32 %v975, 0.0
  %v1012 = vpack.c.bf16 %v978, %v976
  %v1013 = vpack.c.bf16 %v979, %v977
  %v1014 = vpack.c.bf16 %v982, %v980
  %v1015 = vpack.c.bf16 %v983, %v981
  %v1016 = vpack.c.bf16 %v986, %v984
  %v1017 = vpack.c.bf16 %v987, %v985
  %v1018 = vpack.c.bf16 %v990, %v988
  %v1019 = vpack.c.bf16 %v991, %v989
  %v1020 = vpack.c.bf16 %v994, %v992
  %v1021 = vpack.c.bf16 %v995, %v993
  %v1022 = vpack.c.bf16 %v998, %v996
  %v1023 = vpack.c.bf16 %v999, %v997
  %v1024 = vpack.c.bf16 %v1002, %v1000
  %v1025 = vpack.c.bf16 %v1003, %v1001
  %v1026 = vpack.c.bf16 %v1006, %v1004
  %v1027 = vpack.c.bf16 %v1007, %v1005
  %v1028 = vpack.c.bf16 %v1010, %v1008
  %v1029 = vpack.c.bf16 %v1011, %v1009
  %v1054 = vunpack.c.l.b16 %v700
  %v1055 = vunpack.c.h.b16 %v700
  %v1056 = vunpack.c.l.b16 %v701
  %v1057 = vunpack.c.h.b16 %v701
  %v1058 = vunpack.c.l.b16 %v702
  %v1059 = vunpack.c.h.b16 %v702
  %v1060 = vunpack.c.l.b16 %v703
  %v1061 = vunpack.c.h.b16 %v703
  %v1062 = vunpack.c.l.b16 %v704
  %v1063 = vunpack.c.h.b16 %v704
  %v1064 = vunpack.c.l.b16 %v705
  %v1065 = vunpack.c.h.b16 %v705
  %v1066 = vunpack.c.l.b16 %v706
  %v1067 = vunpack.c.h.b16 %v706
  %v1068 = vunpack.c.l.b16 %v707
  %v1069 = vunpack.c.h.b16 %v707
  %v1070 = vunpack.c.l.b16 %v708
  %v1071 = vunpack.c.h.b16 %v708
  %v1072 = vunpack.c.l.b16 %v709
  %v1073 = vunpack.c.h.b16 %v709
  %v1074 = vunpack.c.l.b16 %v710
  %v1075 = vunpack.c.h.b16 %v710
  %v1076 = vunpack.c.l.b16 %v711
  %v1077 = vunpack.c.h.b16 %v711
  %v1078 = vunpack.c.l.b16 %v712
  %v1079 = vunpack.c.h.b16 %v712
  %v1080 = vunpack.c.l.b16 %v713
  %v1081 = vunpack.c.h.b16 %v713
  %v1082 = vunpack.c.l.b16 %v714
  %v1083 = vunpack.c.h.b16 %v714
  %v1084 = vunpack.c.l.b16 %v715
  %v1085 = vunpack.c.h.b16 %v715
  %v1086 = vunpack.c.l.b16 %v716
  %v1087 = vunpack.c.h.b16 %v716
  %v1088 = vunpack.c.l.b16 %v717
  %v1089 = vunpack.c.h.b16 %v717
  %v1090 = vunpack.c.l.b16 %v718
  %v1091 = vunpack.c.h.b16 %v718
  %v1092 = vunpack.c.l.b16 %v719
  %v1093 = vunpack.c.h.b16 %v719
  %v1094 = vunpack.c.l.b16 %v720
  %v1095 = vunpack.c.h.b16 %v720
  %v1096 = vunpack.c.l.b16 %v721
  %v1097 = vunpack.c.h.b16 %v721
  %v1098 = vunpack.c.l.b16 %v722
  %v1099 = vunpack.c.h.b16 %v722
  %v1100 = vunpack.c.l.b16 %v723
  %v1101 = vunpack.c.h.b16 %v723
  %v1102 = vpack.c.b16 %v1056, %v1054
  %v1103 = vpack.c.b16 %v1057, %v1055
  %v1104 = vpack.c.b16 %v1060, %v1058
  %v1105 = vpack.c.b16 %v1061, %v1059
  %v1106 = vpack.c.b16 %v1064, %v1062
  %v1107 = vpack.c.b16 %v1065, %v1063
  %v1108 = vpack.c.b16 %v1068, %v1066
  %v1109 = vpack.c.b16 %v1069, %v1067
  %v1110 = vpack.c.b16 %v1072, %v1070
  %v1111 = vpack.c.b16 %v1073, %v1071
  %v1112 = vpack.c.b16 %v1076, %v1074
  %v1113 = vpack.c.b16 %v1077, %v1075
  %v1114 = vpack.c.b16 %v1080, %v1078
  %v1115 = vpack.c.b16 %v1081, %v1079
  %v1116 = vpack.c.b16 %v1084, %v1082
  %v1117 = vpack.c.b16 %v1085, %v1083
  %v1118 = vpack.c.b16 %v1088, %v1086
  %v1119 = vpack.c.b16 %v1089, %v1087
  %v1120 = vpack.c.b16 %v1092, %v1090
  %v1121 = vpack.c.b16 %v1093, %v1091
  %v1122 = vpack.c.b16 %v1096, %v1094
  %v1123 = vpack.c.b16 %v1097, %v1095
  %v1124 = vpack.c.b16 %v1100, %v1098
  %v1125 = vpack.c.b16 %v1101, %v1099
  %vm1138 = vcmask 130048
  %v1140 = vsel %vm1138, %v1103, 0
  %v1143 = vsel %vm1138, %v1105, 0
  %v1146 = vsel %vm1138, %v1107, 0
  %v1149 = vsel %vm1138, %v1109, 0
  %v1152 = vsel %vm1138, %v1111, 0
  %v1155 = vsel %vm1138, %v1113, 0
  %v1158 = vsel %vm1138, %v1115, 0
  %v1161 = vsel %vm1138, %v1117, 0
  %v1164 = vsel %vm1138, %v1119, 0
  %v1167 = vsel %vm1138, %v1121, 0
  %v1170 = vsel %vm1138, %v1123, 0
  %v1173 = vsel %vm1138, %v1125, 0
  %1175 = vmatprep.subr.bf16.mxu0 %v1013
  %1176 = vmatpush1.bf16.msra.mxu0 %v1012
  %1177 = vmatprep.subr.bf16.mxu0 %v1015
  %1178 = vmatpush1.bf16.msra.mxu0 %v1014
  %1179 = vmatprep.subr.bf16.mxu0 %v1017
  %1180 = vmatpush1.bf16.msra.mxu0 %v1016
  %1181 = vmatprep.subr.bf16.mxu0 %v1019
  %1182 = vmatpush1.bf16.msra.mxu0 %v1018
  %1183 = vmatprep.subr.bf16.mxu0 %v1021
  %1184 = vmatpush1.bf16.msra.mxu0 %v1020
  %1185 = vmatprep.subr.bf16.mxu0 %v1023
  %1186 = vmatpush1.bf16.msra.mxu0 %v1022
  %1187 = vmatprep.subr.bf16.mxu0 %v1025
  %1188 = vmatpush1.bf16.msra.mxu0 %v1024
  %1189 = vmatprep.subr.bf16.mxu0 %v1027
  %1190 = vmatpush1.bf16.msra.mxu0 %v1026
  %1191 = vmatprep.subr.bf16.mxu0 %v1029
  %1192 = vmatpush1.bf16.msra.mxu0 %v1028
  %1193 = vmatprep.subr.bf16.mxu0 0
  %1194 = vmatpush1.bf16.msra.mxu0 0
  %1195 = vmatprep.subr.bf16.mxu0 0
  %1196 = vmatpush1.bf16.msra.mxu0 0
  %1197 = vmatprep.subr.bf16.mxu0 0
  %1198 = vmatpush1.bf16.msra.mxu0 0
  %1199 = vmatprep.subr.bf16.mxu0 0
  %1200 = vmatpush1.bf16.msra.mxu0 0
  %1201 = vmatprep.subr.bf16.mxu0 0
  %1202 = vmatpush1.bf16.msra.mxu0 0
  %1203 = vmatprep.subr.bf16.mxu0 0
  %1204 = vmatpush1.bf16.msra.mxu0 0
  %1205 = vmatprep.subr.bf16.mxu0 0
  %1206 = vmatpush1.bf16.msra.mxu0 0
  %1207 = vmatprep.mubr.bf16.mxu0 %v1140
  %1208 = vmatmul.mubr.bf16.gmra.mrb[0].mxu0 %v1102
  %v1209 = vpop.f32.mrb[0].mxu0
  %v1210 = vadd.f32 0.0, %v1209
  %v1211 = vpop.f32.mrb[0].mxu0
  %v1212 = vadd.f32 0.0, %v1211
  %v1213 = vpop.f32.mrb[0].mxu0
  %v1214 = vadd.f32 0.0, %v1213
  %v1215 = vpop.f32.mrb[0].mxu0
  %v1216 = vadd.f32 0.0, %v1215
  %1217 = vmatprep.mubr.bf16.mxu0 %v1143
  %1218 = vmatmul.mubr.bf16.gmra.mrb[0].mxu0 %v1104
  %v1219 = vpop.f32.mrb[0].mxu0
  %v1220 = vadd.f32 0.0, %v1219
  %v1221 = vpop.f32.mrb[0].mxu0
  %v1222 = vadd.f32 0.0, %v1221
  %v1223 = vpop.f32.mrb[0].mxu0
  %v1224 = vadd.f32 0.0, %v1223
  %v1225 = vpop.f32.mrb[0].mxu0
  %v1226 = vadd.f32 0.0, %v1225
  %1227 = vmatprep.mubr.bf16.mxu0 %v1146
  %1228 = vmatmul.mubr.bf16.gmra.mrb[0].mxu0 %v1106
  %v1229 = vpop.f32.mrb[0].mxu0
  %v1230 = vadd.f32 0.0, %v1229
  %v1231 = vpop.f32.mrb[0].mxu0
  %v1232 = vadd.f32 0.0, %v1231
  %v1233 = vpop.f32.mrb[0].mxu0
  %v1234 = vadd.f32 0.0, %v1233
  %v1235 = vpop.f32.mrb[0].mxu0
  %v1236 = vadd.f32 0.0, %v1235
  %1237 = vmatprep.mubr.bf16.mxu0 %v1149
  %1238 = vmatmul.mubr.bf16.gmra.mrb[0].mxu0 %v1108
  %v1239 = vpop.f32.mrb[0].mxu0
  %v1240 = vadd.f32 0.0, %v1239
  %v1241 = vpop.f32.mrb[0].mxu0
  %v1242 = vadd.f32 0.0, %v1241
  %v1243 = vpop.f32.mrb[0].mxu0
  %v1244 = vadd.f32 0.0, %v1243
  %v1245 = vpop.f32.mrb[0].mxu0
  %v1246 = vadd.f32 0.0, %v1245
  %1247 = vmatprep.mubr.bf16.mxu0 %v1152
  %1248 = vmatmul.mubr.bf16.gmra.mrb[0].mxu0 %v1110
  %v1249 = vpop.f32.mrb[0].mxu0
  %v1250 = vadd.f32 0.0, %v1249
  %v1251 = vpop.f32.mrb[0].mxu0
  %v1252 = vadd.f32 0.0, %v1251
  %v1253 = vpop.f32.mrb[0].mxu0
  %v1254 = vadd.f32 0.0, %v1253
  %v1255 = vpop.f32.mrb[0].mxu0
  %v1256 = vadd.f32 0.0, %v1255
  %1257 = vmatprep.mubr.bf16.mxu0 %v1155
  %1258 = vmatmul.mubr.bf16.gmra.mrb[0].mxu0 %v1112
  %v1259 = vpop.f32.mrb[0].mxu0
  %v1260 = vadd.f32 0.0, %v1259
  %v1261 = vpop.f32.mrb[0].mxu0
  %v1262 = vadd.f32 0.0, %v1261
  %v1263 = vpop.f32.mrb[0].mxu0
  %v1264 = vadd.f32 0.0, %v1263
  %v1265 = vpop.f32.mrb[0].mxu0
  %v1266 = vadd.f32 0.0, %v1265
  %1267 = vmatprep.mubr.bf16.mxu0 %v1158
  %1268 = vmatmul.mubr.bf16.gmra.mrb[0].mxu0 %v1114
  %v1269 = vpop.f32.mrb[0].mxu0
  %v1270 = vadd.f32 0.0, %v1269
  %v1271 = vpop.f32.mrb[0].mxu0
  %v1272 = vadd.f32 0.0, %v1271
  %v1273 = vpop.f32.mrb[0].mxu0
  %v1274 = vadd.f32 0.0, %v1273
  %v1275 = vpop.f32.mrb[0].mxu0
  %v1276 = vadd.f32 0.0, %v1275
  %1277 = vmatprep.mubr.bf16.mxu0 %v1161
  %1278 = vmatmul.mubr.bf16.gmra.mrb[0].mxu0 %v1116
  %v1279 = vpop.f32.mrb[0].mxu0
  %v1280 = vadd.f32 0.0, %v1279
  %v1281 = vpop.f32.mrb[0].mxu0
  %v1282 = vadd.f32 0.0, %v1281
  %v1283 = vpop.f32.mrb[0].mxu0
  %v1284 = vadd.f32 0.0, %v1283
  %v1285 = vpop.f32.mrb[0].mxu0
  %v1286 = vadd.f32 0.0, %v1285
  %1287 = vmatprep.mubr.bf16.mxu0 %v1164
  %1288 = vmatmul.mubr.bf16.gmra.mrb[0].mxu0 %v1118
  %v1289 = vpop.f32.mrb[0].mxu0
  %v1290 = vadd.f32 0.0, %v1289
  %v1291 = vpop.f32.mrb[0].mxu0
  %v1292 = vadd.f32 0.0, %v1291
  %v1293 = vpop.f32.mrb[0].mxu0
  %v1294 = vadd.f32 0.0, %v1293
  %v1295 = vpop.f32.mrb[0].mxu0
  %v1296 = vadd.f32 0.0, %v1295
  %1297 = vmatprep.mubr.bf16.mxu0 %v1167
  %1298 = vmatmul.mubr.bf16.gmra.mrb[0].mxu0 %v1120
  %v1299 = vpop.f32.mrb[0].mxu0
  %v1300 = vadd.f32 0.0, %v1299
  %v1301 = vpop.f32.mrb[0].mxu0
  %v1302 = vadd.f32 0.0, %v1301
  %v1303 = vpop.f32.mrb[0].mxu0
  %v1304 = vadd.f32 0.0, %v1303
  %v1305 = vpop.f32.mrb[0].mxu0
  %v1306 = vadd.f32 0.0, %v1305
  %1307 = vmatprep.mubr.bf16.mxu0 %v1170
  %1308 = vmatmul.mubr.bf16.gmra.mrb[0].mxu0 %v1122
  %v1309 = vpop.f32.mrb[0].mxu0
  %v1310 = vadd.f32 0.0, %v1309
  %v1311 = vpop.f32.mrb[0].mxu0
  %v1312 = vadd.f32 0.0, %v1311
  %v1313 = vpop.f32.mrb[0].mxu0
  %v1314 = vadd.f32 0.0, %v1313
  %v1315 = vpop.f32.mrb[0].mxu0
  %v1316 = vadd.f32 0.0, %v1315
  %1317 = vmatprep.mubr.bf16.mxu0 %v1173
  %1318 = vmatmul.mubr.bf16.gmra.mrb[0].mxu0 %v1124
  %v1319 = vpop.f32.mrb[0].mxu0
  %v1320 = vadd.f32 0.0, %v1319
  %v1321 = vpop.f32.mrb[0].mxu0
  %v1322 = vadd.f32 0.0, %v1321
  %v1323 = vpop.f32.mrb[0].mxu0
  %v1324 = vadd.f32 0.0, %v1323
  %v1325 = vpop.f32.mrb[0].mxu0
  %v1326 = vadd.f32 0.0, %v1325
  %1327 = vdwg.mxu0
  %v1328 = vmul.f32 %v142, %v727
  %v1329 = vmul.f32 %v143, %v727
  %v1330 = vmul.f32 %v144, %v732
  %v1331 = vmul.f32 %v145, %v732
  %v1332 = vmul.f32 %v146, %v737
  %v1333 = vmul.f32 %v147, %v737
  %v1334 = vmul.f32 %v148, %v742
  %v1335 = vmul.f32 %v149, %v742
  %v1336 = vmul.f32 %v150, %v747
  %v1337 = vmul.f32 %v151, %v747
  %v1338 = vmul.f32 %v152, %v752
  %v1339 = vmul.f32 %v153, %v752
  %v1340 = vmul.f32 %v154, %v757
  %v1341 = vmul.f32 %v155, %v757
  %v1342 = vmul.f32 %v156, %v762
  %v1343 = vmul.f32 %v157, %v762
  %v1344 = vmul.f32 %v158, %v767
  %v1345 = vmul.f32 %v159, %v767
  %v1346 = vmul.f32 %v160, %v772
  %v1347 = vmul.f32 %v161, %v772
  %v1348 = vmul.f32 %v162, %v777
  %v1349 = vmul.f32 %v163, %v777
  %v1350 = vmul.f32 %v164, %v782
  %v1351 = vmul.f32 %v165, %v782
  %v1352 = vmul.f32 %v166, %v787
  %v1353 = vmul.f32 %v167, %v787
  %v1354 = vmul.f32 %v168, %v792
  %v1355 = vmul.f32 %v169, %v792
  %v1356 = vmul.f32 %v170, %v797
  %v1357 = vmul.f32 %v171, %v797
  %v1358 = vmul.f32 %v172, %v802
  %v1359 = vmul.f32 %v173, %v802
  %v1360 = vmul.f32 %v174, %v807
  %v1361 = vmul.f32 %v175, %v807
  %v1362 = vmul.f32 %v176, %v812
  %v1363 = vmul.f32 %v177, %v812
  %v1364 = vadd.f32 %v1328, %v853
  %v1365 = vadd.f32 %v1329, %v853
  %v1366 = vadd.f32 %v1330, %v858
  %v1367 = vadd.f32 %v1331, %v858
  %v1368 = vadd.f32 %v1332, %v863
  %v1369 = vadd.f32 %v1333, %v863
  %v1370 = vadd.f32 %v1334, %v868
  %v1371 = vadd.f32 %v1335, %v868
  %v1372 = vadd.f32 %v1336, %v873
  %v1373 = vadd.f32 %v1337, %v873
  %v1374 = vadd.f32 %v1338, %v878
  %v1375 = vadd.f32 %v1339, %v878
  %v1376 = vadd.f32 %v1340, %v883
  %v1377 = vadd.f32 %v1341, %v883
  %v1378 = vadd.f32 %v1342, %v888
  %v1379 = vadd.f32 %v1343, %v888
  %v1380 = vadd.f32 %v1344, %v893
  %v1381 = vadd.f32 %v1345, %v893
  %v1382 = vadd.f32 %v1346, %v898
  %v1383 = vadd.f32 %v1347, %v898
  %v1384 = vadd.f32 %v1348, %v903
  %v1385 = vadd.f32 %v1349, %v903
  %v1386 = vadd.f32 %v1350, %v908
  %v1387 = vadd.f32 %v1351, %v908
  %v1388 = vadd.f32 %v1352, %v913
  %v1389 = vadd.f32 %v1353, %v913
  %v1390 = vadd.f32 %v1354, %v918
  %v1391 = vadd.f32 %v1355, %v918
  %v1392 = vadd.f32 %v1356, %v923
  %v1393 = vadd.f32 %v1357, %v923
  %v1394 = vadd.f32 %v1358, %v928
  %v1395 = vadd.f32 %v1359, %v928
  %v1396 = vadd.f32 %v1360, %v933
  %v1397 = vadd.f32 %v1361, %v933
  %v1398 = vadd.f32 %v1362, %v938
  %v1399 = vadd.f32 %v1363, %v938
  %v1400 = vmax.f32 %v1364, 0.0
  %v1401 = vmax.f32 %v1365, 0.0
  %v1402 = vmax.f32 %v1366, 0.0
  %v1403 = vmax.f32 %v1367, 0.0
  %v1404 = vmax.f32 %v1368, 0.0
  %v1405 = vmax.f32 %v1369, 0.0
  %v1406 = vmax.f32 %v1370, 0.0
  %v1407 = vmax.f32 %v1371, 0.0
  %v1408 = vmax.f32 %v1372, 0.0
  %v1409 = vmax.f32 %v1373, 0.0
  %v1410 = vmax.f32 %v1374, 0.0
  %v1411 = vmax.f32 %v1375, 0.0
  %v1412 = vmax.f32 %v1376, 0.0
  %v1413 = vmax.f32 %v1377, 0.0
  %v1414 = vmax.f32 %v1378, 0.0
  %v1415 = vmax.f32 %v1379, 0.0
  %v1416 = vmax.f32 %v1380, 0.0
  %v1417 = vmax.f32 %v1381, 0.0
  %v1418 = vmax.f32 %v1382, 0.0
  %v1419 = vmax.f32 %v1383, 0.0
  %v1420 = vmax.f32 %v1384, 0.0
  %v1421 = vmax.f32 %v1385, 0.0
  %v1422 = vmax.f32 %v1386, 0.0
  %v1423 = vmax.f32 %v1387, 0.0
  %v1424 = vmax.f32 %v1388, 0.0
  %v1425 = vmax.f32 %v1389, 0.0
  %v1426 = vmax.f32 %v1390, 0.0
  %v1427 = vmax.f32 %v1391, 0.0
  %v1428 = vmax.f32 %v1392, 0.0
  %v1429 = vmax.f32 %v1393, 0.0
  %v1430 = vmax.f32 %v1394, 0.0
  %v1431 = vmax.f32 %v1395, 0.0
  %v1432 = vmax.f32 %v1396, 0.0
  %v1433 = vmax.f32 %v1397, 0.0
  %v1434 = vmax.f32 %v1398, 0.0
  %v1435 = vmax.f32 %v1399, 0.0
  %v1436 = vpack.c.bf16 %v1402, %v1400
  %v1437 = vpack.c.bf16 %v1403, %v1401
  %v1438 = vpack.c.bf16 %v1406, %v1404
  %v1439 = vpack.c.bf16 %v1407, %v1405
  %v1440 = vpack.c.bf16 %v1410, %v1408
  %v1441 = vpack.c.bf16 %v1411, %v1409
  %v1442 = vpack.c.bf16 %v1414, %v1412
  %v1443 = vpack.c.bf16 %v1415, %v1413
  %v1444 = vpack.c.bf16 %v1418, %v1416
  %v1445 = vpack.c.bf16 %v1419, %v1417
  %v1446 = vpack.c.bf16 %v1422, %v1420
  %v1447 = vpack.c.bf16 %v1423, %v1421
  %v1448 = vpack.c.bf16 %v1426, %v1424
  %v1449 = vpack.c.bf16 %v1427, %v1425
  %v1450 = vpack.c.bf16 %v1430, %v1428
  %v1451 = vpack.c.bf16 %v1431, %v1429
  %v1452 = vpack.c.bf16 %v1434, %v1432
  %v1453 = vpack.c.bf16 %v1435, %v1433
  %1454 = vmatprep.subr.bf16.mxu0 %v1437
  %1455 = vmatpush1.bf16.msra.mxu0 %v1436
  %1456 = vmatprep.subr.bf16.mxu0 %v1439
  %1457 = vmatpush1.bf16.msra.mxu0 %v1438
  %1458 = vmatprep.subr.bf16.mxu0 %v1441
  %1459 = vmatpush1.bf16.msra.mxu0 %v1440
  %1460 = vmatprep.subr.bf16.mxu0 %v1443
  %1461 = vmatpush1.bf16.msra.mxu0 %v1442
  %1462 = vmatprep.subr.bf16.mxu0 %v1445
  %1463 = vmatpush1.bf16.msra.mxu0 %v1444
  %1464 = vmatprep.subr.bf16.mxu0 %v1447
  %1465 = vmatpush1.bf16.msra.mxu0 %v1446
  %1466 = vmatprep.subr.bf16.mxu0 %v1449
  %1467 = vmatpush1.bf16.msra.mxu0 %v1448
  %1468 = vmatprep.subr.bf16.mxu0 %v1451
  %1469 = vmatpush1.bf16.msra.mxu0 %v1450
  %1470 = vmatprep.subr.bf16.mxu0 %v1453
  %1471 = vmatpush1.bf16.msra.mxu0 %v1452
  %1472 = vmatprep.subr.bf16.mxu0 0
  %1473 = vmatpush1.bf16.msra.mxu0 0
  %1474 = vmatprep.subr.bf16.mxu0 0
  %1475 = vmatpush1.bf16.msra.mxu0 0
  %1476 = vmatprep.subr.bf16.mxu0 0
  %1477 = vmatpush1.bf16.msra.mxu0 0
  %1478 = vmatprep.subr.bf16.mxu0 0
  %1479 = vmatpush1.bf16.msra.mxu0 0
  %1480 = vmatprep.subr.bf16.mxu0 0
  %1481 = vmatpush1.bf16.msra.mxu0 0
  %1482 = vmatprep.subr.bf16.mxu0 0
  %1483 = vmatpush1.bf16.msra.mxu0 0
  %1484 = vmatprep.subr.bf16.mxu0 0
  %1485 = vmatpush1.bf16.msra.mxu0 0
  %1486 = vmatprep.mubr.bf16.mxu0 %v1140
  %1487 = vmatmul.mubr.bf16.gmra.mrb[0].mxu0 %v1102
  %v1488 = vpop.f32.mrb[0].mxu0
  %v1489 = vadd.f32 0.0, %v1488
  %v1490 = vpop.f32.mrb[0].mxu0
  %v1491 = vadd.f32 0.0, %v1490
  %v1492 = vpop.f32.mrb[0].mxu0
  %v1493 = vadd.f32 0.0, %v1492
  %v1494 = vpop.f32.mrb[0].mxu0
  %v1495 = vadd.f32 0.0, %v1494
  %1496 = vmatprep.mubr.bf16.mxu0 %v1143
  %1497 = vmatmul.mubr.bf16.gmra.mrb[0].mxu0 %v1104
  %v1498 = vpop.f32.mrb[0].mxu0
  %v1499 = vadd.f32 0.0, %v1498
  %v1500 = vpop.f32.mrb[0].mxu0
  %v1501 = vadd.f32 0.0, %v1500
  %v1502 = vpop.f32.mrb[0].mxu0
  %v1503 = vadd.f32 0.0, %v1502
  %v1504 = vpop.f32.mrb[0].mxu0
  %v1505 = vadd.f32 0.0, %v1504
  %1506 = vmatprep.mubr.bf16.mxu0 %v1146
  %1507 = vmatmul.mubr.bf16.gmra.mrb[0].mxu0 %v1106
  %v1508 = vpop.f32.mrb[0].mxu0
  %v1509 = vadd.f32 0.0, %v1508
  %v1510 = vpop.f32.mrb[0].mxu0
  %v1511 = vadd.f32 0.0, %v1510
  %v1512 = vpop.f32.mrb[0].mxu0
  %v1513 = vadd.f32 0.0, %v1512
  %v1514 = vpop.f32.mrb[0].mxu0
  %v1515 = vadd.f32 0.0, %v1514
  %1516 = vmatprep.mubr.bf16.mxu0 %v1149
  %1517 = vmatmul.mubr.bf16.gmra.mrb[0].mxu0 %v1108
  %v1518 = vpop.f32.mrb[0].mxu0
  %v1519 = vadd.f32 0.0, %v1518
  %v1520 = vpop.f32.mrb[0].mxu0
  %v1521 = vadd.f32 0.0, %v1520
  %v1522 = vpop.f32.mrb[0].mxu0
  %v1523 = vadd.f32 0.0, %v1522
  %v1524 = vpop.f32.mrb[0].mxu0
  %v1525 = vadd.f32 0.0, %v1524
  %1526 = vmatprep.mubr.bf16.mxu0 %v1152
  %1527 = vmatmul.mubr.bf16.gmra.mrb[0].mxu0 %v1110
  %v1528 = vpop.f32.mrb[0].mxu0
  %v1529 = vadd.f32 0.0, %v1528
  %v1530 = vpop.f32.mrb[0].mxu0
  %v1531 = vadd.f32 0.0, %v1530
  %v1532 = vpop.f32.mrb[0].mxu0
  %v1533 = vadd.f32 0.0, %v1532
  %v1534 = vpop.f32.mrb[0].mxu0
  %v1535 = vadd.f32 0.0, %v1534
  %1536 = vmatprep.mubr.bf16.mxu0 %v1155
  %1537 = vmatmul.mubr.bf16.gmra.mrb[0].mxu0 %v1112
  %v1538 = vpop.f32.mrb[0].mxu0
  %v1539 = vadd.f32 0.0, %v1538
  %v1540 = vpop.f32.mrb[0].mxu0
  %v1541 = vadd.f32 0.0, %v1540
  %v1542 = vpop.f32.mrb[0].mxu0
  %v1543 = vadd.f32 0.0, %v1542
  %v1544 = vpop.f32.mrb[0].mxu0
  %v1545 = vadd.f32 0.0, %v1544
  %1546 = vmatprep.mubr.bf16.mxu0 %v1158
  %1547 = vmatmul.mubr.bf16.gmra.mrb[0].mxu0 %v1114
  %v1548 = vpop.f32.mrb[0].mxu0
  %v1549 = vadd.f32 0.0, %v1548
  %v1550 = vpop.f32.mrb[0].mxu0
  %v1551 = vadd.f32 0.0, %v1550
  %v1552 = vpop.f32.mrb[0].mxu0
  %v1553 = vadd.f32 0.0, %v1552
  %v1554 = vpop.f32.mrb[0].mxu0
  %v1555 = vadd.f32 0.0, %v1554
  %1556 = vmatprep.mubr.bf16.mxu0 %v1161
  %1557 = vmatmul.mubr.bf16.gmra.mrb[0].mxu0 %v1116
  %v1558 = vpop.f32.mrb[0].mxu0
  %v1559 = vadd.f32 0.0, %v1558
  %v1560 = vpop.f32.mrb[0].mxu0
  %v1561 = vadd.f32 0.0, %v1560
  %v1562 = vpop.f32.mrb[0].mxu0
  %v1563 = vadd.f32 0.0, %v1562
  %v1564 = vpop.f32.mrb[0].mxu0
  %v1565 = vadd.f32 0.0, %v1564
  %1566 = vmatprep.mubr.bf16.mxu0 %v1164
  %1567 = vmatmul.mubr.bf16.gmra.mrb[0].mxu0 %v1118
  %v1568 = vpop.f32.mrb[0].mxu0
  %v1569 = vadd.f32 0.0, %v1568
  %v1570 = vpop.f32.mrb[0].mxu0
  %v1571 = vadd.f32 0.0, %v1570
  %v1572 = vpop.f32.mrb[0].mxu0
  %v1573 = vadd.f32 0.0, %v1572
  %v1574 = vpop.f32.mrb[0].mxu0
  %v1575 = vadd.f32 0.0, %v1574
  %1576 = vmatprep.mubr.bf16.mxu0 %v1167
  %1577 = vmatmul.mubr.bf16.gmra.mrb[0].mxu0 %v1120
  %v1578 = vpop.f32.mrb[0].mxu0
  %v1579 = vadd.f32 0.0, %v1578
  %v1580 = vpop.f32.mrb[0].mxu0
  %v1581 = vadd.f32 0.0, %v1580
  %v1582 = vpop.f32.mrb[0].mxu0
  %v1583 = vadd.f32 0.0, %v1582
  %v1584 = vpop.f32.mrb[0].mxu0
  %v1585 = vadd.f32 0.0, %v1584
  %1586 = vmatprep.mubr.bf16.mxu0 %v1170
  %1587 = vmatmul.mubr.bf16.gmra.mrb[0].mxu0 %v1122
  %v1588 = vpop.f32.mrb[0].mxu0
  %v1589 = vadd.f32 0.0, %v1588
  %v1590 = vpop.f32.mrb[0].mxu0
  %v1591 = vadd.f32 0.0, %v1590
  %v1592 = vpop.f32.mrb[0].mxu0
  %v1593 = vadd.f32 0.0, %v1592
  %v1594 = vpop.f32.mrb[0].mxu0
  %v1595 = vadd.f32 0.0, %v1594
  %1596 = vmatprep.mubr.bf16.mxu0 %v1173
  %1597 = vmatmul.mubr.bf16.gmra.mrb[0].mxu0 %v1124
  %v1598 = vpop.f32.mrb[0].mxu0
  %v1599 = vadd.f32 0.0, %v1598
  %v1600 = vpop.f32.mrb[0].mxu0
  %v1601 = vadd.f32 0.0, %v1600
  %v1602 = vpop.f32.mrb[0].mxu0
  %v1603 = vadd.f32 0.0, %v1602
  %v1604 = vpop.f32.mrb[0].mxu0
  %v1605 = vadd.f32 0.0, %v1604
  %1606 = vdwg.mxu0
  %v1607 = vadd.f32 %v1210, %v1212
  %1608 = vadd.xlane.f32.xlu0 %v1607
  %v1609 = vpop.xlane.xlu0 %1608
  %v1610 = vadd.f32 %v1214, %v1216
  %1611 = vadd.xlane.f32.xlu0 %v1610
  %v1612 = vpop.xlane.xlu0 %1611
  %v1613 = vadd.f32 %v1220, %v1222
  %1614 = vadd.xlane.f32.xlu0 %v1613
  %v1615 = vpop.xlane.xlu0 %1614
  %v1616 = vadd.f32 %v1224, %v1226
  %1617 = vadd.xlane.f32.xlu0 %v1616
  %v1618 = vpop.xlane.xlu0 %1617
  %v1619 = vadd.f32 %v1230, %v1232
  %1620 = vadd.xlane.f32.xlu0 %v1619
  %v1621 = vpop.xlane.xlu0 %1620
  %v1622 = vadd.f32 %v1234, %v1236
  %1623 = vadd.xlane.f32.xlu0 %v1622
  %v1624 = vpop.xlane.xlu0 %1623
  %v1625 = vadd.f32 %v1240, %v1242
  %1626 = vadd.xlane.f32.xlu0 %v1625
  %v1627 = vpop.xlane.xlu0 %1626
  %v1628 = vadd.f32 %v1244, %v1246
  %1629 = vadd.xlane.f32.xlu0 %v1628
  %v1630 = vpop.xlane.xlu0 %1629
  %v1631 = vadd.f32 %v1250, %v1252
  %1632 = vadd.xlane.f32.xlu0 %v1631
  %v1633 = vpop.xlane.xlu0 %1632
  %v1634 = vadd.f32 %v1254, %v1256
  %1635 = vadd.xlane.f32.xlu0 %v1634
  %v1636 = vpop.xlane.xlu0 %1635
  %v1637 = vadd.f32 %v1260, %v1262
  %1638 = vadd.xlane.f32.xlu0 %v1637
  %v1639 = vpop.xlane.xlu0 %1638
  %v1640 = vadd.f32 %v1264, %v1266
  %1641 = vadd.xlane.f32.xlu0 %v1640
  %v1642 = vpop.xlane.xlu0 %1641
  %v1643 = vadd.f32 %v1270, %v1272
  %1644 = vadd.xlane.f32.xlu0 %v1643
  %v1645 = vpop.xlane.xlu0 %1644
  %v1646 = vadd.f32 %v1274, %v1276
  %1647 = vadd.xlane.f32.xlu0 %v1646
  %v1648 = vpop.xlane.xlu0 %1647
  %v1649 = vadd.f32 %v1280, %v1282
  %1650 = vadd.xlane.f32.xlu0 %v1649
  %v1651 = vpop.xlane.xlu0 %1650
  %v1652 = vadd.f32 %v1284, %v1286
  %1653 = vadd.xlane.f32.xlu0 %v1652
  %v1654 = vpop.xlane.xlu0 %1653
  %v1655 = vadd.f32 %v1290, %v1292
  %1656 = vadd.xlane.f32.xlu0 %v1655
  %v1657 = vpop.xlane.xlu0 %1656
  %v1658 = vadd.f32 %v1294, %v1296
  %1659 = vadd.xlane.f32.xlu0 %v1658
  %v1660 = vpop.xlane.xlu0 %1659
  %v1661 = vadd.f32 %v1300, %v1302
  %1662 = vadd.xlane.f32.xlu0 %v1661
  %v1663 = vpop.xlane.xlu0 %1662
  %v1664 = vadd.f32 %v1304, %v1306
  %1665 = vadd.xlane.f32.xlu0 %v1664
  %v1666 = vpop.xlane.xlu0 %1665
  %v1667 = vadd.f32 %v1310, %v1312
  %1668 = vadd.xlane.f32.xlu0 %v1667
  %v1669 = vpop.xlane.xlu0 %1668
  %v1670 = vadd.f32 %v1314, %v1316
  %1671 = vadd.xlane.f32.xlu0 %v1670
  %v1672 = vpop.xlane.xlu0 %1671
  %v1673 = vadd.f32 %v1320, %v1322
  %1674 = vadd.xlane.f32.xlu0 %v1673
  %v1675 = vpop.xlane.xlu0 %1674
  %v1676 = vadd.f32 %v1324, %v1326
  %1677 = vadd.xlane.f32.xlu0 %v1676
  %v1678 = vpop.xlane.xlu0 %1677
  %v1679 = vadd.f32 %v1609, 0.0
  %v1680 = vadd.f32 %v1612, 0.0
  %v1681 = vadd.f32 %v1615, 0.0
  %v1682 = vadd.f32 %v1618, 0.0
  %v1683 = vadd.f32 %v1621, 0.0
  %v1684 = vadd.f32 %v1624, 0.0
  %v1685 = vadd.f32 %v1627, 0.0
  %v1686 = vadd.f32 %v1630, 0.0
  %v1687 = vadd.f32 %v1633, 0.0
  %v1688 = vadd.f32 %v1636, 0.0
  %v1689 = vadd.f32 %v1639, 0.0
  %v1690 = vadd.f32 %v1642, 0.0
  %v1691 = vadd.f32 %v1645, 0.0
  %v1692 = vadd.f32 %v1648, 0.0
  %v1693 = vadd.f32 %v1651, 0.0
  %v1694 = vadd.f32 %v1654, 0.0
  %v1695 = vadd.f32 %v1657, 0.0
  %v1696 = vadd.f32 %v1660, 0.0
  %v1697 = vadd.f32 %v1663, 0.0
  %v1698 = vadd.f32 %v1666, 0.0
  %v1699 = vadd.f32 %v1669, 0.0
  %v1700 = vadd.f32 %v1672, 0.0
  %v1701 = vadd.f32 %v1675, 0.0
  %v1702 = vadd.f32 %v1678, 0.0
  %v1703 = vadd.f32 %v1489, %v1491
  %1704 = vadd.xlane.f32.xlu0 %v1703
  %v1705 = vpop.xlane.xlu0 %1704
  %v1706 = vadd.f32 %v1493, %v1495
  %1707 = vadd.xlane.f32.xlu0 %v1706
  %v1708 = vpop.xlane.xlu0 %1707
  %v1709 = vadd.f32 %v1499, %v1501
  %1710 = vadd.xlane.f32.xlu0 %v1709
  %v1711 = vpop.xlane.xlu0 %1710
  %v1712 = vadd.f32 %v1503, %v1505
  %1713 = vadd.xlane.f32.xlu0 %v1712
  %v1714 = vpop.xlane.xlu0 %1713
  %v1715 = vadd.f32 %v1509, %v1511
  %1716 = vadd.xlane.f32.xlu0 %v1715
  %v1717 = vpop.xlane.xlu0 %1716
  %v1718 = vadd.f32 %v1513, %v1515
  %1719 = vadd.xlane.f32.xlu0 %v1718
  %v1720 = vpop.xlane.xlu0 %1719
  %v1721 = vadd.f32 %v1519, %v1521
  %1722 = vadd.xlane.f32.xlu0 %v1721
  %v1723 = vpop.xlane.xlu0 %1722
  %v1724 = vadd.f32 %v1523, %v1525
  %1725 = vadd.xlane.f32.xlu0 %v1724
  %v1726 = vpop.xlane.xlu0 %1725
  %v1727 = vadd.f32 %v1529, %v1531
  %1728 = vadd.xlane.f32.xlu0 %v1727
  %v1729 = vpop.xlane.xlu0 %1728
  %v1730 = vadd.f32 %v1533, %v1535
  %1731 = vadd.xlane.f32.xlu0 %v1730
  %v1732 = vpop.xlane.xlu0 %1731
  %v1733 = vadd.f32 %v1539, %v1541
  %1734 = vadd.xlane.f32.xlu0 %v1733
  %v1735 = vpop.xlane.xlu0 %1734
  %v1736 = vadd.f32 %v1543, %v1545
  %1737 = vadd.xlane.f32.xlu0 %v1736
  %v1738 = vpop.xlane.xlu0 %1737
  %v1739 = vadd.f32 %v1549, %v1551
  %1740 = vadd.xlane.f32.xlu0 %v1739
  %v1741 = vpop.xlane.xlu0 %1740
  %v1742 = vadd.f32 %v1553, %v1555
  %1743 = vadd.xlane.f32.xlu0 %v1742
  %v1744 = vpop.xlane.xlu0 %1743
  %v1745 = vadd.f32 %v1559, %v1561
  %1746 = vadd.xlane.f32.xlu0 %v1745
  %v1747 = vpop.xlane.xlu0 %1746
  %v1748 = vadd.f32 %v1563, %v1565
  %1749 = vadd.xlane.f32.xlu0 %v1748
  %v1750 = vpop.xlane.xlu0 %1749
  %v1751 = vadd.f32 %v1569, %v1571
  %1752 = vadd.xlane.f32.xlu0 %v1751
  %v1753 = vpop.xlane.xlu0 %1752
  %v1754 = vadd.f32 %v1573, %v1575
  %1755 = vadd.xlane.f32.xlu0 %v1754
  %v1756 = vpop.xlane.xlu0 %1755
  %v1757 = vadd.f32 %v1579, %v1581
  %1758 = vadd.xlane.f32.xlu0 %v1757
  %v1759 = vpop.xlane.xlu0 %1758
  %v1760 = vadd.f32 %v1583, %v1585
  %1761 = vadd.xlane.f32.xlu0 %v1760
  %v1762 = vpop.xlane.xlu0 %1761
  %v1763 = vadd.f32 %v1589, %v1591
  %1764 = vadd.xlane.f32.xlu0 %v1763
  %v1765 = vpop.xlane.xlu0 %1764
  %v1766 = vadd.f32 %v1593, %v1595
  %1767 = vadd.xlane.f32.xlu0 %v1766
  %v1768 = vpop.xlane.xlu0 %1767
  %v1769 = vadd.f32 %v1599, %v1601
  %1770 = vadd.xlane.f32.xlu0 %v1769
  %v1771 = vpop.xlane.xlu0 %1770
  %v1772 = vadd.f32 %v1603, %v1605
  %1773 = vadd.xlane.f32.xlu0 %v1772
  %v1774 = vpop.xlane.xlu0 %1773
  %v1775 = vadd.f32 %v1679, %v1705
  %v1776 = vadd.f32 %v1680, %v1708
  %v1777 = vadd.f32 %v1681, %v1711
  %v1778 = vadd.f32 %v1682, %v1714
  %v1779 = vadd.f32 %v1683, %v1717
  %v1780 = vadd.f32 %v1684, %v1720
  %v1781 = vadd.f32 %v1685, %v1723
  %v1782 = vadd.f32 %v1686, %v1726
  %v1783 = vadd.f32 %v1687, %v1729
  %v1784 = vadd.f32 %v1688, %v1732
  %v1785 = vadd.f32 %v1689, %v1735
  %v1786 = vadd.f32 %v1690, %v1738
  %v1787 = vadd.f32 %v1691, %v1741
  %v1788 = vadd.f32 %v1692, %v1744
  %v1789 = vadd.f32 %v1693, %v1747
  %v1790 = vadd.f32 %v1694, %v1750
  %v1791 = vadd.f32 %v1695, %v1753
  %v1792 = vadd.f32 %v1696, %v1756
  %v1793 = vadd.f32 %v1697, %v1759
  %v1794 = vadd.f32 %v1698, %v1762
  %v1795 = vadd.f32 %v1699, %v1765
  %v1796 = vadd.f32 %v1700, %v1768
  %v1797 = vadd.f32 %v1701, %v1771
  %v1798 = vadd.f32 %v1702, %v1774
  %v1799 = vmul.f32 %v1775, 0.001953125
  %v1800 = vmul.f32 %v1776, 0.001953125
  %v1801 = vmul.f32 %v1777, 0.001953125
  %v1802 = vmul.f32 %v1778, 0.001953125
  %v1803 = vmul.f32 %v1779, 0.001953125
  %v1804 = vmul.f32 %v1780, 0.001953125
  %v1805 = vmul.f32 %v1781, 0.001953125
  %v1806 = vmul.f32 %v1782, 0.001953125
  %v1807 = vmul.f32 %v1783, 0.001953125
  %v1808 = vmul.f32 %v1784, 0.001953125
  %v1809 = vmul.f32 %v1785, 0.001953125
  %v1810 = vmul.f32 %v1786, 0.001953125
  %v1811 = vmul.f32 %v1787, 0.001953125
  %v1812 = vmul.f32 %v1788, 0.001953125
  %v1813 = vmul.f32 %v1789, 0.001953125
  %v1814 = vmul.f32 %v1790, 0.001953125
  %v1815 = vmul.f32 %v1791, 0.001953125
  %v1816 = vmul.f32 %v1792, 0.001953125
  %v1817 = vmul.f32 %v1793, 0.001953125
  %v1818 = vmul.f32 %v1794, 0.001953125
  %v1819 = vmul.f32 %v1795, 0.001953125
  %v1820 = vmul.f32 %v1796, 0.001953125
  %v1821 = vmul.f32 %v1797, 0.001953125
  %v1822 = vmul.f32 %v1798, 0.001953125
  %v1823 = vsub.f32 %v1210, %v1799
  %v1824 = vsub.f32 %v1212, %v1799
  %v1825 = vsub.f32 %v1214, %v1800
  %v1826 = vsub.f32 %v1216, %v1800
  %v1827 = vsub.f32 %v1220, %v1801
  %v1828 = vsub.f32 %v1222, %v1801
  %v1829 = vsub.f32 %v1224, %v1802
  %v1830 = vsub.f32 %v1226, %v1802
  %v1831 = vsub.f32 %v1230, %v1803
  %v1832 = vsub.f32 %v1232, %v1803
  %v1833 = vsub.f32 %v1234, %v1804
  %v1834 = vsub.f32 %v1236, %v1804
  %v1835 = vsub.f32 %v1240, %v1805
  %v1836 = vsub.f32 %v1242, %v1805
  %v1837 = vsub.f32 %v1244, %v1806
  %v1838 = vsub.f32 %v1246, %v1806
  %v1839 = vsub.f32 %v1250, %v1807
  %v1840 = vsub.f32 %v1252, %v1807
  %v1841 = vsub.f32 %v1254, %v1808
  %v1842 = vsub.f32 %v1256, %v1808
  %v1843 = vsub.f32 %v1260, %v1809
  %v1844 = vsub.f32 %v1262, %v1809
  %v1845 = vsub.f32 %v1264, %v1810
  %v1846 = vsub.f32 %v1266, %v1810
  %v1847 = vsub.f32 %v1270, %v1811
  %v1848 = vsub.f32 %v1272, %v1811
  %v1849 = vsub.f32 %v1274, %v1812
  %v1850 = vsub.f32 %v1276, %v1812
  %v1851 = vsub.f32 %v1280, %v1813
  %v1852 = vsub.f32 %v1282, %v1813
  %v1853 = vsub.f32 %v1284, %v1814
  %v1854 = vsub.f32 %v1286, %v1814
  %v1855 = vsub.f32 %v1290, %v1815
  %v1856 = vsub.f32 %v1292, %v1815
  %v1857 = vsub.f32 %v1294, %v1816
  %v1858 = vsub.f32 %v1296, %v1816
  %v1859 = vsub.f32 %v1300, %v1817
  %v1860 = vsub.f32 %v1302, %v1817
  %v1861 = vsub.f32 %v1304, %v1818
  %v1862 = vsub.f32 %v1306, %v1818
  %v1863 = vsub.f32 %v1310, %v1819
  %v1864 = vsub.f32 %v1312, %v1819
  %v1865 = vsub.f32 %v1314, %v1820
  %v1866 = vsub.f32 %v1316, %v1820
  %v1867 = vsub.f32 %v1320, %v1821
  %v1868 = vsub.f32 %v1322, %v1821
  %v1869 = vsub.f32 %v1324, %v1822
  %v1870 = vsub.f32 %v1326, %v1822
  %v1871 = vmul.f32 %v1823, %v1823
  %v1872 = vmul.f32 %v1824, %v1824
  %v1873 = vmul.f32 %v1825, %v1825
  %v1874 = vmul.f32 %v1826, %v1826
  %v1875 = vmul.f32 %v1827, %v1827
  %v1876 = vmul.f32 %v1828, %v1828
  %v1877 = vmul.f32 %v1829, %v1829
  %v1878 = vmul.f32 %v1830, %v1830
  %v1879 = vmul.f32 %v1831, %v1831
  %v1880 = vmul.f32 %v1832, %v1832
  %v1881 = vmul.f32 %v1833, %v1833
  %v1882 = vmul.f32 %v1834, %v1834
  %v1883 = vmul.f32 %v1835, %v1835
  %v1884 = vmul.f32 %v1836, %v1836
  %v1885 = vmul.f32 %v1837, %v1837
  %v1886 = vmul.f32 %v1838, %v1838
  %v1887 = vmul.f32 %v1839, %v1839
  %v1888 = vmul.f32 %v1840, %v1840
  %v1889 = vmul.f32 %v1841, %v1841
  %v1890 = vmul.f32 %v1842, %v1842
  %v1891 = vmul.f32 %v1843, %v1843
  %v1892 = vmul.f32 %v1844, %v1844
  %v1893 = vmul.f32 %v1845, %v1845
  %v1894 = vmul.f32 %v1846, %v1846
  %v1895 = vmul.f32 %v1847, %v1847
  %v1896 = vmul.f32 %v1848, %v1848
  %v1897 = vmul.f32 %v1849, %v1849
  %v1898 = vmul.f32 %v1850, %v1850
  %v1899 = vmul.f32 %v1851, %v1851
  %v1900 = vmul.f32 %v1852, %v1852
  %v1901 = vmul.f32 %v1853, %v1853
  %v1902 = vmul.f32 %v1854, %v1854
  %v1903 = vmul.f32 %v1855, %v1855
  %v1904 = vmul.f32 %v1856, %v1856
  %v1905 = vmul.f32 %v1857, %v1857
  %v1906 = vmul.f32 %v1858, %v1858
  %v1907 = vmul.f32 %v1859, %v1859
  %v1908 = vmul.f32 %v1860, %v1860
  %v1909 = vmul.f32 %v1861, %v1861
  %v1910 = vmul.f32 %v1862, %v1862
  %v1911 = vmul.f32 %v1863, %v1863
  %v1912 = vmul.f32 %v1864, %v1864
  %v1913 = vmul.f32 %v1865, %v1865
  %v1914 = vmul.f32 %v1866, %v1866
  %v1915 = vmul.f32 %v1867, %v1867
  %v1916 = vmul.f32 %v1868, %v1868
  %v1917 = vmul.f32 %v1869, %v1869
  %v1918 = vmul.f32 %v1870, %v1870
  %v1919 = vadd.f32 %v1871, %v1872
  %1920 = vadd.xlane.f32.xlu0 %v1919
  %v1921 = vpop.xlane.xlu0 %1920
  %v1922 = vadd.f32 %v1873, %v1874
  %1923 = vadd.xlane.f32.xlu0 %v1922
  %v1924 = vpop.xlane.xlu0 %1923
  %v1925 = vadd.f32 %v1875, %v1876
  %1926 = vadd.xlane.f32.xlu0 %v1925
  %v1927 = vpop.xlane.xlu0 %1926
  %v1928 = vadd.f32 %v1877, %v1878
  %1929 = vadd.xlane.f32.xlu0 %v1928
  %v1930 = vpop.xlane.xlu0 %1929
  %v1931 = vadd.f32 %v1879, %v1880
  %1932 = vadd.xlane.f32.xlu0 %v1931
  %v1933 = vpop.xlane.xlu0 %1932
  %v1934 = vadd.f32 %v1881, %v1882
  %1935 = vadd.xlane.f32.xlu0 %v1934
  %v1936 = vpop.xlane.xlu0 %1935
  %v1937 = vadd.f32 %v1883, %v1884
  %1938 = vadd.xlane.f32.xlu0 %v1937
  %v1939 = vpop.xlane.xlu0 %1938
  %v1940 = vadd.f32 %v1885, %v1886
  %1941 = vadd.xlane.f32.xlu0 %v1940
  %v1942 = vpop.xlane.xlu0 %1941
  %v1943 = vadd.f32 %v1887, %v1888
  %1944 = vadd.xlane.f32.xlu0 %v1943
  %v1945 = vpop.xlane.xlu0 %1944
  %v1946 = vadd.f32 %v1889, %v1890
  %1947 = vadd.xlane.f32.xlu0 %v1946
  %v1948 = vpop.xlane.xlu0 %1947
  %v1949 = vadd.f32 %v1891, %v1892
  %1950 = vadd.xlane.f32.xlu0 %v1949
  %v1951 = vpop.xlane.xlu0 %1950
  %v1952 = vadd.f32 %v1893, %v1894
  %1953 = vadd.xlane.f32.xlu0 %v1952
  %v1954 = vpop.xlane.xlu0 %1953
  %v1955 = vadd.f32 %v1895, %v1896
  %1956 = vadd.xlane.f32.xlu0 %v1955
  %v1957 = vpop.xlane.xlu0 %1956
  %v1958 = vadd.f32 %v1897, %v1898
  %1959 = vadd.xlane.f32.xlu0 %v1958
  %v1960 = vpop.xlane.xlu0 %1959
  %v1961 = vadd.f32 %v1899, %v1900
  %1962 = vadd.xlane.f32.xlu0 %v1961
  %v1963 = vpop.xlane.xlu0 %1962
  %v1964 = vadd.f32 %v1901, %v1902
  %1965 = vadd.xlane.f32.xlu0 %v1964
  %v1966 = vpop.xlane.xlu0 %1965
  %v1967 = vadd.f32 %v1903, %v1904
  %1968 = vadd.xlane.f32.xlu0 %v1967
  %v1969 = vpop.xlane.xlu0 %1968
  %v1970 = vadd.f32 %v1905, %v1906
  %1971 = vadd.xlane.f32.xlu0 %v1970
  %v1972 = vpop.xlane.xlu0 %1971
  %v1973 = vadd.f32 %v1907, %v1908
  %1974 = vadd.xlane.f32.xlu0 %v1973
  %v1975 = vpop.xlane.xlu0 %1974
  %v1976 = vadd.f32 %v1909, %v1910
  %1977 = vadd.xlane.f32.xlu0 %v1976
  %v1978 = vpop.xlane.xlu0 %1977
  %v1979 = vadd.f32 %v1911, %v1912
  %1980 = vadd.xlane.f32.xlu0 %v1979
  %v1981 = vpop.xlane.xlu0 %1980
  %v1982 = vadd.f32 %v1913, %v1914
  %1983 = vadd.xlane.f32.xlu0 %v1982
  %v1984 = vpop.xlane.xlu0 %1983
  %v1985 = vadd.f32 %v1915, %v1916
  %1986 = vadd.xlane.f32.xlu0 %v1985
  %v1987 = vpop.xlane.xlu0 %1986
  %v1988 = vadd.f32 %v1917, %v1918
  %1989 = vadd.xlane.f32.xlu0 %v1988
  %v1990 = vpop.xlane.xlu0 %1989
  %v1991 = vadd.f32 %v1921, 0.0
  %v1992 = vadd.f32 %v1924, 0.0
  %v1993 = vadd.f32 %v1927, 0.0
  %v1994 = vadd.f32 %v1930, 0.0
  %v1995 = vadd.f32 %v1933, 0.0
  %v1996 = vadd.f32 %v1936, 0.0
  %v1997 = vadd.f32 %v1939, 0.0
  %v1998 = vadd.f32 %v1942, 0.0
  %v1999 = vadd.f32 %v1945, 0.0
  %v2000 = vadd.f32 %v1948, 0.0
  %v2001 = vadd.f32 %v1951, 0.0
  %v2002 = vadd.f32 %v1954, 0.0
  %v2003 = vadd.f32 %v1957, 0.0
  %v2004 = vadd.f32 %v1960, 0.0
  %v2005 = vadd.f32 %v1963, 0.0
  %v2006 = vadd.f32 %v1966, 0.0
  %v2007 = vadd.f32 %v1969, 0.0
  %v2008 = vadd.f32 %v1972, 0.0
  %v2009 = vadd.f32 %v1975, 0.0
  %v2010 = vadd.f32 %v1978, 0.0
  %v2011 = vadd.f32 %v1981, 0.0
  %v2012 = vadd.f32 %v1984, 0.0
  %v2013 = vadd.f32 %v1987, 0.0
  %v2014 = vadd.f32 %v1990, 0.0
  %v2015 = vsub.f32 %v1489, %v1799
  %v2016 = vsub.f32 %v1491, %v1799
  %v2017 = vsub.f32 %v1493, %v1800
  %v2018 = vsub.f32 %v1495, %v1800
  %v2019 = vsub.f32 %v1499, %v1801
  %v2020 = vsub.f32 %v1501, %v1801
  %v2021 = vsub.f32 %v1503, %v1802
  %v2022 = vsub.f32 %v1505, %v1802
  %v2023 = vsub.f32 %v1509, %v1803
  %v2024 = vsub.f32 %v1511, %v1803
  %v2025 = vsub.f32 %v1513, %v1804
  %v2026 = vsub.f32 %v1515, %v1804
  %v2027 = vsub.f32 %v1519, %v1805
  %v2028 = vsub.f32 %v1521, %v1805
  %v2029 = vsub.f32 %v1523, %v1806
  %v2030 = vsub.f32 %v1525, %v1806
  %v2031 = vsub.f32 %v1529, %v1807
  %v2032 = vsub.f32 %v1531, %v1807
  %v2033 = vsub.f32 %v1533, %v1808
  %v2034 = vsub.f32 %v1535, %v1808
  %v2035 = vsub.f32 %v1539, %v1809
  %v2036 = vsub.f32 %v1541, %v1809
  %v2037 = vsub.f32 %v1543, %v1810
  %v2038 = vsub.f32 %v1545, %v1810
  %v2039 = vsub.f32 %v1549, %v1811
  %v2040 = vsub.f32 %v1551, %v1811
  %v2041 = vsub.f32 %v1553, %v1812
  %v2042 = vsub.f32 %v1555, %v1812
  %v2043 = vsub.f32 %v1559, %v1813
  %v2044 = vsub.f32 %v1561, %v1813
  %v2045 = vsub.f32 %v1563, %v1814
  %v2046 = vsub.f32 %v1565, %v1814
  %v2047 = vsub.f32 %v1569, %v1815
  %v2048 = vsub.f32 %v1571, %v1815
  %v2049 = vsub.f32 %v1573, %v1816
  %v2050 = vsub.f32 %v1575, %v1816
  %v2051 = vsub.f32 %v1579, %v1817
  %v2052 = vsub.f32 %v1581, %v1817
  %v2053 = vsub.f32 %v1583, %v1818
  %v2054 = vsub.f32 %v1585, %v1818
  %v2055 = vsub.f32 %v1589, %v1819
  %v2056 = vsub.f32 %v1591, %v1819
  %v2057 = vsub.f32 %v1593, %v1820
  %v2058 = vsub.f32 %v1595, %v1820
  %v2059 = vsub.f32 %v1599, %v1821
  %v2060 = vsub.f32 %v1601, %v1821
  %v2061 = vsub.f32 %v1603, %v1822
  %v2062 = vsub.f32 %v1605, %v1822
  %v2063 = vmul.f32 %v2015, %v2015
  %v2064 = vmul.f32 %v2016, %v2016
  %v2065 = vmul.f32 %v2017, %v2017
  %v2066 = vmul.f32 %v2018, %v2018
  %v2067 = vmul.f32 %v2019, %v2019
  %v2068 = vmul.f32 %v2020, %v2020
  %v2069 = vmul.f32 %v2021, %v2021
  %v2070 = vmul.f32 %v2022, %v2022
  %v2071 = vmul.f32 %v2023, %v2023
  %v2072 = vmul.f32 %v2024, %v2024
  %v2073 = vmul.f32 %v2025, %v2025
  %v2074 = vmul.f32 %v2026, %v2026
  %v2075 = vmul.f32 %v2027, %v2027
  %v2076 = vmul.f32 %v2028, %v2028
  %v2077 = vmul.f32 %v2029, %v2029
  %v2078 = vmul.f32 %v2030, %v2030
  %v2079 = vmul.f32 %v2031, %v2031
  %v2080 = vmul.f32 %v2032, %v2032
  %v2081 = vmul.f32 %v2033, %v2033
  %v2082 = vmul.f32 %v2034, %v2034
  %v2083 = vmul.f32 %v2035, %v2035
  %v2084 = vmul.f32 %v2036, %v2036
  %v2085 = vmul.f32 %v2037, %v2037
  %v2086 = vmul.f32 %v2038, %v2038
  %v2087 = vmul.f32 %v2039, %v2039
  %v2088 = vmul.f32 %v2040, %v2040
  %v2089 = vmul.f32 %v2041, %v2041
  %v2090 = vmul.f32 %v2042, %v2042
  %v2091 = vmul.f32 %v2043, %v2043
  %v2092 = vmul.f32 %v2044, %v2044
  %v2093 = vmul.f32 %v2045, %v2045
  %v2094 = vmul.f32 %v2046, %v2046
  %v2095 = vmul.f32 %v2047, %v2047
  %v2096 = vmul.f32 %v2048, %v2048
  %v2097 = vmul.f32 %v2049, %v2049
  %v2098 = vmul.f32 %v2050, %v2050
  %v2099 = vmul.f32 %v2051, %v2051
  %v2100 = vmul.f32 %v2052, %v2052
  %v2101 = vmul.f32 %v2053, %v2053
  %v2102 = vmul.f32 %v2054, %v2054
  %v2103 = vmul.f32 %v2055, %v2055
  %v2104 = vmul.f32 %v2056, %v2056
  %v2105 = vmul.f32 %v2057, %v2057
  %v2106 = vmul.f32 %v2058, %v2058
  %v2107 = vmul.f32 %v2059, %v2059
  %v2108 = vmul.f32 %v2060, %v2060
  %v2109 = vmul.f32 %v2061, %v2061
  %v2110 = vmul.f32 %v2062, %v2062
  %v2111 = vadd.f32 %v2063, %v2064
  %2112 = vadd.xlane.f32.xlu0 %v2111
  %v2113 = vpop.xlane.xlu0 %2112
  %v2114 = vadd.f32 %v2065, %v2066
  %2115 = vadd.xlane.f32.xlu0 %v2114
  %v2116 = vpop.xlane.xlu0 %2115
  %v2117 = vadd.f32 %v2067, %v2068
  %2118 = vadd.xlane.f32.xlu0 %v2117
  %v2119 = vpop.xlane.xlu0 %2118
  %v2120 = vadd.f32 %v2069, %v2070
  %2121 = vadd.xlane.f32.xlu0 %v2120
  %v2122 = vpop.xlane.xlu0 %2121
  %v2123 = vadd.f32 %v2071, %v2072
  %2124 = vadd.xlane.f32.xlu0 %v2123
  %v2125 = vpop.xlane.xlu0 %2124
  %v2126 = vadd.f32 %v2073, %v2074
  %2127 = vadd.xlane.f32.xlu0 %v2126
  %v2128 = vpop.xlane.xlu0 %2127
  %v2129 = vadd.f32 %v2075, %v2076
  %2130 = vadd.xlane.f32.xlu0 %v2129
  %v2131 = vpop.xlane.xlu0 %2130
  %v2132 = vadd.f32 %v2077, %v2078
  %2133 = vadd.xlane.f32.xlu0 %v2132
  %v2134 = vpop.xlane.xlu0 %2133
  %v2135 = vadd.f32 %v2079, %v2080
  %2136 = vadd.xlane.f32.xlu0 %v2135
  %v2137 = vpop.xlane.xlu0 %2136
  %v2138 = vadd.f32 %v2081, %v2082
  %2139 = vadd.xlane.f32.xlu0 %v2138
  %v2140 = vpop.xlane.xlu0 %2139
  %v2141 = vadd.f32 %v2083, %v2084
  %2142 = vadd.xlane.f32.xlu0 %v2141
  %v2143 = vpop.xlane.xlu0 %2142
  %v2144 = vadd.f32 %v2085, %v2086
  %2145 = vadd.xlane.f32.xlu0 %v2144
  %v2146 = vpop.xlane.xlu0 %2145
  %v2147 = vadd.f32 %v2087, %v2088
  %2148 = vadd.xlane.f32.xlu0 %v2147
  %v2149 = vpop.xlane.xlu0 %2148
  %v2150 = vadd.f32 %v2089, %v2090
  %2151 = vadd.xlane.f32.xlu0 %v2150
  %v2152 = vpop.xlane.xlu0 %2151
  %v2153 = vadd.f32 %v2091, %v2092
  %2154 = vadd.xlane.f32.xlu0 %v2153
  %v2155 = vpop.xlane.xlu0 %2154
  %v2156 = vadd.f32 %v2093, %v2094
  %2157 = vadd.xlane.f32.xlu0 %v2156
  %v2158 = vpop.xlane.xlu0 %2157
  %v2159 = vadd.f32 %v2095, %v2096
  %2160 = vadd.xlane.f32.xlu0 %v2159
  %v2161 = vpop.xlane.xlu0 %2160
  %v2162 = vadd.f32 %v2097, %v2098
  %2163 = vadd.xlane.f32.xlu0 %v2162
  %v2164 = vpop.xlane.xlu0 %2163
  %v2165 = vadd.f32 %v2099, %v2100
  %2166 = vadd.xlane.f32.xlu0 %v2165
  %v2167 = vpop.xlane.xlu0 %2166
  %v2168 = vadd.f32 %v2101, %v2102
  %2169 = vadd.xlane.f32.xlu0 %v2168
  %v2170 = vpop.xlane.xlu0 %2169
  %v2171 = vadd.f32 %v2103, %v2104
  %2172 = vadd.xlane.f32.xlu0 %v2171
  %v2173 = vpop.xlane.xlu0 %2172
  %v2174 = vadd.f32 %v2105, %v2106
  %2175 = vadd.xlane.f32.xlu0 %v2174
  %v2176 = vpop.xlane.xlu0 %2175
  %v2177 = vadd.f32 %v2107, %v2108
  %2178 = vadd.xlane.f32.xlu0 %v2177
  %v2179 = vpop.xlane.xlu0 %2178
  %v2180 = vadd.f32 %v2109, %v2110
  %2181 = vadd.xlane.f32.xlu0 %v2180
  %v2182 = vpop.xlane.xlu0 %2181
  %v2183 = vadd.f32 %v1991, %v2113
  %v2184 = vadd.f32 %v1992, %v2116
  %v2185 = vadd.f32 %v1993, %v2119
  %v2186 = vadd.f32 %v1994, %v2122
  %v2187 = vadd.f32 %v1995, %v2125
  %v2188 = vadd.f32 %v1996, %v2128
  %v2189 = vadd.f32 %v1997, %v2131
  %v2190 = vadd.f32 %v1998, %v2134
  %v2191 = vadd.f32 %v1999, %v2137
  %v2192 = vadd.f32 %v2000, %v2140
  %v2193 = vadd.f32 %v2001, %v2143
  %v2194 = vadd.f32 %v2002, %v2146
  %v2195 = vadd.f32 %v2003, %v2149
  %v2196 = vadd.f32 %v2004, %v2152
  %v2197 = vadd.f32 %v2005, %v2155
  %v2198 = vadd.f32 %v2006, %v2158
  %v2199 = vadd.f32 %v2007, %v2161
  %v2200 = vadd.f32 %v2008, %v2164
  %v2201 = vadd.f32 %v2009, %v2167
  %v2202 = vadd.f32 %v2010, %v2170
  %v2203 = vadd.f32 %v2011, %v2173
  %v2204 = vadd.f32 %v2012, %v2176
  %v2205 = vadd.f32 %v2013, %v2179
  %v2206 = vadd.f32 %v2014, %v2182
  %v2207 = vmul.f32 %v2183, 0.001953125
  %v2208 = vmul.f32 %v2184, 0.001953125
  %v2209 = vmul.f32 %v2185, 0.001953125
  %v2210 = vmul.f32 %v2186, 0.001953125
  %v2211 = vmul.f32 %v2187, 0.001953125
  %v2212 = vmul.f32 %v2188, 0.001953125
  %v2213 = vmul.f32 %v2189, 0.001953125
  %v2214 = vmul.f32 %v2190, 0.001953125
  %v2215 = vmul.f32 %v2191, 0.001953125
  %v2216 = vmul.f32 %v2192, 0.001953125
  %v2217 = vmul.f32 %v2193, 0.001953125
  %v2218 = vmul.f32 %v2194, 0.001953125
  %v2219 = vmul.f32 %v2195, 0.001953125
  %v2220 = vmul.f32 %v2196, 0.001953125
  %v2221 = vmul.f32 %v2197, 0.001953125
  %v2222 = vmul.f32 %v2198, 0.001953125
  %v2223 = vmul.f32 %v2199, 0.001953125
  %v2224 = vmul.f32 %v2200, 0.001953125
  %v2225 = vmul.f32 %v2201, 0.001953125
  %v2226 = vmul.f32 %v2202, 0.001953125
  %v2227 = vmul.f32 %v2203, 0.001953125
  %v2228 = vmul.f32 %v2204, 0.001953125
  %v2229 = vmul.f32 %v2205, 0.001953125
  %v2230 = vmul.f32 %v2206, 0.001953125
  %v2231 = vld [vmem:[%s4] sm:$0xff]
  %v2232 = vld [vmem:[%s4 + $0x8] sm:$0xff]
  %v2233 = vld [vmem:[%s4 + $0x10] sm:$0xff]
  %v2234 = vld [vmem:[%s4 + $0x18] sm:$0xff]
  %v2235 = vld [vmem:[%s4 + $0x20] sm:$0xff]
  %v2236 = vld [vmem:[%s4 + $0x28] sm:$0xff]
  %v2237 = vld [vmem:[%s4 + $0x30] sm:$0xff]
  %v2238 = vld [vmem:[%s4 + $0x38] sm:$0xff]
  %v2239 = vld [vmem:[%s4 + $0x40] sm:$0xff]
  %v2240 = vld [vmem:[%s4 + $0x48] sm:$0xff]
  %v2241 = vld [vmem:[%s4 + $0x50] sm:$0xff]
  %v2242 = vld [vmem:[%s4 + $0x58] sm:$0xff]
  %v2243 = vld [vmem:[%s4 + $0x60] sm:$0xff]
  %v2244 = vld [vmem:[%s4 + $0x68] sm:$0xff]
  %v2245 = vld [vmem:[%s4 + $0x70] sm:$0xff]
  %v2246 = vld [vmem:[%s4 + $0x78] sm:$0xff]
  %v2247 = vld [vmem:[%s4 + $0x80] sm:$0xff]
  %v2248 = vld [vmem:[%s4 + $0x88] sm:$0xff]
  %v2249 = vld [vmem:[%s4 + $0x90] sm:$0xff]
  %v2250 = vld [vmem:[%s4 + $0x98] sm:$0xff]
  %v2251 = vld [vmem:[%s4 + $0xa0] sm:$0xff]
  %v2252 = vld [vmem:[%s4 + $0xa8] sm:$0xff]
  %v2253 = vld [vmem:[%s4 + $0xb0] sm:$0xff]
  %v2254 = vld [vmem:[%s4 + $0xb8] sm:$0xff]
  %v2255 = vadd.f32 %v2207, 1e-05
  %v2256 = vadd.f32 %v2208, 1e-05
  %v2257 = vadd.f32 %v2209, 1e-05
  %v2258 = vadd.f32 %v2210, 1e-05
  %v2259 = vadd.f32 %v2211, 1e-05
  %v2260 = vadd.f32 %v2212, 1e-05
  %v2261 = vadd.f32 %v2213, 1e-05
  %v2262 = vadd.f32 %v2214, 1e-05
  %v2263 = vadd.f32 %v2215, 1e-05
  %v2264 = vadd.f32 %v2216, 1e-05
  %v2265 = vadd.f32 %v2217, 1e-05
  %v2266 = vadd.f32 %v2218, 1e-05
  %v2267 = vadd.f32 %v2219, 1e-05
  %v2268 = vadd.f32 %v2220, 1e-05
  %v2269 = vadd.f32 %v2221, 1e-05
  %v2270 = vadd.f32 %v2222, 1e-05
  %v2271 = vadd.f32 %v2223, 1e-05
  %v2272 = vadd.f32 %v2224, 1e-05
  %v2273 = vadd.f32 %v2225, 1e-05
  %v2274 = vadd.f32 %v2226, 1e-05
  %v2275 = vadd.f32 %v2227, 1e-05
  %v2276 = vadd.f32 %v2228, 1e-05
  %v2277 = vadd.f32 %v2229, 1e-05
  %v2278 = vadd.f32 %v2230, 1e-05
  %v2279 = vrsqrt.pop %v2255
  %v2280 = vrsqrt.pop %v2256
  %v2281 = vrsqrt.pop %v2257
  %v2282 = vrsqrt.pop %v2258
  %v2283 = vrsqrt.pop %v2259
  %v2284 = vrsqrt.pop %v2260
  %v2285 = vrsqrt.pop %v2261
  %v2286 = vrsqrt.pop %v2262
  %v2287 = vrsqrt.pop %v2263
  %v2288 = vrsqrt.pop %v2264
  %v2289 = vrsqrt.pop %v2265
  %v2290 = vrsqrt.pop %v2266
  %v2291 = vrsqrt.pop %v2267
  %v2292 = vrsqrt.pop %v2268
  %v2293 = vrsqrt.pop %v2269
  %v2294 = vrsqrt.pop %v2270
  %v2295 = vrsqrt.pop %v2271
  %v2296 = vrsqrt.pop %v2272
  %v2297 = vrsqrt.pop %v2273
  %v2298 = vrsqrt.pop %v2274
  %v2299 = vrsqrt.pop %v2275
  %v2300 = vrsqrt.pop %v2276
  %v2301 = vrsqrt.pop %v2277
  %v2302 = vrsqrt.pop %v2278
  %v2303 = vmul.f32 %v2231, %v2279
  %v2304 = vmul.f32 %v2232, %v2280
  %v2305 = vmul.f32 %v2233, %v2281
  %v2306 = vmul.f32 %v2234, %v2282
  %v2307 = vmul.f32 %v2235, %v2283
  %v2308 = vmul.f32 %v2236, %v2284
  %v2309 = vmul.f32 %v2237, %v2285
  %v2310 = vmul.f32 %v2238, %v2286
  %v2311 = vmul.f32 %v2239, %v2287
  %v2312 = vmul.f32 %v2240, %v2288
  %v2313 = vmul.f32 %v2241, %v2289
  %v2314 = vmul.f32 %v2242, %v2290
  %v2315 = vmul.f32 %v2243, %v2291
  %v2316 = vmul.f32 %v2244, %v2292
  %v2317 = vmul.f32 %v2245, %v2293
  %v2318 = vmul.f32 %v2246, %v2294
  %v2319 = vmul.f32 %v2247, %v2295
  %v2320 = vmul.f32 %v2248, %v2296
  %v2321 = vmul.f32 %v2249, %v2297
  %v2322 = vmul.f32 %v2250, %v2298
  %v2323 = vmul.f32 %v2251, %v2299
  %v2324 = vmul.f32 %v2252, %v2300
  %v2325 = vmul.f32 %v2253, %v2301
  %v2326 = vmul.f32 %v2254, %v2302
  %v2327 = vld [vmem:[%s5] sm:$0xff]
  %v2328 = vld [vmem:[%s5 + $0x8] sm:$0xff]
  %v2329 = vld [vmem:[%s5 + $0x10] sm:$0xff]
  %v2330 = vld [vmem:[%s5 + $0x18] sm:$0xff]
  %v2331 = vld [vmem:[%s5 + $0x20] sm:$0xff]
  %v2332 = vld [vmem:[%s5 + $0x28] sm:$0xff]
  %v2333 = vld [vmem:[%s5 + $0x30] sm:$0xff]
  %v2334 = vld [vmem:[%s5 + $0x38] sm:$0xff]
  %v2335 = vld [vmem:[%s5 + $0x40] sm:$0xff]
  %v2336 = vld [vmem:[%s5 + $0x48] sm:$0xff]
  %v2337 = vld [vmem:[%s5 + $0x50] sm:$0xff]
  %v2338 = vld [vmem:[%s5 + $0x58] sm:$0xff]
  %v2339 = vld [vmem:[%s5 + $0x60] sm:$0xff]
  %v2340 = vld [vmem:[%s5 + $0x68] sm:$0xff]
  %v2341 = vld [vmem:[%s5 + $0x70] sm:$0xff]
  %v2342 = vld [vmem:[%s5 + $0x78] sm:$0xff]
  %v2343 = vld [vmem:[%s5 + $0x80] sm:$0xff]
  %v2344 = vld [vmem:[%s5 + $0x88] sm:$0xff]
  %v2345 = vld [vmem:[%s5 + $0x90] sm:$0xff]
  %v2346 = vld [vmem:[%s5 + $0x98] sm:$0xff]
  %v2347 = vld [vmem:[%s5 + $0xa0] sm:$0xff]
  %v2348 = vld [vmem:[%s5 + $0xa8] sm:$0xff]
  %v2349 = vld [vmem:[%s5 + $0xb0] sm:$0xff]
  %v2350 = vld [vmem:[%s5 + $0xb8] sm:$0xff]
  %v2351 = vmul.f32 %v1799, %v2303
  %v2352 = vmul.f32 %v1800, %v2304
  %v2353 = vmul.f32 %v1801, %v2305
  %v2354 = vmul.f32 %v1802, %v2306
  %v2355 = vmul.f32 %v1803, %v2307
  %v2356 = vmul.f32 %v1804, %v2308
  %v2357 = vmul.f32 %v1805, %v2309
  %v2358 = vmul.f32 %v1806, %v2310
  %v2359 = vmul.f32 %v1807, %v2311
  %v2360 = vmul.f32 %v1808, %v2312
  %v2361 = vmul.f32 %v1809, %v2313
  %v2362 = vmul.f32 %v1810, %v2314
  %v2363 = vmul.f32 %v1811, %v2315
  %v2364 = vmul.f32 %v1812, %v2316
  %v2365 = vmul.f32 %v1813, %v2317
  %v2366 = vmul.f32 %v1814, %v2318
  %v2367 = vmul.f32 %v1815, %v2319
  %v2368 = vmul.f32 %v1816, %v2320
  %v2369 = vmul.f32 %v1817, %v2321
  %v2370 = vmul.f32 %v1818, %v2322
  %v2371 = vmul.f32 %v1819, %v2323
  %v2372 = vmul.f32 %v1820, %v2324
  %v2373 = vmul.f32 %v1821, %v2325
  %v2374 = vmul.f32 %v1822, %v2326
  %v2375 = vsub.f32 %v2327, %v2351
  %v2376 = vsub.f32 %v2328, %v2352
  %v2377 = vsub.f32 %v2329, %v2353
  %v2378 = vsub.f32 %v2330, %v2354
  %v2379 = vsub.f32 %v2331, %v2355
  %v2380 = vsub.f32 %v2332, %v2356
  %v2381 = vsub.f32 %v2333, %v2357
  %v2382 = vsub.f32 %v2334, %v2358
  %v2383 = vsub.f32 %v2335, %v2359
  %v2384 = vsub.f32 %v2336, %v2360
  %v2385 = vsub.f32 %v2337, %v2361
  %v2386 = vsub.f32 %v2338, %v2362
  %v2387 = vsub.f32 %v2339, %v2363
  %v2388 = vsub.f32 %v2340, %v2364
  %v2389 = vsub.f32 %v2341, %v2365
  %v2390 = vsub.f32 %v2342, %v2366
  %v2391 = vsub.f32 %v2343, %v2367
  %v2392 = vsub.f32 %v2344, %v2368
  %v2393 = vsub.f32 %v2345, %v2369
  %v2394 = vsub.f32 %v2346, %v2370
  %v2395 = vsub.f32 %v2347, %v2371
  %v2396 = vsub.f32 %v2348, %v2372
  %v2397 = vsub.f32 %v2349, %v2373
  %v2398 = vsub.f32 %v2350, %v2374
  %v2399 = vld [vmem:[%s6] sm:$0xff]
  %v2400 = vld [vmem:[%s6 + $0x8] sm:$0xff]
  %v2401 = vld [vmem:[%s6 + $0x10] sm:$0xff]
  %v2402 = vld [vmem:[%s6 + $0x18] sm:$0xff]
  %v2403 = vld [vmem:[%s6 + $0x20] sm:$0xff]
  %v2404 = vld [vmem:[%s6 + $0x28] sm:$0xff]
  %v2405 = vld [vmem:[%s6 + $0x30] sm:$0xff]
  %v2406 = vld [vmem:[%s6 + $0x38] sm:$0xff]
  %v2407 = vld [vmem:[%s6 + $0x40] sm:$0xff]
  %v2408 = vld [vmem:[%s6 + $0x48] sm:$0xff]
  %v2409 = vld [vmem:[%s6 + $0x50] sm:$0xff]
  %v2410 = vld [vmem:[%s6 + $0x58] sm:$0xff]
  %v2411 = vld [vmem:[%s6 + $0x60] sm:$0xff]
  %v2412 = vld [vmem:[%s6 + $0x68] sm:$0xff]
  %v2413 = vld [vmem:[%s6 + $0x70] sm:$0xff]
  %v2414 = vld [vmem:[%s6 + $0x78] sm:$0xff]
  %v2415 = vld [vmem:[%s6 + $0x80] sm:$0xff]
  %v2416 = vld [vmem:[%s6 + $0x88] sm:$0xff]
  %v2417 = vld [vmem:[%s6 + $0x90] sm:$0xff]
  %v2418 = vld [vmem:[%s6 + $0x98] sm:$0xff]
  %v2419 = vld [vmem:[%s6 + $0xa0] sm:$0xff]
  %v2420 = vld [vmem:[%s6 + $0xa8] sm:$0xff]
  %v2421 = vld [vmem:[%s6 + $0xb0] sm:$0xff]
  %v2422 = vld [vmem:[%s6 + $0xb8] sm:$0xff]
  %v2423 = vld [vmem:[%s6 + $0xc0] sm:$0xff]
  %v2424 = vld [vmem:[%s6 + $0xc8] sm:$0xff]
  %v2425 = vld [vmem:[%s6 + $0xd0] sm:$0xff]
  %v2426 = vld [vmem:[%s6 + $0xd8] sm:$0xff]
  %v2427 = vld [vmem:[%s6 + $0xe0] sm:$0xff]
  %v2428 = vld [vmem:[%s6 + $0xe8] sm:$0xff]
  %v2429 = vld [vmem:[%s6 + $0xf0] sm:$0xff]
  %v2430 = vld [vmem:[%s6 + $0xf8] sm:$0xff]
  %v2431 = vld [vmem:[%s6 + $0x100] sm:$0xff]
  %v2432 = vld [vmem:[%s6 + $0x108] sm:$0xff]
  %v2433 = vld [vmem:[%s6 + $0x110] sm:$0xff]
  %v2434 = vld [vmem:[%s6 + $0x118] sm:$0xff]
  %v2435 = vld [vmem:[%s6 + $0x120] sm:$0xff]
  %v2436 = vld [vmem:[%s6 + $0x128] sm:$0xff]
  %v2437 = vld [vmem:[%s6 + $0x130] sm:$0xff]
  %v2438 = vld [vmem:[%s6 + $0x138] sm:$0xff]
  %v2439 = vld [vmem:[%s6 + $0x140] sm:$0xff]
  %v2440 = vld [vmem:[%s6 + $0x148] sm:$0xff]
  %v2441 = vld [vmem:[%s6 + $0x150] sm:$0xff]
  %v2442 = vld [vmem:[%s6 + $0x158] sm:$0xff]
  %v2443 = vld [vmem:[%s6 + $0x160] sm:$0xff]
  %v2444 = vld [vmem:[%s6 + $0x168] sm:$0xff]
  %v2445 = vld [vmem:[%s6 + $0x170] sm:$0xff]
  %v2446 = vld [vmem:[%s6 + $0x178] sm:$0xff]
  %v2447 = vld [vmem:[%s6 + $0x180] sm:$0xff]
  %v2448 = vld [vmem:[%s6 + $0x188] sm:$0xff]
  %v2449 = vld [vmem:[%s6 + $0x190] sm:$0xff]
  %v2450 = vld [vmem:[%s6 + $0x198] sm:$0xff]
  %v2451 = vld [vmem:[%s6 + $0x1a0] sm:$0xff]
  %v2452 = vld [vmem:[%s6 + $0x1a8] sm:$0xff]
  %2453 = vst [vmem:[#allocation2] sm:$0xff] 0.0
  %2454 = vst [vmem:[#allocation2 + $0x30] sm:$0xff] 0.0
  %2455 = vst [vmem:[#allocation2 + $0x60] sm:$0xff] 0.0
  %2456 = vst [vmem:[#allocation2 + $0x90] sm:$0xff] 0.0
  %2457 = vst [vmem:[#allocation2 + $0xc0] sm:$0xff] 0.0
  %2458 = vst [vmem:[#allocation2 + $0xf0] sm:$0xff] 0.0
  %2459 = vst [vmem:[#allocation2 + $0x120] sm:$0xff] 0.0
  %2460 = vst [vmem:[#allocation2 + $0x150] sm:$0xff] 0.0
  %2461 = vst [vmem:[#allocation2 + $0x180] sm:$0xff] 0.0
  %2462 = vst [vmem:[#allocation2 + $0x1b0] sm:$0xff] 0.0
  %2463 = vst [vmem:[#allocation2 + $0x1e0] sm:$0xff] 0.0
  %2464 = vst [vmem:[#allocation2 + $0x210] sm:$0xff] 0.0
  %2465 = vst [vmem:[#allocation2 + $0x240] sm:$0xff] 0.0
  %2466 = vst [vmem:[#allocation2 + $0x270] sm:$0xff] 0.0
  %2467 = vst [vmem:[#allocation2 + $0x2a0] sm:$0xff] 0.0
  %2468 = vst [vmem:[#allocation2 + $0x2d0] sm:$0xff] 0.0
  %2469 = vst [vmem:[#allocation2 + $0x300] sm:$0xff] 0.0
  %2470 = vst [vmem:[#allocation2 + $0x330] sm:$0xff] 0.0
  %2471 = vst [vmem:[#allocation2 + $0x360] sm:$0xff] 0.0
  %2472 = vst [vmem:[#allocation2 + $0x390] sm:$0xff] 0.0
  %2473 = vst [vmem:[#allocation2 + $0x3c0] sm:$0xff] 0.0
  %2474 = vst [vmem:[#allocation2 + $0x3f0] sm:$0xff] 0.0
  %2475 = vst [vmem:[#allocation2 + $0x420] sm:$0xff] 0.0
  %2476 = vst [vmem:[#allocation2 + $0x450] sm:$0xff] 0.0
  %2477 = vst [vmem:[#allocation2 + $0x480] sm:$0xff] 0.0
  %2478 = vst [vmem:[#allocation2 + $0x4b0] sm:$0xff] 0.0
  %2479 = vst [vmem:[#allocation2 + $0x4e0] sm:$0xff] 0.0
  %2480 = vst [vmem:[#allocation2 + $0x510] sm:$0xff] 0.0
  %2481 = vst [vmem:[#allocation2 + $0x540] sm:$0xff] 0.0
  %2482 = vst [vmem:[#allocation2 + $0x570] sm:$0xff] 0.0
  %2483 = vst [vmem:[#allocation2 + $0x5a0] sm:$0xff] 0.0
  %2484 = vst [vmem:[#allocation2 + $0x5d0] sm:$0xff] 0.0
  %2485 = vst [vmem:[#allocation2 + $0x600] sm:$0xff] 0.0
  %2486 = vst [vmem:[#allocation2 + $0x630] sm:$0xff] 0.0
  %2487 = vst [vmem:[#allocation2 + $0x660] sm:$0xff] 0.0
  %2488 = vst [vmem:[#allocation2 + $0x690] sm:$0xff] 0.0
  %2489 = vst [vmem:[#allocation2 + $0x6c0] sm:$0xff] 0.0
  %2490 = vst [vmem:[#allocation2 + $0x6f0] sm:$0xff] 0.0
  %2491 = vst [vmem:[#allocation2 + $0x720] sm:$0xff] 0.0
  %2492 = vst [vmem:[#allocation2 + $0x750] sm:$0xff] 0.0
  %2493 = vst [vmem:[#allocation2 + $0x780] sm:$0xff] 0.0
  %2494 = vst [vmem:[#allocation2 + $0x7b0] sm:$0xff] 0.0
  %2495 = vst [vmem:[#allocation2 + $0x7e0] sm:$0xff] 0.0
  %2496 = vst [vmem:[#allocation2 + $0x810] sm:$0xff] 0.0
  %2497 = vst [vmem:[#allocation2 + $0x840] sm:$0xff] 0.0
  %2498 = vst [vmem:[#allocation2 + $0x870] sm:$0xff] 0.0
  %2499 = vst [vmem:[#allocation2 + $0x8a0] sm:$0xff] 0.0
  %2500 = vst [vmem:[#allocation2 + $0x8d0] sm:$0xff] 0.0
  %2501 = vst [vmem:[#allocation2 + $0x900] sm:$0xff] 0.0
  %2502 = vst [vmem:[#allocation2 + $0x930] sm:$0xff] 0.0
  %2503 = vst [vmem:[#allocation2 + $0x960] sm:$0xff] 0.0
  %2504 = vst [vmem:[#allocation2 + $0x990] sm:$0xff] 0.0
  %2505 = vst [vmem:[#allocation2 + $0x9c0] sm:$0xff] 0.0
  %2506 = vst [vmem:[#allocation2 + $0x9f0] sm:$0xff] 0.0
  %2507 = vst [vmem:[#allocation2 + $0x28] sm:$0xff] 0.0
  %2508 = vst [vmem:[#allocation2 + $0x58] sm:$0xff] 0.0
  %2509 = vst [vmem:[#allocation2 + $0x88] sm:$0xff] 0.0
  %2510 = vst [vmem:[#allocation2 + $0xb8] sm:$0xff] 0.0
  %2511 = vst [vmem:[#allocation2 + $0xe8] sm:$0xff] 0.0
  %2512 = vst [vmem:[#allocation2 + $0x118] sm:$0xff] 0.0
  %2513 = vst [vmem:[#allocation2 + $0x148] sm:$0xff] 0.0
  %2514 = vst [vmem:[#allocation2 + $0x178] sm:$0xff] 0.0
  %2515 = vst [vmem:[#allocation2 + $0x1a8] sm:$0xff] 0.0
  %2516 = vst [vmem:[#allocation2 + $0x1d8] sm:$0xff] 0.0
  %2517 = vst [vmem:[#allocation2 + $0x208] sm:$0xff] 0.0
  %2518 = vst [vmem:[#allocation2 + $0x238] sm:$0xff] 0.0
  %2519 = vst [vmem:[#allocation2 + $0x268] sm:$0xff] 0.0
  %2520 = vst [vmem:[#allocation2 + $0x298] sm:$0xff] 0.0
  %2521 = vst [vmem:[#allocation2 + $0x2c8] sm:$0xff] 0.0
  %2522 = vst [vmem:[#allocation2 + $0x2f8] sm:$0xff] 0.0
  %2523 = vst [vmem:[#allocation2 + $0x328] sm:$0xff] 0.0
  %2524 = vst [vmem:[#allocation2 + $0x358] sm:$0xff] 0.0
  %2525 = vst [vmem:[#allocation2 + $0x388] sm:$0xff] 0.0
  %2526 = vst [vmem:[#allocation2 + $0x3b8] sm:$0xff] 0.0
  %2527 = vst [vmem:[#allocation2 + $0x3e8] sm:$0xff] 0.0
  %2528 = vst [vmem:[#allocation2 + $0x418] sm:$0xff] 0.0
  %2529 = vst [vmem:[#allocation2 + $0x448] sm:$0xff] 0.0
  %2530 = vst [vmem:[#allocation2 + $0x478] sm:$0xff] 0.0
  %2531 = vst [vmem:[#allocation2 + $0x4a8] sm:$0xff] 0.0
  %2532 = vst [vmem:[#allocation2 + $0x4d8] sm:$0xff] 0.0
  %2533 = vst [vmem:[#allocation2 + $0x508] sm:$0xff] 0.0
  %2534 = vst [vmem:[#allocation2 + $0x538] sm:$0xff] 0.0
  %2535 = vst [vmem:[#allocation2 + $0x568] sm:$0xff] 0.0
  %2536 = vst [vmem:[#allocation2 + $0x598] sm:$0xff] 0.0
  %2537 = vst [vmem:[#allocation2 + $0x5c8] sm:$0xff] 0.0
  %2538 = vst [vmem:[#allocation2 + $0x5f8] sm:$0xff] 0.0
  %2539 = vst [vmem:[#allocation2 + $0x628] sm:$0xff] 0.0
  %2540 = vst [vmem:[#allocation2 + $0x658] sm:$0xff] 0.0
  %2541 = vst [vmem:[#allocation2 + $0x688] sm:$0xff] 0.0
  %2542 = vst [vmem:[#allocation2 + $0x6b8] sm:$0xff] 0.0
  %2543 = vst [vmem:[#allocation2 + $0x6e8] sm:$0xff] 0.0
  %2544 = vst [vmem:[#allocation2 + $0x718] sm:$0xff] 0.0
  %2545 = vst [vmem:[#allocation2 + $0x748] sm:$0xff] 0.0
  %2546 = vst [vmem:[#allocation2 + $0x778] sm:$0xff] 0.0
  %2547 = vst [vmem:[#allocation2 + $0x7a8] sm:$0xff] 0.0
  %2548 = vst [vmem:[#allocation2 + $0x7d8] sm:$0xff] 0.0
  %2549 = vst [vmem:[#allocation2 + $0x808] sm:$0xff] 0.0
  %2550 = vst [vmem:[#allocation2 + $0x838] sm:$0xff] 0.0
  %2551 = vst [vmem:[#allocation2 + $0x868] sm:$0xff] 0.0
  %2552 = vst [vmem:[#allocation2 + $0x898] sm:$0xff] 0.0
  %2553 = vst [vmem:[#allocation2 + $0x8c8] sm:$0xff] 0.0
  %2554 = vst [vmem:[#allocation2 + $0x8f8] sm:$0xff] 0.0
  %2555 = vst [vmem:[#allocation2 + $0x928] sm:$0xff] 0.0
  %2556 = vst [vmem:[#allocation2 + $0x958] sm:$0xff] 0.0
  %2557 = vst [vmem:[#allocation2 + $0x988] sm:$0xff] 0.0
  %2558 = vst [vmem:[#allocation2 + $0x9b8] sm:$0xff] 0.0
  %2559 = vst [vmem:[#allocation2 + $0x9e8] sm:$0xff] 0.0
  %2560 = vst [vmem:[#allocation2 + $0xa18] sm:$0xff] 0.0
  %2562 = vset.pattern.permute.xlu0 0
  %2563 = vperm.xlu0 %2562, %v2303
  %v2564 = vpop.permute.xlu0 %2563
  %2567 = vset.pattern.permute.xlu0 0
  %2568 = vperm.xlu0 %2567, %v2304
  %v2569 = vpop.permute.xlu0 %2568
  %2572 = vset.pattern.permute.xlu0 0
  %2573 = vperm.xlu0 %2572, %v2305
  %v2574 = vpop.permute.xlu0 %2573
  %2577 = vset.pattern.permute.xlu0 0
  %2578 = vperm.xlu0 %2577, %v2306
  %v2579 = vpop.permute.xlu0 %2578
  %2582 = vset.pattern.permute.xlu0 0
  %2583 = vperm.xlu0 %2582, %v2307
  %v2584 = vpop.permute.xlu0 %2583
  %2587 = vset.pattern.permute.xlu0 0
  %2588 = vperm.xlu0 %2587, %v2308
  %v2589 = vpop.permute.xlu0 %2588
  %2592 = vset.pattern.permute.xlu0 0
  %2593 = vperm.xlu0 %2592, %v2309
  %v2594 = vpop.permute.xlu0 %2593
  %2597 = vset.pattern.permute.xlu0 0
  %2598 = vperm.xlu0 %2597, %v2310
  %v2599 = vpop.permute.xlu0 %2598
  %2602 = vset.pattern.permute.xlu0 0
  %2603 = vperm.xlu0 %2602, %v2311
  %v2604 = vpop.permute.xlu0 %2603
  %2607 = vset.pattern.permute.xlu0 0
  %2608 = vperm.xlu0 %2607, %v2312
  %v2609 = vpop.permute.xlu0 %2608
  %2612 = vset.pattern.permute.xlu0 0
  %2613 = vperm.xlu0 %2612, %v2313
  %v2614 = vpop.permute.xlu0 %2613
  %2617 = vset.pattern.permute.xlu0 0
  %2618 = vperm.xlu0 %2617, %v2314
  %v2619 = vpop.permute.xlu0 %2618
  %2622 = vset.pattern.permute.xlu0 0
  %2623 = vperm.xlu0 %2622, %v2315
  %v2624 = vpop.permute.xlu0 %2623
  %2627 = vset.pattern.permute.xlu0 0
  %2628 = vperm.xlu0 %2627, %v2316
  %v2629 = vpop.permute.xlu0 %2628
  %2632 = vset.pattern.permute.xlu0 0
  %2633 = vperm.xlu0 %2632, %v2317
  %v2634 = vpop.permute.xlu0 %2633
  %2637 = vset.pattern.permute.xlu0 0
  %2638 = vperm.xlu0 %2637, %v2318
  %v2639 = vpop.permute.xlu0 %2638
  %2642 = vset.pattern.permute.xlu0 0
  %2643 = vperm.xlu0 %2642, %v2319
  %v2644 = vpop.permute.xlu0 %2643
  %2647 = vset.pattern.permute.xlu0 0
  %2648 = vperm.xlu0 %2647, %v2320
  %v2649 = vpop.permute.xlu0 %2648
  %2652 = vset.pattern.permute.xlu0 0
  %2653 = vperm.xlu0 %2652, %v2321
  %v2654 = vpop.permute.xlu0 %2653
  %2657 = vset.pattern.permute.xlu0 0
  %2658 = vperm.xlu0 %2657, %v2322
  %v2659 = vpop.permute.xlu0 %2658
  %2662 = vset.pattern.permute.xlu0 0
  %2663 = vperm.xlu0 %2662, %v2323
  %v2664 = vpop.permute.xlu0 %2663
  %2667 = vset.pattern.permute.xlu0 0
  %2668 = vperm.xlu0 %2667, %v2324
  %v2669 = vpop.permute.xlu0 %2668
  %2672 = vset.pattern.permute.xlu0 0
  %2673 = vperm.xlu0 %2672, %v2325
  %v2674 = vpop.permute.xlu0 %2673
  %2677 = vset.pattern.permute.xlu0 0
  %2678 = vperm.xlu0 %2677, %v2326
  %v2679 = vpop.permute.xlu0 %2678
  %v2681 = vmul.f32 %v1210, %v2564
  %v2682 = vmul.f32 %v1212, %v2564
  %v2683 = vmul.f32 %v1214, %v2569
  %v2684 = vmul.f32 %v1216, %v2569
  %v2685 = vmul.f32 %v1220, %v2574
  %v2686 = vmul.f32 %v1222, %v2574
  %v2687 = vmul.f32 %v1224, %v2579
  %v2688 = vmul.f32 %v1226, %v2579
  %v2689 = vmul.f32 %v1230, %v2584
  %v2690 = vmul.f32 %v1232, %v2584
  %v2691 = vmul.f32 %v1234, %v2589
  %v2692 = vmul.f32 %v1236, %v2589
  %v2693 = vmul.f32 %v1240, %v2594
  %v2694 = vmul.f32 %v1242, %v2594
  %v2695 = vmul.f32 %v1244, %v2599
  %v2696 = vmul.f32 %v1246, %v2599
  %v2697 = vmul.f32 %v1250, %v2604
  %v2698 = vmul.f32 %v1252, %v2604
  %v2699 = vmul.f32 %v1254, %v2609
  %v2700 = vmul.f32 %v1256, %v2609
  %v2701 = vmul.f32 %v1260, %v2614
  %v2702 = vmul.f32 %v1262, %v2614
  %v2703 = vmul.f32 %v1264, %v2619
  %v2704 = vmul.f32 %v1266, %v2619
  %v2705 = vmul.f32 %v1270, %v2624
  %v2706 = vmul.f32 %v1272, %v2624
  %v2707 = vmul.f32 %v1274, %v2629
  %v2708 = vmul.f32 %v1276, %v2629
  %v2709 = vmul.f32 %v1280, %v2634
  %v2710 = vmul.f32 %v1282, %v2634
  %v2711 = vmul.f32 %v1284, %v2639
  %v2712 = vmul.f32 %v1286, %v2639
  %v2713 = vmul.f32 %v1290, %v2644
  %v2714 = vmul.f32 %v1292, %v2644
  %v2715 = vmul.f32 %v1294, %v2649
  %v2716 = vmul.f32 %v1296, %v2649
  %v2717 = vmul.f32 %v1300, %v2654
  %v2718 = vmul.f32 %v1302, %v2654
  %v2719 = vmul.f32 %v1304, %v2659
  %v2720 = vmul.f32 %v1306, %v2659
  %v2721 = vmul.f32 %v1310, %v2664
  %v2722 = vmul.f32 %v1312, %v2664
  %v2723 = vmul.f32 %v1314, %v2669
  %v2724 = vmul.f32 %v1316, %v2669
  %v2725 = vmul.f32 %v1320, %v2674
  %v2726 = vmul.f32 %v1322, %v2674
  %v2727 = vmul.f32 %v1324, %v2679
  %v2728 = vmul.f32 %v1326, %v2679
  %2730 = vset.pattern.permute.xlu0 0
  %2731 = vperm.xlu0 %2730, %v2375
  %v2732 = vpop.permute.xlu0 %2731
  %2735 = vset.pattern.permute.xlu0 0
  %2736 = vperm.xlu0 %2735, %v2376
  %v2737 = vpop.permute.xlu0 %2736
  %2740 = vset.pattern.permute.xlu0 0
  %2741 = vperm.xlu0 %2740, %v2377
  %v2742 = vpop.permute.xlu0 %2741
  %2745 = vset.pattern.permute.xlu0 0
  %2746 = vperm.xlu0 %2745, %v2378
  %v2747 = vpop.permute.xlu0 %2746
  %2750 = vset.pattern.permute.xlu0 0
  %2751 = vperm.xlu0 %2750, %v2379
  %v2752 = vpop.permute.xlu0 %2751
  %2755 = vset.pattern.permute.xlu0 0
  %2756 = vperm.xlu0 %2755, %v2380
  %v2757 = vpop.permute.xlu0 %2756
  %2760 = vset.pattern.permute.xlu0 0
  %2761 = vperm.xlu0 %2760, %v2381
  %v2762 = vpop.permute.xlu0 %2761
  %2765 = vset.pattern.permute.xlu0 0
  %2766 = vperm.xlu0 %2765, %v2382
  %v2767 = vpop.permute.xlu0 %2766
  %2770 = vset.pattern.permute.xlu0 0
  %2771 = vperm.xlu0 %2770, %v2383
  %v2772 = vpop.permute.xlu0 %2771
  %2775 = vset.pattern.permute.xlu0 0
  %2776 = vperm.xlu0 %2775, %v2384
  %v2777 = vpop.permute.xlu0 %2776
  %2780 = vset.pattern.permute.xlu0 0
  %2781 = vperm.xlu0 %2780, %v2385
  %v2782 = vpop.permute.xlu0 %2781
  %2785 = vset.pattern.permute.xlu0 0
  %2786 = vperm.xlu0 %2785, %v2386
  %v2787 = vpop.permute.xlu0 %2786
  %2790 = vset.pattern.permute.xlu0 0
  %2791 = vperm.xlu0 %2790, %v2387
  %v2792 = vpop.permute.xlu0 %2791
  %2795 = vset.pattern.permute.xlu0 0
  %2796 = vperm.xlu0 %2795, %v2388
  %v2797 = vpop.permute.xlu0 %2796
  %2800 = vset.pattern.permute.xlu0 0
  %2801 = vperm.xlu0 %2800, %v2389
  %v2802 = vpop.permute.xlu0 %2801
  %2805 = vset.pattern.permute.xlu0 0
  %2806 = vperm.xlu0 %2805, %v2390
  %v2807 = vpop.permute.xlu0 %2806
  %2810 = vset.pattern.permute.xlu0 0
  %2811 = vperm.xlu0 %2810, %v2391
  %v2812 = vpop.permute.xlu0 %2811
  %2815 = vset.pattern.permute.xlu0 0
  %2816 = vperm.xlu0 %2815, %v2392
  %v2817 = vpop.permute.xlu0 %2816
  %2820 = vset.pattern.permute.xlu0 0
  %2821 = vperm.xlu0 %2820, %v2393
  %v2822 = vpop.permute.xlu0 %2821
  %2825 = vset.pattern.permute.xlu0 0
  %2826 = vperm.xlu0 %2825, %v2394
  %v2827 = vpop.permute.xlu0 %2826
  %2830 = vset.pattern.permute.xlu0 0
  %2831 = vperm.xlu0 %2830, %v2395
  %v2832 = vpop.permute.xlu0 %2831
  %2835 = vset.pattern.permute.xlu0 0
  %2836 = vperm.xlu0 %2835, %v2396
  %v2837 = vpop.permute.xlu0 %2836
  %2840 = vset.pattern.permute.xlu0 0
  %2841 = vperm.xlu0 %2840, %v2397
  %v2842 = vpop.permute.xlu0 %2841
  %2845 = vset.pattern.permute.xlu0 0
  %2846 = vperm.xlu0 %2845, %v2398
  %v2847 = vpop.permute.xlu0 %2846
  %v2849 = vadd.f32 %v2681, %v2732
  %v2850 = vadd.f32 %v2682, %v2732
  %v2851 = vadd.f32 %v2683, %v2737
  %v2852 = vadd.f32 %v2684, %v2737
  %v2853 = vadd.f32 %v2685, %v2742
  %v2854 = vadd.f32 %v2686, %v2742
  %v2855 = vadd.f32 %v2687, %v2747
  %v2856 = vadd.f32 %v2688, %v2747
  %v2857 = vadd.f32 %v2689, %v2752
  %v2858 = vadd.f32 %v2690, %v2752
  %v2859 = vadd.f32 %v2691, %v2757
  %v2860 = vadd.f32 %v2692, %v2757
  %v2861 = vadd.f32 %v2693, %v2762
  %v2862 = vadd.f32 %v2694, %v2762
  %v2863 = vadd.f32 %v2695, %v2767
  %v2864 = vadd.f32 %v2696, %v2767
  %v2865 = vadd.f32 %v2697, %v2772
  %v2866 = vadd.f32 %v2698, %v2772
  %v2867 = vadd.f32 %v2699, %v2777
  %v2868 = vadd.f32 %v2700, %v2777
  %v2869 = vadd.f32 %v2701, %v2782
  %v2870 = vadd.f32 %v2702, %v2782
  %v2871 = vadd.f32 %v2703, %v2787
  %v2872 = vadd.f32 %v2704, %v2787
  %v2873 = vadd.f32 %v2705, %v2792
  %v2874 = vadd.f32 %v2706, %v2792
  %v2875 = vadd.f32 %v2707, %v2797
  %v2876 = vadd.f32 %v2708, %v2797
  %v2877 = vadd.f32 %v2709, %v2802
  %v2878 = vadd.f32 %v2710, %v2802
  %v2879 = vadd.f32 %v2711, %v2807
  %v2880 = vadd.f32 %v2712, %v2807
  %v2881 = vadd.f32 %v2713, %v2812
  %v2882 = vadd.f32 %v2714, %v2812
  %v2883 = vadd.f32 %v2715, %v2817
  %v2884 = vadd.f32 %v2716, %v2817
  %v2885 = vadd.f32 %v2717, %v2822
  %v2886 = vadd.f32 %v2718, %v2822
  %v2887 = vadd.f32 %v2719, %v2827
  %v2888 = vadd.f32 %v2720, %v2827
  %v2889 = vadd.f32 %v2721, %v2832
  %v2890 = vadd.f32 %v2722, %v2832
  %v2891 = vadd.f32 %v2723, %v2837
  %v2892 = vadd.f32 %v2724, %v2837
  %v2893 = vadd.f32 %v2725, %v2842
  %v2894 = vadd.f32 %v2726, %v2842
  %v2895 = vadd.f32 %v2727, %v2847
  %v2896 = vadd.f32 %v2728, %v2847
  %v2897 = vmax.f32 %v2849, 0.0
  %v2898 = vmax.f32 %v2850, 0.0
  %v2899 = vmax.f32 %v2851, 0.0
  %v2900 = vmax.f32 %v2852, 0.0
  %v2901 = vmax.f32 %v2853, 0.0
  %v2902 = vmax.f32 %v2854, 0.0
  %v2903 = vmax.f32 %v2855, 0.0
  %v2904 = vmax.f32 %v2856, 0.0
  %v2905 = vmax.f32 %v2857, 0.0
  %v2906 = vmax.f32 %v2858, 0.0
  %v2907 = vmax.f32 %v2859, 0.0
  %v2908 = vmax.f32 %v2860, 0.0
  %v2909 = vmax.f32 %v2861, 0.0
  %v2910 = vmax.f32 %v2862, 0.0
  %v2911 = vmax.f32 %v2863, 0.0
  %v2912 = vmax.f32 %v2864, 0.0
  %v2913 = vmax.f32 %v2865, 0.0
  %v2914 = vmax.f32 %v2866, 0.0
  %v2915 = vmax.f32 %v2867, 0.0
  %v2916 = vmax.f32 %v2868, 0.0
  %v2917 = vmax.f32 %v2869, 0.0
  %v2918 = vmax.f32 %v2870, 0.0
  %v2919 = vmax.f32 %v2871, 0.0
  %v2920 = vmax.f32 %v2872, 0.0
  %v2921 = vmax.f32 %v2873, 0.0
  %v2922 = vmax.f32 %v2874, 0.0
  %v2923 = vmax.f32 %v2875, 0.0
  %v2924 = vmax.f32 %v2876, 0.0
  %v2925 = vmax.f32 %v2877, 0.0
  %v2926 = vmax.f32 %v2878, 0.0
  %v2927 = vmax.f32 %v2879, 0.0
  %v2928 = vmax.f32 %v2880, 0.0
  %v2929 = vmax.f32 %v2881, 0.0
  %v2930 = vmax.f32 %v2882, 0.0
  %v2931 = vmax.f32 %v2883, 0.0
  %v2932 = vmax.f32 %v2884, 0.0
  %v2933 = vmax.f32 %v2885, 0.0
  %v2934 = vmax.f32 %v2886, 0.0
  %v2935 = vmax.f32 %v2887, 0.0
  %v2936 = vmax.f32 %v2888, 0.0
  %v2937 = vmax.f32 %v2889, 0.0
  %v2938 = vmax.f32 %v2890, 0.0
  %v2939 = vmax.f32 %v2891, 0.0
  %v2940 = vmax.f32 %v2892, 0.0
  %v2941 = vmax.f32 %v2893, 0.0
  %v2942 = vmax.f32 %v2894, 0.0
  %v2943 = vmax.f32 %v2895, 0.0
  %v2944 = vmax.f32 %v2896, 0.0
  %v2945 = vpack.c.bf16 %v2899, %v2897
  %v2946 = vpack.c.bf16 %v2900, %v2898
  %v2947 = vpack.c.bf16 %v2903, %v2901
  %v2948 = vpack.c.bf16 %v2904, %v2902
  %v2949 = vpack.c.bf16 %v2907, %v2905
  %v2950 = vpack.c.bf16 %v2908, %v2906
  %v2951 = vpack.c.bf16 %v2911, %v2909
  %v2952 = vpack.c.bf16 %v2912, %v2910
  %v2953 = vpack.c.bf16 %v2915, %v2913
  %v2954 = vpack.c.bf16 %v2916, %v2914
  %v2955 = vpack.c.bf16 %v2919, %v2917
  %v2956 = vpack.c.bf16 %v2920, %v2918
  %v2957 = vpack.c.bf16 %v2923, %v2921
  %v2958 = vpack.c.bf16 %v2924, %v2922
  %v2959 = vpack.c.bf16 %v2927, %v2925
  %v2960 = vpack.c.bf16 %v2928, %v2926
  %v2961 = vpack.c.bf16 %v2931, %v2929
  %v2962 = vpack.c.bf16 %v2932, %v2930
  %v2963 = vpack.c.bf16 %v2935, %v2933
  %v2964 = vpack.c.bf16 %v2936, %v2934
  %v2965 = vpack.c.bf16 %v2939, %v2937
  %v2966 = vpack.c.bf16 %v2940, %v2938
  %v2967 = vpack.c.bf16 %v2943, %v2941
  %v2968 = vpack.c.bf16 %v2944, %v2942
  %v3023 = vunpack.c.l.b16 %v2399
  %v3024 = vunpack.c.h.b16 %v2399
  %v3025 = vunpack.c.l.b16 %v2400
  %v3026 = vunpack.c.h.b16 %v2400
  %v3027 = vunpack.c.l.b16 %v2401
  %v3028 = vunpack.c.h.b16 %v2401
  %v3029 = vunpack.c.l.b16 %v2402
  %v3030 = vunpack.c.h.b16 %v2402
  %v3031 = vunpack.c.l.b16 %v2403
  %v3032 = vunpack.c.h.b16 %v2403
  %v3033 = vunpack.c.l.b16 %v2404
  %v3034 = vunpack.c.h.b16 %v2404
  %v3035 = vunpack.c.l.b16 %v2405
  %v3036 = vunpack.c.h.b16 %v2405
  %v3037 = vunpack.c.l.b16 %v2406
  %v3038 = vunpack.c.h.b16 %v2406
  %v3039 = vunpack.c.l.b16 %v2407
  %v3040 = vunpack.c.h.b16 %v2407
  %v3041 = vunpack.c.l.b16 %v2408
  %v3042 = vunpack.c.h.b16 %v2408
  %v3043 = vunpack.c.l.b16 %v2409
  %v3044 = vunpack.c.h.b16 %v2409
  %v3045 = vunpack.c.l.b16 %v2410
  %v3046 = vunpack.c.h.b16 %v2410
  %v3047 = vunpack.c.l.b16 %v2411
  %v3048 = vunpack.c.h.b16 %v2411
  %v3049 = vunpack.c.l.b16 %v2412
  %v3050 = vunpack.c.h.b16 %v2412
  %v3051 = vunpack.c.l.b16 %v2413
  %v3052 = vunpack.c.h.b16 %v2413
  %v3053 = vunpack.c.l.b16 %v2414
  %v3054 = vunpack.c.h.b16 %v2414
  %v3055 = vunpack.c.l.b16 %v2415
  %v3056 = vunpack.c.h.b16 %v2415
  %v3057 = vunpack.c.l.b16 %v2416
  %v3058 = vunpack.c.h.b16 %v2416
  %v3059 = vunpack.c.l.b16 %v2417
  %v3060 = vunpack.c.h.b16 %v2417
  %v3061 = vunpack.c.l.b16 %v2418
  %v3062 = vunpack.c.h.b16 %v2418
  %v3063 = vunpack.c.l.b16 %v2419
  %v3064 = vunpack.c.h.b16 %v2419
  %v3065 = vunpack.c.l.b16 %v2420
  %v3066 = vunpack.c.h.b16 %v2420
  %v3067 = vunpack.c.l.b16 %v2421
  %v3068 = vunpack.c.h.b16 %v2421
  %v3069 = vunpack.c.l.b16 %v2422
  %v3070 = vunpack.c.h.b16 %v2422
  %v3071 = vunpack.c.l.b16 %v2423
  %v3072 = vunpack.c.h.b16 %v2423
  %v3073 = vunpack.c.l.b16 %v2424
  %v3074 = vunpack.c.h.b16 %v2424
  %v3075 = vunpack.c.l.b16 %v2425
  %v3076 = vunpack.c.h.b16 %v2425
  %v3077 = vunpack.c.l.b16 %v2426
  %v3078 = vunpack.c.h.b16 %v2426
  %v3079 = vunpack.c.l.b16 %v2427
  %v3080 = vunpack.c.h.b16 %v2427
  %v3081 = vunpack.c.l.b16 %v2428
  %v3082 = vunpack.c.h.b16 %v2428
  %v3083 = vunpack.c.l.b16 %v2429
  %v3084 = vunpack.c.h.b16 %v2429
  %v3085 = vunpack.c.l.b16 %v2430
  %v3086 = vunpack.c.h.b16 %v2430
  %v3087 = vunpack.c.l.b16 %v2431
  %v3088 = vunpack.c.h.b16 %v2431
  %v3089 = vunpack.c.l.b16 %v2432
  %v3090 = vunpack.c.h.b16 %v2432
  %v3091 = vunpack.c.l.b16 %v2433
  %v3092 = vunpack.c.h.b16 %v2433
  %v3093 = vunpack.c.l.b16 %v2434
  %v3094 = vunpack.c.h.b16 %v2434
  %v3095 = vunpack.c.l.b16 %v2435
  %v3096 = vunpack.c.h.b16 %v2435
  %v3097 = vunpack.c.l.b16 %v2436
  %v3098 = vunpack.c.h.b16 %v2436
  %v3099 = vunpack.c.l.b16 %v2437
  %v3100 = vunpack.c.h.b16 %v2437
  %v3101 = vunpack.c.l.b16 %v2438
  %v3102 = vunpack.c.h.b16 %v2438
  %v3103 = vunpack.c.l.b16 %v2439
  %v3104 = vunpack.c.h.b16 %v2439
  %v3105 = vunpack.c.l.b16 %v2440
  %v3106 = vunpack.c.h.b16 %v2440
  %v3107 = vunpack.c.l.b16 %v2441
  %v3108 = vunpack.c.h.b16 %v2441
  %v3109 = vunpack.c.l.b16 %v2442
  %v3110 = vunpack.c.h.b16 %v2442
  %v3111 = vunpack.c.l.b16 %v2443
  %v3112 = vunpack.c.h.b16 %v2443
  %v3113 = vunpack.c.l.b16 %v2444
  %v3114 = vunpack.c.h.b16 %v2444
  %v3115 = vunpack.c.l.b16 %v2445
  %v3116 = vunpack.c.h.b16 %v2445
  %v3117 = vunpack.c.l.b16 %v2446
  %v3118 = vunpack.c.h.b16 %v2446
  %v3119 = vunpack.c.l.b16 %v2447
  %v3120 = vunpack.c.h.b16 %v2447
  %v3121 = vunpack.c.l.b16 %v2448
  %v3122 = vunpack.c.h.b16 %v2448
  %v3123 = vunpack.c.l.b16 %v2449
  %v3124 = vunpack.c.h.b16 %v2449
  %v3125 = vunpack.c.l.b16 %v2450
  %v3126 = vunpack.c.h.b16 %v2450
  %v3127 = vunpack.c.l.b16 %v2451
  %v3128 = vunpack.c.h.b16 %v2451
  %v3129 = vunpack.c.l.b16 %v2452
  %v3130 = vunpack.c.h.b16 %v2452
  %v3131 = vpack.c.b16 %v3025, %v3023
  %v3132 = vpack.c.b16 %v3026, %v3024
  %v3133 = vpack.c.b16 %v3029, %v3027
  %v3134 = vpack.c.b16 %v3030, %v3028
  %v3135 = vpack.c.b16 %v3033, %v3031
  %v3136 = vpack.c.b16 %v3034, %v3032
  %v3137 = vpack.c.b16 %v3037, %v3035
  %v3138 = vpack.c.b16 %v3038, %v3036
  %v3139 = vpack.c.b16 %v3041, %v3039
  %v3140 = vpack.c.b16 %v3042, %v3040
  %v3141 = vpack.c.b16 %v3045, %v3043
  %v3142 = vpack.c.b16 %v3046, %v3044
  %v3143 = vpack.c.b16 %v3049, %v3047
  %v3144 = vpack.c.b16 %v3050, %v3048
  %v3145 = vpack.c.b16 %v3053, %v3051
  %v3146 = vpack.c.b16 %v3054, %v3052
  %v3147 = vpack.c.b16 %v3057, %v3055
  %v3148 = vpack.c.b16 %v3058, %v3056
  %v3149 = vpack.c.b16 %v3061, %v3059
  %v3150 = vpack.c.b16 %v3062, %v3060
  %v3151 = vpack.c.b16 %v3065, %v3063
  %v3152 = vpack.c.b16 %v3066, %v3064
  %v3153 = vpack.c.b16 %v3069, %v3067
  %v3154 = vpack.c.b16 %v3070, %v3068
  %v3155 = vpack.c.b16 %v3073, %v3071
  %v3156 = vpack.c.b16 %v3074, %v3072
  %v3157 = vpack.c.b16 %v3077, %v3075
  %v3158 = vpack.c.b16 %v3078, %v3076
  %v3159 = vpack.c.b16 %v3081, %v3079
  %v3160 = vpack.c.b16 %v3082, %v3080
  %v3161 = vpack.c.b16 %v3085, %v3083
  %v3162 = vpack.c.b16 %v3086, %v3084
  %v3163 = vpack.c.b16 %v3089, %v3087
  %v3164 = vpack.c.b16 %v3090, %v3088
  %v3165 = vpack.c.b16 %v3093, %v3091
  %v3166 = vpack.c.b16 %v3094, %v3092
  %v3167 = vpack.c.b16 %v3097, %v3095
  %v3168 = vpack.c.b16 %v3098, %v3096
  %v3169 = vpack.c.b16 %v3101, %v3099
  %v3170 = vpack.c.b16 %v3102, %v3100
  %v3171 = vpack.c.b16 %v3105, %v3103
  %v3172 = vpack.c.b16 %v3106, %v3104
  %v3173 = vpack.c.b16 %v3109, %v3107
  %v3174 = vpack.c.b16 %v3110, %v3108
  %v3175 = vpack.c.b16 %v3113, %v3111
  %v3176 = vpack.c.b16 %v3114, %v3112
  %v3177 = vpack.c.b16 %v3117, %v3115
  %v3178 = vpack.c.b16 %v3118, %v3116
  %v3179 = vpack.c.b16 %v3121, %v3119
  %v3180 = vpack.c.b16 %v3122, %v3120
  %v3181 = vpack.c.b16 %v3125, %v3123
  %v3182 = vpack.c.b16 %v3126, %v3124
  %v3183 = vpack.c.b16 %v3129, %v3127
  %v3184 = vpack.c.b16 %v3130, %v3128
  %vm3212 = vcmask 523264
  %v3214 = vsel %vm3212, %v3132, 0
  %v3217 = vsel %vm3212, %v3134, 0
  %v3220 = vsel %vm3212, %v3136, 0
  %v3223 = vsel %vm3212, %v3138, 0
  %v3226 = vsel %vm3212, %v3140, 0
  %v3229 = vsel %vm3212, %v3142, 0
  %v3232 = vsel %vm3212, %v3144, 0
  %v3235 = vsel %vm3212, %v3146, 0
  %v3238 = vsel %vm3212, %v3148, 0
  %v3241 = vsel %vm3212, %v3150, 0
  %v3244 = vsel %vm3212, %v3152, 0
  %v3247 = vsel %vm3212, %v3154, 0
  %v3250 = vsel %vm3212, %v3156, 0
  %v3253 = vsel %vm3212, %v3158, 0
  %v3256 = vsel %vm3212, %v3160, 0
  %v3259 = vsel %vm3212, %v3162, 0
  %v3262 = vsel %vm3212, %v3164, 0
  %v3265 = vsel %vm3212, %v3166, 0
  %v3268 = vsel %vm3212, %v3168, 0
  %v3271 = vsel %vm3212, %v3170, 0
  %v3274 = vsel %vm3212, %v3172, 0
  %v3277 = vsel %vm3212, %v3174, 0
  %v3280 = vsel %vm3212, %v3176, 0
  %v3283 = vsel %vm3212, %v3178, 0
  %v3286 = vsel %vm3212, %v3180, 0
  %v3289 = vsel %vm3212, %v3182, 0
  %v3292 = vsel %vm3212, %v3184, 0
  %3294 = vmatprep.subr.bf16.mxu0 %v2946
  %3295 = vmatpush1.bf16.msra.mxu0 %v2945
  %3296 = vmatprep.subr.bf16.mxu0 %v2948
  %3297 = vmatpush1.bf16.msra.mxu0 %v2947
  %3298 = vmatprep.subr.bf16.mxu0 %v2950
  %3299 = vmatpush1.bf16.msra.mxu0 %v2949
  %3300 = vmatprep.subr.bf16.mxu0 %v2952
  %3301 = vmatpush1.bf16.msra.mxu0 %v2951
  %3302 = vmatprep.subr.bf16.mxu0 %v2954
  %3303 = vmatpush1.bf16.msra.mxu0 %v2953
  %3304 = vmatprep.subr.bf16.mxu0 %v2956
  %3305 = vmatpush1.bf16.msra.mxu0 %v2955
  %3306 = vmatprep.subr.bf16.mxu0 %v2958
  %3307 = vmatpush1.bf16.msra.mxu0 %v2957
  %3308 = vmatprep.subr.bf16.mxu0 %v2960
  %3309 = vmatpush1.bf16.msra.mxu0 %v2959
  %3310 = vmatprep.subr.bf16.mxu0 %v2962
  %3311 = vmatpush1.bf16.msra.mxu0 %v2961
  %3312 = vmatprep.subr.bf16.mxu0 %v2964
  %3313 = vmatpush1.bf16.msra.mxu0 %v2963
  %3314 = vmatprep.subr.bf16.mxu0 %v2966
  %3315 = vmatpush1.bf16.msra.mxu0 %v2965
  %3316 = vmatprep.subr.bf16.mxu0 %v2968
  %3317 = vmatpush1.bf16.msra.mxu0 %v2967
  %3318 = vmatprep.subr.bf16.mxu0 0
  %3319 = vmatpush1.bf16.msra.mxu0 0
  %3320 = vmatprep.subr.bf16.mxu0 0
  %3321 = vmatpush1.bf16.msra.mxu0 0
  %3322 = vmatprep.subr.bf16.mxu0 0
  %3323 = vmatpush1.bf16.msra.mxu0 0
  %3324 = vmatprep.subr.bf16.mxu0 0
  %3325 = vmatpush1.bf16.msra.mxu0 0
  %3326 = vmatprep.mubr.bf16.mxu0 %v3214
  %3327 = vmatmul.mubr.bf16.gmra.mrb[0].mxu0 %v3131
  %v3328 = vpop.f32.mrb[0].mxu0
  %v3329 = vadd.f32 0.0, %v3328
  %v3330 = vpop.f32.mrb[0].mxu0
  %v3331 = vadd.f32 0.0, %v3330
  %v3332 = vpop.f32.mrb[0].mxu0
  %v3333 = vadd.f32 0.0, %v3332
  %v3334 = vpop.f32.mrb[0].mxu0
  %v3335 = vadd.f32 0.0, %v3334
  %3336 = vmatprep.mubr.bf16.mxu0 %v3217
  %3337 = vmatmul.mubr.bf16.gmra.mrb[0].mxu0 %v3133
  %v3338 = vpop.f32.mrb[0].mxu0
  %v3339 = vadd.f32 0.0, %v3338
  %v3340 = vpop.f32.mrb[0].mxu0
  %v3341 = vadd.f32 0.0, %v3340
  %v3342 = vpop.f32.mrb[0].mxu0
  %v3343 = vadd.f32 0.0, %v3342
  %v3344 = vpop.f32.mrb[0].mxu0
  %v3345 = vadd.f32 0.0, %v3344
  %3346 = vmatprep.mubr.bf16.mxu0 %v3220
  %3347 = vmatmul.mubr.bf16.gmra.mrb[0].mxu0 %v3135
  %v3348 = vpop.f32.mrb[0].mxu0
  %v3349 = vadd.f32 0.0, %v3348
  %v3350 = vpop.f32.mrb[0].mxu0
  %v3351 = vadd.f32 0.0, %v3350
  %v3352 = vpop.f32.mrb[0].mxu0
  %v3353 = vadd.f32 0.0, %v3352
  %v3354 = vpop.f32.mrb[0].mxu0
  %v3355 = vadd.f32 0.0, %v3354
  %3356 = vmatprep.mubr.bf16.mxu0 %v3223
  %3357 = vmatmul.mubr.bf16.gmra.mrb[0].mxu0 %v3137
  %v3358 = vpop.f32.mrb[0].mxu0
  %v3359 = vadd.f32 0.0, %v3358
  %v3360 = vpop.f32.mrb[0].mxu0
  %v3361 = vadd.f32 0.0, %v3360
  %v3362 = vpop.f32.mrb[0].mxu0
  %v3363 = vadd.f32 0.0, %v3362
  %v3364 = vpop.f32.mrb[0].mxu0
  %v3365 = vadd.f32 0.0, %v3364
  %3366 = vmatprep.mubr.bf16.mxu0 %v3226
  %3367 = vmatmul.mubr.bf16.gmra.mrb[0].mxu0 %v3139
  %v3368 = vpop.f32.mrb[0].mxu0
  %v3369 = vadd.f32 0.0, %v3368
  %v3370 = vpop.f32.mrb[0].mxu0
  %v3371 = vadd.f32 0.0, %v3370
  %v3372 = vpop.f32.mrb[0].mxu0
  %v3373 = vadd.f32 0.0, %v3372
  %v3374 = vpop.f32.mrb[0].mxu0
  %v3375 = vadd.f32 0.0, %v3374
  %3376 = vmatprep.mubr.bf16.mxu0 %v3229
  %3377 = vmatmul.mubr.bf16.gmra.mrb[0].mxu0 %v3141
  %v3378 = vpop.f32.mrb[0].mxu0
  %v3379 = vadd.f32 0.0, %v3378
  %v3380 = vpop.f32.mrb[0].mxu0
  %v3381 = vadd.f32 0.0, %v3380
  %v3382 = vpop.f32.mrb[0].mxu0
  %v3383 = vadd.f32 0.0, %v3382
  %v3384 = vpop.f32.mrb[0].mxu0
  %v3385 = vadd.f32 0.0, %v3384
  %3386 = vmatprep.mubr.bf16.mxu0 %v3232
  %3387 = vmatmul.mubr.bf16.gmra.mrb[0].mxu0 %v3143
  %v3388 = vpop.f32.mrb[0].mxu0
  %v3389 = vadd.f32 0.0, %v3388
  %v3390 = vpop.f32.mrb[0].mxu0
  %v3391 = vadd.f32 0.0, %v3390
  %v3392 = vpop.f32.mrb[0].mxu0
  %v3393 = vadd.f32 0.0, %v3392
  %v3394 = vpop.f32.mrb[0].mxu0
  %v3395 = vadd.f32 0.0, %v3394
  %3396 = vmatprep.mubr.bf16.mxu0 %v3235
  %3397 = vmatmul.mubr.bf16.gmra.mrb[0].mxu0 %v3145
  %v3398 = vpop.f32.mrb[0].mxu0
  %v3399 = vadd.f32 0.0, %v3398
  %v3400 = vpop.f32.mrb[0].mxu0
  %v3401 = vadd.f32 0.0, %v3400
  %v3402 = vpop.f32.mrb[0].mxu0
  %v3403 = vadd.f32 0.0, %v3402
  %v3404 = vpop.f32.mrb[0].mxu0
  %v3405 = vadd.f32 0.0, %v3404
  %3406 = vmatprep.mubr.bf16.mxu0 %v3238
  %3407 = vmatmul.mubr.bf16.gmra.mrb[0].mxu0 %v3147
  %v3408 = vpop.f32.mrb[0].mxu0
  %v3409 = vadd.f32 0.0, %v3408
  %v3410 = vpop.f32.mrb[0].mxu0
  %v3411 = vadd.f32 0.0, %v3410
  %v3412 = vpop.f32.mrb[0].mxu0
  %v3413 = vadd.f32 0.0, %v3412
  %v3414 = vpop.f32.mrb[0].mxu0
  %v3415 = vadd.f32 0.0, %v3414
  %3416 = vmatprep.mubr.bf16.mxu0 %v3241
  %3417 = vmatmul.mubr.bf16.gmra.mrb[0].mxu0 %v3149
  %v3418 = vpop.f32.mrb[0].mxu0
  %v3419 = vadd.f32 0.0, %v3418
  %v3420 = vpop.f32.mrb[0].mxu0
  %v3421 = vadd.f32 0.0, %v3420
  %v3422 = vpop.f32.mrb[0].mxu0
  %v3423 = vadd.f32 0.0, %v3422
  %v3424 = vpop.f32.mrb[0].mxu0
  %v3425 = vadd.f32 0.0, %v3424
  %3426 = vmatprep.mubr.bf16.mxu0 %v3244
  %3427 = vmatmul.mubr.bf16.gmra.mrb[0].mxu0 %v3151
  %v3428 = vpop.f32.mrb[0].mxu0
  %v3429 = vadd.f32 0.0, %v3428
  %v3430 = vpop.f32.mrb[0].mxu0
  %v3431 = vadd.f32 0.0, %v3430
  %v3432 = vpop.f32.mrb[0].mxu0
  %v3433 = vadd.f32 0.0, %v3432
  %v3434 = vpop.f32.mrb[0].mxu0
  %v3435 = vadd.f32 0.0, %v3434
  %3436 = vmatprep.mubr.bf16.mxu0 %v3247
  %3437 = vmatmul.mubr.bf16.gmra.mrb[0].mxu0 %v3153
  %v3438 = vpop.f32.mrb[0].mxu0
  %v3439 = vadd.f32 0.0, %v3438
  %v3440 = vpop.f32.mrb[0].mxu0
  %v3441 = vadd.f32 0.0, %v3440
  %v3442 = vpop.f32.mrb[0].mxu0
  %v3443 = vadd.f32 0.0, %v3442
  %v3444 = vpop.f32.mrb[0].mxu0
  %v3445 = vadd.f32 0.0, %v3444
  %3446 = vmatprep.mubr.bf16.mxu0 %v3250
  %3447 = vmatmul.mubr.bf16.gmra.mrb[0].mxu0 %v3155
  %v3448 = vpop.f32.mrb[0].mxu0
  %v3449 = vadd.f32 0.0, %v3448
  %v3450 = vpop.f32.mrb[0].mxu0
  %v3451 = vadd.f32 0.0, %v3450
  %v3452 = vpop.f32.mrb[0].mxu0
  %v3453 = vadd.f32 0.0, %v3452
  %v3454 = vpop.f32.mrb[0].mxu0
  %v3455 = vadd.f32 0.0, %v3454
  %3456 = vmatprep.mubr.bf16.mxu0 %v3253
  %3457 = vmatmul.mubr.bf16.gmra.mrb[0].mxu0 %v3157
  %v3458 = vpop.f32.mrb[0].mxu0
  %v3459 = vadd.f32 0.0, %v3458
  %v3460 = vpop.f32.mrb[0].mxu0
  %v3461 = vadd.f32 0.0, %v3460
  %v3462 = vpop.f32.mrb[0].mxu0
  %v3463 = vadd.f32 0.0, %v3462
  %v3464 = vpop.f32.mrb[0].mxu0
  %v3465 = vadd.f32 0.0, %v3464
  %3466 = vmatprep.mubr.bf16.mxu0 %v3256
  %3467 = vmatmul.mubr.bf16.gmra.mrb[0].mxu0 %v3159
  %v3468 = vpop.f32.mrb[0].mxu0
  %v3469 = vadd.f32 0.0, %v3468
  %v3470 = vpop.f32.mrb[0].mxu0
  %v3471 = vadd.f32 0.0, %v3470
  %v3472 = vpop.f32.mrb[0].mxu0
  %v3473 = vadd.f32 0.0, %v3472
  %v3474 = vpop.f32.mrb[0].mxu0
  %v3475 = vadd.f32 0.0, %v3474
  %3476 = vmatprep.mubr.bf16.mxu0 %v3259
  %3477 = vmatmul.mubr.bf16.gmra.mrb[0].mxu0 %v3161
  %v3478 = vpop.f32.mrb[0].mxu0
  %v3479 = vadd.f32 0.0, %v3478
  %v3480 = vpop.f32.mrb[0].mxu0
  %v3481 = vadd.f32 0.0, %v3480
  %v3482 = vpop.f32.mrb[0].mxu0
  %v3483 = vadd.f32 0.0, %v3482
  %v3484 = vpop.f32.mrb[0].mxu0
  %v3485 = vadd.f32 0.0, %v3484
  %3486 = vmatprep.mubr.bf16.mxu0 %v3262
  %3487 = vmatmul.mubr.bf16.gmra.mrb[0].mxu0 %v3163
  %v3488 = vpop.f32.mrb[0].mxu0
  %v3489 = vadd.f32 0.0, %v3488
  %v3490 = vpop.f32.mrb[0].mxu0
  %v3491 = vadd.f32 0.0, %v3490
  %v3492 = vpop.f32.mrb[0].mxu0
  %v3493 = vadd.f32 0.0, %v3492
  %v3494 = vpop.f32.mrb[0].mxu0
  %v3495 = vadd.f32 0.0, %v3494
  %3496 = vmatprep.mubr.bf16.mxu0 %v3265
  %3497 = vmatmul.mubr.bf16.gmra.mrb[0].mxu0 %v3165
  %v3498 = vpop.f32.mrb[0].mxu0
  %v3499 = vadd.f32 0.0, %v3498
  %v3500 = vpop.f32.mrb[0].mxu0
  %v3501 = vadd.f32 0.0, %v3500
  %v3502 = vpop.f32.mrb[0].mxu0
  %v3503 = vadd.f32 0.0, %v3502
  %v3504 = vpop.f32.mrb[0].mxu0
  %v3505 = vadd.f32 0.0, %v3504
  %3506 = vmatprep.mubr.bf16.mxu0 %v3268
  %3507 = vmatmul.mubr.bf16.gmra.mrb[0].mxu0 %v3167
  %v3508 = vpop.f32.mrb[0].mxu0
  %v3509 = vadd.f32 0.0, %v3508
  %v3510 = vpop.f32.mrb[0].mxu0
  %v3511 = vadd.f32 0.0, %v3510
  %v3512 = vpop.f32.mrb[0].mxu0
  %v3513 = vadd.f32 0.0, %v3512
  %v3514 = vpop.f32.mrb[0].mxu0
  %v3515 = vadd.f32 0.0, %v3514
  %3516 = vmatprep.mubr.bf16.mxu0 %v3271
  %3517 = vmatmul.mubr.bf16.gmra.mrb[0].mxu0 %v3169
  %v3518 = vpop.f32.mrb[0].mxu0
  %v3519 = vadd.f32 0.0, %v3518
  %v3520 = vpop.f32.mrb[0].mxu0
  %v3521 = vadd.f32 0.0, %v3520
  %v3522 = vpop.f32.mrb[0].mxu0
  %v3523 = vadd.f32 0.0, %v3522
  %v3524 = vpop.f32.mrb[0].mxu0
  %v3525 = vadd.f32 0.0, %v3524
  %3526 = vmatprep.mubr.bf16.mxu0 %v3274
  %3527 = vmatmul.mubr.bf16.gmra.mrb[0].mxu0 %v3171
  %v3528 = vpop.f32.mrb[0].mxu0
  %v3529 = vadd.f32 0.0, %v3528
  %v3530 = vpop.f32.mrb[0].mxu0
  %v3531 = vadd.f32 0.0, %v3530
  %v3532 = vpop.f32.mrb[0].mxu0
  %v3533 = vadd.f32 0.0, %v3532
  %v3534 = vpop.f32.mrb[0].mxu0
  %v3535 = vadd.f32 0.0, %v3534
  %3536 = vmatprep.mubr.bf16.mxu0 %v3277
  %3537 = vmatmul.mubr.bf16.gmra.mrb[0].mxu0 %v3173
  %v3538 = vpop.f32.mrb[0].mxu0
  %v3539 = vadd.f32 0.0, %v3538
  %v3540 = vpop.f32.mrb[0].mxu0
  %v3541 = vadd.f32 0.0, %v3540
  %v3542 = vpop.f32.mrb[0].mxu0
  %v3543 = vadd.f32 0.0, %v3542
  %v3544 = vpop.f32.mrb[0].mxu0
  %v3545 = vadd.f32 0.0, %v3544
  %3546 = vmatprep.mubr.bf16.mxu0 %v3280
  %3547 = vmatmul.mubr.bf16.gmra.mrb[0].mxu0 %v3175
  %v3548 = vpop.f32.mrb[0].mxu0
  %v3549 = vadd.f32 0.0, %v3548
  %v3550 = vpop.f32.mrb[0].mxu0
  %v3551 = vadd.f32 0.0, %v3550
  %v3552 = vpop.f32.mrb[0].mxu0
  %v3553 = vadd.f32 0.0, %v3552
  %v3554 = vpop.f32.mrb[0].mxu0
  %v3555 = vadd.f32 0.0, %v3554
  %3556 = vmatprep.mubr.bf16.mxu0 %v3283
  %3557 = vmatmul.mubr.bf16.gmra.mrb[0].mxu0 %v3177
  %v3558 = vpop.f32.mrb[0].mxu0
  %v3559 = vadd.f32 0.0, %v3558
  %v3560 = vpop.f32.mrb[0].mxu0
  %v3561 = vadd.f32 0.0, %v3560
  %v3562 = vpop.f32.mrb[0].mxu0
  %v3563 = vadd.f32 0.0, %v3562
  %v3564 = vpop.f32.mrb[0].mxu0
  %v3565 = vadd.f32 0.0, %v3564
  %3566 = vmatprep.mubr.bf16.mxu0 %v3286
  %3567 = vmatmul.mubr.bf16.gmra.mrb[0].mxu0 %v3179
  %v3568 = vpop.f32.mrb[0].mxu0
  %v3569 = vadd.f32 0.0, %v3568
  %v3570 = vpop.f32.mrb[0].mxu0
  %v3571 = vadd.f32 0.0, %v3570
  %v3572 = vpop.f32.mrb[0].mxu0
  %v3573 = vadd.f32 0.0, %v3572
  %v3574 = vpop.f32.mrb[0].mxu0
  %v3575 = vadd.f32 0.0, %v3574
  %3576 = vmatprep.mubr.bf16.mxu0 %v3289
  %3577 = vmatmul.mubr.bf16.gmra.mrb[0].mxu0 %v3181
  %v3578 = vpop.f32.mrb[0].mxu0
  %v3579 = vadd.f32 0.0, %v3578
  %v3580 = vpop.f32.mrb[0].mxu0
  %v3581 = vadd.f32 0.0, %v3580
  %v3582 = vpop.f32.mrb[0].mxu0
  %v3583 = vadd.f32 0.0, %v3582
  %v3584 = vpop.f32.mrb[0].mxu0
  %v3585 = vadd.f32 0.0, %v3584
  %3586 = vmatprep.mubr.bf16.mxu0 %v3292
  %3587 = vmatmul.mubr.bf16.gmra.mrb[0].mxu0 %v3183
  %v3588 = vpop.f32.mrb[0].mxu0
  %v3589 = vadd.f32 0.0, %v3588
  %v3590 = vpop.f32.mrb[0].mxu0
  %v3591 = vadd.f32 0.0, %v3590
  %v3592 = vpop.f32.mrb[0].mxu0
  %v3593 = vadd.f32 0.0, %v3592
  %v3594 = vpop.f32.mrb[0].mxu0
  %v3595 = vadd.f32 0.0, %v3594
  %3596 = vdwg.mxu0
  %3597 = vst [vmem:[#allocation2 + $0x8] sm:$0xff] %v3329
  %3598 = vst [vmem:[#allocation2 + $0x10] sm:$0xff] %v3331
  %3599 = vst [vmem:[#allocation2 + $0x38] sm:$0xff] %v3333
  %3600 = vst [vmem:[#allocation2 + $0x40] sm:$0xff] %v3335
  %3601 = vst [vmem:[#allocation2 + $0x68] sm:$0xff] %v3339
  %3602 = vst [vmem:[#allocation2 + $0x70] sm:$0xff] %v3341
  %3603 = vst [vmem:[#allocation2 + $0x98] sm:$0xff] %v3343
  %3604 = vst [vmem:[#allocation2 + $0xa0] sm:$0xff] %v3345
  %3605 = vst [vmem:[#allocation2 + $0xc8] sm:$0xff] %v3349
  %3606 = vst [vmem:[#allocation2 + $0xd0] sm:$0xff] %v3351
  %3607 = vst [vmem:[#allocation2 + $0xf8] sm:$0xff] %v3353
  %3608 = vst [vmem:[#allocation2 + $0x100] sm:$0xff] %v3355
  %3609 = vst [vmem:[#allocation2 + $0x128] sm:$0xff] %v3359
  %3610 = vst [vmem:[#allocation2 + $0x130] sm:$0xff] %v3361
  %3611 = vst [vmem:[#allocation2 + $0x158] sm:$0xff] %v3363
  %3612 = vst [vmem:[#allocation2 + $0x160] sm:$0xff] %v3365
  %3613 = vst [vmem:[#allocation2 + $0x188] sm:$0xff] %v3369
  %3614 = vst [vmem:[#allocation2 + $0x190] sm:$0xff] %v3371
  %3615 = vst [vmem:[#allocation2 + $0x1b8] sm:$0xff] %v3373
  %3616 = vst [vmem:[#allocation2 + $0x1c0] sm:$0xff] %v3375
  %3617 = vst [vmem:[#allocation2 + $0x1e8] sm:$0xff] %v3379
  %3618 = vst [vmem:[#allocation2 + $0x1f0] sm:$0xff] %v3381
  %3619 = vst [vmem:[#allocation2 + $0x218] sm:$0xff] %v3383
  %3620 = vst [vmem:[#allocation2 + $0x220] sm:$0xff] %v3385
  %3621 = vst [vmem:[#allocation2 + $0x248] sm:$0xff] %v3389
  %3622 = vst [vmem:[#allocation2 + $0x250] sm:$0xff] %v3391
  %3623 = vst [vmem:[#allocation2 + $0x278] sm:$0xff] %v3393
  %3624 = vst [vmem:[#allocation2 + $0x280] sm:$0xff] %v3395
  %3625 = vst [vmem:[#allocation2 + $0x2a8] sm:$0xff] %v3399
  %3626 = vst [vmem:[#allocation2 + $0x2b0] sm:$0xff] %v3401
  %3627 = vst [vmem:[#allocation2 + $0x2d8] sm:$0xff] %v3403
  %3628 = vst [vmem:[#allocation2 + $0x2e0] sm:$0xff] %v3405
  %3629 = vst [vmem:[#allocation2 + $0x308] sm:$0xff] %v3409
  %3630 = vst [vmem:[#allocation2 + $0x310] sm:$0xff] %v3411
  %3631 = vst [vmem:[#allocation2 + $0x338] sm:$0xff] %v3413
  %3632 = vst [vmem:[#allocation2 + $0x340] sm:$0xff] %v3415
  %3633 = vst [vmem:[#allocation2 + $0x368] sm:$0xff] %v3419
  %3634 = vst [vmem:[#allocation2 + $0x370] sm:$0xff] %v3421
  %3635 = vst [vmem:[#allocation2 + $0x398] sm:$0xff] %v3423
  %3636 = vst [vmem:[#allocation2 + $0x3a0] sm:$0xff] %v3425
  %3637 = vst [vmem:[#allocation2 + $0x3c8] sm:$0xff] %v3429
  %3638 = vst [vmem:[#allocation2 + $0x3d0] sm:$0xff] %v3431
  %3639 = vst [vmem:[#allocation2 + $0x3f8] sm:$0xff] %v3433
  %3640 = vst [vmem:[#allocation2 + $0x400] sm:$0xff] %v3435
  %3641 = vst [vmem:[#allocation2 + $0x428] sm:$0xff] %v3439
  %3642 = vst [vmem:[#allocation2 + $0x430] sm:$0xff] %v3441
  %3643 = vst [vmem:[#allocation2 + $0x458] sm:$0xff] %v3443
  %3644 = vst [vmem:[#allocation2 + $0x460] sm:$0xff] %v3445
  %3645 = vst [vmem:[#allocation2 + $0x488] sm:$0xff] %v3449
  %3646 = vst [vmem:[#allocation2 + $0x490] sm:$0xff] %v3451
  %3647 = vst [vmem:[#allocation2 + $0x4b8] sm:$0xff] %v3453
  %3648 = vst [vmem:[#allocation2 + $0x4c0] sm:$0xff] %v3455
  %3649 = vst [vmem:[#allocation2 + $0x4e8] sm:$0xff] %v3459
  %3650 = vst [vmem:[#allocation2 + $0x4f0] sm:$0xff] %v3461
  %3651 = vst [vmem:[#allocation2 + $0x518] sm:$0xff] %v3463
  %3652 = vst [vmem:[#allocation2 + $0x520] sm:$0xff] %v3465
  %3653 = vst [vmem:[#allocation2 + $0x548] sm:$0xff] %v3469
  %3654 = vst [vmem:[#allocation2 + $0x550] sm:$0xff] %v3471
  %3655 = vst [vmem:[#allocation2 + $0x578] sm:$0xff] %v3473
  %3656 = vst [vmem:[#allocation2 + $0x580] sm:$0xff] %v3475
  %3657 = vst [vmem:[#allocation2 + $0x5a8] sm:$0xff] %v3479
  %3658 = vst [vmem:[#allocation2 + $0x5b0] sm:$0xff] %v3481
  %3659 = vst [vmem:[#allocation2 + $0x5d8] sm:$0xff] %v3483
  %3660 = vst [vmem:[#allocation2 + $0x5e0] sm:$0xff] %v3485
  %3661 = vst [vmem:[#allocation2 + $0x608] sm:$0xff] %v3489
  %3662 = vst [vmem:[#allocation2 + $0x610] sm:$0xff] %v3491
  %3663 = vst [vmem:[#allocation2 + $0x638] sm:$0xff] %v3493
  %3664 = vst [vmem:[#allocation2 + $0x640] sm:$0xff] %v3495
  %3665 = vst [vmem:[#allocation2 + $0x668] sm:$0xff] %v3499
  %3666 = vst [vmem:[#allocation2 + $0x670] sm:$0xff] %v3501
  %3667 = vst [vmem:[#allocation2 + $0x698] sm:$0xff] %v3503
  %3668 = vst [vmem:[#allocation2 + $0x6a0] sm:$0xff] %v3505
  %3669 = vst [vmem:[#allocation2 + $0x6c8] sm:$0xff] %v3509
  %3670 = vst [vmem:[#allocation2 + $0x6d0] sm:$0xff] %v3511
  %3671 = vst [vmem:[#allocation2 + $0x6f8] sm:$0xff] %v3513
  %3672 = vst [vmem:[#allocation2 + $0x700] sm:$0xff] %v3515
  %3673 = vst [vmem:[#allocation2 + $0x728] sm:$0xff] %v3519
  %3674 = vst [vmem:[#allocation2 + $0x730] sm:$0xff] %v3521
  %3675 = vst [vmem:[#allocation2 + $0x758] sm:$0xff] %v3523
  %3676 = vst [vmem:[#allocation2 + $0x760] sm:$0xff] %v3525
  %3677 = vst [vmem:[#allocation2 + $0x788] sm:$0xff] %v3529
  %3678 = vst [vmem:[#allocation2 + $0x790] sm:$0xff] %v3531
  %3679 = vst [vmem:[#allocation2 + $0x7b8] sm:$0xff] %v3533
  %3680 = vst [vmem:[#allocation2 + $0x7c0] sm:$0xff] %v3535
  %3681 = vst [vmem:[#allocation2 + $0x7e8] sm:$0xff] %v3539
  %3682 = vst [vmem:[#allocation2 + $0x7f0] sm:$0xff] %v3541
  %3683 = vst [vmem:[#allocation2 + $0x818] sm:$0xff] %v3543
  %3684 = vst [vmem:[#allocation2 + $0x820] sm:$0xff] %v3545
  %3685 = vst [vmem:[#allocation2 + $0x848] sm:$0xff] %v3549
  %3686 = vst [vmem:[#allocation2 + $0x850] sm:$0xff] %v3551
  %3687 = vst [vmem:[#allocation2 + $0x878] sm:$0xff] %v3553
  %3688 = vst [vmem:[#allocation2 + $0x880] sm:$0xff] %v3555
  %3689 = vst [vmem:[#allocation2 + $0x8a8] sm:$0xff] %v3559
  %3690 = vst [vmem:[#allocation2 + $0x8b0] sm:$0xff] %v3561
  %3691 = vst [vmem:[#allocation2 + $0x8d8] sm:$0xff] %v3563
  %3692 = vst [vmem:[#allocation2 + $0x8e0] sm:$0xff] %v3565
  %3693 = vst [vmem:[#allocation2 + $0x908] sm:$0xff] %v3569
  %3694 = vst [vmem:[#allocation2 + $0x910] sm:$0xff] %v3571
  %3695 = vst [vmem:[#allocation2 + $0x938] sm:$0xff] %v3573
  %3696 = vst [vmem:[#allocation2 + $0x940] sm:$0xff] %v3575
  %3697 = vst [vmem:[#allocation2 + $0x968] sm:$0xff] %v3579
  %3698 = vst [vmem:[#allocation2 + $0x970] sm:$0xff] %v3581
  %3699 = vst [vmem:[#allocation2 + $0x998] sm:$0xff] %v3583
  %3700 = vst [vmem:[#allocation2 + $0x9a0] sm:$0xff] %v3585
  %3701 = vst [vmem:[#allocation2 + $0x9c8] sm:$0xff] %v3589
  %3702 = vst [vmem:[#allocation2 + $0x9d0] sm:$0xff] %v3591
  %3703 = vst [vmem:[#allocation2 + $0x9f8] sm:$0xff] %v3593
  %3704 = vst [vmem:[#allocation2 + $0xa00] sm:$0xff] %v3595
  %v3705 = vmul.f32 %v1489, %v2564
  %v3706 = vmul.f32 %v1491, %v2564
  %v3707 = vmul.f32 %v1493, %v2569
  %v3708 = vmul.f32 %v1495, %v2569
  %v3709 = vmul.f32 %v1499, %v2574
  %v3710 = vmul.f32 %v1501, %v2574
  %v3711 = vmul.f32 %v1503, %v2579
  %v3712 = vmul.f32 %v1505, %v2579
  %v3713 = vmul.f32 %v1509, %v2584
  %v3714 = vmul.f32 %v1511, %v2584
  %v3715 = vmul.f32 %v1513, %v2589
  %v3716 = vmul.f32 %v1515, %v2589
  %v3717 = vmul.f32 %v1519, %v2594
  %v3718 = vmul.f32 %v1521, %v2594
  %v3719 = vmul.f32 %v1523, %v2599
  %v3720 = vmul.f32 %v1525, %v2599
  %v3721 = vmul.f32 %v1529, %v2604
  %v3722 = vmul.f32 %v1531, %v2604
  %v3723 = vmul.f32 %v1533, %v2609
  %v3724 = vmul.f32 %v1535, %v2609
  %v3725 = vmul.f32 %v1539, %v2614
  %v3726 = vmul.f32 %v1541, %v2614
  %v3727 = vmul.f32 %v1543, %v2619
  %v3728 = vmul.f32 %v1545, %v2619
  %v3729 = vmul.f32 %v1549, %v2624
  %v3730 = vmul.f32 %v1551, %v2624
  %v3731 = vmul.f32 %v1553, %v2629
  %v3732 = vmul.f32 %v1555, %v2629
  %v3733 = vmul.f32 %v1559, %v2634
  %v3734 = vmul.f32 %v1561, %v2634
  %v3735 = vmul.f32 %v1563, %v2639
  %v3736 = vmul.f32 %v1565, %v2639
  %v3737 = vmul.f32 %v1569, %v2644
  %v3738 = vmul.f32 %v1571, %v2644
  %v3739 = vmul.f32 %v1573, %v2649
  %v3740 = vmul.f32 %v1575, %v2649
  %v3741 = vmul.f32 %v1579, %v2654
  %v3742 = vmul.f32 %v1581, %v2654
  %v3743 = vmul.f32 %v1583, %v2659
  %v3744 = vmul.f32 %v1585, %v2659
  %v3745 = vmul.f32 %v1589, %v2664
  %v3746 = vmul.f32 %v1591, %v2664
  %v3747 = vmul.f32 %v1593, %v2669
  %v3748 = vmul.f32 %v1595, %v2669
  %v3749 = vmul.f32 %v1599, %v2674
  %v3750 = vmul.f32 %v1601, %v2674
  %v3751 = vmul.f32 %v1603, %v2679
  %v3752 = vmul.f32 %v1605, %v2679
  %v3753 = vadd.f32 %v3705, %v2732
  %v3754 = vadd.f32 %v3706, %v2732
  %v3755 = vadd.f32 %v3707, %v2737
  %v3756 = vadd.f32 %v3708, %v2737
  %v3757 = vadd.f32 %v3709, %v2742
  %v3758 = vadd.f32 %v3710, %v2742
  %v3759 = vadd.f32 %v3711, %v2747
  %v3760 = vadd.f32 %v3712, %v2747
  %v3761 = vadd.f32 %v3713, %v2752
  %v3762 = vadd.f32 %v3714, %v2752
  %v3763 = vadd.f32 %v3715, %v2757
  %v3764 = vadd.f32 %v3716, %v2757
  %v3765 = vadd.f32 %v3717, %v2762
  %v3766 = vadd.f32 %v3718, %v2762
  %v3767 = vadd.f32 %v3719, %v2767
  %v3768 = vadd.f32 %v3720, %v2767
  %v3769 = vadd.f32 %v3721, %v2772
  %v3770 = vadd.f32 %v3722, %v2772
  %v3771 = vadd.f32 %v3723, %v2777
  %v3772 = vadd.f32 %v3724, %v2777
  %v3773 = vadd.f32 %v3725, %v2782
  %v3774 = vadd.f32 %v3726, %v2782
  %v3775 = vadd.f32 %v3727, %v2787
  %v3776 = vadd.f32 %v3728, %v2787
  %v3777 = vadd.f32 %v3729, %v2792
  %v3778 = vadd.f32 %v3730, %v2792
  %v3779 = vadd.f32 %v3731, %v2797
  %v3780 = vadd.f32 %v3732, %v2797
  %v3781 = vadd.f32 %v3733, %v2802
  %v3782 = vadd.f32 %v3734, %v2802
  %v3783 = vadd.f32 %v3735, %v2807
  %v3784 = vadd.f32 %v3736, %v2807
  %v3785 = vadd.f32 %v3737, %v2812
  %v3786 = vadd.f32 %v3738, %v2812
  %v3787 = vadd.f32 %v3739, %v2817
  %v3788 = vadd.f32 %v3740, %v2817
  %v3789 = vadd.f32 %v3741, %v2822
  %v3790 = vadd.f32 %v3742, %v2822
  %v3791 = vadd.f32 %v3743, %v2827
  %v3792 = vadd.f32 %v3744, %v2827
  %v3793 = vadd.f32 %v3745, %v2832
  %v3794 = vadd.f32 %v3746, %v2832
  %v3795 = vadd.f32 %v3747, %v2837
  %v3796 = vadd.f32 %v3748, %v2837
  %v3797 = vadd.f32 %v3749, %v2842
  %v3798 = vadd.f32 %v3750, %v2842
  %v3799 = vadd.f32 %v3751, %v2847
  %v3800 = vadd.f32 %v3752, %v2847
  %v3801 = vmax.f32 %v3753, 0.0
  %v3802 = vmax.f32 %v3754, 0.0
  %v3803 = vmax.f32 %v3755, 0.0
  %v3804 = vmax.f32 %v3756, 0.0
  %v3805 = vmax.f32 %v3757, 0.0
  %v3806 = vmax.f32 %v3758, 0.0
  %v3807 = vmax.f32 %v3759, 0.0
  %v3808 = vmax.f32 %v3760, 0.0
  %v3809 = vmax.f32 %v3761, 0.0
  %v3810 = vmax.f32 %v3762, 0.0
  %v3811 = vmax.f32 %v3763, 0.0
  %v3812 = vmax.f32 %v3764, 0.0
  %v3813 = vmax.f32 %v3765, 0.0
  %v3814 = vmax.f32 %v3766, 0.0
  %v3815 = vmax.f32 %v3767, 0.0
  %v3816 = vmax.f32 %v3768, 0.0
  %v3817 = vmax.f32 %v3769, 0.0
  %v3818 = vmax.f32 %v3770, 0.0
  %v3819 = vmax.f32 %v3771, 0.0
  %v3820 = vmax.f32 %v3772, 0.0
  %v3821 = vmax.f32 %v3773, 0.0
  %v3822 = vmax.f32 %v3774, 0.0
  %v3823 = vmax.f32 %v3775, 0.0
  %v3824 = vmax.f32 %v3776, 0.0
  %v3825 = vmax.f32 %v3777, 0.0
  %v3826 = vmax.f32 %v3778, 0.0
  %v3827 = vmax.f32 %v3779, 0.0
  %v3828 = vmax.f32 %v3780, 0.0
  %v3829 = vmax.f32 %v3781, 0.0
  %v3830 = vmax.f32 %v3782, 0.0
  %v3831 = vmax.f32 %v3783, 0.0
  %v3832 = vmax.f32 %v3784, 0.0
  %v3833 = vmax.f32 %v3785, 0.0
  %v3834 = vmax.f32 %v3786, 0.0
  %v3835 = vmax.f32 %v3787, 0.0
  %v3836 = vmax.f32 %v3788, 0.0
  %v3837 = vmax.f32 %v3789, 0.0
  %v3838 = vmax.f32 %v3790, 0.0
  %v3839 = vmax.f32 %v3791, 0.0
  %v3840 = vmax.f32 %v3792, 0.0
  %v3841 = vmax.f32 %v3793, 0.0
  %v3842 = vmax.f32 %v3794, 0.0
  %v3843 = vmax.f32 %v3795, 0.0
  %v3844 = vmax.f32 %v3796, 0.0
  %v3845 = vmax.f32 %v3797, 0.0
  %v3846 = vmax.f32 %v3798, 0.0
  %v3847 = vmax.f32 %v3799, 0.0
  %v3848 = vmax.f32 %v3800, 0.0
  %v3849 = vpack.c.bf16 %v3803, %v3801
  %v3850 = vpack.c.bf16 %v3804, %v3802
  %v3851 = vpack.c.bf16 %v3807, %v3805
  %v3852 = vpack.c.bf16 %v3808, %v3806
  %v3853 = vpack.c.bf16 %v3811, %v3809
  %v3854 = vpack.c.bf16 %v3812, %v3810
  %v3855 = vpack.c.bf16 %v3815, %v3813
  %v3856 = vpack.c.bf16 %v3816, %v3814
  %v3857 = vpack.c.bf16 %v3819, %v3817
  %v3858 = vpack.c.bf16 %v3820, %v3818
  %v3859 = vpack.c.bf16 %v3823, %v3821
  %v3860 = vpack.c.bf16 %v3824, %v3822
  %v3861 = vpack.c.bf16 %v3827, %v3825
  %v3862 = vpack.c.bf16 %v3828, %v3826
  %v3863 = vpack.c.bf16 %v3831, %v3829
  %v3864 = vpack.c.bf16 %v3832, %v3830
  %v3865 = vpack.c.bf16 %v3835, %v3833
  %v3866 = vpack.c.bf16 %v3836, %v3834
  %v3867 = vpack.c.bf16 %v3839, %v3837
  %v3868 = vpack.c.bf16 %v3840, %v3838
  %v3869 = vpack.c.bf16 %v3843, %v3841
  %v3870 = vpack.c.bf16 %v3844, %v3842
  %v3871 = vpack.c.bf16 %v3847, %v3845
  %v3872 = vpack.c.bf16 %v3848, %v3846
  %3873 = vmatprep.subr.bf16.mxu0 %v3850
  %3874 = vmatpush1.bf16.msra.mxu0 %v3849
  %3875 = vmatprep.subr.bf16.mxu0 %v3852
  %3876 = vmatpush1.bf16.msra.mxu0 %v3851
  %3877 = vmatprep.subr.bf16.mxu0 %v3854
  %3878 = vmatpush1.bf16.msra.mxu0 %v3853
  %3879 = vmatprep.subr.bf16.mxu0 %v3856
  %3880 = vmatpush1.bf16.msra.mxu0 %v3855
  %3881 = vmatprep.subr.bf16.mxu0 %v3858
  %3882 = vmatpush1.bf16.msra.mxu0 %v3857
  %3883 = vmatprep.subr.bf16.mxu0 %v3860
  %3884 = vmatpush1.bf16.msra.mxu0 %v3859
  %3885 = vmatprep.subr.bf16.mxu0 %v3862
  %3886 = vmatpush1.bf16.msra.mxu0 %v3861
  %3887 = vmatprep.subr.bf16.mxu0 %v3864
  %3888 = vmatpush1.bf16.msra.mxu0 %v3863
  %3889 = vmatprep.subr.bf16.mxu0 %v3866
  %3890 = vmatpush1.bf16.msra.mxu0 %v3865
  %3891 = vmatprep.subr.bf16.mxu0 %v3868
  %3892 = vmatpush1.bf16.msra.mxu0 %v3867
  %3893 = vmatprep.subr.bf16.mxu0 %v3870
  %3894 = vmatpush1.bf16.msra.mxu0 %v3869
  %3895 = vmatprep.subr.bf16.mxu0 %v3872
  %3896 = vmatpush1.bf16.msra.mxu0 %v3871
  %3897 = vmatprep.subr.bf16.mxu0 0
  %3898 = vmatpush1.bf16.msra.mxu0 0
  %3899 = vmatprep.subr.bf16.mxu0 0
  %3900 = vmatpush1.bf16.msra.mxu0 0
  %3901 = vmatprep.subr.bf16.mxu0 0
  %3902 = vmatpush1.bf16.msra.mxu0 0
  %3903 = vmatprep.subr.bf16.mxu0 0
  %3904 = vmatpush1.bf16.msra.mxu0 0
  %3905 = vmatprep.mubr.bf16.mxu0 %v3214
  %3906 = vmatmul.mubr.bf16.gmra.mrb[0].mxu0 %v3131
  %v3907 = vpop.f32.mrb[0].mxu0
  %v3908 = vadd.f32 0.0, %v3907
  %v3909 = vpop.f32.mrb[0].mxu0
  %v3910 = vadd.f32 0.0, %v3909
  %v3911 = vpop.f32.mrb[0].mxu0
  %v3912 = vadd.f32 0.0, %v3911
  %v3913 = vpop.f32.mrb[0].mxu0
  %v3914 = vadd.f32 0.0, %v3913
  %3915 = vmatprep.mubr.bf16.mxu0 %v3217
  %3916 = vmatmul.mubr.bf16.gmra.mrb[0].mxu0 %v3133
  %v3917 = vpop.f32.mrb[0].mxu0
  %v3918 = vadd.f32 0.0, %v3917
  %v3919 = vpop.f32.mrb[0].mxu0
  %v3920 = vadd.f32 0.0, %v3919
  %v3921 = vpop.f32.mrb[0].mxu0
  %v3922 = vadd.f32 0.0, %v3921
  %v3923 = vpop.f32.mrb[0].mxu0
  %v3924 = vadd.f32 0.0, %v3923
  %3925 = vmatprep.mubr.bf16.mxu0 %v3220
  %3926 = vmatmul.mubr.bf16.gmra.mrb[0].mxu0 %v3135
  %v3927 = vpop.f32.mrb[0].mxu0
  %v3928 = vadd.f32 0.0, %v3927
  %v3929 = vpop.f32.mrb[0].mxu0
  %v3930 = vadd.f32 0.0, %v3929
  %v3931 = vpop.f32.mrb[0].mxu0
  %v3932 = vadd.f32 0.0, %v3931
  %v3933 = vpop.f32.mrb[0].mxu0
  %v3934 = vadd.f32 0.0, %v3933
  %3935 = vmatprep.mubr.bf16.mxu0 %v3223
  %3936 = vmatmul.mubr.bf16.gmra.mrb[0].mxu0 %v3137
  %v3937 = vpop.f32.mrb[0].mxu0
  %v3938 = vadd.f32 0.0, %v3937
  %v3939 = vpop.f32.mrb[0].mxu0
  %v3940 = vadd.f32 0.0, %v3939
  %v3941 = vpop.f32.mrb[0].mxu0
  %v3942 = vadd.f32 0.0, %v3941
  %v3943 = vpop.f32.mrb[0].mxu0
  %v3944 = vadd.f32 0.0, %v3943
  %3945 = vmatprep.mubr.bf16.mxu0 %v3226
  %3946 = vmatmul.mubr.bf16.gmra.mrb[0].mxu0 %v3139
  %v3947 = vpop.f32.mrb[0].mxu0
  %v3948 = vadd.f32 0.0, %v3947
  %v3949 = vpop.f32.mrb[0].mxu0
  %v3950 = vadd.f32 0.0, %v3949
  %v3951 = vpop.f32.mrb[0].mxu0
  %v3952 = vadd.f32 0.0, %v3951
  %v3953 = vpop.f32.mrb[0].mxu0
  %v3954 = vadd.f32 0.0, %v3953
  %3955 = vmatprep.mubr.bf16.mxu0 %v3229
  %3956 = vmatmul.mubr.bf16.gmra.mrb[0].mxu0 %v3141
  %v3957 = vpop.f32.mrb[0].mxu0
  %v3958 = vadd.f32 0.0, %v3957
  %v3959 = vpop.f32.mrb[0].mxu0
  %v3960 = vadd.f32 0.0, %v3959
  %v3961 = vpop.f32.mrb[0].mxu0
  %v3962 = vadd.f32 0.0, %v3961
  %v3963 = vpop.f32.mrb[0].mxu0
  %v3964 = vadd.f32 0.0, %v3963
  %3965 = vmatprep.mubr.bf16.mxu0 %v3232
  %3966 = vmatmul.mubr.bf16.gmra.mrb[0].mxu0 %v3143
  %v3967 = vpop.f32.mrb[0].mxu0
  %v3968 = vadd.f32 0.0, %v3967
  %v3969 = vpop.f32.mrb[0].mxu0
  %v3970 = vadd.f32 0.0, %v3969
  %v3971 = vpop.f32.mrb[0].mxu0
  %v3972 = vadd.f32 0.0, %v3971
  %v3973 = vpop.f32.mrb[0].mxu0
  %v3974 = vadd.f32 0.0, %v3973
  %3975 = vmatprep.mubr.bf16.mxu0 %v3235
  %3976 = vmatmul.mubr.bf16.gmra.mrb[0].mxu0 %v3145
  %v3977 = vpop.f32.mrb[0].mxu0
  %v3978 = vadd.f32 0.0, %v3977
  %v3979 = vpop.f32.mrb[0].mxu0
  %v3980 = vadd.f32 0.0, %v3979
  %v3981 = vpop.f32.mrb[0].mxu0
  %v3982 = vadd.f32 0.0, %v3981
  %v3983 = vpop.f32.mrb[0].mxu0
  %v3984 = vadd.f32 0.0, %v3983
  %3985 = vmatprep.mubr.bf16.mxu0 %v3238
  %3986 = vmatmul.mubr.bf16.gmra.mrb[0].mxu0 %v3147
  %v3987 = vpop.f32.mrb[0].mxu0
  %v3988 = vadd.f32 0.0, %v3987
  %v3989 = vpop.f32.mrb[0].mxu0
  %v3990 = vadd.f32 0.0, %v3989
  %v3991 = vpop.f32.mrb[0].mxu0
  %v3992 = vadd.f32 0.0, %v3991
  %v3993 = vpop.f32.mrb[0].mxu0
  %v3994 = vadd.f32 0.0, %v3993
  %3995 = vmatprep.mubr.bf16.mxu0 %v3241
  %3996 = vmatmul.mubr.bf16.gmra.mrb[0].mxu0 %v3149
  %v3997 = vpop.f32.mrb[0].mxu0
  %v3998 = vadd.f32 0.0, %v3997
  %v3999 = vpop.f32.mrb[0].mxu0
  %v4000 = vadd.f32 0.0, %v3999
  %v4001 = vpop.f32.mrb[0].mxu0
  %v4002 = vadd.f32 0.0, %v4001
  %v4003 = vpop.f32.mrb[0].mxu0
  %v4004 = vadd.f32 0.0, %v4003
  %4005 = vmatprep.mubr.bf16.mxu0 %v3244
  %4006 = vmatmul.mubr.bf16.gmra.mrb[0].mxu0 %v3151
  %v4007 = vpop.f32.mrb[0].mxu0
  %v4008 = vadd.f32 0.0, %v4007
  %v4009 = vpop.f32.mrb[0].mxu0
  %v4010 = vadd.f32 0.0, %v4009
  %v4011 = vpop.f32.mrb[0].mxu0
  %v4012 = vadd.f32 0.0, %v4011
  %v4013 = vpop.f32.mrb[0].mxu0
  %v4014 = vadd.f32 0.0, %v4013
  %4015 = vmatprep.mubr.bf16.mxu0 %v3247
  %4016 = vmatmul.mubr.bf16.gmra.mrb[0].mxu0 %v3153
  %v4017 = vpop.f32.mrb[0].mxu0
  %v4018 = vadd.f32 0.0, %v4017
  %v4019 = vpop.f32.mrb[0].mxu0
  %v4020 = vadd.f32 0.0, %v4019
  %v4021 = vpop.f32.mrb[0].mxu0
  %v4022 = vadd.f32 0.0, %v4021
  %v4023 = vpop.f32.mrb[0].mxu0
  %v4024 = vadd.f32 0.0, %v4023
  %4025 = vmatprep.mubr.bf16.mxu0 %v3250
  %4026 = vmatmul.mubr.bf16.gmra.mrb[0].mxu0 %v3155
  %v4027 = vpop.f32.mrb[0].mxu0
  %v4028 = vadd.f32 0.0, %v4027
  %v4029 = vpop.f32.mrb[0].mxu0
  %v4030 = vadd.f32 0.0, %v4029
  %v4031 = vpop.f32.mrb[0].mxu0
  %v4032 = vadd.f32 0.0, %v4031
  %v4033 = vpop.f32.mrb[0].mxu0
  %v4034 = vadd.f32 0.0, %v4033
  %4035 = vmatprep.mubr.bf16.mxu0 %v3253
  %4036 = vmatmul.mubr.bf16.gmra.mrb[0].mxu0 %v3157
  %v4037 = vpop.f32.mrb[0].mxu0
  %v4038 = vadd.f32 0.0, %v4037
  %v4039 = vpop.f32.mrb[0].mxu0
  %v4040 = vadd.f32 0.0, %v4039
  %v4041 = vpop.f32.mrb[0].mxu0
  %v4042 = vadd.f32 0.0, %v4041
  %v4043 = vpop.f32.mrb[0].mxu0
  %v4044 = vadd.f32 0.0, %v4043
  %4045 = vmatprep.mubr.bf16.mxu0 %v3256
  %4046 = vmatmul.mubr.bf16.gmra.mrb[0].mxu0 %v3159
  %v4047 = vpop.f32.mrb[0].mxu0
  %v4048 = vadd.f32 0.0, %v4047
  %v4049 = vpop.f32.mrb[0].mxu0
  %v4050 = vadd.f32 0.0, %v4049
  %v4051 = vpop.f32.mrb[0].mxu0
  %v4052 = vadd.f32 0.0, %v4051
  %v4053 = vpop.f32.mrb[0].mxu0
  %v4054 = vadd.f32 0.0, %v4053
  %4055 = vmatprep.mubr.bf16.mxu0 %v3259
  %4056 = vmatmul.mubr.bf16.gmra.mrb[0].mxu0 %v3161
  %v4057 = vpop.f32.mrb[0].mxu0
  %v4058 = vadd.f32 0.0, %v4057
  %v4059 = vpop.f32.mrb[0].mxu0
  %v4060 = vadd.f32 0.0, %v4059
  %v4061 = vpop.f32.mrb[0].mxu0
  %v4062 = vadd.f32 0.0, %v4061
  %v4063 = vpop.f32.mrb[0].mxu0
  %v4064 = vadd.f32 0.0, %v4063
  %4065 = vmatprep.mubr.bf16.mxu0 %v3262
  %4066 = vmatmul.mubr.bf16.gmra.mrb[0].mxu0 %v3163
  %v4067 = vpop.f32.mrb[0].mxu0
  %v4068 = vadd.f32 0.0, %v4067
  %v4069 = vpop.f32.mrb[0].mxu0
  %v4070 = vadd.f32 0.0, %v4069
  %v4071 = vpop.f32.mrb[0].mxu0
  %v4072 = vadd.f32 0.0, %v4071
  %v4073 = vpop.f32.mrb[0].mxu0
  %v4074 = vadd.f32 0.0, %v4073
  %4075 = vmatprep.mubr.bf16.mxu0 %v3265
  %4076 = vmatmul.mubr.bf16.gmra.mrb[0].mxu0 %v3165
  %v4077 = vpop.f32.mrb[0].mxu0
  %v4078 = vadd.f32 0.0, %v4077
  %v4079 = vpop.f32.mrb[0].mxu0
  %v4080 = vadd.f32 0.0, %v4079
  %v4081 = vpop.f32.mrb[0].mxu0
  %v4082 = vadd.f32 0.0, %v4081
  %v4083 = vpop.f32.mrb[0].mxu0
  %v4084 = vadd.f32 0.0, %v4083
  %4085 = vmatprep.mubr.bf16.mxu0 %v3268
  %4086 = vmatmul.mubr.bf16.gmra.mrb[0].mxu0 %v3167
  %v4087 = vpop.f32.mrb[0].mxu0
  %v4088 = vadd.f32 0.0, %v4087
  %v4089 = vpop.f32.mrb[0].mxu0
  %v4090 = vadd.f32 0.0, %v4089
  %v4091 = vpop.f32.mrb[0].mxu0
  %v4092 = vadd.f32 0.0, %v4091
  %v4093 = vpop.f32.mrb[0].mxu0
  %v4094 = vadd.f32 0.0, %v4093
  %4095 = vmatprep.mubr.bf16.mxu0 %v3271
  %4096 = vmatmul.mubr.bf16.gmra.mrb[0].mxu0 %v3169
  %v4097 = vpop.f32.mrb[0].mxu0
  %v4098 = vadd.f32 0.0, %v4097
  %v4099 = vpop.f32.mrb[0].mxu0
  %v4100 = vadd.f32 0.0, %v4099
  %v4101 = vpop.f32.mrb[0].mxu0
  %v4102 = vadd.f32 0.0, %v4101
  %v4103 = vpop.f32.mrb[0].mxu0
  %v4104 = vadd.f32 0.0, %v4103
  %4105 = vmatprep.mubr.bf16.mxu0 %v3274
  %4106 = vmatmul.mubr.bf16.gmra.mrb[0].mxu0 %v3171
  %v4107 = vpop.f32.mrb[0].mxu0
  %v4108 = vadd.f32 0.0, %v4107
  %v4109 = vpop.f32.mrb[0].mxu0
  %v4110 = vadd.f32 0.0, %v4109
  %v4111 = vpop.f32.mrb[0].mxu0
  %v4112 = vadd.f32 0.0, %v4111
  %v4113 = vpop.f32.mrb[0].mxu0
  %v4114 = vadd.f32 0.0, %v4113
  %4115 = vmatprep.mubr.bf16.mxu0 %v3277
  %4116 = vmatmul.mubr.bf16.gmra.mrb[0].mxu0 %v3173
  %v4117 = vpop.f32.mrb[0].mxu0
  %v4118 = vadd.f32 0.0, %v4117
  %v4119 = vpop.f32.mrb[0].mxu0
  %v4120 = vadd.f32 0.0, %v4119
  %v4121 = vpop.f32.mrb[0].mxu0
  %v4122 = vadd.f32 0.0, %v4121
  %v4123 = vpop.f32.mrb[0].mxu0
  %v4124 = vadd.f32 0.0, %v4123
  %4125 = vmatprep.mubr.bf16.mxu0 %v3280
  %4126 = vmatmul.mubr.bf16.gmra.mrb[0].mxu0 %v3175
  %v4127 = vpop.f32.mrb[0].mxu0
  %v4128 = vadd.f32 0.0, %v4127
  %v4129 = vpop.f32.mrb[0].mxu0
  %v4130 = vadd.f32 0.0, %v4129
  %v4131 = vpop.f32.mrb[0].mxu0
  %v4132 = vadd.f32 0.0, %v4131
  %v4133 = vpop.f32.mrb[0].mxu0
  %v4134 = vadd.f32 0.0, %v4133
  %4135 = vmatprep.mubr.bf16.mxu0 %v3283
  %4136 = vmatmul.mubr.bf16.gmra.mrb[0].mxu0 %v3177
  %v4137 = vpop.f32.mrb[0].mxu0
  %v4138 = vadd.f32 0.0, %v4137
  %v4139 = vpop.f32.mrb[0].mxu0
  %v4140 = vadd.f32 0.0, %v4139
  %v4141 = vpop.f32.mrb[0].mxu0
  %v4142 = vadd.f32 0.0, %v4141
  %v4143 = vpop.f32.mrb[0].mxu0
  %v4144 = vadd.f32 0.0, %v4143
  %4145 = vmatprep.mubr.bf16.mxu0 %v3286
  %4146 = vmatmul.mubr.bf16.gmra.mrb[0].mxu0 %v3179
  %v4147 = vpop.f32.mrb[0].mxu0
  %v4148 = vadd.f32 0.0, %v4147
  %v4149 = vpop.f32.mrb[0].mxu0
  %v4150 = vadd.f32 0.0, %v4149
  %v4151 = vpop.f32.mrb[0].mxu0
  %v4152 = vadd.f32 0.0, %v4151
  %v4153 = vpop.f32.mrb[0].mxu0
  %v4154 = vadd.f32 0.0, %v4153
  %4155 = vmatprep.mubr.bf16.mxu0 %v3289
  %4156 = vmatmul.mubr.bf16.gmra.mrb[0].mxu0 %v3181
  %v4157 = vpop.f32.mrb[0].mxu0
  %v4158 = vadd.f32 0.0, %v4157
  %v4159 = vpop.f32.mrb[0].mxu0
  %v4160 = vadd.f32 0.0, %v4159
  %v4161 = vpop.f32.mrb[0].mxu0
  %v4162 = vadd.f32 0.0, %v4161
  %v4163 = vpop.f32.mrb[0].mxu0
  %v4164 = vadd.f32 0.0, %v4163
  %4165 = vmatprep.mubr.bf16.mxu0 %v3292
  %4166 = vmatmul.mubr.bf16.gmra.mrb[0].mxu0 %v3183
  %v4167 = vpop.f32.mrb[0].mxu0
  %v4168 = vadd.f32 0.0, %v4167
  %v4169 = vpop.f32.mrb[0].mxu0
  %v4170 = vadd.f32 0.0, %v4169
  %v4171 = vpop.f32.mrb[0].mxu0
  %v4172 = vadd.f32 0.0, %v4171
  %v4173 = vpop.f32.mrb[0].mxu0
  %v4174 = vadd.f32 0.0, %v4173
  %4175 = vdwg.mxu0
  %4176 = vst [vmem:[#allocation2 + $0x18] sm:$0xff] %v3908
  %4177 = vst [vmem:[#allocation2 + $0x20] sm:$0xff] %v3910
  %4178 = vst [vmem:[#allocation2 + $0x48] sm:$0xff] %v3912
  %4179 = vst [vmem:[#allocation2 + $0x50] sm:$0xff] %v3914
  %4180 = vst [vmem:[#allocation2 + $0x78] sm:$0xff] %v3918
  %4181 = vst [vmem:[#allocation2 + $0x80] sm:$0xff] %v3920
  %4182 = vst [vmem:[#allocation2 + $0xa8] sm:$0xff] %v3922
  %4183 = vst [vmem:[#allocation2 + $0xb0] sm:$0xff] %v3924
  %4184 = vst [vmem:[#allocation2 + $0xd8] sm:$0xff] %v3928
  %4185 = vst [vmem:[#allocation2 + $0xe0] sm:$0xff] %v3930
  %4186 = vst [vmem:[#allocation2 + $0x108] sm:$0xff] %v3932
  %4187 = vst [vmem:[#allocation2 + $0x110] sm:$0xff] %v3934
  %4188 = vst [vmem:[#allocation2 + $0x138] sm:$0xff] %v3938
  %4189 = vst [vmem:[#allocation2 + $0x140] sm:$0xff] %v3940
  %4190 = vst [vmem:[#allocation2 + $0x168] sm:$0xff] %v3942
  %4191 = vst [vmem:[#allocation2 + $0x170] sm:$0xff] %v3944
  %4192 = vst [vmem:[#allocation2 + $0x198] sm:$0xff] %v3948
  %4193 = vst [vmem:[#allocation2 + $0x1a0] sm:$0xff] %v3950
  %4194 = vst [vmem:[#allocation2 + $0x1c8] sm:$0xff] %v3952
  %4195 = vst [vmem:[#allocation2 + $0x1d0] sm:$0xff] %v3954
  %4196 = vst [vmem:[#allocation2 + $0x1f8] sm:$0xff] %v3958
  %4197 = vst [vmem:[#allocation2 + $0x200] sm:$0xff] %v3960
  %4198 = vst [vmem:[#allocation2 + $0x228] sm:$0xff] %v3962
  %4199 = vst [vmem:[#allocation2 + $0x230] sm:$0xff] %v3964
  %4200 = vst [vmem:[#allocation2 + $0x258] sm:$0xff] %v3968
  %4201 = vst [vmem:[#allocation2 + $0x260] sm:$0xff] %v3970
  %4202 = vst [vmem:[#allocation2 + $0x288] sm:$0xff] %v3972
  %4203 = vst [vmem:[#allocation2 + $0x290] sm:$0xff] %v3974
  %4204 = vst [vmem:[#allocation2 + $0x2b8] sm:$0xff] %v3978
  %4205 = vst [vmem:[#allocation2 + $0x2c0] sm:$0xff] %v3980
  %4206 = vst [vmem:[#allocation2 + $0x2e8] sm:$0xff] %v3982
  %4207 = vst [vmem:[#allocation2 + $0x2f0] sm:$0xff] %v3984
  %4208 = vst [vmem:[#allocation2 + $0x318] sm:$0xff] %v3988
  %4209 = vst [vmem:[#allocation2 + $0x320] sm:$0xff] %v3990
  %4210 = vst [vmem:[#allocation2 + $0x348] sm:$0xff] %v3992
  %4211 = vst [vmem:[#allocation2 + $0x350] sm:$0xff] %v3994
  %4212 = vst [vmem:[#allocation2 + $0x378] sm:$0xff] %v3998
  %4213 = vst [vmem:[#allocation2 + $0x380] sm:$0xff] %v4000
  %4214 = vst [vmem:[#allocation2 + $0x3a8] sm:$0xff] %v4002
  %4215 = vst [vmem:[#allocation2 + $0x3b0] sm:$0xff] %v4004
  %4216 = vst [vmem:[#allocation2 + $0x3d8] sm:$0xff] %v4008
  %4217 = vst [vmem:[#allocation2 + $0x3e0] sm:$0xff] %v4010
  %4218 = vst [vmem:[#allocation2 + $0x408] sm:$0xff] %v4012
  %4219 = vst [vmem:[#allocation2 + $0x410] sm:$0xff] %v4014
  %4220 = vst [vmem:[#allocation2 + $0x438] sm:$0xff] %v4018
  %4221 = vst [vmem:[#allocation2 + $0x440] sm:$0xff] %v4020
  %4222 = vst [vmem:[#allocation2 + $0x468] sm:$0xff] %v4022
  %4223 = vst [vmem:[#allocation2 + $0x470] sm:$0xff] %v4024
  %4224 = vst [vmem:[#allocation2 + $0x498] sm:$0xff] %v4028
  %4225 = vst [vmem:[#allocation2 + $0x4a0] sm:$0xff] %v4030
  %4226 = vst [vmem:[#allocation2 + $0x4c8] sm:$0xff] %v4032
  %4227 = vst [vmem:[#allocation2 + $0x4d0] sm:$0xff] %v4034
  %4228 = vst [vmem:[#allocation2 + $0x4f8] sm:$0xff] %v4038
  %4229 = vst [vmem:[#allocation2 + $0x500] sm:$0xff] %v4040
  %4230 = vst [vmem:[#allocation2 + $0x528] sm:$0xff] %v4042
  %4231 = vst [vmem:[#allocation2 + $0x530] sm:$0xff] %v4044
  %4232 = vst [vmem:[#allocation2 + $0x558] sm:$0xff] %v4048
  %4233 = vst [vmem:[#allocation2 + $0x560] sm:$0xff] %v4050
  %4234 = vst [vmem:[#allocation2 + $0x588] sm:$0xff] %v4052
  %4235 = vst [vmem:[#allocation2 + $0x590] sm:$0xff] %v4054
  %4236 = vst [vmem:[#allocation2 + $0x5b8] sm:$0xff] %v4058
  %4237 = vst [vmem:[#allocation2 + $0x5c0] sm:$0xff] %v4060
  %4238 = vst [vmem:[#allocation2 + $0x5e8] sm:$0xff] %v4062
  %4239 = vst [vmem:[#allocation2 + $0x5f0] sm:$0xff] %v4064
  %4240 = vst [vmem:[#allocation2 + $0x618] sm:$0xff] %v4068
  %4241 = vst [vmem:[#allocation2 + $0x620] sm:$0xff] %v4070
  %4242 = vst [vmem:[#allocation2 + $0x648] sm:$0xff] %v4072
  %4243 = vst [vmem:[#allocation2 + $0x650] sm:$0xff] %v4074
  %4244 = vst [vmem:[#allocation2 + $0x678] sm:$0xff] %v4078
  %4245 = vst [vmem:[#allocation2 + $0x680] sm:$0xff] %v4080
  %4246 = vst [vmem:[#allocation2 + $0x6a8] sm:$0xff] %v4082
  %4247 = vst [vmem:[#allocation2 + $0x6b0] sm:$0xff] %v4084
  %4248 = vst [vmem:[#allocation2 + $0x6d8] sm:$0xff] %v4088
  %4249 = vst [vmem:[#allocation2 + $0x6e0] sm:$0xff] %v4090
  %4250 = vst [vmem:[#allocation2 + $0x708] sm:$0xff] %v4092
  %4251 = vst [vmem:[#allocation2 + $0x710] sm:$0xff] %v4094
  %4252 = vst [vmem:[#allocation2 + $0x738] sm:$0xff] %v4098
  %4253 = vst [vmem:[#allocation2 + $0x740] sm:$0xff] %v4100
  %4254 = vst [vmem:[#allocation2 + $0x768] sm:$0xff] %v4102
  %4255 = vst [vmem:[#allocation2 + $0x770] sm:$0xff] %v4104
  %4256 = vst [vmem:[#allocation2 + $0x798] sm:$0xff] %v4108
  %4257 = vst [vmem:[#allocation2 + $0x7a0] sm:$0xff] %v4110
  %4258 = vst [vmem:[#allocation2 + $0x7c8] sm:$0xff] %v4112
  %4259 = vst [vmem:[#allocation2 + $0x7d0] sm:$0xff] %v4114
  %4260 = vst [vmem:[#allocation2 + $0x7f8] sm:$0xff] %v4118
  %4261 = vst [vmem:[#allocation2 + $0x800] sm:$0xff] %v4120
  %4262 = vst [vmem:[#allocation2 + $0x828] sm:$0xff] %v4122
  %4263 = vst [vmem:[#allocation2 + $0x830] sm:$0xff] %v4124
  %4264 = vst [vmem:[#allocation2 + $0x858] sm:$0xff] %v4128
  %4265 = vst [vmem:[#allocation2 + $0x860] sm:$0xff] %v4130
  %4266 = vst [vmem:[#allocation2 + $0x888] sm:$0xff] %v4132
  %4267 = vst [vmem:[#allocation2 + $0x890] sm:$0xff] %v4134
  %4268 = vst [vmem:[#allocation2 + $0x8b8] sm:$0xff] %v4138
  %4269 = vst [vmem:[#allocation2 + $0x8c0] sm:$0xff] %v4140
  %4270 = vst [vmem:[#allocation2 + $0x8e8] sm:$0xff] %v4142
  %4271 = vst [vmem:[#allocation2 + $0x8f0] sm:$0xff] %v4144
  %4272 = vst [vmem:[#allocation2 + $0x918] sm:$0xff] %v4148
  %4273 = vst [vmem:[#allocation2 + $0x920] sm:$0xff] %v4150
  %4274 = vst [vmem:[#allocation2 + $0x948] sm:$0xff] %v4152
  %4275 = vst [vmem:[#allocation2 + $0x950] sm:$0xff] %v4154
  %4276 = vst [vmem:[#allocation2 + $0x978] sm:$0xff] %v4158
  %4277 = vst [vmem:[#allocation2 + $0x980] sm:$0xff] %v4160
  %4278 = vst [vmem:[#allocation2 + $0x9a8] sm:$0xff] %v4162
  %4279 = vst [vmem:[#allocation2 + $0x9b0] sm:$0xff] %v4164
  %4280 = vst [vmem:[#allocation2 + $0x9d8] sm:$0xff] %v4168
  %4281 = vst [vmem:[#allocation2 + $0x9e0] sm:$0xff] %v4170
  %4282 = vst [vmem:[#allocation2 + $0xa08] sm:$0xff] %v4172
  %4283 = vst [vmem:[#allocation2 + $0xa10] sm:$0xff] %v4174
  %v4284 = vld [vmem:[%s7] sm:$0xf]
  %v4285 = vld [vmem:[%s8] sm:$0xf]
  %v4286 = vld [vmem:[#allocation2] sm:$0xff]
  %v4287 = vld [vmem:[#allocation2 + $0x8] sm:$0xff]
  %v4288 = vld [vmem:[#allocation2 + $0x10] sm:$0xff]
  %v4289 = vld [vmem:[#allocation2 + $0x18] sm:$0xff]
  %v4290 = vld [vmem:[#allocation2 + $0x20] sm:$0xff]
  %v4291 = vld [vmem:[#allocation2 + $0x30] sm:$0xff]
  %v4292 = vld [vmem:[#allocation2 + $0x38] sm:$0xff]
  %v4293 = vld [vmem:[#allocation2 + $0x40] sm:$0xff]
  %v4294 = vld [vmem:[#allocation2 + $0x48] sm:$0xff]
  %v4295 = vld [vmem:[#allocation2 + $0x50] sm:$0xff]
  %v4296 = vld [vmem:[#allocation2 + $0x60] sm:$0xff]
  %v4297 = vld [vmem:[#allocation2 + $0x68] sm:$0xff]
  %v4298 = vld [vmem:[#allocation2 + $0x70] sm:$0xff]
  %v4299 = vld [vmem:[#allocation2 + $0x78] sm:$0xff]
  %v4300 = vld [vmem:[#allocation2 + $0x80] sm:$0xff]
  %v4301 = vld [vmem:[#allocation2 + $0x90] sm:$0xff]
  %v4302 = vld [vmem:[#allocation2 + $0x98] sm:$0xff]
  %v4303 = vld [vmem:[#allocation2 + $0xa0] sm:$0xff]
  %v4304 = vld [vmem:[#allocation2 + $0xa8] sm:$0xff]
  %v4305 = vld [vmem:[#allocation2 + $0xb0] sm:$0xff]
  %v4306 = vld [vmem:[#allocation2 + $0xc0] sm:$0xff]
  %v4307 = vld [vmem:[#allocation2 + $0xc8] sm:$0xff]
  %v4308 = vld [vmem:[#allocation2 + $0xd0] sm:$0xff]
  %v4309 = vld [vmem:[#allocation2 + $0xd8] sm:$0xff]
  %v4310 = vld [vmem:[#allocation2 + $0xe0] sm:$0xff]
  %v4311 = vld [vmem:[#allocation2 + $0xf0] sm:$0xff]
  %v4312 = vld [vmem:[#allocation2 + $0xf8] sm:$0xff]
  %v4313 = vld [vmem:[#allocation2 + $0x100] sm:$0xff]
  %v4314 = vld [vmem:[#allocation2 + $0x108] sm:$0xff]
  %v4315 = vld [vmem:[#allocation2 + $0x110] sm:$0xff]
  %v4316 = vadd.s32 %v4284, 4294967295
  %vm4317 = vcmp.ge.s32.totalorder %v4316, 0
  %vm4318 = vcmp.lt.s32.totalorder %v4316, 16
  %vm4319 = vmand %vm4317, %vm4318
  %v4320 = vadd.s32 %v4285, 4294967295
  %vm4321 = vcmp.ge.s32.totalorder %v4320, 0
  %vm4322 = vmand %vm4319, %vm4321
  %vm4323 = vcmp.lt.s32.totalorder %v4320, 16
  %vm4324 = vmand %vm4322, %vm4323
  %v4325 = vsel %vm4324, 1.0, 0.0
  %v4327 = vlaneseq
  %v4328 = vshrl.u32 %v4327, 7
  %v4329 = vsub.s32 0, %v4328
  %v4330 = vrot.slane %v4325, %v4329
  %v4331 = vlaneseq
  %v4332 = vshrl.u32 %v4331, 7
  %v4333 = vsub.s32 1, %v4332
  %v4334 = vrot.slane %v4325, %v4333
  %v4335 = vlaneseq
  %v4336 = vshrl.u32 %v4335, 7
  %v4337 = vsub.s32 2, %v4336
  %v4338 = vrot.slane %v4325, %v4337
  %v4339 = vlaneseq
  %v4340 = vshrl.u32 %v4339, 7
  %v4341 = vsub.s32 3, %v4340
  %v4342 = vrot.slane %v4325, %v4341
  %4343 = vrot.lane.b32.xlu0 %v4330, 111
  %v4344 = vpop.permute.xlu0 %4343
  %4345 = vrot.lane.b32.xlu0 %v4334, 111
  %v4346 = vpop.permute.xlu0 %4345
  %4347 = vrot.lane.b32.xlu0 %v4338, 111
  %v4348 = vpop.permute.xlu0 %4347
  %4349 = vrot.lane.b32.xlu0 %v4342, 111
  %v4350 = vpop.permute.xlu0 %4349
  %vm4351 = vcmask 908288
  %v4352 = vsel %vm4351, %v4344, %v4346
  %v4353 = vsel %vm4351, %v4346, %v4348
  %v4354 = vsel %vm4351, %v4348, %v4350
  %v4360 = vmul.f32 %v4286, %v4344
  %v4361 = vmul.f32 %v4287, %v4352
  %v4362 = vmul.f32 %v4288, %v4353
  %v4363 = vmul.f32 %v4289, %v4354
  %v4364 = vmul.f32 %v4290, %v4350
  %v4365 = vmul.f32 %v4291, %v4344
  %v4366 = vmul.f32 %v4292, %v4352
  %v4367 = vmul.f32 %v4293, %v4353
  %v4368 = vmul.f32 %v4294, %v4354
  %v4369 = vmul.f32 %v4295, %v4350
  %v4370 = vmul.f32 %v4296, %v4344
  %v4371 = vmul.f32 %v4297, %v4352
  %v4372 = vmul.f32 %v4298, %v4353
  %v4373 = vmul.f32 %v4299, %v4354
  %v4374 = vmul.f32 %v4300, %v4350
  %v4375 = vmul.f32 %v4301, %v4344
  %v4376 = vmul.f32 %v4302, %v4352
  %v4377 = vmul.f32 %v4303, %v4353
  %v4378 = vmul.f32 %v4304, %v4354
  %v4379 = vmul.f32 %v4305, %v4350
  %v4380 = vmul.f32 %v4306, %v4344
  %v4381 = vmul.f32 %v4307, %v4352
  %v4382 = vmul.f32 %v4308, %v4353
  %v4383 = vmul.f32 %v4309, %v4354
  %v4384 = vmul.f32 %v4310, %v4350
  %v4385 = vmul.f32 %v4311, %v4344
  %v4386 = vmul.f32 %v4312, %v4352
  %v4387 = vmul.f32 %v4313, %v4353
  %v4388 = vmul.f32 %v4314, %v4354
  %v4389 = vmul.f32 %v4315, %v4350
  %v4390 = vadd.f32 %v4360, 0.0
  %v4391 = vadd.f32 %v4361, 0.0
  %v4392 = vadd.f32 %v4362, 0.0
  %v4393 = vadd.f32 %v4363, 0.0
  %v4394 = vadd.f32 %v4364, 0.0
  %v4395 = vadd.f32 %v4365, 0.0
  %v4396 = vadd.f32 %v4366, 0.0
  %v4397 = vadd.f32 %v4367, 0.0
  %v4398 = vadd.f32 %v4368, 0.0
  %v4399 = vadd.f32 %v4369, 0.0
  %v4400 = vadd.f32 %v4370, 0.0
  %v4401 = vadd.f32 %v4371, 0.0
  %v4402 = vadd.f32 %v4372, 0.0
  %v4403 = vadd.f32 %v4373, 0.0
  %v4404 = vadd.f32 %v4374, 0.0
  %v4405 = vadd.f32 %v4375, 0.0
  %v4406 = vadd.f32 %v4376, 0.0
  %v4407 = vadd.f32 %v4377, 0.0
  %v4408 = vadd.f32 %v4378, 0.0
  %v4409 = vadd.f32 %v4379, 0.0
  %v4410 = vadd.f32 %v4380, 0.0
  %v4411 = vadd.f32 %v4381, 0.0
  %v4412 = vadd.f32 %v4382, 0.0
  %v4413 = vadd.f32 %v4383, 0.0
  %v4414 = vadd.f32 %v4384, 0.0
  %v4415 = vadd.f32 %v4385, 0.0
  %v4416 = vadd.f32 %v4386, 0.0
  %v4417 = vadd.f32 %v4387, 0.0
  %v4418 = vadd.f32 %v4388, 0.0
  %v4419 = vadd.f32 %v4389, 0.0
  %v4420 = vld [vmem:[#allocation2 + $0x120] sm:$0xff]
  %v4421 = vld [vmem:[#allocation2 + $0x128] sm:$0xff]
  %v4422 = vld [vmem:[#allocation2 + $0x130] sm:$0xff]
  %v4423 = vld [vmem:[#allocation2 + $0x138] sm:$0xff]
  %v4424 = vld [vmem:[#allocation2 + $0x140] sm:$0xff]
  %v4425 = vld [vmem:[#allocation2 + $0x150] sm:$0xff]
  %v4426 = vld [vmem:[#allocation2 + $0x158] sm:$0xff]
  %v4427 = vld [vmem:[#allocation2 + $0x160] sm:$0xff]
  %v4428 = vld [vmem:[#allocation2 + $0x168] sm:$0xff]
  %v4429 = vld [vmem:[#allocation2 + $0x170] sm:$0xff]
  %v4430 = vld [vmem:[#allocation2 + $0x180] sm:$0xff]
  %v4431 = vld [vmem:[#allocation2 + $0x188] sm:$0xff]
  %v4432 = vld [vmem:[#allocation2 + $0x190] sm:$0xff]
  %v4433 = vld [vmem:[#allocation2 + $0x198] sm:$0xff]
  %v4434 = vld [vmem:[#allocation2 + $0x1a0] sm:$0xff]
  %v4435 = vld [vmem:[#allocation2 + $0x1b0] sm:$0xff]
  %v4436 = vld [vmem:[#allocation2 + $0x1b8] sm:$0xff]
  %v4437 = vld [vmem:[#allocation2 + $0x1c0] sm:$0xff]
  %v4438 = vld [vmem:[#allocation2 + $0x1c8] sm:$0xff]
  %v4439 = vld [vmem:[#allocation2 + $0x1d0] sm:$0xff]
  %v4440 = vld [vmem:[#allocation2 + $0x1e0] sm:$0xff]
  %v4441 = vld [vmem:[#allocation2 + $0x1e8] sm:$0xff]
  %v4442 = vld [vmem:[#allocation2 + $0x1f0] sm:$0xff]
  %v4443 = vld [vmem:[#allocation2 + $0x1f8] sm:$0xff]
  %v4444 = vld [vmem:[#allocation2 + $0x200] sm:$0xff]
  %v4445 = vld [vmem:[#allocation2 + $0x210] sm:$0xff]
  %v4446 = vld [vmem:[#allocation2 + $0x218] sm:$0xff]
  %v4447 = vld [vmem:[#allocation2 + $0x220] sm:$0xff]
  %v4448 = vld [vmem:[#allocation2 + $0x228] sm:$0xff]
  %v4449 = vld [vmem:[#allocation2 + $0x230] sm:$0xff]
  %vm4450 = vcmp.ge.s32.totalorder %v4285, 0
  %vm4451 = vmand %vm4319, %vm4450
  %vm4452 = vcmp.lt.s32.totalorder %v4285, 16
  %vm4453 = vmand %vm4451, %vm4452
  %v4454 = vsel %vm4453, 1.0, 0.0
  %v4456 = vlaneseq
  %v4457 = vshrl.u32 %v4456, 7
  %v4458 = vsub.s32 0, %v4457
  %v4459 = vrot.slane %v4454, %v4458
  %v4460 = vlaneseq
  %v4461 = vshrl.u32 %v4460, 7
  %v4462 = vsub.s32 1, %v4461
  %v4463 = vrot.slane %v4454, %v4462
  %v4464 = vlaneseq
  %v4465 = vshrl.u32 %v4464, 7
  %v4466 = vsub.s32 2, %v4465
  %v4467 = vrot.slane %v4454, %v4466
  %v4468 = vlaneseq
  %v4469 = vshrl.u32 %v4468, 7
  %v4470 = vsub.s32 3, %v4469
  %v4471 = vrot.slane %v4454, %v4470
  %4472 = vrot.lane.b32.xlu0 %v4459, 112
  %v4473 = vpop.permute.xlu0 %4472
  %4474 = vrot.lane.b32.xlu0 %v4463, 112
  %v4475 = vpop.permute.xlu0 %4474
  %4476 = vrot.lane.b32.xlu0 %v4467, 112
  %v4477 = vpop.permute.xlu0 %4476
  %4478 = vrot.lane.b32.xlu0 %v4471, 112
  %v4479 = vpop.permute.xlu0 %4478
  %vm4480 = vcmask 916480
  %v4481 = vsel %vm4480, %v4473, %v4475
  %v4482 = vsel %vm4480, %v4475, %v4477
  %v4483 = vsel %vm4480, %v4477, %v4479
  %v4489 = vmul.f32 %v4420, %v4473
  %v4490 = vmul.f32 %v4421, %v4481
  %v4491 = vmul.f32 %v4422, %v4482
  %v4492 = vmul.f32 %v4423, %v4483
  %v4493 = vmul.f32 %v4424, %v4479
  %v4494 = vmul.f32 %v4425, %v4473
  %v4495 = vmul.f32 %v4426, %v4481
  %v4496 = vmul.f32 %v4427, %v4482
  %v4497 = vmul.f32 %v4428, %v4483
  %v4498 = vmul.f32 %v4429, %v4479
  %v4499 = vmul.f32 %v4430, %v4473
  %v4500 = vmul.f32 %v4431, %v4481
  %v4501 = vmul.f32 %v4432, %v4482
  %v4502 = vmul.f32 %v4433, %v4483
  %v4503 = vmul.f32 %v4434, %v4479
  %v4504 = vmul.f32 %v4435, %v4473
  %v4505 = vmul.f32 %v4436, %v4481
  %v4506 = vmul.f32 %v4437, %v4482
  %v4507 = vmul.f32 %v4438, %v4483
  %v4508 = vmul.f32 %v4439, %v4479
  %v4509 = vmul.f32 %v4440, %v4473
  %v4510 = vmul.f32 %v4441, %v4481
  %v4511 = vmul.f32 %v4442, %v4482
  %v4512 = vmul.f32 %v4443, %v4483
  %v4513 = vmul.f32 %v4444, %v4479
  %v4514 = vmul.f32 %v4445, %v4473
  %v4515 = vmul.f32 %v4446, %v4481
  %v4516 = vmul.f32 %v4447, %v4482
  %v4517 = vmul.f32 %v4448, %v4483
  %v4518 = vmul.f32 %v4449, %v4479
  %4549 = vrot.lane.b32.xlu0 %v4489, 127
  %v4550 = vpop.permute.xlu0 %4549
  %4551 = vrot.lane.b32.xlu0 %v4490, 127
  %v4552 = vpop.permute.xlu0 %4551
  %4553 = vrot.lane.b32.xlu0 %v4491, 127
  %v4554 = vpop.permute.xlu0 %4553
  %4555 = vrot.lane.b32.xlu0 %v4492, 127
  %v4556 = vpop.permute.xlu0 %4555
  %4557 = vrot.lane.b32.xlu0 %v4493, 127
  %v4558 = vpop.permute.xlu0 %4557
  %4559 = vrot.lane.b32.xlu0 %v4494, 127
  %v4560 = vpop.permute.xlu0 %4559
  %4561 = vrot.lane.b32.xlu0 %v4495, 127
  %v4562 = vpop.permute.xlu0 %4561
  %4563 = vrot.lane.b32.xlu0 %v4496, 127
  %v4564 = vpop.permute.xlu0 %4563
  %4565 = vrot.lane.b32.xlu0 %v4497, 127
  %v4566 = vpop.permute.xlu0 %4565
  %4567 = vrot.lane.b32.xlu0 %v4498, 127
  %v4568 = vpop.permute.xlu0 %4567
  %4569 = vrot.lane.b32.xlu0 %v4499, 127
  %v4570 = vpop.permute.xlu0 %4569
  %4571 = vrot.lane.b32.xlu0 %v4500, 127
  %v4572 = vpop.permute.xlu0 %4571
  %4573 = vrot.lane.b32.xlu0 %v4501, 127
  %v4574 = vpop.permute.xlu0 %4573
  %4575 = vrot.lane.b32.xlu0 %v4502, 127
  %v4576 = vpop.permute.xlu0 %4575
  %4577 = vrot.lane.b32.xlu0 %v4503, 127
  %v4578 = vpop.permute.xlu0 %4577
  %4579 = vrot.lane.b32.xlu0 %v4504, 127
  %v4580 = vpop.permute.xlu0 %4579
  %4581 = vrot.lane.b32.xlu0 %v4505, 127
  %v4582 = vpop.permute.xlu0 %4581
  %4583 = vrot.lane.b32.xlu0 %v4506, 127
  %v4584 = vpop.permute.xlu0 %4583
  %4585 = vrot.lane.b32.xlu0 %v4507, 127
  %v4586 = vpop.permute.xlu0 %4585
  %4587 = vrot.lane.b32.xlu0 %v4508, 127
  %v4588 = vpop.permute.xlu0 %4587
  %4589 = vrot.lane.b32.xlu0 %v4509, 127
  %v4590 = vpop.permute.xlu0 %4589
  %4591 = vrot.lane.b32.xlu0 %v4510, 127
  %v4592 = vpop.permute.xlu0 %4591
  %4593 = vrot.lane.b32.xlu0 %v4511, 127
  %v4594 = vpop.permute.xlu0 %4593
  %4595 = vrot.lane.b32.xlu0 %v4512, 127
  %v4596 = vpop.permute.xlu0 %4595
  %4597 = vrot.lane.b32.xlu0 %v4513, 127
  %v4598 = vpop.permute.xlu0 %4597
  %4599 = vrot.lane.b32.xlu0 %v4514, 127
  %v4600 = vpop.permute.xlu0 %4599
  %4601 = vrot.lane.b32.xlu0 %v4515, 127
  %v4602 = vpop.permute.xlu0 %4601
  %4603 = vrot.lane.b32.xlu0 %v4516, 127
  %v4604 = vpop.permute.xlu0 %4603
  %4605 = vrot.lane.b32.xlu0 %v4517, 127
  %v4606 = vpop.permute.xlu0 %4605
  %4607 = vrot.lane.b32.xlu0 %v4518, 127
  %v4608 = vpop.permute.xlu0 %4607
  %vm4609 = vcmask 1039360
  %v4610 = vsel %vm4609, %v4550, %v4552
  %v4611 = vsel %vm4609, %v4552, %v4554
  %v4612 = vsel %vm4609, %v4554, %v4556
  %v4613 = vsel %vm4609, %v4556, %v4558
  %v4614 = vsel %vm4609, %v4560, %v4562
  %v4615 = vsel %vm4609, %v4562, %v4564
  %v4616 = vsel %vm4609, %v4564, %v4566
  %v4617 = vsel %vm4609, %v4566, %v4568
  %v4618 = vsel %vm4609, %v4570, %v4572
  %v4619 = vsel %vm4609, %v4572, %v4574
  %v4620 = vsel %vm4609, %v4574, %v4576
  %v4621 = vsel %vm4609, %v4576, %v4578
  %v4622 = vsel %vm4609, %v4580, %v4582
  %v4623 = vsel %vm4609, %v4582, %v4584
  %v4624 = vsel %vm4609, %v4584, %v4586
  %v4625 = vsel %vm4609, %v4586, %v4588
  %v4626 = vsel %vm4609, %v4590, %v4592
  %v4627 = vsel %vm4609, %v4592, %v4594
  %v4628 = vsel %vm4609, %v4594, %v4596
  %v4629 = vsel %vm4609, %v4596, %v4598
  %v4630 = vsel %vm4609, %v4600, %v4602
  %v4631 = vsel %vm4609, %v4602, %v4604
  %v4632 = vsel %vm4609, %v4604, %v4606
  %v4633 = vsel %vm4609, %v4606, %v4608
  %v4664 = vadd.f32 %v4390, %v4610
  %v4665 = vadd.f32 %v4391, %v4611
  %v4666 = vadd.f32 %v4392, %v4612
  %v4667 = vadd.f32 %v4393, %v4613
  %v4668 = vadd.f32 %v4394, %v4558
  %v4669 = vadd.f32 %v4395, %v4614
  %v4670 = vadd.f32 %v4396, %v4615
  %v4671 = vadd.f32 %v4397, %v4616
  %v4672 = vadd.f32 %v4398, %v4617
  %v4673 = vadd.f32 %v4399, %v4568
  %v4674 = vadd.f32 %v4400, %v4618
  %v4675 = vadd.f32 %v4401, %v4619
  %v4676 = vadd.f32 %v4402, %v4620
  %v4677 = vadd.f32 %v4403, %v4621
  %v4678 = vadd.f32 %v4404, %v4578
  %v4679 = vadd.f32 %v4405, %v4622
  %v4680 = vadd.f32 %v4406, %v4623
  %v4681 = vadd.f32 %v4407, %v4624
  %v4682 = vadd.f32 %v4408, %v4625
  %v4683 = vadd.f32 %v4409, %v4588
  %v4684 = vadd.f32 %v4410, %v4626
  %v4685 = vadd.f32 %v4411, %v4627
  %v4686 = vadd.f32 %v4412, %v4628
  %v4687 = vadd.f32 %v4413, %v4629
  %v4688 = vadd.f32 %v4414, %v4598
  %v4689 = vadd.f32 %v4415, %v4630
  %v4690 = vadd.f32 %v4416, %v4631
  %v4691 = vadd.f32 %v4417, %v4632
  %v4692 = vadd.f32 %v4418, %v4633
  %v4693 = vadd.f32 %v4419, %v4608
  %v4694 = vld [vmem:[#allocation2 + $0x240] sm:$0xff]
  %v4695 = vld [vmem:[#allocation2 + $0x248] sm:$0xff]
  %v4696 = vld [vmem:[#allocation2 + $0x250] sm:$0xff]
  %v4697 = vld [vmem:[#allocation2 + $0x258] sm:$0xff]
  %v4698 = vld [vmem:[#allocation2 + $0x260] sm:$0xff]
  %v4699 = vld [vmem:[#allocation2 + $0x270] sm:$0xff]
  %v4700 = vld [vmem:[#allocation2 + $0x278] sm:$0xff]
  %v4701 = vld [vmem:[#allocation2 + $0x280] sm:$0xff]
  %v4702 = vld [vmem:[#allocation2 + $0x288] sm:$0xff]
  %v4703 = vld [vmem:[#allocation2 + $0x290] sm:$0xff]
  %v4704 = vld [vmem:[#allocation2 + $0x2a0] sm:$0xff]
  %v4705 = vld [vmem:[#allocation2 + $0x2a8] sm:$0xff]
  %v4706 = vld [vmem:[#allocation2 + $0x2b0] sm:$0xff]
  %v4707 = vld [vmem:[#allocation2 + $0x2b8] sm:$0xff]
  %v4708 = vld [vmem:[#allocation2 + $0x2c0] sm:$0xff]
  %v4709 = vld [vmem:[#allocation2 + $0x2d0] sm:$0xff]
  %v4710 = vld [vmem:[#allocation2 + $0x2d8] sm:$0xff]
  %v4711 = vld [vmem:[#allocation2 + $0x2e0] sm:$0xff]
  %v4712 = vld [vmem:[#allocation2 + $0x2e8] sm:$0xff]
  %v4713 = vld [vmem:[#allocation2 + $0x2f0] sm:$0xff]
  %v4714 = vld [vmem:[#allocation2 + $0x300] sm:$0xff]
  %v4715 = vld [vmem:[#allocation2 + $0x308] sm:$0xff]
  %v4716 = vld [vmem:[#allocation2 + $0x310] sm:$0xff]
  %v4717 = vld [vmem:[#allocation2 + $0x318] sm:$0xff]
  %v4718 = vld [vmem:[#allocation2 + $0x320] sm:$0xff]
  %v4719 = vld [vmem:[#allocation2 + $0x330] sm:$0xff]
  %v4720 = vld [vmem:[#allocation2 + $0x338] sm:$0xff]
  %v4721 = vld [vmem:[#allocation2 + $0x340] sm:$0xff]
  %v4722 = vld [vmem:[#allocation2 + $0x348] sm:$0xff]
  %v4723 = vld [vmem:[#allocation2 + $0x350] sm:$0xff]
  %v4724 = vadd.s32 %v4285, 1
  %vm4725 = vcmp.ge.s32.totalorder %v4724, 0
  %vm4726 = vmand %vm4319, %vm4725
  %vm4727 = vcmp.lt.s32.totalorder %v4724, 16
  %vm4728 = vmand %vm4726, %vm4727
  %v4729 = vsel %vm4728, 1.0, 0.0
  %v4731 = vlaneseq
  %v4732 = vshrl.u32 %v4731, 7
  %v4733 = vsub.s32 0, %v4732
  %v4734 = vrot.slane %v4729, %v4733
  %v4735 = vlaneseq
  %v4736 = vshrl.u32 %v4735, 7
  %v4737 = vsub.s32 1, %v4736
  %v4738 = vrot.slane %v4729, %v4737
  %v4739 = vlaneseq
  %v4740 = vshrl.u32 %v4739, 7
  %v4741 = vsub.s32 2, %v4740
  %v4742 = vrot.slane %v4729, %v4741
  %v4743 = vlaneseq
  %v4744 = vshrl.u32 %v4743, 7
  %v4745 = vsub.s32 3, %v4744
  %v4746 = vrot.slane %v4729, %v4745
  %4747 = vrot.lane.b32.xlu0 %v4734, 113
  %v4748 = vpop.permute.xlu0 %4747
  %4749 = vrot.lane.b32.xlu0 %v4738, 113
  %v4750 = vpop.permute.xlu0 %4749
  %4751 = vrot.lane.b32.xlu0 %v4742, 113
  %v4752 = vpop.permute.xlu0 %4751
  %4753 = vrot.lane.b32.xlu0 %v4746, 113
  %v4754 = vpop.permute.xlu0 %4753
  %vm4755 = vcmask 924672
  %v4756 = vsel %vm4755, %v4748, %v4750
  %v4757 = vsel %vm4755, %v4750, %v4752
  %v4758 = vsel %vm4755, %v4752, %v4754
  %v4764 = vmul.f32 %v4694, %v4748
  %v4765 = vmul.f32 %v4695, %v4756
  %v4766 = vmul.f32 %v4696, %v4757
  %v4767 = vmul.f32 %v4697, %v4758
  %v4768 = vmul.f32 %v4698, %v4754
  %v4769 = vmul.f32 %v4699, %v4748
  %v4770 = vmul.f32 %v4700, %v4756
  %v4771 = vmul.f32 %v4701, %v4757
  %v4772 = vmul.f32 %v4702, %v4758
  %v4773 = vmul.f32 %v4703, %v4754
  %v4774 = vmul.f32 %v4704, %v4748
  %v4775 = vmul.f32 %v4705, %v4756
  %v4776 = vmul.f32 %v4706, %v4757
  %v4777 = vmul.f32 %v4707, %v4758
  %v4778 = vmul.f32 %v4708, %v4754
  %v4779 = vmul.f32 %v4709, %v4748
  %v4780 = vmul.f32 %v4710, %v4756
  %v4781 = vmul.f32 %v4711, %v4757
  %v4782 = vmul.f32 %v4712, %v4758
  %v4783 = vmul.f32 %v4713, %v4754
  %v4784 = vmul.f32 %v4714, %v4748
  %v4785 = vmul.f32 %v4715, %v4756
  %v4786 = vmul.f32 %v4716, %v4757
  %v4787 = vmul.f32 %v4717, %v4758
  %v4788 = vmul.f32 %v4718, %v4754
  %v4789 = vmul.f32 %v4719, %v4748
  %v4790 = vmul.f32 %v4720, %v4756
  %v4791 = vmul.f32 %v4721, %v4757
  %v4792 = vmul.f32 %v4722, %v4758
  %v4793 = vmul.f32 %v4723, %v4754
  %4824 = vrot.lane.b32.xlu0 %v4764, 126
  %v4825 = vpop.permute.xlu0 %4824
  %4826 = vrot.lane.b32.xlu0 %v4765, 126
  %v4827 = vpop.permute.xlu0 %4826
  %4828 = vrot.lane.b32.xlu0 %v4766, 126
  %v4829 = vpop.permute.xlu0 %4828
  %4830 = vrot.lane.b32.xlu0 %v4767, 126
  %v4831 = vpop.permute.xlu0 %4830
  %4832 = vrot.lane.b32.xlu0 %v4768, 126
  %v4833 = vpop.permute.xlu0 %4832
  %4834 = vrot.lane.b32.xlu0 %v4769, 126
  %v4835 = vpop.permute.xlu0 %4834
  %4836 = vrot.lane.b32.xlu0 %v4770, 126
  %v4837 = vpop.permute.xlu0 %4836
  %4838 = vrot.lane.b32.xlu0 %v4771, 126
  %v4839 = vpop.permute.xlu0 %4838
  %4840 = vrot.lane.b32.xlu0 %v4772, 126
  %v4841 = vpop.permute.xlu0 %4840
  %4842 = vrot.lane.b32.xlu0 %v4773, 126
  %v4843 = vpop.permute.xlu0 %4842
  %4844 = vrot.lane.b32.xlu0 %v4774, 126
  %v4845 = vpop.permute.xlu0 %4844
  %4846 = vrot.lane.b32.xlu0 %v4775, 126
  %v4847 = vpop.permute.xlu0 %4846
  %4848 = vrot.lane.b32.xlu0 %v4776, 126
  %v4849 = vpop.permute.xlu0 %4848
  %4850 = vrot.lane.b32.xlu0 %v4777, 126
  %v4851 = vpop.permute.xlu0 %4850
  %4852 = vrot.lane.b32.xlu0 %v4778, 126
  %v4853 = vpop.permute.xlu0 %4852
  %4854 = vrot.lane.b32.xlu0 %v4779, 126
  %v4855 = vpop.permute.xlu0 %4854
  %4856 = vrot.lane.b32.xlu0 %v4780, 126
  %v4857 = vpop.permute.xlu0 %4856
  %4858 = vrot.lane.b32.xlu0 %v4781, 126
  %v4859 = vpop.permute.xlu0 %4858
  %4860 = vrot.lane.b32.xlu0 %v4782, 126
  %v4861 = vpop.permute.xlu0 %4860
  %4862 = vrot.lane.b32.xlu0 %v4783, 126
  %v4863 = vpop.permute.xlu0 %4862
  %4864 = vrot.lane.b32.xlu0 %v4784, 126
  %v4865 = vpop.permute.xlu0 %4864
  %4866 = vrot.lane.b32.xlu0 %v4785, 126
  %v4867 = vpop.permute.xlu0 %4866
  %4868 = vrot.lane.b32.xlu0 %v4786, 126
  %v4869 = vpop.permute.xlu0 %4868
  %4870 = vrot.lane.b32.xlu0 %v4787, 126
  %v4871 = vpop.permute.xlu0 %4870
  %4872 = vrot.lane.b32.xlu0 %v4788, 126
  %v4873 = vpop.permute.xlu0 %4872
  %4874 = vrot.lane.b32.xlu0 %v4789, 126
  %v4875 = vpop.permute.xlu0 %4874
  %4876 = vrot.lane.b32.xlu0 %v4790, 126
  %v4877 = vpop.permute.xlu0 %4876
  %4878 = vrot.lane.b32.xlu0 %v4791, 126
  %v4879 = vpop.permute.xlu0 %4878
  %4880 = vrot.lane.b32.xlu0 %v4792, 126
  %v4881 = vpop.permute.xlu0 %4880
  %4882 = vrot.lane.b32.xlu0 %v4793, 126
  %v4883 = vpop.permute.xlu0 %4882
  %vm4884 = vcmask 1031168
  %v4885 = vsel %vm4884, %v4825, %v4827
  %v4886 = vsel %vm4884, %v4827, %v4829
  %v4887 = vsel %vm4884, %v4829, %v4831
  %v4888 = vsel %vm4884, %v4831, %v4833
  %v4889 = vsel %vm4884, %v4835, %v4837
  %v4890 = vsel %vm4884, %v4837, %v4839
  %v4891 = vsel %vm4884, %v4839, %v4841
  %v4892 = vsel %vm4884, %v4841, %v4843
  %v4893 = vsel %vm4884, %v4845, %v4847
  %v4894 = vsel %vm4884, %v4847, %v4849
  %v4895 = vsel %vm4884, %v4849, %v4851
  %v4896 = vsel %vm4884, %v4851, %v4853
  %v4897 = vsel %vm4884, %v4855, %v4857
  %v4898 = vsel %vm4884, %v4857, %v4859
  %v4899 = vsel %vm4884, %v4859, %v4861
  %v4900 = vsel %vm4884, %v4861, %v4863
  %v4901 = vsel %vm4884, %v4865, %v4867
  %v4902 = vsel %vm4884, %v4867, %v4869
  %v4903 = vsel %vm4884, %v4869, %v4871
  %v4904 = vsel %vm4884, %v4871, %v4873
  %v4905 = vsel %vm4884, %v4875, %v4877
  %v4906 = vsel %vm4884, %v4877, %v4879
  %v4907 = vsel %vm4884, %v4879, %v4881
  %v4908 = vsel %vm4884, %v4881, %v4883
  %v4939 = vadd.f32 %v4664, %v4885
  %v4940 = vadd.f32 %v4665, %v4886
  %v4941 = vadd.f32 %v4666, %v4887
  %v4942 = vadd.f32 %v4667, %v4888
  %v4943 = vadd.f32 %v4668, %v4833
  %v4944 = vadd.f32 %v4669, %v4889
  %v4945 = vadd.f32 %v4670, %v4890
  %v4946 = vadd.f32 %v4671, %v4891
  %v4947 = vadd.f32 %v4672, %v4892
  %v4948 = vadd.f32 %v4673, %v4843
  %v4949 = vadd.f32 %v4674, %v4893
  %v4950 = vadd.f32 %v4675, %v4894
  %v4951 = vadd.f32 %v4676, %v4895
  %v4952 = vadd.f32 %v4677, %v4896
  %v4953 = vadd.f32 %v4678, %v4853
  %v4954 = vadd.f32 %v4679, %v4897
  %v4955 = vadd.f32 %v4680, %v4898
  %v4956 = vadd.f32 %v4681, %v4899
  %v4957 = vadd.f32 %v4682, %v4900
  %v4958 = vadd.f32 %v4683, %v4863
  %v4959 = vadd.f32 %v4684, %v4901
  %v4960 = vadd.f32 %v4685, %v4902
  %v4961 = vadd.f32 %v4686, %v4903
  %v4962 = vadd.f32 %v4687, %v4904
  %v4963 = vadd.f32 %v4688, %v4873
  %v4964 = vadd.f32 %v4689, %v4905
  %v4965 = vadd.f32 %v4690, %v4906
  %v4966 = vadd.f32 %v4691, %v4907
  %v4967 = vadd.f32 %v4692, %v4908
  %v4968 = vadd.f32 %v4693, %v4883
  %v4969 = vld [vmem:[#allocation2 + $0x360] sm:$0xff]
  %v4970 = vld [vmem:[#allocation2 + $0x368] sm:$0xff]
  %v4971 = vld [vmem:[#allocation2 + $0x370] sm:$0xff]
  %v4972 = vld [vmem:[#allocation2 + $0x378] sm:$0xff]
  %v4973 = vld [vmem:[#allocation2 + $0x380] sm:$0xff]
  %v4974 = vld [vmem:[#allocation2 + $0x390] sm:$0xff]
  %v4975 = vld [vmem:[#allocation2 + $0x398] sm:$0xff]
  %v4976 = vld [vmem:[#allocation2 + $0x3a0] sm:$0xff]
  %v4977 = vld [vmem:[#allocation2 + $0x3a8] sm:$0xff]
  %v4978 = vld [vmem:[#allocation2 + $0x3b0] sm:$0xff]
  %v4979 = vld [vmem:[#allocation2 + $0x3c0] sm:$0xff]
  %v4980 = vld [vmem:[#allocation2 + $0x3c8] sm:$0xff]
  %v4981 = vld [vmem:[#allocation2 + $0x3d0] sm:$0xff]
  %v4982 = vld [vmem:[#allocation2 + $0x3d8] sm:$0xff]
  %v4983 = vld [vmem:[#allocation2 + $0x3e0] sm:$0xff]
  %v4984 = vld [vmem:[#allocation2 + $0x3f0] sm:$0xff]
  %v4985 = vld [vmem:[#allocation2 + $0x3f8] sm:$0xff]
  %v4986 = vld [vmem:[#allocation2 + $0x400] sm:$0xff]
  %v4987 = vld [vmem:[#allocation2 + $0x408] sm:$0xff]
  %v4988 = vld [vmem:[#allocation2 + $0x410] sm:$0xff]
  %v4989 = vld [vmem:[#allocation2 + $0x420] sm:$0xff]
  %v4990 = vld [vmem:[#allocation2 + $0x428] sm:$0xff]
  %v4991 = vld [vmem:[#allocation2 + $0x430] sm:$0xff]
  %v4992 = vld [vmem:[#allocation2 + $0x438] sm:$0xff]
  %v4993 = vld [vmem:[#allocation2 + $0x440] sm:$0xff]
  %v4994 = vld [vmem:[#allocation2 + $0x450] sm:$0xff]
  %v4995 = vld [vmem:[#allocation2 + $0x458] sm:$0xff]
  %v4996 = vld [vmem:[#allocation2 + $0x460] sm:$0xff]
  %v4997 = vld [vmem:[#allocation2 + $0x468] sm:$0xff]
  %v4998 = vld [vmem:[#allocation2 + $0x470] sm:$0xff]
  %vm4999 = vcmp.ge.s32.totalorder %v4284, 0
  %vm5000 = vcmp.lt.s32.totalorder %v4284, 16
  %vm5001 = vmand %vm4999, %vm5000
  %vm5002 = vmand %vm5001, %vm4321
  %vm5003 = vmand %vm5002, %vm4323
  %v5004 = vsel %vm5003, 1.0, 0.0
  %v5006 = vlaneseq
  %v5007 = vshrl.u32 %v5006, 7
  %v5008 = vsub.s32 0, %v5007
  %v5009 = vrot.slane %v5004, %v5008
  %v5010 = vlaneseq
  %v5011 = vshrl.u32 %v5010, 7
  %v5012 = vsub.s32 1, %v5011
  %v5013 = vrot.slane %v5004, %v5012
  %v5014 = vlaneseq
  %v5015 = vshrl.u32 %v5014, 7
  %v5016 = vsub.s32 2, %v5015
  %v5017 = vrot.slane %v5004, %v5016
  %v5018 = vlaneseq
  %v5019 = vshrl.u32 %v5018, 7
  %v5020 = vsub.s32 3, %v5019
  %v5021 = vrot.slane %v5004, %v5020
  %5022 = vrot.lane.b32.xlu0 %v5009, 127
  %v5023 = vpop.permute.xlu0 %5022
  %5024 = vrot.lane.b32.xlu0 %v5013, 127
  %v5025 = vpop.permute.xlu0 %5024
  %5026 = vrot.lane.b32.xlu0 %v5017, 127
  %v5027 = vpop.permute.xlu0 %5026
  %5028 = vrot.lane.b32.xlu0 %v5021, 127
  %v5029 = vpop.permute.xlu0 %5028
  %v5030 = vsel %vm4609, %v5023, %v5025
  %v5031 = vsel %vm4609, %v5025, %v5027
  %v5032 = vsel %vm4609, %v5027, %v5029
  %v5038 = vmul.f32 %v4969, %v5023
  %v5039 = vmul.f32 %v4970, %v5030
  %v5040 = vmul.f32 %v4971, %v5031
  %v5041 = vmul.f32 %v4972, %v5032
  %v5042 = vmul.f32 %v4973, %v5029
  %v5043 = vmul.f32 %v4974, %v5023
  %v5044 = vmul.f32 %v4975, %v5030
  %v5045 = vmul.f32 %v4976, %v5031
  %v5046 = vmul.f32 %v4977, %v5032
  %v5047 = vmul.f32 %v4978, %v5029
  %v5048 = vmul.f32 %v4979, %v5023
  %v5049 = vmul.f32 %v4980, %v5030
  %v5050 = vmul.f32 %v4981, %v5031
  %v5051 = vmul.f32 %v4982, %v5032
  %v5052 = vmul.f32 %v4983, %v5029
  %v5053 = vmul.f32 %v4984, %v5023
  %v5054 = vmul.f32 %v4985, %v5030
  %v5055 = vmul.f32 %v4986, %v5031
  %v5056 = vmul.f32 %v4987, %v5032
  %v5057 = vmul.f32 %v4988, %v5029
  %v5058 = vmul.f32 %v4989, %v5023
  %v5059 = vmul.f32 %v4990, %v5030
  %v5060 = vmul.f32 %v4991, %v5031
  %v5061 = vmul.f32 %v4992, %v5032
  %v5062 = vmul.f32 %v4993, %v5029
  %v5063 = vmul.f32 %v4994, %v5023
  %v5064 = vmul.f32 %v4995, %v5030
  %v5065 = vmul.f32 %v4996, %v5031
  %v5066 = vmul.f32 %v4997, %v5032
  %v5067 = vmul.f32 %v4998, %v5029
  %5098 = vrot.lane.b32.xlu0 %v5038, 112
  %v5099 = vpop.permute.xlu0 %5098
  %5100 = vrot.lane.b32.xlu0 %v5039, 112
  %v5101 = vpop.permute.xlu0 %5100
  %5102 = vrot.lane.b32.xlu0 %v5040, 112
  %v5103 = vpop.permute.xlu0 %5102
  %5104 = vrot.lane.b32.xlu0 %v5041, 112
  %v5105 = vpop.permute.xlu0 %5104
  %5106 = vrot.lane.b32.xlu0 %v5042, 112
  %v5107 = vpop.permute.xlu0 %5106
  %5108 = vrot.lane.b32.xlu0 %v5043, 112
  %v5109 = vpop.permute.xlu0 %5108
  %5110 = vrot.lane.b32.xlu0 %v5044, 112
  %v5111 = vpop.permute.xlu0 %5110
  %5112 = vrot.lane.b32.xlu0 %v5045, 112
  %v5113 = vpop.permute.xlu0 %5112
  %5114 = vrot.lane.b32.xlu0 %v5046, 112
  %v5115 = vpop.permute.xlu0 %5114
  %5116 = vrot.lane.b32.xlu0 %v5047, 112
  %v5117 = vpop.permute.xlu0 %5116
  %5118 = vrot.lane.b32.xlu0 %v5048, 112
  %v5119 = vpop.permute.xlu0 %5118
  %5120 = vrot.lane.b32.xlu0 %v5049, 112
  %v5121 = vpop.permute.xlu0 %5120
  %5122 = vrot.lane.b32.xlu0 %v5050, 112
  %v5123 = vpop.permute.xlu0 %5122
  %5124 = vrot.lane.b32.xlu0 %v5051, 112
  %v5125 = vpop.permute.xlu0 %5124
  %5126 = vrot.lane.b32.xlu0 %v5052, 112
  %v5127 = vpop.permute.xlu0 %5126
  %5128 = vrot.lane.b32.xlu0 %v5053, 112
  %v5129 = vpop.permute.xlu0 %5128
  %5130 = vrot.lane.b32.xlu0 %v5054, 112
  %v5131 = vpop.permute.xlu0 %5130
  %5132 = vrot.lane.b32.xlu0 %v5055, 112
  %v5133 = vpop.permute.xlu0 %5132
  %5134 = vrot.lane.b32.xlu0 %v5056, 112
  %v5135 = vpop.permute.xlu0 %5134
  %5136 = vrot.lane.b32.xlu0 %v5057, 112
  %v5137 = vpop.permute.xlu0 %5136
  %5138 = vrot.lane.b32.xlu0 %v5058, 112
  %v5139 = vpop.permute.xlu0 %5138
  %5140 = vrot.lane.b32.xlu0 %v5059, 112
  %v5141 = vpop.permute.xlu0 %5140
  %5142 = vrot.lane.b32.xlu0 %v5060, 112
  %v5143 = vpop.permute.xlu0 %5142
  %5144 = vrot.lane.b32.xlu0 %v5061, 112
  %v5145 = vpop.permute.xlu0 %5144
  %5146 = vrot.lane.b32.xlu0 %v5062, 112
  %v5147 = vpop.permute.xlu0 %5146
  %5148 = vrot.lane.b32.xlu0 %v5063, 112
  %v5149 = vpop.permute.xlu0 %5148
  %5150 = vrot.lane.b32.xlu0 %v5064, 112
  %v5151 = vpop.permute.xlu0 %5150
  %5152 = vrot.lane.b32.xlu0 %v5065, 112
  %v5153 = vpop.permute.xlu0 %5152
  %5154 = vrot.lane.b32.xlu0 %v5066, 112
  %v5155 = vpop.permute.xlu0 %5154
  %5156 = vrot.lane.b32.xlu0 %v5067, 112
  %v5157 = vpop.permute.xlu0 %5156
  %v5158 = vsel %vm4480, %v5099, %v5101
  %v5159 = vsel %vm4480, %v5101, %v5103
  %v5160 = vsel %vm4480, %v5103, %v5105
  %v5161 = vsel %vm4480, %v5105, %v5107
  %v5162 = vsel %vm4480, %v5109, %v5111
  %v5163 = vsel %vm4480, %v5111, %v5113
  %v5164 = vsel %vm4480, %v5113, %v5115
  %v5165 = vsel %vm4480, %v5115, %v5117
  %v5166 = vsel %vm4480, %v5119, %v5121
  %v5167 = vsel %vm4480, %v5121, %v5123
  %v5168 = vsel %vm4480, %v5123, %v5125
  %v5169 = vsel %vm4480, %v5125, %v5127
  %v5170 = vsel %vm4480, %v5129, %v5131
  %v5171 = vsel %vm4480, %v5131, %v5133
  %v5172 = vsel %vm4480, %v5133, %v5135
  %v5173 = vsel %vm4480, %v5135, %v5137
  %v5174 = vsel %vm4480, %v5139, %v5141
  %v5175 = vsel %vm4480, %v5141, %v5143
  %v5176 = vsel %vm4480, %v5143, %v5145
  %v5177 = vsel %vm4480, %v5145, %v5147
  %v5178 = vsel %vm4480, %v5149, %v5151
  %v5179 = vsel %vm4480, %v5151, %v5153
  %v5180 = vsel %vm4480, %v5153, %v5155
  %v5181 = vsel %vm4480, %v5155, %v5157
  %v5212 = vadd.f32 %v4939, %v5158
  %v5213 = vadd.f32 %v4940, %v5159
  %v5214 = vadd.f32 %v4941, %v5160
  %v5215 = vadd.f32 %v4942, %v5161
  %v5216 = vadd.f32 %v4943, %v5107
  %v5217 = vadd.f32 %v4944, %v5162
  %v5218 = vadd.f32 %v4945, %v5163
  %v5219 = vadd.f32 %v4946, %v5164
  %v5220 = vadd.f32 %v4947, %v5165
  %v5221 = vadd.f32 %v4948, %v5117
  %v5222 = vadd.f32 %v4949, %v5166
  %v5223 = vadd.f32 %v4950, %v5167
  %v5224 = vadd.f32 %v4951, %v5168
  %v5225 = vadd.f32 %v4952, %v5169
  %v5226 = vadd.f32 %v4953, %v5127
  %v5227 = vadd.f32 %v4954, %v5170
  %v5228 = vadd.f32 %v4955, %v5171
  %v5229 = vadd.f32 %v4956, %v5172
  %v5230 = vadd.f32 %v4957, %v5173
  %v5231 = vadd.f32 %v4958, %v5137
  %v5232 = vadd.f32 %v4959, %v5174
  %v5233 = vadd.f32 %v4960, %v5175
  %v5234 = vadd.f32 %v4961, %v5176
  %v5235 = vadd.f32 %v4962, %v5177
  %v5236 = vadd.f32 %v4963, %v5147
  %v5237 = vadd.f32 %v4964, %v5178
  %v5238 = vadd.f32 %v4965, %v5179
  %v5239 = vadd.f32 %v4966, %v5180
  %v5240 = vadd.f32 %v4967, %v5181
  %v5241 = vadd.f32 %v4968, %v5157
  %v5242 = vld [vmem:[#allocation2 + $0x488] sm:$0xff]
  %v5243 = vld [vmem:[#allocation2 + $0x490] sm:$0xff]
  %v5244 = vld [vmem:[#allocation2 + $0x498] sm:$0xff]
  %v5245 = vld [vmem:[#allocation2 + $0x4a0] sm:$0xff]
  %v5246 = vld [vmem:[#allocation2 + $0x4b8] sm:$0xff]
  %v5247 = vld [vmem:[#allocation2 + $0x4c0] sm:$0xff]
  %v5248 = vld [vmem:[#allocation2 + $0x4c8] sm:$0xff]
  %v5249 = vld [vmem:[#allocation2 + $0x4d0] sm:$0xff]
  %v5250 = vld [vmem:[#allocation2 + $0x4e8] sm:$0xff]
  %v5251 = vld [vmem:[#allocation2 + $0x4f0] sm:$0xff]
  %v5252 = vld [vmem:[#allocation2 + $0x4f8] sm:$0xff]
  %v5253 = vld [vmem:[#allocation2 + $0x500] sm:$0xff]
  %v5254 = vld [vmem:[#allocation2 + $0x518] sm:$0xff]
  %v5255 = vld [vmem:[#allocation2 + $0x520] sm:$0xff]
  %v5256 = vld [vmem:[#allocation2 + $0x528] sm:$0xff]
  %v5257 = vld [vmem:[#allocation2 + $0x530] sm:$0xff]
  %v5258 = vld [vmem:[#allocation2 + $0x548] sm:$0xff]
  %v5259 = vld [vmem:[#allocation2 + $0x550] sm:$0xff]
  %v5260 = vld [vmem:[#allocation2 + $0x558] sm:$0xff]
  %v5261 = vld [vmem:[#allocation2 + $0x560] sm:$0xff]
  %v5262 = vld [vmem:[#allocation2 + $0x578] sm:$0xff]
  %v5263 = vld [vmem:[#allocation2 + $0x580] sm:$0xff]
  %v5264 = vld [vmem:[#allocation2 + $0x588] sm:$0xff]
  %v5265 = vld [vmem:[#allocation2 + $0x590] sm:$0xff]
  %5290 = vrot.lane.b32.xlu0 %v5242, 111
  %v5291 = vpop.permute.xlu0 %5290
  %5292 = vrot.lane.b32.xlu0 %v5243, 111
  %v5293 = vpop.permute.xlu0 %5292
  %5294 = vrot.lane.b32.xlu0 %v5244, 111
  %v5295 = vpop.permute.xlu0 %5294
  %5296 = vrot.lane.b32.xlu0 %v5245, 111
  %v5297 = vpop.permute.xlu0 %5296
  %5298 = vrot.lane.b32.xlu0 %v5246, 111
  %v5299 = vpop.permute.xlu0 %5298
  %5300 = vrot.lane.b32.xlu0 %v5247, 111
  %v5301 = vpop.permute.xlu0 %5300
  %5302 = vrot.lane.b32.xlu0 %v5248, 111
  %v5303 = vpop.permute.xlu0 %5302
  %5304 = vrot.lane.b32.xlu0 %v5249, 111
  %v5305 = vpop.permute.xlu0 %5304
  %5306 = vrot.lane.b32.xlu0 %v5250, 111
  %v5307 = vpop.permute.xlu0 %5306
  %5308 = vrot.lane.b32.xlu0 %v5251, 111
  %v5309 = vpop.permute.xlu0 %5308
  %5310 = vrot.lane.b32.xlu0 %v5252, 111
  %v5311 = vpop.permute.xlu0 %5310
  %5312 = vrot.lane.b32.xlu0 %v5253, 111
  %v5313 = vpop.permute.xlu0 %5312
  %5314 = vrot.lane.b32.xlu0 %v5254, 111
  %v5315 = vpop.permute.xlu0 %5314
  %5316 = vrot.lane.b32.xlu0 %v5255, 111
  %v5317 = vpop.permute.xlu0 %5316
  %5318 = vrot.lane.b32.xlu0 %v5256, 111
  %v5319 = vpop.permute.xlu0 %5318
  %5320 = vrot.lane.b32.xlu0 %v5257, 111
  %v5321 = vpop.permute.xlu0 %5320
  %5322 = vrot.lane.b32.xlu0 %v5258, 111
  %v5323 = vpop.permute.xlu0 %5322
  %5324 = vrot.lane.b32.xlu0 %v5259, 111
  %v5325 = vpop.permute.xlu0 %5324
  %5326 = vrot.lane.b32.xlu0 %v5260, 111
  %v5327 = vpop.permute.xlu0 %5326
  %5328 = vrot.lane.b32.xlu0 %v5261, 111
  %v5329 = vpop.permute.xlu0 %5328
  %5330 = vrot.lane.b32.xlu0 %v5262, 111
  %v5331 = vpop.permute.xlu0 %5330
  %5332 = vrot.lane.b32.xlu0 %v5263, 111
  %v5333 = vpop.permute.xlu0 %5332
  %5334 = vrot.lane.b32.xlu0 %v5264, 111
  %v5335 = vpop.permute.xlu0 %5334
  %5336 = vrot.lane.b32.xlu0 %v5265, 111
  %v5337 = vpop.permute.xlu0 %5336
  %v5338 = vsel %vm4351, %v5291, %v5293
  %v5339 = vsel %vm4351, %v5293, %v5295
  %v5340 = vsel %vm4351, %v5295, %v5297
  %v5341 = vsel %vm4351, %v5299, %v5301
  %v5342 = vsel %vm4351, %v5301, %v5303
  %v5343 = vsel %vm4351, %v5303, %v5305
  %v5344 = vsel %vm4351, %v5307, %v5309
  %v5345 = vsel %vm4351, %v5309, %v5311
  %v5346 = vsel %vm4351, %v5311, %v5313
  %v5347 = vsel %vm4351, %v5315, %v5317
  %v5348 = vsel %vm4351, %v5317, %v5319
  %v5349 = vsel %vm4351, %v5319, %v5321
  %v5350 = vsel %vm4351, %v5323, %v5325
  %v5351 = vsel %vm4351, %v5325, %v5327
  %v5352 = vsel %vm4351, %v5327, %v5329
  %v5353 = vsel %vm4351, %v5331, %v5333
  %v5354 = vsel %vm4351, %v5333, %v5335
  %v5355 = vsel %vm4351, %v5335, %v5337
  %v5386 = vadd.f32 %v5212, %v5291
  %v5387 = vadd.f32 %v5213, %v5338
  %v5388 = vadd.f32 %v5214, %v5339
  %v5389 = vadd.f32 %v5215, %v5340
  %v5390 = vadd.f32 %v5216, %v5297
  %v5391 = vadd.f32 %v5217, %v5299
  %v5392 = vadd.f32 %v5218, %v5341
  %v5393 = vadd.f32 %v5219, %v5342
  %v5394 = vadd.f32 %v5220, %v5343
  %v5395 = vadd.f32 %v5221, %v5305
  %v5396 = vadd.f32 %v5222, %v5307
  %v5397 = vadd.f32 %v5223, %v5344
  %v5398 = vadd.f32 %v5224, %v5345
  %v5399 = vadd.f32 %v5225, %v5346
  %v5400 = vadd.f32 %v5226, %v5313
  %v5401 = vadd.f32 %v5227, %v5315
  %v5402 = vadd.f32 %v5228, %v5347
  %v5403 = vadd.f32 %v5229, %v5348
  %v5404 = vadd.f32 %v5230, %v5349
  %v5405 = vadd.f32 %v5231, %v5321
  %v5406 = vadd.f32 %v5232, %v5323
  %v5407 = vadd.f32 %v5233, %v5350
  %v5408 = vadd.f32 %v5234, %v5351
  %v5409 = vadd.f32 %v5235, %v5352
  %v5410 = vadd.f32 %v5236, %v5329
  %v5411 = vadd.f32 %v5237, %v5331
  %v5412 = vadd.f32 %v5238, %v5353
  %v5413 = vadd.f32 %v5239, %v5354
  %v5414 = vadd.f32 %v5240, %v5355
  %v5415 = vadd.f32 %v5241, %v5337
  %v5416 = vld [vmem:[#allocation2 + $0x5a8] sm:$0xff]
  %v5417 = vld [vmem:[#allocation2 + $0x5b0] sm:$0xff]
  %v5418 = vld [vmem:[#allocation2 + $0x5b8] sm:$0xff]
  %v5419 = vld [vmem:[#allocation2 + $0x5c0] sm:$0xff]
  %v5420 = vld [vmem:[#allocation2 + $0x5c8] sm:$0xff]
  %v5421 = vld [vmem:[#allocation2 + $0x5d8] sm:$0xff]
  %v5422 = vld [vmem:[#allocation2 + $0x5e0] sm:$0xff]
  %v5423 = vld [vmem:[#allocation2 + $0x5e8] sm:$0xff]
  %v5424 = vld [vmem:[#allocation2 + $0x5f0] sm:$0xff]
  %v5425 = vld [vmem:[#allocation2 + $0x5f8] sm:$0xff]
  %v5426 = vld [vmem:[#allocation2 + $0x608] sm:$0xff]
  %v5427 = vld [vmem:[#allocation2 + $0x610] sm:$0xff]
  %v5428 = vld [vmem:[#allocation2 + $0x618] sm:$0xff]
  %v5429 = vld [vmem:[#allocation2 + $0x620] sm:$0xff]
  %v5430 = vld [vmem:[#allocation2 + $0x628] sm:$0xff]
  %v5431 = vld [vmem:[#allocation2 + $0x638] sm:$0xff]
  %v5432 = vld [vmem:[#allocation2 + $0x640] sm:$0xff]
  %v5433 = vld [vmem:[#allocation2 + $0x648] sm:$0xff]
  %v5434 = vld [vmem:[#allocation2 + $0x650] sm:$0xff]
  %v5435 = vld [vmem:[#allocation2 + $0x658] sm:$0xff]
  %v5436 = vld [vmem:[#allocation2 + $0x668] sm:$0xff]
  %v5437 = vld [vmem:[#allocation2 + $0x670] sm:$0xff]
  %v5438 = vld [vmem:[#allocation2 + $0x678] sm:$0xff]
  %v5439 = vld [vmem:[#allocation2 + $0x680] sm:$0xff]
  %v5440 = vld [vmem:[#allocation2 + $0x688] sm:$0xff]
  %v5441 = vld [vmem:[#allocation2 + $0x698] sm:$0xff]
  %v5442 = vld [vmem:[#allocation2 + $0x6a0] sm:$0xff]
  %v5443 = vld [vmem:[#allocation2 + $0x6a8] sm:$0xff]
  %v5444 = vld [vmem:[#allocation2 + $0x6b0] sm:$0xff]
  %v5445 = vld [vmem:[#allocation2 + $0x6b8] sm:$0xff]
  %vm5446 = vmand %vm5001, %vm4725
  %vm5447 = vmand %vm5446, %vm4727
  %v5448 = vsel %vm5447, 1.0, 0.0
  %v5450 = vlaneseq
  %v5451 = vshrl.u32 %v5450, 7
  %v5452 = vsub.s32 0, %v5451
  %v5453 = vrot.slane %v5448, %v5452
  %v5454 = vlaneseq
  %v5455 = vshrl.u32 %v5454, 7
  %v5456 = vsub.s32 1, %v5455
  %v5457 = vrot.slane %v5448, %v5456
  %v5458 = vlaneseq
  %v5459 = vshrl.u32 %v5458, 7
  %v5460 = vsub.s32 2, %v5459
  %v5461 = vrot.slane %v5448, %v5460
  %v5462 = vlaneseq
  %v5463 = vshrl.u32 %v5462, 7
  %v5464 = vsub.s32 3, %v5463
  %v5465 = vrot.slane %v5448, %v5464
  %5466 = vrot.lane.b32.xlu0 %v5453, 1
  %v5467 = vpop.permute.xlu0 %5466
  %5468 = vrot.lane.b32.xlu0 %v5457, 1
  %v5469 = vpop.permute.xlu0 %5468
  %5470 = vrot.lane.b32.xlu0 %v5461, 1
  %v5471 = vpop.permute.xlu0 %5470
  %5472 = vrot.lane.b32.xlu0 %v5465, 1
  %v5473 = vpop.permute.xlu0 %5472
  %vm5474 = vcmask 7168
  %v5475 = vsel %vm5474, %v5467, %v5469
  %v5476 = vsel %vm5474, %v5469, %v5471
  %v5477 = vsel %vm5474, %v5471, %v5473
  %v5483 = vmul.f32 %v5416, %v5467
  %v5484 = vmul.f32 %v5417, %v5475
  %v5485 = vmul.f32 %v5418, %v5476
  %v5486 = vmul.f32 %v5419, %v5477
  %v5487 = vmul.f32 %v5420, %v5473
  %v5488 = vmul.f32 %v5421, %v5467
  %v5489 = vmul.f32 %v5422, %v5475
  %v5490 = vmul.f32 %v5423, %v5476
  %v5491 = vmul.f32 %v5424, %v5477
  %v5492 = vmul.f32 %v5425, %v5473
  %v5493 = vmul.f32 %v5426, %v5467
  %v5494 = vmul.f32 %v5427, %v5475
  %v5495 = vmul.f32 %v5428, %v5476
  %v5496 = vmul.f32 %v5429, %v5477
  %v5497 = vmul.f32 %v5430, %v5473
  %v5498 = vmul.f32 %v5431, %v5467
  %v5499 = vmul.f32 %v5432, %v5475
  %v5500 = vmul.f32 %v5433, %v5476
  %v5501 = vmul.f32 %v5434, %v5477
  %v5502 = vmul.f32 %v5435, %v5473
  %v5503 = vmul.f32 %v5436, %v5467
  %v5504 = vmul.f32 %v5437, %v5475
  %v5505 = vmul.f32 %v5438, %v5476
  %v5506 = vmul.f32 %v5439, %v5477
  %v5507 = vmul.f32 %v5440, %v5473
  %v5508 = vmul.f32 %v5441, %v5467
  %v5509 = vmul.f32 %v5442, %v5475
  %v5510 = vmul.f32 %v5443, %v5476
  %v5511 = vmul.f32 %v5444, %v5477
  %v5512 = vmul.f32 %v5445, %v5473
  %5543 = vrot.lane.b32.xlu0 %v5483, 110
  %v5544 = vpop.permute.xlu0 %5543
  %5545 = vrot.lane.b32.xlu0 %v5484, 110
  %v5546 = vpop.permute.xlu0 %5545
  %5547 = vrot.lane.b32.xlu0 %v5485, 110
  %v5548 = vpop.permute.xlu0 %5547
  %5549 = vrot.lane.b32.xlu0 %v5486, 110
  %v5550 = vpop.permute.xlu0 %5549
  %5551 = vrot.lane.b32.xlu0 %v5487, 110
  %v5552 = vpop.permute.xlu0 %5551
  %5553 = vrot.lane.b32.xlu0 %v5488, 110
  %v5554 = vpop.permute.xlu0 %5553
  %5555 = vrot.lane.b32.xlu0 %v5489, 110
  %v5556 = vpop.permute.xlu0 %5555
  %5557 = vrot.lane.b32.xlu0 %v5490, 110
  %v5558 = vpop.permute.xlu0 %5557
  %5559 = vrot.lane.b32.xlu0 %v5491, 110
  %v5560 = vpop.permute.xlu0 %5559
  %5561 = vrot.lane.b32.xlu0 %v5492, 110
  %v5562 = vpop.permute.xlu0 %5561
  %5563 = vrot.lane.b32.xlu0 %v5493, 110
  %v5564 = vpop.permute.xlu0 %5563
  %5565 = vrot.lane.b32.xlu0 %v5494, 110
  %v5566 = vpop.permute.xlu0 %5565
  %5567 = vrot.lane.b32.xlu0 %v5495, 110
  %v5568 = vpop.permute.xlu0 %5567
  %5569 = vrot.lane.b32.xlu0 %v5496, 110
  %v5570 = vpop.permute.xlu0 %5569
  %5571 = vrot.lane.b32.xlu0 %v5497, 110
  %v5572 = vpop.permute.xlu0 %5571
  %5573 = vrot.lane.b32.xlu0 %v5498, 110
  %v5574 = vpop.permute.xlu0 %5573
  %5575 = vrot.lane.b32.xlu0 %v5499, 110
  %v5576 = vpop.permute.xlu0 %5575
  %5577 = vrot.lane.b32.xlu0 %v5500, 110
  %v5578 = vpop.permute.xlu0 %5577
  %5579 = vrot.lane.b32.xlu0 %v5501, 110
  %v5580 = vpop.permute.xlu0 %5579
  %5581 = vrot.lane.b32.xlu0 %v5502, 110
  %v5582 = vpop.permute.xlu0 %5581
  %5583 = vrot.lane.b32.xlu0 %v5503, 110
  %v5584 = vpop.permute.xlu0 %5583
  %5585 = vrot.lane.b32.xlu0 %v5504, 110
  %v5586 = vpop.permute.xlu0 %5585
  %5587 = vrot.lane.b32.xlu0 %v5505, 110
  %v5588 = vpop.permute.xlu0 %5587
  %5589 = vrot.lane.b32.xlu0 %v5506, 110
  %v5590 = vpop.permute.xlu0 %5589
  %5591 = vrot.lane.b32.xlu0 %v5507, 110
  %v5592 = vpop.permute.xlu0 %5591
  %5593 = vrot.lane.b32.xlu0 %v5508, 110
  %v5594 = vpop.permute.xlu0 %5593
  %5595 = vrot.lane.b32.xlu0 %v5509, 110
  %v5596 = vpop.permute.xlu0 %5595
  %5597 = vrot.lane.b32.xlu0 %v5510, 110
  %v5598 = vpop.permute.xlu0 %5597
  %5599 = vrot.lane.b32.xlu0 %v5511, 110
  %v5600 = vpop.permute.xlu0 %5599
  %5601 = vrot.lane.b32.xlu0 %v5512, 110
  %v5602 = vpop.permute.xlu0 %5601
  %vm5603 = vcmask 900096
  %v5604 = vsel %vm5603, %v5544, %v5546
  %v5605 = vsel %vm5603, %v5546, %v5548
  %v5606 = vsel %vm5603, %v5548, %v5550
  %v5607 = vsel %vm5603, %v5550, %v5552
  %v5608 = vsel %vm5603, %v5554, %v5556
  %v5609 = vsel %vm5603, %v5556, %v5558
  %v5610 = vsel %vm5603, %v5558, %v5560
  %v5611 = vsel %vm5603, %v5560, %v5562
  %v5612 = vsel %vm5603, %v5564, %v5566
  %v5613 = vsel %vm5603, %v5566, %v5568
  %v5614 = vsel %vm5603, %v5568, %v5570
  %v5615 = vsel %vm5603, %v5570, %v5572
  %v5616 = vsel %vm5603, %v5574, %v5576
  %v5617 = vsel %vm5603, %v5576, %v5578
  %v5618 = vsel %vm5603, %v5578, %v5580
  %v5619 = vsel %vm5603, %v5580, %v5582
  %v5620 = vsel %vm5603, %v5584, %v5586
  %v5621 = vsel %vm5603, %v5586, %v5588
  %v5622 = vsel %vm5603, %v5588, %v5590
  %v5623 = vsel %vm5603, %v5590, %v5592
  %v5624 = vsel %vm5603, %v5594, %v5596
  %v5625 = vsel %vm5603, %v5596, %v5598
  %v5626 = vsel %vm5603, %v5598, %v5600
  %v5627 = vsel %vm5603, %v5600, %v5602
  %v5658 = vadd.f32 %v5386, %v5544
  %v5659 = vadd.f32 %v5387, %v5604
  %v5660 = vadd.f32 %v5388, %v5605
  %v5661 = vadd.f32 %v5389, %v5606
  %v5662 = vadd.f32 %v5390, %v5607
  %v5663 = vadd.f32 %v5391, %v5554
  %v5664 = vadd.f32 %v5392, %v5608
  %v5665 = vadd.f32 %v5393, %v5609
  %v5666 = vadd.f32 %v5394, %v5610
  %v5667 = vadd.f32 %v5395, %v5611
  %v5668 = vadd.f32 %v5396, %v5564
  %v5669 = vadd.f32 %v5397, %v5612
  %v5670 = vadd.f32 %v5398, %v5613
  %v5671 = vadd.f32 %v5399, %v5614
  %v5672 = vadd.f32 %v5400, %v5615
  %v5673 = vadd.f32 %v5401, %v5574
  %v5674 = vadd.f32 %v5402, %v5616
  %v5675 = vadd.f32 %v5403, %v5617
  %v5676 = vadd.f32 %v5404, %v5618
  %v5677 = vadd.f32 %v5405, %v5619
  %v5678 = vadd.f32 %v5406, %v5584
  %v5679 = vadd.f32 %v5407, %v5620
  %v5680 = vadd.f32 %v5408, %v5621
  %v5681 = vadd.f32 %v5409, %v5622
  %v5682 = vadd.f32 %v5410, %v5623
  %v5683 = vadd.f32 %v5411, %v5594
  %v5684 = vadd.f32 %v5412, %v5624
  %v5685 = vadd.f32 %v5413, %v5625
  %v5686 = vadd.f32 %v5414, %v5626
  %v5687 = vadd.f32 %v5415, %v5627
  %v5688 = vld [vmem:[#allocation2 + $0x6c8] sm:$0xff]
  %v5689 = vld [vmem:[#allocation2 + $0x6d0] sm:$0xff]
  %v5690 = vld [vmem:[#allocation2 + $0x6d8] sm:$0xff]
  %v5691 = vld [vmem:[#allocation2 + $0x6e0] sm:$0xff]
  %v5692 = vld [vmem:[#allocation2 + $0x6e8] sm:$0xff]
  %v5693 = vld [vmem:[#allocation2 + $0x6f8] sm:$0xff]
  %v5694 = vld [vmem:[#allocation2 + $0x700] sm:$0xff]
  %v5695 = vld [vmem:[#allocation2 + $0x708] sm:$0xff]
  %v5696 = vld [vmem:[#allocation2 + $0x710] sm:$0xff]
  %v5697 = vld [vmem:[#allocation2 + $0x718] sm:$0xff]
  %v5698 = vld [vmem:[#allocation2 + $0x728] sm:$0xff]
  %v5699 = vld [vmem:[#allocation2 + $0x730] sm:$0xff]
  %v5700 = vld [vmem:[#allocation2 + $0x738] sm:$0xff]
  %v5701 = vld [vmem:[#allocation2 + $0x740] sm:$0xff]
  %v5702 = vld [vmem:[#allocation2 + $0x748] sm:$0xff]
  %v5703 = vld [vmem:[#allocation2 + $0x758] sm:$0xff]
  %v5704 = vld [vmem:[#allocation2 + $0x760] sm:$0xff]
  %v5705 = vld [vmem:[#allocation2 + $0x768] sm:$0xff]
  %v5706 = vld [vmem:[#allocation2 + $0x770] sm:$0xff]
  %v5707 = vld [vmem:[#allocation2 + $0x778] sm:$0xff]
  %v5708 = vld [vmem:[#allocation2 + $0x788] sm:$0xff]
  %v5709 = vld [vmem:[#allocation2 + $0x790] sm:$0xff]
  %v5710 = vld [vmem:[#allocation2 + $0x798] sm:$0xff]
  %v5711 = vld [vmem:[#allocation2 + $0x7a0] sm:$0xff]
  %v5712 = vld [vmem:[#allocation2 + $0x7a8] sm:$0xff]
  %v5713 = vld [vmem:[#allocation2 + $0x7b8] sm:$0xff]
  %v5714 = vld [vmem:[#allocation2 + $0x7c0] sm:$0xff]
  %v5715 = vld [vmem:[#allocation2 + $0x7c8] sm:$0xff]
  %v5716 = vld [vmem:[#allocation2 + $0x7d0] sm:$0xff]
  %v5717 = vld [vmem:[#allocation2 + $0x7d8] sm:$0xff]
  %v5718 = vadd.s32 %v4284, 1
  %vm5719 = vcmp.ge.s32.totalorder %v5718, 0
  %vm5720 = vcmp.lt.s32.totalorder %v5718, 16
  %vm5721 = vmand %vm5719, %vm5720
  %vm5722 = vmand %vm5721, %vm4321
  %vm5723 = vmand %vm5722, %vm4323
  %v5724 = vsel %vm5723, 1.0, 0.0
  %v5726 = vlaneseq
  %v5727 = vshrl.u32 %v5726, 7
  %v5728 = vsub.s32 0, %v5727
  %v5729 = vrot.slane %v5724, %v5728
  %v5730 = vlaneseq
  %v5731 = vshrl.u32 %v5730, 7
  %v5732 = vsub.s32 1, %v5731
  %v5733 = vrot.slane %v5724, %v5732
  %v5734 = vlaneseq
  %v5735 = vshrl.u32 %v5734, 7
  %v5736 = vsub.s32 2, %v5735
  %v5737 = vrot.slane %v5724, %v5736
  %v5738 = vlaneseq
  %v5739 = vshrl.u32 %v5738, 7
  %v5740 = vsub.s32 3, %v5739
  %v5741 = vrot.slane %v5724, %v5740
  %5742 = vrot.lane.b32.xlu0 %v5729, 15
  %v5743 = vpop.permute.xlu0 %5742
  %5744 = vrot.lane.b32.xlu0 %v5733, 15
  %v5745 = vpop.permute.xlu0 %5744
  %5746 = vrot.lane.b32.xlu0 %v5737, 15
  %v5747 = vpop.permute.xlu0 %5746
  %5748 = vrot.lane.b32.xlu0 %v5741, 15
  %v5749 = vpop.permute.xlu0 %5748
  %vm5750 = vcmask 121856
  %v5751 = vsel %vm5750, %v5743, %v5745
  %v5752 = vsel %vm5750, %v5745, %v5747
  %v5753 = vsel %vm5750, %v5747, %v5749
  %v5759 = vmul.f32 %v5688, %v5743
  %v5760 = vmul.f32 %v5689, %v5751
  %v5761 = vmul.f32 %v5690, %v5752
  %v5762 = vmul.f32 %v5691, %v5753
  %v5763 = vmul.f32 %v5692, %v5749
  %v5764 = vmul.f32 %v5693, %v5743
  %v5765 = vmul.f32 %v5694, %v5751
  %v5766 = vmul.f32 %v5695, %v5752
  %v5767 = vmul.f32 %v5696, %v5753
  %v5768 = vmul.f32 %v5697, %v5749
  %v5769 = vmul.f32 %v5698, %v5743
  %v5770 = vmul.f32 %v5699, %v5751
  %v5771 = vmul.f32 %v5700, %v5752
  %v5772 = vmul.f32 %v5701, %v5753
  %v5773 = vmul.f32 %v5702, %v5749
  %v5774 = vmul.f32 %v5703, %v5743
  %v5775 = vmul.f32 %v5704, %v5751
  %v5776 = vmul.f32 %v5705, %v5752
  %v5777 = vmul.f32 %v5706, %v5753
  %v5778 = vmul.f32 %v5707, %v5749
  %v5779 = vmul.f32 %v5708, %v5743
  %v5780 = vmul.f32 %v5709, %v5751
  %v5781 = vmul.f32 %v5710, %v5752
  %v5782 = vmul.f32 %v5711, %v5753
  %v5783 = vmul.f32 %v5712, %v5749
  %v5784 = vmul.f32 %v5713, %v5743
  %v5785 = vmul.f32 %v5714, %v5751
  %v5786 = vmul.f32 %v5715, %v5752
  %v5787 = vmul.f32 %v5716, %v5753
  %v5788 = vmul.f32 %v5717, %v5749
  %5819 = vrot.lane.b32.xlu0 %v5759, 96
  %v5820 = vpop.permute.xlu0 %5819
  %5821 = vrot.lane.b32.xlu0 %v5760, 96
  %v5822 = vpop.permute.xlu0 %5821
  %5823 = vrot.lane.b32.xlu0 %v5761, 96
  %v5824 = vpop.permute.xlu0 %5823
  %5825 = vrot.lane.b32.xlu0 %v5762, 96
  %v5826 = vpop.permute.xlu0 %5825
  %5827 = vrot.lane.b32.xlu0 %v5763, 96
  %v5828 = vpop.permute.xlu0 %5827
  %5829 = vrot.lane.b32.xlu0 %v5764, 96
  %v5830 = vpop.permute.xlu0 %5829
  %5831 = vrot.lane.b32.xlu0 %v5765, 96
  %v5832 = vpop.permute.xlu0 %5831
  %5833 = vrot.lane.b32.xlu0 %v5766, 96
  %v5834 = vpop.permute.xlu0 %5833
  %5835 = vrot.lane.b32.xlu0 %v5767, 96
  %v5836 = vpop.permute.xlu0 %5835
  %5837 = vrot.lane.b32.xlu0 %v5768, 96
  %v5838 = vpop.permute.xlu0 %5837
  %5839 = vrot.lane.b32.xlu0 %v5769, 96
  %v5840 = vpop.permute.xlu0 %5839
  %5841 = vrot.lane.b32.xlu0 %v5770, 96
  %v5842 = vpop.permute.xlu0 %5841
  %5843 = vrot.lane.b32.xlu0 %v5771, 96
  %v5844 = vpop.permute.xlu0 %5843
  %5845 = vrot.lane.b32.xlu0 %v5772, 96
  %v5846 = vpop.permute.xlu0 %5845
  %5847 = vrot.lane.b32.xlu0 %v5773, 96
  %v5848 = vpop.permute.xlu0 %5847
  %5849 = vrot.lane.b32.xlu0 %v5774, 96
  %v5850 = vpop.permute.xlu0 %5849
  %5851 = vrot.lane.b32.xlu0 %v5775, 96
  %v5852 = vpop.permute.xlu0 %5851
  %5853 = vrot.lane.b32.xlu0 %v5776, 96
  %v5854 = vpop.permute.xlu0 %5853
  %5855 = vrot.lane.b32.xlu0 %v5777, 96
  %v5856 = vpop.permute.xlu0 %5855
  %5857 = vrot.lane.b32.xlu0 %v5778, 96
  %v5858 = vpop.permute.xlu0 %5857
  %5859 = vrot.lane.b32.xlu0 %v5779, 96
  %v5860 = vpop.permute.xlu0 %5859
  %5861 = vrot.lane.b32.xlu0 %v5780, 96
  %v5862 = vpop.permute.xlu0 %5861
  %5863 = vrot.lane.b32.xlu0 %v5781, 96
  %v5864 = vpop.permute.xlu0 %5863
  %5865 = vrot.lane.b32.xlu0 %v5782, 96
  %v5866 = vpop.permute.xlu0 %5865
  %5867 = vrot.lane.b32.xlu0 %v5783, 96
  %v5868 = vpop.permute.xlu0 %5867
  %5869 = vrot.lane.b32.xlu0 %v5784, 96
  %v5870 = vpop.permute.xlu0 %5869
  %5871 = vrot.lane.b32.xlu0 %v5785, 96
  %v5872 = vpop.permute.xlu0 %5871
  %5873 = vrot.lane.b32.xlu0 %v5786, 96
  %v5874 = vpop.permute.xlu0 %5873
  %5875 = vrot.lane.b32.xlu0 %v5787, 96
  %v5876 = vpop.permute.xlu0 %5875
  %5877 = vrot.lane.b32.xlu0 %v5788, 96
  %v5878 = vpop.permute.xlu0 %5877
  %vm5879 = vcmask 785408
  %v5880 = vsel %vm5879, %v5820, %v5822
  %v5881 = vsel %vm5879, %v5822, %v5824
  %v5882 = vsel %vm5879, %v5824, %v5826
  %v5883 = vsel %vm5879, %v5826, %v5828
  %v5884 = vsel %vm5879, %v5830, %v5832
  %v5885 = vsel %vm5879, %v5832, %v5834
  %v5886 = vsel %vm5879, %v5834, %v5836
  %v5887 = vsel %vm5879, %v5836, %v5838
  %v5888 = vsel %vm5879, %v5840, %v5842
  %v5889 = vsel %vm5879, %v5842, %v5844
  %v5890 = vsel %vm5879, %v5844, %v5846
  %v5891 = vsel %vm5879, %v5846, %v5848
  %v5892 = vsel %vm5879, %v5850, %v5852
  %v5893 = vsel %vm5879, %v5852, %v5854
  %v5894 = vsel %vm5879, %v5854, %v5856
  %v5895 = vsel %vm5879, %v5856, %v5858
  %v5896 = vsel %vm5879, %v5860, %v5862
  %v5897 = vsel %vm5879, %v5862, %v5864
  %v5898 = vsel %vm5879, %v5864, %v5866
  %v5899 = vsel %vm5879, %v5866, %v5868
  %v5900 = vsel %vm5879, %v5870, %v5872
  %v5901 = vsel %vm5879, %v5872, %v5874
  %v5902 = vsel %vm5879, %v5874, %v5876
  %v5903 = vsel %vm5879, %v5876, %v5878
  %v5934 = vadd.f32 %v5658, %v5820
  %v5935 = vadd.f32 %v5659, %v5880
  %v5936 = vadd.f32 %v5660, %v5881
  %v5937 = vadd.f32 %v5661, %v5882
  %v5938 = vadd.f32 %v5662, %v5883
  %v5939 = vadd.f32 %v5663, %v5830
  %v5940 = vadd.f32 %v5664, %v5884
  %v5941 = vadd.f32 %v5665, %v5885
  %v5942 = vadd.f32 %v5666, %v5886
  %v5943 = vadd.f32 %v5667, %v5887
  %v5944 = vadd.f32 %v5668, %v5840
  %v5945 = vadd.f32 %v5669, %v5888
  %v5946 = vadd.f32 %v5670, %v5889
  %v5947 = vadd.f32 %v5671, %v5890
  %v5948 = vadd.f32 %v5672, %v5891
  %v5949 = vadd.f32 %v5673, %v5850
  %v5950 = vadd.f32 %v5674, %v5892
  %v5951 = vadd.f32 %v5675, %v5893
  %v5952 = vadd.f32 %v5676, %v5894
  %v5953 = vadd.f32 %v5677, %v5895
  %v5954 = vadd.f32 %v5678, %v5860
  %v5955 = vadd.f32 %v5679, %v5896
  %v5956 = vadd.f32 %v5680, %v5897
  %v5957 = vadd.f32 %v5681, %v5898
  %v5958 = vadd.f32 %v5682, %v5899
  %v5959 = vadd.f32 %v5683, %v5870
  %v5960 = vadd.f32 %v5684, %v5900
  %v5961 = vadd.f32 %v5685, %v5901
  %v5962 = vadd.f32 %v5686, %v5902
  %v5963 = vadd.f32 %v5687, %v5903
  %v5964 = vld [vmem:[#allocation2 + $0x7e8] sm:$0xff]
  %v5965 = vld [vmem:[#allocation2 + $0x7f0] sm:$0xff]
  %v5966 = vld [vmem:[#allocation2 + $0x7f8] sm:$0xff]
  %v5967 = vld [vmem:[#allocation2 + $0x800] sm:$0xff]
  %v5968 = vld [vmem:[#allocation2 + $0x808] sm:$0xff]
  %v5969 = vld [vmem:[#allocation2 + $0x818] sm:$0xff]
  %v5970 = vld [vmem:[#allocation2 + $0x820] sm:$0xff]
  %v5971 = vld [vmem:[#allocation2 + $0x828] sm:$0xff]
  %v5972 = vld [vmem:[#allocation2 + $0x830] sm:$0xff]
  %v5973 = vld [vmem:[#allocation2 + $0x838] sm:$0xff]
  %v5974 = vld [vmem:[#allocation2 + $0x848] sm:$0xff]
  %v5975 = vld [vmem:[#allocation2 + $0x850] sm:$0xff]
  %v5976 = vld [vmem:[#allocation2 + $0x858] sm:$0xff]
  %v5977 = vld [vmem:[#allocation2 + $0x860] sm:$0xff]
  %v5978 = vld [vmem:[#allocation2 + $0x868] sm:$0xff]
  %v5979 = vld [vmem:[#allocation2 + $0x878] sm:$0xff]
  %v5980 = vld [vmem:[#allocation2 + $0x880] sm:$0xff]
  %v5981 = vld [vmem:[#allocation2 + $0x888] sm:$0xff]
  %v5982 = vld [vmem:[#allocation2 + $0x890] sm:$0xff]
  %v5983 = vld [vmem:[#allocation2 + $0x898] sm:$0xff]
  %v5984 = vld [vmem:[#allocation2 + $0x8a8] sm:$0xff]
  %v5985 = vld [vmem:[#allocation2 + $0x8b0] sm:$0xff]
  %v5986 = vld [vmem:[#allocation2 + $0x8b8] sm:$0xff]
  %v5987 = vld [vmem:[#allocation2 + $0x8c0] sm:$0xff]
  %v5988 = vld [vmem:[#allocation2 + $0x8c8] sm:$0xff]
  %v5989 = vld [vmem:[#allocation2 + $0x8d8] sm:$0xff]
  %v5990 = vld [vmem:[#allocation2 + $0x8e0] sm:$0xff]
  %v5991 = vld [vmem:[#allocation2 + $0x8e8] sm:$0xff]
  %v5992 = vld [vmem:[#allocation2 + $0x8f0] sm:$0xff]
  %v5993 = vld [vmem:[#allocation2 + $0x8f8] sm:$0xff]
  %vm5994 = vmand %vm5721, %vm4450
  %vm5995 = vmand %vm5994, %vm4452
  %v5996 = vsel %vm5995, 1.0, 0.0
  %v5998 = vlaneseq
  %v5999 = vshrl.u32 %v5998, 7
  %v6000 = vsub.s32 0, %v5999
  %v6001 = vrot.slane %v5996, %v6000
  %v6002 = vlaneseq
  %v6003 = vshrl.u32 %v6002, 7
  %v6004 = vsub.s32 1, %v6003
  %v6005 = vrot.slane %v5996, %v6004
  %v6006 = vlaneseq
  %v6007 = vshrl.u32 %v6006, 7
  %v6008 = vsub.s32 2, %v6007
  %v6009 = vrot.slane %v5996, %v6008
  %v6010 = vlaneseq
  %v6011 = vshrl.u32 %v6010, 7
  %v6012 = vsub.s32 3, %v6011
  %v6013 = vrot.slane %v5996, %v6012
  %6014 = vrot.lane.b32.xlu0 %v6001, 16
  %v6015 = vpop.permute.xlu0 %6014
  %6016 = vrot.lane.b32.xlu0 %v6005, 16
  %v6017 = vpop.permute.xlu0 %6016
  %6018 = vrot.lane.b32.xlu0 %v6009, 16
  %v6019 = vpop.permute.xlu0 %6018
  %6020 = vrot.lane.b32.xlu0 %v6013, 16
  %v6021 = vpop.permute.xlu0 %6020
  %v6022 = vsel %vm1138, %v6015, %v6017
  %v6023 = vsel %vm1138, %v6017, %v6019
  %v6024 = vsel %vm1138, %v6019, %v6021
  %v6030 = vmul.f32 %v5964, %v6015
  %v6031 = vmul.f32 %v5965, %v6022
  %v6032 = vmul.f32 %v5966, %v6023
  %v6033 = vmul.f32 %v5967, %v6024
  %v6034 = vmul.f32 %v5968, %v6021
  %v6035 = vmul.f32 %v5969, %v6015
  %v6036 = vmul.f32 %v5970, %v6022
  %v6037 = vmul.f32 %v5971, %v6023
  %v6038 = vmul.f32 %v5972, %v6024
  %v6039 = vmul.f32 %v5973, %v6021
  %v6040 = vmul.f32 %v5974, %v6015
  %v6041 = vmul.f32 %v5975, %v6022
  %v6042 = vmul.f32 %v5976, %v6023
  %v6043 = vmul.f32 %v5977, %v6024
  %v6044 = vmul.f32 %v5978, %v6021
  %v6045 = vmul.f32 %v5979, %v6015
  %v6046 = vmul.f32 %v5980, %v6022
  %v6047 = vmul.f32 %v5981, %v6023
  %v6048 = vmul.f32 %v5982, %v6024
  %v6049 = vmul.f32 %v5983, %v6021
  %v6050 = vmul.f32 %v5984, %v6015
  %v6051 = vmul.f32 %v5985, %v6022
  %v6052 = vmul.f32 %v5986, %v6023
  %v6053 = vmul.f32 %v5987, %v6024
  %v6054 = vmul.f32 %v5988, %v6021
  %v6055 = vmul.f32 %v5989, %v6015
  %v6056 = vmul.f32 %v5990, %v6022
  %v6057 = vmul.f32 %v5991, %v6023
  %v6058 = vmul.f32 %v5992, %v6024
  %v6059 = vmul.f32 %v5993, %v6021
  %6090 = vrot.lane.b32.xlu0 %v6030, 95
  %v6091 = vpop.permute.xlu0 %6090
  %6092 = vrot.lane.b32.xlu0 %v6031, 95
  %v6093 = vpop.permute.xlu0 %6092
  %6094 = vrot.lane.b32.xlu0 %v6032, 95
  %v6095 = vpop.permute.xlu0 %6094
  %6096 = vrot.lane.b32.xlu0 %v6033, 95
  %v6097 = vpop.permute.xlu0 %6096
  %6098 = vrot.lane.b32.xlu0 %v6034, 95
  %v6099 = vpop.permute.xlu0 %6098
  %6100 = vrot.lane.b32.xlu0 %v6035, 95
  %v6101 = vpop.permute.xlu0 %6100
  %6102 = vrot.lane.b32.xlu0 %v6036, 95
  %v6103 = vpop.permute.xlu0 %6102
  %6104 = vrot.lane.b32.xlu0 %v6037, 95
  %v6105 = vpop.permute.xlu0 %6104
  %6106 = vrot.lane.b32.xlu0 %v6038, 95
  %v6107 = vpop.permute.xlu0 %6106
  %6108 = vrot.lane.b32.xlu0 %v6039, 95
  %v6109 = vpop.permute.xlu0 %6108
  %6110 = vrot.lane.b32.xlu0 %v6040, 95
  %v6111 = vpop.permute.xlu0 %6110
  %6112 = vrot.lane.b32.xlu0 %v6041, 95
  %v6113 = vpop.permute.xlu0 %6112
  %6114 = vrot.lane.b32.xlu0 %v6042, 95
  %v6115 = vpop.permute.xlu0 %6114
  %6116 = vrot.lane.b32.xlu0 %v6043, 95
  %v6117 = vpop.permute.xlu0 %6116
  %6118 = vrot.lane.b32.xlu0 %v6044, 95
  %v6119 = vpop.permute.xlu0 %6118
  %6120 = vrot.lane.b32.xlu0 %v6045, 95
  %v6121 = vpop.permute.xlu0 %6120
  %6122 = vrot.lane.b32.xlu0 %v6046, 95
  %v6123 = vpop.permute.xlu0 %6122
  %6124 = vrot.lane.b32.xlu0 %v6047, 95
  %v6125 = vpop.permute.xlu0 %6124
  %6126 = vrot.lane.b32.xlu0 %v6048, 95
  %v6127 = vpop.permute.xlu0 %6126
  %6128 = vrot.lane.b32.xlu0 %v6049, 95
  %v6129 = vpop.permute.xlu0 %6128
  %6130 = vrot.lane.b32.xlu0 %v6050, 95
  %v6131 = vpop.permute.xlu0 %6130
  %6132 = vrot.lane.b32.xlu0 %v6051, 95
  %v6133 = vpop.permute.xlu0 %6132
  %6134 = vrot.lane.b32.xlu0 %v6052, 95
  %v6135 = vpop.permute.xlu0 %6134
  %6136 = vrot.lane.b32.xlu0 %v6053, 95
  %v6137 = vpop.permute.xlu0 %6136
  %6138 = vrot.lane.b32.xlu0 %v6054, 95
  %v6139 = vpop.permute.xlu0 %6138
  %6140 = vrot.lane.b32.xlu0 %v6055, 95
  %v6141 = vpop.permute.xlu0 %6140
  %6142 = vrot.lane.b32.xlu0 %v6056, 95
  %v6143 = vpop.permute.xlu0 %6142
  %6144 = vrot.lane.b32.xlu0 %v6057, 95
  %v6145 = vpop.permute.xlu0 %6144
  %6146 = vrot.lane.b32.xlu0 %v6058, 95
  %v6147 = vpop.permute.xlu0 %6146
  %6148 = vrot.lane.b32.xlu0 %v6059, 95
  %v6149 = vpop.permute.xlu0 %6148
  %vm6150 = vcmask 777216
  %v6151 = vsel %vm6150, %v6091, %v6093
  %v6152 = vsel %vm6150, %v6093, %v6095
  %v6153 = vsel %vm6150, %v6095, %v6097
  %v6154 = vsel %vm6150, %v6097, %v6099
  %v6155 = vsel %vm6150, %v6101, %v6103
  %v6156 = vsel %vm6150, %v6103, %v6105
  %v6157 = vsel %vm6150, %v6105, %v6107
  %v6158 = vsel %vm6150, %v6107, %v6109
  %v6159 = vsel %vm6150, %v6111, %v6113
  %v6160 = vsel %vm6150, %v6113, %v6115
  %v6161 = vsel %vm6150, %v6115, %v6117
  %v6162 = vsel %vm6150, %v6117, %v6119
  %v6163 = vsel %vm6150, %v6121, %v6123
  %v6164 = vsel %vm6150, %v6123, %v6125
  %v6165 = vsel %vm6150, %v6125, %v6127
  %v6166 = vsel %vm6150, %v6127, %v6129
  %v6167 = vsel %vm6150, %v6131, %v6133
  %v6168 = vsel %vm6150, %v6133, %v6135
  %v6169 = vsel %vm6150, %v6135, %v6137
  %v6170 = vsel %vm6150, %v6137, %v6139
  %v6171 = vsel %vm6150, %v6141, %v6143
  %v6172 = vsel %vm6150, %v6143, %v6145
  %v6173 = vsel %vm6150, %v6145, %v6147
  %v6174 = vsel %vm6150, %v6147, %v6149
  %v6205 = vadd.f32 %v5934, %v6091
  %v6206 = vadd.f32 %v5935, %v6151
  %v6207 = vadd.f32 %v5936, %v6152
  %v6208 = vadd.f32 %v5937, %v6153
  %v6209 = vadd.f32 %v5938, %v6154
  %v6210 = vadd.f32 %v5939, %v6101
  %v6211 = vadd.f32 %v5940, %v6155
  %v6212 = vadd.f32 %v5941, %v6156
  %v6213 = vadd.f32 %v5942, %v6157
  %v6214 = vadd.f32 %v5943, %v6158
  %v6215 = vadd.f32 %v5944, %v6111
  %v6216 = vadd.f32 %v5945, %v6159
  %v6217 = vadd.f32 %v5946, %v6160
  %v6218 = vadd.f32 %v5947, %v6161
  %v6219 = vadd.f32 %v5948, %v6162
  %v6220 = vadd.f32 %v5949, %v6121
  %v6221 = vadd.f32 %v5950, %v6163
  %v6222 = vadd.f32 %v5951, %v6164
  %v6223 = vadd.f32 %v5952, %v6165
  %v6224 = vadd.f32 %v5953, %v6166
  %v6225 = vadd.f32 %v5954, %v6131
  %v6226 = vadd.f32 %v5955, %v6167
  %v6227 = vadd.f32 %v5956, %v6168
  %v6228 = vadd.f32 %v5957, %v6169
  %v6229 = vadd.f32 %v5958, %v6170
  %v6230 = vadd.f32 %v5959, %v6141
  %v6231 = vadd.f32 %v5960, %v6171
  %v6232 = vadd.f32 %v5961, %v6172
  %v6233 = vadd.f32 %v5962, %v6173
  %v6234 = vadd.f32 %v5963, %v6174
  %v6235 = vld [vmem:[#allocation2 + $0x908] sm:$0xff]
  %v6236 = vld [vmem:[#allocation2 + $0x910] sm:$0xff]
  %v6237 = vld [vmem:[#allocation2 + $0x918] sm:$0xff]
  %v6238 = vld [vmem:[#allocation2 + $0x920] sm:$0xff]
  %v6239 = vld [vmem:[#allocation2 + $0x928] sm:$0xff]
  %v6240 = vld [vmem:[#allocation2 + $0x938] sm:$0xff]
  %v6241 = vld [vmem:[#allocation2 + $0x940] sm:$0xff]
  %v6242 = vld [vmem:[#allocation2 + $0x948] sm:$0xff]
  %v6243 = vld [vmem:[#allocation2 + $0x950] sm:$0xff]
  %v6244 = vld [vmem:[#allocation2 + $0x958] sm:$0xff]
  %v6245 = vld [vmem:[#allocation2 + $0x968] sm:$0xff]
  %v6246 = vld [vmem:[#allocation2 + $0x970] sm:$0xff]
  %v6247 = vld [vmem:[#allocation2 + $0x978] sm:$0xff]
  %v6248 = vld [vmem:[#allocation2 + $0x980] sm:$0xff]
  %v6249 = vld [vmem:[#allocation2 + $0x988] sm:$0xff]
  %v6250 = vld [vmem:[#allocation2 + $0x998] sm:$0xff]
  %v6251 = vld [vmem:[#allocation2 + $0x9a0] sm:$0xff]
  %v6252 = vld [vmem:[#allocation2 + $0x9a8] sm:$0xff]
  %v6253 = vld [vmem:[#allocation2 + $0x9b0] sm:$0xff]
  %v6254 = vld [vmem:[#allocation2 + $0x9b8] sm:$0xff]
  %v6255 = vld [vmem:[#allocation2 + $0x9c8] sm:$0xff]
  %v6256 = vld [vmem:[#allocation2 + $0x9d0] sm:$0xff]
  %v6257 = vld [vmem:[#allocation2 + $0x9d8] sm:$0xff]
  %v6258 = vld [vmem:[#allocation2 + $0x9e0] sm:$0xff]
  %v6259 = vld [vmem:[#allocation2 + $0x9e8] sm:$0xff]
  %v6260 = vld [vmem:[#allocation2 + $0x9f8] sm:$0xff]
  %v6261 = vld [vmem:[#allocation2 + $0xa00] sm:$0xff]
  %v6262 = vld [vmem:[#allocation2 + $0xa08] sm:$0xff]
  %v6263 = vld [vmem:[#allocation2 + $0xa10] sm:$0xff]
  %v6264 = vld [vmem:[#allocation2 + $0xa18] sm:$0xff]
  %vm6265 = vmand %vm5721, %vm4725
  %vm6266 = vmand %vm6265, %vm4727
  %v6267 = vsel %vm6266, 1.0, 0.0
  %v6269 = vlaneseq
  %v6270 = vshrl.u32 %v6269, 7
  %v6271 = vsub.s32 0, %v6270
  %v6272 = vrot.slane %v6267, %v6271
  %v6273 = vlaneseq
  %v6274 = vshrl.u32 %v6273, 7
  %v6275 = vsub.s32 1, %v6274
  %v6276 = vrot.slane %v6267, %v6275
  %v6277 = vlaneseq
  %v6278 = vshrl.u32 %v6277, 7
  %v6279 = vsub.s32 2, %v6278
  %v6280 = vrot.slane %v6267, %v6279
  %v6281 = vlaneseq
  %v6282 = vshrl.u32 %v6281, 7
  %v6283 = vsub.s32 3, %v6282
  %v6284 = vrot.slane %v6267, %v6283
  %6285 = vrot.lane.b32.xlu0 %v6272, 17
  %v6286 = vpop.permute.xlu0 %6285
  %6287 = vrot.lane.b32.xlu0 %v6276, 17
  %v6288 = vpop.permute.xlu0 %6287
  %6289 = vrot.lane.b32.xlu0 %v6280, 17
  %v6290 = vpop.permute.xlu0 %6289
  %6291 = vrot.lane.b32.xlu0 %v6284, 17
  %v6292 = vpop.permute.xlu0 %6291
  %vm6293 = vcmask 138240
  %v6294 = vsel %vm6293, %v6286, %v6288
  %v6295 = vsel %vm6293, %v6288, %v6290
  %v6296 = vsel %vm6293, %v6290, %v6292
  %v6302 = vmul.f32 %v6235, %v6286
  %v6303 = vmul.f32 %v6236, %v6294
  %v6304 = vmul.f32 %v6237, %v6295
  %v6305 = vmul.f32 %v6238, %v6296
  %v6306 = vmul.f32 %v6239, %v6292
  %v6307 = vmul.f32 %v6240, %v6286
  %v6308 = vmul.f32 %v6241, %v6294
  %v6309 = vmul.f32 %v6242, %v6295
  %v6310 = vmul.f32 %v6243, %v6296
  %v6311 = vmul.f32 %v6244, %v6292
  %v6312 = vmul.f32 %v6245, %v6286
  %v6313 = vmul.f32 %v6246, %v6294
  %v6314 = vmul.f32 %v6247, %v6295
  %v6315 = vmul.f32 %v6248, %v6296
  %v6316 = vmul.f32 %v6249, %v6292
  %v6317 = vmul.f32 %v6250, %v6286
  %v6318 = vmul.f32 %v6251, %v6294
  %v6319 = vmul.f32 %v6252, %v6295
  %v6320 = vmul.f32 %v6253, %v6296
  %v6321 = vmul.f32 %v6254, %v6292
  %v6322 = vmul.f32 %v6255, %v6286
  %v6323 = vmul.f32 %v6256, %v6294
  %v6324 = vmul.f32 %v6257, %v6295
  %v6325 = vmul.f32 %v6258, %v6296
  %v6326 = vmul.f32 %v6259, %v6292
  %v6327 = vmul.f32 %v6260, %v6286
  %v6328 = vmul.f32 %v6261, %v6294
  %v6329 = vmul.f32 %v6262, %v6295
  %v6330 = vmul.f32 %v6263, %v6296
  %v6331 = vmul.f32 %v6264, %v6292
  %6362 = vrot.lane.b32.xlu0 %v6302, 94
  %v6363 = vpop.permute.xlu0 %6362
  %6364 = vrot.lane.b32.xlu0 %v6303, 94
  %v6365 = vpop.permute.xlu0 %6364
  %6366 = vrot.lane.b32.xlu0 %v6304, 94
  %v6367 = vpop.permute.xlu0 %6366
  %6368 = vrot.lane.b32.xlu0 %v6305, 94
  %v6369 = vpop.permute.xlu0 %6368
  %6370 = vrot.lane.b32.xlu0 %v6306, 94
  %v6371 = vpop.permute.xlu0 %6370
  %6372 = vrot.lane.b32.xlu0 %v6307, 94
  %v6373 = vpop.permute.xlu0 %6372
  %6374 = vrot.lane.b32.xlu0 %v6308, 94
  %v6375 = vpop.permute.xlu0 %6374
  %6376 = vrot.lane.b32.xlu0 %v6309, 94
  %v6377 = vpop.permute.xlu0 %6376
  %6378 = vrot.lane.b32.xlu0 %v6310, 94
  %v6379 = vpop.permute.xlu0 %6378
  %6380 = vrot.lane.b32.xlu0 %v6311, 94
  %v6381 = vpop.permute.xlu0 %6380
  %6382 = vrot.lane.b32.xlu0 %v6312, 94
  %v6383 = vpop.permute.xlu0 %6382
  %6384 = vrot.lane.b32.xlu0 %v6313, 94
  %v6385 = vpop.permute.xlu0 %6384
  %6386 = vrot.lane.b32.xlu0 %v6314, 94
  %v6387 = vpop.permute.xlu0 %6386
  %6388 = vrot.lane.b32.xlu0 %v6315, 94
  %v6389 = vpop.permute.xlu0 %6388
  %6390 = vrot.lane.b32.xlu0 %v6316, 94
  %v6391 = vpop.permute.xlu0 %6390
  %6392 = vrot.lane.b32.xlu0 %v6317, 94
  %v6393 = vpop.permute.xlu0 %6392
  %6394 = vrot.lane.b32.xlu0 %v6318, 94
  %v6395 = vpop.permute.xlu0 %6394
  %6396 = vrot.lane.b32.xlu0 %v6319, 94
  %v6397 = vpop.permute.xlu0 %6396
  %6398 = vrot.lane.b32.xlu0 %v6320, 94
  %v6399 = vpop.permute.xlu0 %6398
  %6400 = vrot.lane.b32.xlu0 %v6321, 94
  %v6401 = vpop.permute.xlu0 %6400
  %6402 = vrot.lane.b32.xlu0 %v6322, 94
  %v6403 = vpop.permute.xlu0 %6402
  %6404 = vrot.lane.b32.xlu0 %v6323, 94
  %v6405 = vpop.permute.xlu0 %6404
  %6406 = vrot.lane.b32.xlu0 %v6324, 94
  %v6407 = vpop.permute.xlu0 %6406
  %6408 = vrot.lane.b32.xlu0 %v6325, 94
  %v6409 = vpop.permute.xlu0 %6408
  %6410 = vrot.lane.b32.xlu0 %v6326, 94
  %v6411 = vpop.permute.xlu0 %6410
  %6412 = vrot.lane.b32.xlu0 %v6327, 94
  %v6413 = vpop.permute.xlu0 %6412
  %6414 = vrot.lane.b32.xlu0 %v6328, 94
  %v6415 = vpop.permute.xlu0 %6414
  %6416 = vrot.lane.b32.xlu0 %v6329, 94
  %v6417 = vpop.permute.xlu0 %6416
  %6418 = vrot.lane.b32.xlu0 %v6330, 94
  %v6419 = vpop.permute.xlu0 %6418
  %6420 = vrot.lane.b32.xlu0 %v6331, 94
  %v6421 = vpop.permute.xlu0 %6420
  %vm6422 = vcmask 769024
  %v6423 = vsel %vm6422, %v6363, %v6365
  %v6424 = vsel %vm6422, %v6365, %v6367
  %v6425 = vsel %vm6422, %v6367, %v6369
  %v6426 = vsel %vm6422, %v6369, %v6371
  %v6427 = vsel %vm6422, %v6373, %v6375
  %v6428 = vsel %vm6422, %v6375, %v6377
  %v6429 = vsel %vm6422, %v6377, %v6379
  %v6430 = vsel %vm6422, %v6379, %v6381
  %v6431 = vsel %vm6422, %v6383, %v6385
  %v6432 = vsel %vm6422, %v6385, %v6387
  %v6433 = vsel %vm6422, %v6387, %v6389
  %v6434 = vsel %vm6422, %v6389, %v6391
  %v6435 = vsel %vm6422, %v6393, %v6395
  %v6436 = vsel %vm6422, %v6395, %v6397
  %v6437 = vsel %vm6422, %v6397, %v6399
  %v6438 = vsel %vm6422, %v6399, %v6401
  %v6439 = vsel %vm6422, %v6403, %v6405
  %v6440 = vsel %vm6422, %v6405, %v6407
  %v6441 = vsel %vm6422, %v6407, %v6409
  %v6442 = vsel %vm6422, %v6409, %v6411
  %v6443 = vsel %vm6422, %v6413, %v6415
  %v6444 = vsel %vm6422, %v6415, %v6417
  %v6445 = vsel %vm6422, %v6417, %v6419
  %v6446 = vsel %vm6422, %v6419, %v6421
  %v6477 = vadd.f32 %v6205, %v6363
  %v6478 = vadd.f32 %v6206, %v6423
  %v6479 = vadd.f32 %v6207, %v6424
  %v6480 = vadd.f32 %v6208, %v6425
  %v6481 = vadd.f32 %v6209, %v6426
  %v6482 = vadd.f32 %v6210, %v6373
  %v6483 = vadd.f32 %v6211, %v6427
  %v6484 = vadd.f32 %v6212, %v6428
  %v6485 = vadd.f32 %v6213, %v6429
  %v6486 = vadd.f32 %v6214, %v6430
  %v6487 = vadd.f32 %v6215, %v6383
  %v6488 = vadd.f32 %v6216, %v6431
  %v6489 = vadd.f32 %v6217, %v6432
  %v6490 = vadd.f32 %v6218, %v6433
  %v6491 = vadd.f32 %v6219, %v6434
  %v6492 = vadd.f32 %v6220, %v6393
  %v6493 = vadd.f32 %v6221, %v6435
  %v6494 = vadd.f32 %v6222, %v6436
  %v6495 = vadd.f32 %v6223, %v6437
  %v6496 = vadd.f32 %v6224, %v6438
  %v6497 = vadd.f32 %v6225, %v6403
  %v6498 = vadd.f32 %v6226, %v6439
  %v6499 = vadd.f32 %v6227, %v6440
  %v6500 = vadd.f32 %v6228, %v6441
  %v6501 = vadd.f32 %v6229, %v6442
  %v6502 = vadd.f32 %v6230, %v6413
  %v6503 = vadd.f32 %v6231, %v6443
  %v6504 = vadd.f32 %v6232, %v6444
  %v6505 = vadd.f32 %v6233, %v6445
  %v6506 = vadd.f32 %v6234, %v6446
  %6525 = vrot.lane.b32.xlu0 %v6477, 17
  %v6526 = vpop.permute.xlu0 %6525
  %6527 = vrot.lane.b32.xlu0 %v6478, 17
  %v6528 = vpop.permute.xlu0 %6527
  %6529 = vrot.lane.b32.xlu0 %v6479, 17
  %v6530 = vpop.permute.xlu0 %6529
  %6531 = vrot.lane.b32.xlu0 %v6482, 17
  %v6532 = vpop.permute.xlu0 %6531
  %6533 = vrot.lane.b32.xlu0 %v6483, 17
  %v6534 = vpop.permute.xlu0 %6533
  %6535 = vrot.lane.b32.xlu0 %v6484, 17
  %v6536 = vpop.permute.xlu0 %6535
  %6537 = vrot.lane.b32.xlu0 %v6487, 17
  %v6538 = vpop.permute.xlu0 %6537
  %6539 = vrot.lane.b32.xlu0 %v6488, 17
  %v6540 = vpop.permute.xlu0 %6539
  %6541 = vrot.lane.b32.xlu0 %v6489, 17
  %v6542 = vpop.permute.xlu0 %6541
  %6543 = vrot.lane.b32.xlu0 %v6492, 17
  %v6544 = vpop.permute.xlu0 %6543
  %6545 = vrot.lane.b32.xlu0 %v6493, 17
  %v6546 = vpop.permute.xlu0 %6545
  %6547 = vrot.lane.b32.xlu0 %v6494, 17
  %v6548 = vpop.permute.xlu0 %6547
  %6549 = vrot.lane.b32.xlu0 %v6497, 17
  %v6550 = vpop.permute.xlu0 %6549
  %6551 = vrot.lane.b32.xlu0 %v6498, 17
  %v6552 = vpop.permute.xlu0 %6551
  %6553 = vrot.lane.b32.xlu0 %v6499, 17
  %v6554 = vpop.permute.xlu0 %6553
  %6555 = vrot.lane.b32.xlu0 %v6502, 17
  %v6556 = vpop.permute.xlu0 %6555
  %6557 = vrot.lane.b32.xlu0 %v6503, 17
  %v6558 = vpop.permute.xlu0 %6557
  %6559 = vrot.lane.b32.xlu0 %v6504, 17
  %v6560 = vpop.permute.xlu0 %6559
  %v6561 = vsel %vm6293, %v6526, %v6528
  %v6562 = vsel %vm6293, %v6528, %v6530
  %v6563 = vsel %vm6293, %v6532, %v6534
  %v6564 = vsel %vm6293, %v6534, %v6536
  %v6565 = vsel %vm6293, %v6538, %v6540
  %v6566 = vsel %vm6293, %v6540, %v6542
  %v6567 = vsel %vm6293, %v6544, %v6546
  %v6568 = vsel %vm6293, %v6546, %v6548
  %v6569 = vsel %vm6293, %v6550, %v6552
  %v6570 = vsel %vm6293, %v6552, %v6554
  %v6571 = vsel %vm6293, %v6556, %v6558
  %v6572 = vsel %vm6293, %v6558, %v6560
  %6585 = vst [vmem:[%s9] sm:$0xff] %v6561
  %6586 = vst [vmem:[%s9 + $0x8] sm:$0xff] %v6562
  %6587 = vst [vmem:[%s9 + $0x10] sm:$0xff] %v6563
  %6588 = vst [vmem:[%s9 + $0x18] sm:$0xff] %v6564
  %6589 = vst [vmem:[%s9 + $0x20] sm:$0xff] %v6565
  %6590 = vst [vmem:[%s9 + $0x28] sm:$0xff] %v6566
  %6591 = vst [vmem:[%s9 + $0x30] sm:$0xff] %v6567
  %6592 = vst [vmem:[%s9 + $0x38] sm:$0xff] %v6568
  %6593 = vst [vmem:[%s9 + $0x40] sm:$0xff] %v6569
  %6594 = vst [vmem:[%s9 + $0x48] sm:$0xff] %v6570
  %6595 = vst [vmem:[%s9 + $0x50] sm:$0xff] %v6571
  %6596 = vst [vmem:[%s9 + $0x58] sm:$0xff] %v6572
  %6609 = vrot.lane.b32.xlu0 %v6480, 17
  %v6610 = vpop.permute.xlu0 %6609
  %6611 = vrot.lane.b32.xlu0 %v6481, 17
  %v6612 = vpop.permute.xlu0 %6611
  %6613 = vrot.lane.b32.xlu0 %v6485, 17
  %v6614 = vpop.permute.xlu0 %6613
  %6615 = vrot.lane.b32.xlu0 %v6486, 17
  %v6616 = vpop.permute.xlu0 %6615
  %6617 = vrot.lane.b32.xlu0 %v6490, 17
  %v6618 = vpop.permute.xlu0 %6617
  %6619 = vrot.lane.b32.xlu0 %v6491, 17
  %v6620 = vpop.permute.xlu0 %6619
  %6621 = vrot.lane.b32.xlu0 %v6495, 17
  %v6622 = vpop.permute.xlu0 %6621
  %6623 = vrot.lane.b32.xlu0 %v6496, 17
  %v6624 = vpop.permute.xlu0 %6623
  %6625 = vrot.lane.b32.xlu0 %v6500, 17
  %v6626 = vpop.permute.xlu0 %6625
  %6627 = vrot.lane.b32.xlu0 %v6501, 17
  %v6628 = vpop.permute.xlu0 %6627
  %6629 = vrot.lane.b32.xlu0 %v6505, 17
  %v6630 = vpop.permute.xlu0 %6629
  %6631 = vrot.lane.b32.xlu0 %v6506, 17
  %v6632 = vpop.permute.xlu0 %6631
  %v6633 = vsel %vm6293, %v6530, %v6610
  %v6634 = vsel %vm6293, %v6610, %v6612
  %v6635 = vsel %vm6293, %v6536, %v6614
  %v6636 = vsel %vm6293, %v6614, %v6616
  %v6637 = vsel %vm6293, %v6542, %v6618
  %v6638 = vsel %vm6293, %v6618, %v6620
  %v6639 = vsel %vm6293, %v6548, %v6622
  %v6640 = vsel %vm6293, %v6622, %v6624
  %v6641 = vsel %vm6293, %v6554, %v6626
  %v6642 = vsel %vm6293, %v6626, %v6628
  %v6643 = vsel %vm6293, %v6560, %v6630
  %v6644 = vsel %vm6293, %v6630, %v6632
  %s6657 = scalar_lea.vmem %s9, 96
  %6658 = vst [vmem:[%s6657] sm:$0xff] %v6633
  %6659 = vst [vmem:[%s6657 + $0x8] sm:$0xff] %v6634
  %6660 = vst [vmem:[%s6657 + $0x10] sm:$0xff] %v6635
  %6661 = vst [vmem:[%s6657 + $0x18] sm:$0xff] %v6636
  %6662 = vst [vmem:[%s6657 + $0x20] sm:$0xff] %v6637
  %6663 = vst [vmem:[%s6657 + $0x28] sm:$0xff] %v6638
  %6664 = vst [vmem:[%s6657 + $0x30] sm:$0xff] %v6639
  %6665 = vst [vmem:[%s6657 + $0x38] sm:$0xff] %v6640
  %6666 = vst [vmem:[%s6657 + $0x40] sm:$0xff] %v6641
  %6667 = vst [vmem:[%s6657 + $0x48] sm:$0xff] %v6642
  %6668 = vst [vmem:[%s6657 + $0x50] sm:$0xff] %v6643
  %6669 = vst [vmem:[%s6657 + $0x58] sm:$0xff] %v6644
  // Predicated region
  $region38: #{forward.1} parent=0 // pred_check
    _
  $region39: #{forward.1} parent=0 // pred_check_branch
    %6671 = sbr.rel (0) target = $region41
  $region40: #{forward.1} parent=0 // pred_region
    _
  $region41: #{forward.1} parent=0 // pred_fallthru
    _
  // Predicated region
  $region42: #{forward.1} parent=0 // pred_check
    _
  $region43: #{forward.1} parent=0 // pred_check_branch
    %6673 = sbr.rel (0) target = $region45
  $region44: #{forward.1} parent=0 // pred_region
    _
  $region45: #{forward.1} parent=0 // pred_fallthru
    _

</llo_original>
